<compile_context>
chip_gen: v7x
topology: tpu7x:2x2x1
jax: 0.10.0
libtpu: 0.0.40
codegen_flags: <defaults>
</compile_context>

<pallas_src>
import jax
import jax.numpy as jnp
from jax.experimental import pallas as pl
from jax.experimental.pallas import tpu as pltpu

LEAKY_SLOPE = 0.01   # nn.LeakyReLU default
BN_EPS = 1e-5        # nn.BatchNorm2d default
_LANE = 128          # lane width: channel padding granule
_SUB = 16            # bf16 sublane granule
_C0 = _SUB           # sublane-aligned column offset of the interior in mid scratch


def _round_up(x, m):
    return (x + m - 1) // m * m


def _double_conv_kernel(x_ref, w1_ref, s1_ref, b1_ref, w2_ref, s2_ref, b2_ref,
                        o_ref, mid_ref):
    # x_ref  : (1, H+2, W+2, Cin_p)   bf16 spatially pre-padded input (one batch element)
    # w1_ref : (3, 3, Cin_p, Cmid_p)  bf16 conv1 weights (HWIO)
    # s1/b1  : (1, Cmid_p)            f32 folded BN1 scale / shift (conv bias folded in)
    # w2_ref : (3, 3, Cmid_p, Cout_p) bf16
    # s2/b2  : (1, Cout_p)            f32
    # o_ref  : (1, H, W, Cout_p)      f32
    # mid_ref: (H+2, W_pad, Cmid_p)   bf16 scratch; interior at columns [_C0, _C0+W)
    H = o_ref.shape[1]
    W = o_ref.shape[2]
    Cmid = mid_ref.shape[-1]
    Cout = o_ref.shape[-1]
    W_pad = mid_ref.shape[1]

    # ---- conv1: 9 shifted (H,W,Cin)x(Cin,Cmid) bf16 MXU contractions, f32 acc ----
    # Taps are sliced straight from the (pipelined) input block ref; no full
    # value load + re-slice (keeps vregs free and avoids relayout copies).
    acc1 = jnp.zeros((H, W, Cmid), jnp.float32)
    for kh in range(3):
        for kw in range(3):
            patch = x_ref[0, kh:kh + H, kw:kw + W, :]
            acc1 = acc1 + jax.lax.dot_general(
                patch, w1_ref[kh, kw],
                dimension_numbers=(((2,), (0,)), ((), ())),
                preferred_element_type=jnp.float32)

    y1 = acc1 * s1_ref[...] + b1_ref[...]          # folded conv-bias + BN (f32)
    y1 = jnp.where(y1 > 0, y1, LEAKY_SLOPE * y1)   # LeakyReLU (f32)

    # ---- re-establish the thin zero halo around the conv2 read window ----
    # Done every step (cheap: 2 full-width rows + two 1-wide columns) instead
    # of zeroing the whole buffer; no program_id gate so it stays correct when
    # the batch axis is sharded across TensorCores (per-core scratch).
    zrow = jnp.zeros((1, W_pad, Cmid), mid_ref.dtype)
    zcol = jnp.zeros((H + 2, 1, Cmid), mid_ref.dtype)
    mid_ref[0:1, :, :] = zrow
    mid_ref[H + 1:H + 2, :, :] = zrow
    mid_ref[:, _C0 - 1:_C0, :] = zcol
    mid_ref[:, _C0 + W:_C0 + W + 1, :] = zcol

    # sublane-aligned, lane-dense interior store (bf16)
    mid_ref[1:H + 1, _C0:_C0 + W, :] = y1.astype(mid_ref.dtype)

    # ---- conv2: taps sliced directly from the scratch ref (no full reload) ----
    acc2 = jnp.zeros((H, W, Cout), jnp.float32)
    for kh in range(3):
        for kw in range(3):
            patch = mid_ref[kh:kh + H, _C0 - 1 + kw:_C0 - 1 + kw + W, :]
            acc2 = acc2 + jax.lax.dot_general(
                patch, w2_ref[kh, kw],
                dimension_numbers=(((2,), (0,)), ((), ())),
                preferred_element_type=jnp.float32)

    y2 = acc2 * s2_ref[...] + b2_ref[...]
    y2 = jnp.where(y2 > 0, y2, LEAKY_SLOPE * y2)
    o_ref[0] = y2.astype(o_ref.dtype)


def _fold_bn(conv_bias, gamma, beta, mean, var):
    scale = gamma / jnp.sqrt(var + BN_EPS)
    shift = scale * (conv_bias - mean) + beta
    return scale, shift


def _pad_last(a, target):
    pad = target - a.shape[-1]
    if pad == 0:
        return a
    return jnp.pad(a, [(0, 0)] * (a.ndim - 1) + [(0, pad)])


def double_conv(x_nchw, params):
    """DoubleConv forward. x_nchw: (N, Cin, H, W) float32. Returns (N, Cout, H, W) f32."""
    (w1, b1, g1, be1, m1, v1, w2, b2, g2, be2, m2, v2) = params
    N, Cin, H, W = x_nchw.shape
    Cmid = w1.shape[0]
    Cout = w2.shape[0]

    Cin_p = _round_up(Cin, _LANE)
    Cmid_p = _round_up(Cmid, _LANE)
    Cout_p = _round_up(Cout, _LANE)
    W_pad = _round_up(_C0 + W + 1, _SUB)

    # NCHW -> NHWC, bf16, spatial + channel zero padding (wrapper glue)
    x = jnp.transpose(x_nchw, (0, 2, 3, 1)).astype(jnp.bfloat16)
    x_pad = jnp.pad(x, ((0, 0), (1, 1), (1, 1), (0, Cin_p - Cin)))

    # PyTorch conv weight (O, I, kH, kW) -> HWIO, channel-padded, bf16
    w1_hwio = jnp.transpose(w1, (2, 3, 1, 0))
    w1_hwio = jnp.pad(w1_hwio, ((0, 0), (0, 0), (0, Cin_p - Cin),
                                (0, Cmid_p - Cmid))).astype(jnp.bfloat16)
    w2_hwio = jnp.transpose(w2, (2, 3, 1, 0))
    w2_hwio = jnp.pad(w2_hwio, ((0, 0), (0, 0), (0, Cmid_p - Cmid),
                                (0, Cout_p - Cout))).astype(jnp.bfloat16)

    s1, sh1 = _fold_bn(b1, g1, be1, m1, v1)
    s2, sh2 = _fold_bn(b2, g2, be2, m2, v2)
    s1 = _pad_last(s1, Cmid_p).reshape(1, Cmid_p).astype(jnp.float32)
    sh1 = _pad_last(sh1, Cmid_p).reshape(1, Cmid_p).astype(jnp.float32)
    s2 = _pad_last(s2, Cout_p).reshape(1, Cout_p).astype(jnp.float32)
    sh2 = _pad_last(sh2, Cout_p).reshape(1, Cout_p).astype(jnp.float32)

    # Constant index_map -> weights / BN params stay resident in VMEM across
    # all grid steps (no re-fetch per batch element).
    whole = lambda shp: pl.BlockSpec(shp, lambda n: (0,) * len(shp))

    # Scoped VMEM limit sized from the actual block footprint (+ headroom),
    # clamped to what every generation can physically provide (v7x: 64 MiB/TC).
    x_blk = (H + 2) * (W + 2) * Cin_p * 2
    o_blk = H * W * Cout_p * 4
    mid_b = (H + 2) * W_pad * Cmid_p * 2
    wts_b = 9 * (Cin_p * Cmid_p + Cmid_p * Cout_p) * 2
    acc_b = H * W * (Cmid_p + Cout_p) * 4
    vmem_limit = int(min(64 << 20,
                         max(16 << 20,
                             2 * (x_blk + o_blk + wts_b) + mid_b + acc_b + (8 << 20))))

    out_nhwc = pl.pallas_call(
        _double_conv_kernel,
        out_shape=jax.ShapeDtypeStruct((N, H, W, Cout_p), jnp.float32),
        grid_spec=pltpu.PrefetchScalarGridSpec(
            num_scalar_prefetch=0,
            grid=(N,),
            in_specs=[
                pl.BlockSpec((1, H + 2, W + 2, Cin_p), lambda n: (n, 0, 0, 0)),
                whole(w1_hwio.shape),
                whole(s1.shape),
                whole(sh1.shape),
                whole(w2_hwio.shape),
                whole(s2.shape),
                whole(sh2.shape),
            ],
            out_specs=pl.BlockSpec((1, H, W, Cout_p), lambda n: (n, 0, 0, 0)),
            scratch_shapes=[pltpu.VMEM((H + 2, W_pad, Cmid_p), jnp.bfloat16)],
        ),
        compiler_params=pltpu.CompilerParams(
            dimension_semantics=("parallel",),
            vmem_limit_bytes=vmem_limit),
    )(x_pad, w1_hwio, s1, sh1, w2_hwio, s2, sh2)

    out_nhwc = out_nhwc[:, :, :, :Cout]            # drop channel padding
    return jnp.transpose(out_nhwc, (0, 3, 1, 2))   # back to NCHW


def _reference(x_nchw, params):
    """Pure-JAX f32 reference (lax conv) for a correctness check."""
    (w1, b1, g1, be1, m1, v1, w2, b2, g2, be2, m2, v2) = params

    def conv_bn_lrelu(x, w, b, g, be, m, v):
        y = jax.lax.conv_general_dilated(
            x, w, window_strides=(1, 1), padding=((1, 1), (1, 1)),
            dimension_numbers=("NCHW", "OIHW", "NCHW"))
        y = y + b[None, :, None, None]
        y = (y - m[None, :, None, None]) / jnp.sqrt(v[None, :, None, None] + BN_EPS)
        y = y * g[None, :, None, None] + be[None, :, None, None]
        return jnp.where(y > 0, y, LEAKY_SLOPE * y)

    y = conv_bn_lrelu(x_nchw, w1, b1, g1, be1, m1, v1)
    y = conv_bn_lrelu(y, w2, b2, g2, be2, m2, v2)
    return y


def make_params(key, in_channels, mid_channels, out_channels):
    ks = jax.random.split(key, 12)
    w1 = 0.1 * jax.random.normal(ks[0], (mid_channels, in_channels, 3, 3), jnp.float32)
    b1 = 0.1 * jax.random.normal(ks[1], (mid_channels,), jnp.float32)
    g1 = 1.0 + 0.1 * jax.random.normal(ks[2], (mid_channels,), jnp.float32)
    be1 = 0.1 * jax.random.normal(ks[3], (mid_channels,), jnp.float32)
    m1 = 0.05 * jax.random.normal(ks[4], (mid_channels,), jnp.float32)
    v1 = 1.0 + 0.1 * jax.nn.softplus(jax.random.normal(ks[5], (mid_channels,), jnp.float32))

    w2 = 0.1 * jax.random.normal(ks[6], (out_channels, mid_channels, 3, 3), jnp.float32)
    b2 = 0.1 * jax.random.normal(ks[7], (out_channels,), jnp.float32)
    g2 = 1.0 + 0.1 * jax.random.normal(ks[8], (out_channels,), jnp.float32)
    be2 = 0.1 * jax.random.normal(ks[9], (out_channels,), jnp.float32)
    m2 = 0.05 * jax.random.normal(ks[10], (out_channels,), jnp.float32)
    v2 = 1.0 + 0.1 * jax.nn.softplus(jax.random.normal(ks[11], (out_channels,), jnp.float32))
    return (w1, b1, g1, be1, m1, v1, w2, b2, g2, be2, m2, v2)


if __name__ == "__main__":
    key = jax.random.PRNGKey(0)
    k_x, k_p = jax.random.split(key)

    N, Cin, H, W = 2, 4, 16, 16
    Cmid = Cout = 8  # mid_channels defaults to out_channels

    x = jax.random.normal(k_x, (N, Cin, H, W), jnp.float32)
    params = make_params(k_p, Cin, Cmid, Cout)

    fwd = jax.jit(double_conv)
    out = jax.block_until_ready(fwd(x, params))

    ref = _reference(x, params)
    assert out.shape == (N, Cout, H, W)
    err_max = float(jnp.max(jnp.abs(out - ref)))
    err_mean = float(jnp.mean(jnp.abs(out - ref)))
    # bf16 MXU inputs with f32 accumulation -> loose-ish elementwise tolerance.
    assert err_max < 1e-1 and err_mean < 2e-2, (err_max, err_mean)

    print("KERNEL_OK")
</pallas_src>

<mosaic_0001>
module attributes {stable_mosaic.version = 11 : i64} {
  func.func @_double_conv_kernel(%arg0: i32, %arg1: memref<1x18x18x128xbf16, #tpu.memory_space<vmem>>, %arg2: memref<3x3x128x128xbf16, #tpu.memory_space<vmem>>, %arg3: memref<1x128xf32, #tpu.memory_space<vmem>>, %arg4: memref<1x128xf32, #tpu.memory_space<vmem>>, %arg5: memref<3x3x128x128xbf16, #tpu.memory_space<vmem>>, %arg6: memref<1x128xf32, #tpu.memory_space<vmem>>, %arg7: memref<1x128xf32, #tpu.memory_space<vmem>>, %arg8: memref<1x16x16x128xf32, #tpu.memory_space<vmem>>, %arg9: memref<18x48x128xbf16, #tpu.memory_space<vmem>>) attributes {dimension_semantics = [#tpu.dimension_semantics<parallel>], iteration_bounds = array<i64: 2>, scalar_prefetch = 0 : i64, scratch_operands = 1 : i64, tpu.core_type = #tpu.core_type<tc>, window_params = [{transform_indices = @transform_0, window_bounds = array<i64: 1, 18, 18, 128>}, {pipeline_mode = #tpu.pipeline_mode<synchronous>, transform_indices = @transform_1, window_bounds = array<i64: 3, 3, 128, 128>}, {pipeline_mode = #tpu.pipeline_mode<synchronous>, transform_indices = @transform_2, window_bounds = array<i64: 1, 128>}, {pipeline_mode = #tpu.pipeline_mode<synchronous>, transform_indices = @transform_3, window_bounds = array<i64: 1, 128>}, {pipeline_mode = #tpu.pipeline_mode<synchronous>, transform_indices = @transform_4, window_bounds = array<i64: 3, 3, 128, 128>}, {pipeline_mode = #tpu.pipeline_mode<synchronous>, transform_indices = @transform_5, window_bounds = array<i64: 1, 128>}, {pipeline_mode = #tpu.pipeline_mode<synchronous>, transform_indices = @transform_6, window_bounds = array<i64: 1, 128>}, {transform_indices = @transform_7, window_bounds = array<i64: 1, 16, 16, 128>}]} {
    %cst = arith.constant 0.000000e+00 : f32
    %0 = vector.broadcast %cst : f32 to vector<16x16x128xf32>
    %c0 = arith.constant 0 : index
    %c0_0 = arith.constant 0 : index
    %c0_1 = arith.constant 0 : index
    %c0_2 = arith.constant 0 : index
    %1 = vector.load %arg1[%c0, %c0_0, %c0_1, %c0_2] : memref<1x18x18x128xbf16, #tpu.memory_space<vmem>>, vector<1x16x16x128xbf16>
    %2 = vector.shape_cast %1 : vector<1x16x16x128xbf16> to vector<16x16x128xbf16>
    %c0_3 = arith.constant 0 : index
    %c0_4 = arith.constant 0 : index
    %c0_5 = arith.constant 0 : index
    %c0_6 = arith.constant 0 : index
    %3 = vector.load %arg2[%c0_3, %c0_4, %c0_5, %c0_6] : memref<3x3x128x128xbf16, #tpu.memory_space<vmem>>, vector<1x1x128x128xbf16>
    %4 = vector.shape_cast %3 : vector<1x1x128x128xbf16> to vector<128x128xbf16>
    %cst_7 = arith.constant dense<0.000000e+00> : vector<16x16x128xf32>
    %5 = tpu.matmul %2, %4, %cst_7 {dimension_numbers = #tpu.dot_dimension_numbers<[2], [0], [0, 1], [1], [0, 0, 0, 1, 1, 1], [], []>} : vector<16x16x128xbf16>, vector<128x128xbf16>, vector<16x16x128xf32> -> vector<16x16x128xf32>
    %6 = arith.addf %0, %5 : vector<16x16x128xf32>
    %c0_8 = arith.constant 0 : index
    %c0_9 = arith.constant 0 : index
    %c1 = arith.constant 1 : index
    %c0_10 = arith.constant 0 : index
    %7 = vector.load %arg1[%c0_8, %c0_9, %c1, %c0_10] : memref<1x18x18x128xbf16, #tpu.memory_space<vmem>>, vector<1x16x16x128xbf16>
    %8 = vector.shape_cast %7 : vector<1x16x16x128xbf16> to vector<16x16x128xbf16>
    %c0_11 = arith.constant 0 : index
    %c1_12 = arith.constant 1 : index
    %c0_13 = arith.constant 0 : index
    %c0_14 = arith.constant 0 : index
    %9 = vector.load %arg2[%c0_11, %c1_12, %c0_13, %c0_14] : memref<3x3x128x128xbf16, #tpu.memory_space<vmem>>, vector<1x1x128x128xbf16>
    %10 = vector.shape_cast %9 : vector<1x1x128x128xbf16> to vector<128x128xbf16>
    %cst_15 = arith.constant dense<0.000000e+00> : vector<16x16x128xf32>
    %11 = tpu.matmul %8, %10, %cst_15 {dimension_numbers = #tpu.dot_dimension_numbers<[2], [0], [0, 1], [1], [0, 0, 0, 1, 1, 1], [], []>} : vector<16x16x128xbf16>, vector<128x128xbf16>, vector<16x16x128xf32> -> vector<16x16x128xf32>
    %12 = arith.addf %6, %11 : vector<16x16x128xf32>
    %c0_16 = arith.constant 0 : index
    %c0_17 = arith.constant 0 : index
    %c2 = arith.constant 2 : index
    %c0_18 = arith.constant 0 : index
    %13 = vector.load %arg1[%c0_16, %c0_17, %c2, %c0_18] : memref<1x18x18x128xbf16, #tpu.memory_space<vmem>>, vector<1x16x16x128xbf16>
    %14 = vector.shape_cast %13 : vector<1x16x16x128xbf16> to vector<16x16x128xbf16>
    %c0_19 = arith.constant 0 : index
    %c2_20 = arith.constant 2 : index
    %c0_21 = arith.constant 0 : index
    %c0_22 = arith.constant 0 : index
    %15 = vector.load %arg2[%c0_19, %c2_20, %c0_21, %c0_22] : memref<3x3x128x128xbf16, #tpu.memory_space<vmem>>, vector<1x1x128x128xbf16>
    %16 = vector.shape_cast %15 : vector<1x1x128x128xbf16> to vector<128x128xbf16>
    %cst_23 = arith.constant dense<0.000000e+00> : vector<16x16x128xf32>
    %17 = tpu.matmul %14, %16, %cst_23 {dimension_numbers = #tpu.dot_dimension_numbers<[2], [0], [0, 1], [1], [0, 0, 0, 1, 1, 1], [], []>} : vector<16x16x128xbf16>, vector<128x128xbf16>, vector<16x16x128xf32> -> vector<16x16x128xf32>
    %18 = arith.addf %12, %17 : vector<16x16x128xf32>
    %c0_24 = arith.constant 0 : index
    %c1_25 = arith.constant 1 : index
    %c0_26 = arith.constant 0 : index
    %c0_27 = arith.constant 0 : index
    %19 = vector.load %arg1[%c0_24, %c1_25, %c0_26, %c0_27] : memref<1x18x18x128xbf16, #tpu.memory_space<vmem>>, vector<1x16x16x128xbf16>
    %20 = vector.shape_cast %19 : vector<1x16x16x128xbf16> to vector<16x16x128xbf16>
    %c1_28 = arith.constant 1 : index
    %c0_29 = arith.constant 0 : index
    %c0_30 = arith.constant 0 : index
    %c0_31 = arith.constant 0 : index
    %21 = vector.load %arg2[%c1_28, %c0_29, %c0_30, %c0_31] : memref<3x3x128x128xbf16, #tpu.memory_space<vmem>>, vector<1x1x128x128xbf16>
    %22 = vector.shape_cast %21 : vector<1x1x128x128xbf16> to vector<128x128xbf16>
    %cst_32 = arith.constant dense<0.000000e+00> : vector<16x16x128xf32>
    %23 = tpu.matmul %20, %22, %cst_32 {dimension_numbers = #tpu.dot_dimension_numbers<[2], [0], [0, 1], [1], [0, 0, 0, 1, 1, 1], [], []>} : vector<16x16x128xbf16>, vector<128x128xbf16>, vector<16x16x128xf32> -> vector<16x16x128xf32>
    %24 = arith.addf %18, %23 : vector<16x16x128xf32>
    %c0_33 = arith.constant 0 : index
    %c1_34 = arith.constant 1 : index
    %c1_35 = arith.constant 1 : index
    %c0_36 = arith.constant 0 : index
    %25 = vector.load %arg1[%c0_33, %c1_34, %c1_35, %c0_36] : memref<1x18x18x128xbf16, #tpu.memory_space<vmem>>, vector<1x16x16x128xbf16>
    %26 = vector.shape_cast %25 : vector<1x16x16x128xbf16> to vector<16x16x128xbf16>
    %c1_37 = arith.constant 1 : index
    %c1_38 = arith.constant 1 : index
    %c0_39 = arith.constant 0 : index
    %c0_40 = arith.constant 0 : index
    %27 = vector.load %arg2[%c1_37, %c1_38, %c0_39, %c0_40] : memref<3x3x128x128xbf16, #tpu.memory_space<vmem>>, vector<1x1x128x128xbf16>
    %28 = vector.shape_cast %27 : vector<1x1x128x128xbf16> to vector<128x128xbf16>
    %cst_41 = arith.constant dense<0.000000e+00> : vector<16x16x128xf32>
    %29 = tpu.matmul %26, %28, %cst_41 {dimension_numbers = #tpu.dot_dimension_numbers<[2], [0], [0, 1], [1], [0, 0, 0, 1, 1, 1], [], []>} : vector<16x16x128xbf16>, vector<128x128xbf16>, vector<16x16x128xf32> -> vector<16x16x128xf32>
    %30 = arith.addf %24, %29 : vector<16x16x128xf32>
    %c0_42 = arith.constant 0 : index
    %c1_43 = arith.constant 1 : index
    %c2_44 = arith.constant 2 : index
    %c0_45 = arith.constant 0 : index
    %31 = vector.load %arg1[%c0_42, %c1_43, %c2_44, %c0_45] : memref<1x18x18x128xbf16, #tpu.memory_space<vmem>>, vector<1x16x16x128xbf16>
    %32 = vector.shape_cast %31 : vector<1x16x16x128xbf16> to vector<16x16x128xbf16>
    %c1_46 = arith.constant 1 : index
    %c2_47 = arith.constant 2 : index
    %c0_48 = arith.constant 0 : index
    %c0_49 = arith.constant 0 : index
    %33 = vector.load %arg2[%c1_46, %c2_47, %c0_48, %c0_49] : memref<3x3x128x128xbf16, #tpu.memory_space<vmem>>, vector<1x1x128x128xbf16>
    %34 = vector.shape_cast %33 : vector<1x1x128x128xbf16> to vector<128x128xbf16>
    %cst_50 = arith.constant dense<0.000000e+00> : vector<16x16x128xf32>
    %35 = tpu.matmul %32, %34, %cst_50 {dimension_numbers = #tpu.dot_dimension_numbers<[2], [0], [0, 1], [1], [0, 0, 0, 1, 1, 1], [], []>} : vector<16x16x128xbf16>, vector<128x128xbf16>, vector<16x16x128xf32> -> vector<16x16x128xf32>
    %36 = arith.addf %30, %35 : vector<16x16x128xf32>
    %c0_51 = arith.constant 0 : index
    %c2_52 = arith.constant 2 : index
    %c0_53 = arith.constant 0 : index
    %c0_54 = arith.constant 0 : index
    %37 = vector.load %arg1[%c0_51, %c2_52, %c0_53, %c0_54] : memref<1x18x18x128xbf16, #tpu.memory_space<vmem>>, vector<1x16x16x128xbf16>
    %38 = vector.shape_cast %37 : vector<1x16x16x128xbf16> to vector<16x16x128xbf16>
    %c2_55 = arith.constant 2 : index
    %c0_56 = arith.constant 0 : index
    %c0_57 = arith.constant 0 : index
    %c0_58 = arith.constant 0 : index
    %39 = vector.load %arg2[%c2_55, %c0_56, %c0_57, %c0_58] : memref<3x3x128x128xbf16, #tpu.memory_space<vmem>>, vector<1x1x128x128xbf16>
    %40 = vector.shape_cast %39 : vector<1x1x128x128xbf16> to vector<128x128xbf16>
    %cst_59 = arith.constant dense<0.000000e+00> : vector<16x16x128xf32>
    %41 = tpu.matmul %38, %40, %cst_59 {dimension_numbers = #tpu.dot_dimension_numbers<[2], [0], [0, 1], [1], [0, 0, 0, 1, 1, 1], [], []>} : vector<16x16x128xbf16>, vector<128x128xbf16>, vector<16x16x128xf32> -> vector<16x16x128xf32>
    %42 = arith.addf %36, %41 : vector<16x16x128xf32>
    %c0_60 = arith.constant 0 : index
    %c2_61 = arith.constant 2 : index
    %c1_62 = arith.constant 1 : index
    %c0_63 = arith.constant 0 : index
    %43 = vector.load %arg1[%c0_60, %c2_61, %c1_62, %c0_63] : memref<1x18x18x128xbf16, #tpu.memory_space<vmem>>, vector<1x16x16x128xbf16>
    %44 = vector.shape_cast %43 : vector<1x16x16x128xbf16> to vector<16x16x128xbf16>
    %c2_64 = arith.constant 2 : index
    %c1_65 = arith.constant 1 : index
    %c0_66 = arith.constant 0 : index
    %c0_67 = arith.constant 0 : index
    %45 = vector.load %arg2[%c2_64, %c1_65, %c0_66, %c0_67] : memref<3x3x128x128xbf16, #tpu.memory_space<vmem>>, vector<1x1x128x128xbf16>
    %46 = vector.shape_cast %45 : vector<1x1x128x128xbf16> to vector<128x128xbf16>
    %cst_68 = arith.constant dense<0.000000e+00> : vector<16x16x128xf32>
    %47 = tpu.matmul %44, %46, %cst_68 {dimension_numbers = #tpu.dot_dimension_numbers<[2], [0], [0, 1], [1], [0, 0, 0, 1, 1, 1], [], []>} : vector<16x16x128xbf16>, vector<128x128xbf16>, vector<16x16x128xf32> -> vector<16x16x128xf32>
    %48 = arith.addf %42, %47 : vector<16x16x128xf32>
    %c0_69 = arith.constant 0 : index
    %c2_70 = arith.constant 2 : index
    %c2_71 = arith.constant 2 : index
    %c0_72 = arith.constant 0 : index
    %49 = vector.load %arg1[%c0_69, %c2_70, %c2_71, %c0_72] : memref<1x18x18x128xbf16, #tpu.memory_space<vmem>>, vector<1x16x16x128xbf16>
    %50 = vector.shape_cast %49 : vector<1x16x16x128xbf16> to vector<16x16x128xbf16>
    %c2_73 = arith.constant 2 : index
    %c2_74 = arith.constant 2 : index
    %c0_75 = arith.constant 0 : index
    %c0_76 = arith.constant 0 : index
    %51 = vector.load %arg2[%c2_73, %c2_74, %c0_75, %c0_76] : memref<3x3x128x128xbf16, #tpu.memory_space<vmem>>, vector<1x1x128x128xbf16>
    %52 = vector.shape_cast %51 : vector<1x1x128x128xbf16> to vector<128x128xbf16>
    %cst_77 = arith.constant dense<0.000000e+00> : vector<16x16x128xf32>
    %53 = tpu.matmul %50, %52, %cst_77 {dimension_numbers = #tpu.dot_dimension_numbers<[2], [0], [0, 1], [1], [0, 0, 0, 1, 1, 1], [], []>} : vector<16x16x128xbf16>, vector<128x128xbf16>, vector<16x16x128xf32> -> vector<16x16x128xf32>
    %54 = arith.addf %48, %53 : vector<16x16x128xf32>
    %c0_78 = arith.constant 0 : index
    %c0_79 = arith.constant 0 : index
    %55 = vector.load %arg3[%c0_78, %c0_79] : memref<1x128xf32, #tpu.memory_space<vmem>>, vector<1x128xf32>
    %56 = vector.shape_cast %55 : vector<1x128xf32> to vector<1x1x128xf32>
    %57 = vector.broadcast %56 : vector<1x1x128xf32> to vector<16x16x128xf32>
    %58 = arith.mulf %54, %57 : vector<16x16x128xf32>
    %c0_80 = arith.constant 0 : index
    %c0_81 = arith.constant 0 : index
    %59 = vector.load %arg4[%c0_80, %c0_81] : memref<1x128xf32, #tpu.memory_space<vmem>>, vector<1x128xf32>
    %60 = vector.shape_cast %59 : vector<1x128xf32> to vector<1x1x128xf32>
    %61 = vector.broadcast %60 : vector<1x1x128xf32> to vector<16x16x128xf32>
    %62 = arith.addf %58, %61 : vector<16x16x128xf32>
    %cst_82 = arith.constant 0.000000e+00 : f32
    %63 = vector.broadcast %cst_82 : f32 to vector<16x16x128xf32>
    %64 = arith.cmpf ogt, %62, %63 : vector<16x16x128xf32>
    %cst_83 = arith.constant 0.00999999977 : f32
    %65 = vector.broadcast %cst_83 : f32 to vector<16x16x128xf32>
    %66 = arith.mulf %65, %62 : vector<16x16x128xf32>
    %67 = arith.select %64, %62, %66 : vector<16x16x128xi1>, vector<16x16x128xf32>
    %cst_84 = arith.constant 0.000000e+00 : bf16
    %68 = vector.broadcast %cst_84 : bf16 to vector<1x48x128xbf16>
    %cst_85 = arith.constant 0.000000e+00 : bf16
    %69 = vector.broadcast %cst_85 : bf16 to vector<18x1x128xbf16>
    %c0_86 = arith.constant 0 : index
    %c0_87 = arith.constant 0 : index
    %c0_88 = arith.constant 0 : index
    %70 = vector.load %arg9[%c0_86, %c0_87, %c0_88] : memref<18x48x128xbf16, #tpu.memory_space<vmem>>, vector<1x48x128xbf16>
    tpu.vector_store %arg9[%c0_86, %c0_87, %c0_88], %68 {strides = array<i32>} : memref<18x48x128xbf16, #tpu.memory_space<vmem>>, vector<1x48x128xbf16>,
    %c17 = arith.constant 17 : index
    %c0_89 = arith.constant 0 : index
    %c0_90 = arith.constant 0 : index
    %71 = vector.load %arg9[%c17, %c0_89, %c0_90] : memref<18x48x128xbf16, #tpu.memory_space<vmem>>, vector<1x48x128xbf16>
    tpu.vector_store %arg9[%c17, %c0_89, %c0_90], %68 {strides = array<i32>} : memref<18x48x128xbf16, #tpu.memory_space<vmem>>, vector<1x48x128xbf16>,
    %c0_91 = arith.constant 0 : index
    %c15 = arith.constant 15 : index
    %c0_92 = arith.constant 0 : index
    %72 = vector.load %arg9[%c0_91, %c15, %c0_92] : memref<18x48x128xbf16, #tpu.memory_space<vmem>>, vector<18x1x128xbf16>
    tpu.vector_store %arg9[%c0_91, %c15, %c0_92], %69 {strides = array<i32>} : memref<18x48x128xbf16, #tpu.memory_space<vmem>>, vector<18x1x128xbf16>,
    %c0_93 = arith.constant 0 : index
    %c32 = arith.constant 32 : index
    %c0_94 = arith.constant 0 : index
    %73 = vector.load %arg9[%c0_93, %c32, %c0_94] : memref<18x48x128xbf16, #tpu.memory_space<vmem>>, vector<18x1x128xbf16>
    tpu.vector_store %arg9[%c0_93, %c32, %c0_94], %69 {strides = array<i32>} : memref<18x48x128xbf16, #tpu.memory_space<vmem>>, vector<18x1x128xbf16>,
    %74 = arith.truncf %67 : vector<16x16x128xf32> to vector<16x16x128xbf16>
    %c1_95 = arith.constant 1 : index
    %c16 = arith.constant 16 : index
    %c0_96 = arith.constant 0 : index
    %75 = vector.load %arg9[%c1_95, %c16, %c0_96] : memref<18x48x128xbf16, #tpu.memory_space<vmem>>, vector<16x16x128xbf16>
    tpu.vector_store %arg9[%c1_95, %c16, %c0_96], %74 {strides = array<i32>} : memref<18x48x128xbf16, #tpu.memory_space<vmem>>, vector<16x16x128xbf16>,
    %cst_97 = arith.constant 0.000000e+00 : f32
    %76 = vector.broadcast %cst_97 : f32 to vector<16x16x128xf32>
    %c0_98 = arith.constant 0 : index
    %c15_99 = arith.constant 15 : index
    %c0_100 = arith.constant 0 : index
    %77 = vector.load %arg9[%c0_98, %c15_99, %c0_100] : memref<18x48x128xbf16, #tpu.memory_space<vmem>>, vector<16x16x128xbf16>
    %c0_101 = arith.constant 0 : index
    %c0_102 = arith.constant 0 : index
    %c0_103 = arith.constant 0 : index
    %c0_104 = arith.constant 0 : index
    %78 = vector.load %arg5[%c0_101, %c0_102, %c0_103, %c0_104] : memref<3x3x128x128xbf16, #tpu.memory_space<vmem>>, vector<1x1x128x128xbf16>
    %79 = vector.shape_cast %78 : vector<1x1x128x128xbf16> to vector<128x128xbf16>
    %cst_105 = arith.constant dense<0.000000e+00> : vector<16x16x128xf32>
    %80 = tpu.matmul %77, %79, %cst_105 {dimension_numbers = #tpu.dot_dimension_numbers<[2], [0], [0, 1], [1], [0, 0, 0, 1, 1, 1], [], []>} : vector<16x16x128xbf16>, vector<128x128xbf16>, vector<16x16x128xf32> -> vector<16x16x128xf32>
    %81 = arith.addf %76, %80 : vector<16x16x128xf32>
    %c0_106 = arith.constant 0 : index
    %c16_107 = arith.constant 16 : index
    %c0_108 = arith.constant 0 : index
    %82 = vector.load %arg9[%c0_106, %c16_107, %c0_108] : memref<18x48x128xbf16, #tpu.memory_space<vmem>>, vector<16x16x128xbf16>
    %c0_109 = arith.constant 0 : index
    %c1_110 = arith.constant 1 : index
    %c0_111 = arith.constant 0 : index
    %c0_112 = arith.constant 0 : index
    %83 = vector.load %arg5[%c0_109, %c1_110, %c0_111, %c0_112] : memref<3x3x128x128xbf16, #tpu.memory_space<vmem>>, vector<1x1x128x128xbf16>
    %84 = vector.shape_cast %83 : vector<1x1x128x128xbf16> to vector<128x128xbf16>
    %cst_113 = arith.constant dense<0.000000e+00> : vector<16x16x128xf32>
    %85 = tpu.matmul %82, %84, %cst_113 {dimension_numbers = #tpu.dot_dimension_numbers<[2], [0], [0, 1], [1], [0, 0, 0, 1, 1, 1], [], []>} : vector<16x16x128xbf16>, vector<128x128xbf16>, vector<16x16x128xf32> -> vector<16x16x128xf32>
    %86 = arith.addf %81, %85 : vector<16x16x128xf32>
    %c0_114 = arith.constant 0 : index
    %c17_115 = arith.constant 17 : index
    %c0_116 = arith.constant 0 : index
    %87 = vector.load %arg9[%c0_114, %c17_115, %c0_116] : memref<18x48x128xbf16, #tpu.memory_space<vmem>>, vector<16x16x128xbf16>
    %c0_117 = arith.constant 0 : index
    %c2_118 = arith.constant 2 : index
    %c0_119 = arith.constant 0 : index
    %c0_120 = arith.constant 0 : index
    %88 = vector.load %arg5[%c0_117, %c2_118, %c0_119, %c0_120] : memref<3x3x128x128xbf16, #tpu.memory_space<vmem>>, vector<1x1x128x128xbf16>
    %89 = vector.shape_cast %88 : vector<1x1x128x128xbf16> to vector<128x128xbf16>
    %cst_121 = arith.constant dense<0.000000e+00> : vector<16x16x128xf32>
    %90 = tpu.matmul %87, %89, %cst_121 {dimension_numbers = #tpu.dot_dimension_numbers<[2], [0], [0, 1], [1], [0, 0, 0, 1, 1, 1], [], []>} : vector<16x16x128xbf16>, vector<128x128xbf16>, vector<16x16x128xf32> -> vector<16x16x128xf32>
    %91 = arith.addf %86, %90 : vector<16x16x128xf32>
    %c1_122 = arith.constant 1 : index
    %c15_123 = arith.constant 15 : index
    %c0_124 = arith.constant 0 : index
    %92 = vector.load %arg9[%c1_122, %c15_123, %c0_124] : memref<18x48x128xbf16, #tpu.memory_space<vmem>>, vector<16x16x128xbf16>
    %c1_125 = arith.constant 1 : index
    %c0_126 = arith.constant 0 : index
    %c0_127 = arith.constant 0 : index
    %c0_128 = arith.constant 0 : index
    %93 = vector.load %arg5[%c1_125, %c0_126, %c0_127, %c0_128] : memref<3x3x128x128xbf16, #tpu.memory_space<vmem>>, vector<1x1x128x128xbf16>
    %94 = vector.shape_cast %93 : vector<1x1x128x128xbf16> to vector<128x128xbf16>
    %cst_129 = arith.constant dense<0.000000e+00> : vector<16x16x128xf32>
    %95 = tpu.matmul %92, %94, %cst_129 {dimension_numbers = #tpu.dot_dimension_numbers<[2], [0], [0, 1], [1], [0, 0, 0, 1, 1, 1], [], []>} : vector<16x16x128xbf16>, vector<128x128xbf16>, vector<16x16x128xf32> -> vector<16x16x128xf32>
    %96 = arith.addf %91, %95 : vector<16x16x128xf32>
    %c1_130 = arith.constant 1 : index
    %c16_131 = arith.constant 16 : index
    %c0_132 = arith.constant 0 : index
    %97 = vector.load %arg9[%c1_130, %c16_131, %c0_132] : memref<18x48x128xbf16, #tpu.memory_space<vmem>>, vector<16x16x128xbf16>
    %c1_133 = arith.constant 1 : index
    %c1_134 = arith.constant 1 : index
    %c0_135 = arith.constant 0 : index
    %c0_136 = arith.constant 0 : index
    %98 = vector.load %arg5[%c1_133, %c1_134, %c0_135, %c0_136] : memref<3x3x128x128xbf16, #tpu.memory_space<vmem>>, vector<1x1x128x128xbf16>
    %99 = vector.shape_cast %98 : vector<1x1x128x128xbf16> to vector<128x128xbf16>
    %cst_137 = arith.constant dense<0.000000e+00> : vector<16x16x128xf32>
    %100 = tpu.matmul %97, %99, %cst_137 {dimension_numbers = #tpu.dot_dimension_numbers<[2], [0], [0, 1], [1], [0, 0, 0, 1, 1, 1], [], []>} : vector<16x16x128xbf16>, vector<128x128xbf16>, vector<16x16x128xf32> -> vector<16x16x128xf32>
    %101 = arith.addf %96, %100 : vector<16x16x128xf32>
    %c1_138 = arith.constant 1 : index
    %c17_139 = arith.constant 17 : index
    %c0_140 = arith.constant 0 : index
    %102 = vector.load %arg9[%c1_138, %c17_139, %c0_140] : memref<18x48x128xbf16, #tpu.memory_space<vmem>>, vector<16x16x128xbf16>
    %c1_141 = arith.constant 1 : index
    %c2_142 = arith.constant 2 : index
    %c0_143 = arith.constant 0 : index
    %c0_144 = arith.constant 0 : index
    %103 = vector.load %arg5[%c1_141, %c2_142, %c0_143, %c0_144] : memref<3x3x128x128xbf16, #tpu.memory_space<vmem>>, vector<1x1x128x128xbf16>
    %104 = vector.shape_cast %103 : vector<1x1x128x128xbf16> to vector<128x128xbf16>
    %cst_145 = arith.constant dense<0.000000e+00> : vector<16x16x128xf32>
    %105 = tpu.matmul %102, %104, %cst_145 {dimension_numbers = #tpu.dot_dimension_numbers<[2], [0], [0, 1], [1], [0, 0, 0, 1, 1, 1], [], []>} : vector<16x16x128xbf16>, vector<128x128xbf16>, vector<16x16x128xf32> -> vector<16x16x128xf32>
    %106 = arith.addf %101, %105 : vector<16x16x128xf32>
    %c2_146 = arith.constant 2 : index
    %c15_147 = arith.constant 15 : index
    %c0_148 = arith.constant 0 : index
    %107 = vector.load %arg9[%c2_146, %c15_147, %c0_148] : memref<18x48x128xbf16, #tpu.memory_space<vmem>>, vector<16x16x128xbf16>
    %c2_149 = arith.constant 2 : index
    %c0_150 = arith.constant 0 : index
    %c0_151 = arith.constant 0 : index
    %c0_152 = arith.constant 0 : index
    %108 = vector.load %arg5[%c2_149, %c0_150, %c0_151, %c0_152] : memref<3x3x128x128xbf16, #tpu.memory_space<vmem>>, vector<1x1x128x128xbf16>
    %109 = vector.shape_cast %108 : vector<1x1x128x128xbf16> to vector<128x128xbf16>
    %cst_153 = arith.constant dense<0.000000e+00> : vector<16x16x128xf32>
    %110 = tpu.matmul %107, %109, %cst_153 {dimension_numbers = #tpu.dot_dimension_numbers<[2], [0], [0, 1], [1], [0, 0, 0, 1, 1, 1], [], []>} : vector<16x16x128xbf16>, vector<128x128xbf16>, vector<16x16x128xf32> -> vector<16x16x128xf32>
    %111 = arith.addf %106, %110 : vector<16x16x128xf32>
    %c2_154 = arith.constant 2 : index
    %c16_155 = arith.constant 16 : index
    %c0_156 = arith.constant 0 : index
    %112 = vector.load %arg9[%c2_154, %c16_155, %c0_156] : memref<18x48x128xbf16, #tpu.memory_space<vmem>>, vector<16x16x128xbf16>
    %c2_157 = arith.constant 2 : index
    %c1_158 = arith.constant 1 : index
    %c0_159 = arith.constant 0 : index
    %c0_160 = arith.constant 0 : index
    %113 = vector.load %arg5[%c2_157, %c1_158, %c0_159, %c0_160] : memref<3x3x128x128xbf16, #tpu.memory_space<vmem>>, vector<1x1x128x128xbf16>
    %114 = vector.shape_cast %113 : vector<1x1x128x128xbf16> to vector<128x128xbf16>
    %cst_161 = arith.constant dense<0.000000e+00> : vector<16x16x128xf32>
    %115 = tpu.matmul %112, %114, %cst_161 {dimension_numbers = #tpu.dot_dimension_numbers<[2], [0], [0, 1], [1], [0, 0, 0, 1, 1, 1], [], []>} : vector<16x16x128xbf16>, vector<128x128xbf16>, vector<16x16x128xf32> -> vector<16x16x128xf32>
    %116 = arith.addf %111, %115 : vector<16x16x128xf32>
    %c2_162 = arith.constant 2 : index
    %c17_163 = arith.constant 17 : index
    %c0_164 = arith.constant 0 : index
    %117 = vector.load %arg9[%c2_162, %c17_163, %c0_164] : memref<18x48x128xbf16, #tpu.memory_space<vmem>>, vector<16x16x128xbf16>
    %c2_165 = arith.constant 2 : index
    %c2_166 = arith.constant 2 : index
    %c0_167 = arith.constant 0 : index
    %c0_168 = arith.constant 0 : index
    %118 = vector.load %arg5[%c2_165, %c2_166, %c0_167, %c0_168] : memref<3x3x128x128xbf16, #tpu.memory_space<vmem>>, vector<1x1x128x128xbf16>
    %119 = vector.shape_cast %118 : vector<1x1x128x128xbf16> to vector<128x128xbf16>
    %cst_169 = arith.constant dense<0.000000e+00> : vector<16x16x128xf32>
    %120 = tpu.matmul %117, %119, %cst_169 {dimension_numbers = #tpu.dot_dimension_numbers<[2], [0], [0, 1], [1], [0, 0, 0, 1, 1, 1], [], []>} : vector<16x16x128xbf16>, vector<128x128xbf16>, vector<16x16x128xf32> -> vector<16x16x128xf32>
    %121 = arith.addf %116, %120 : vector<16x16x128xf32>
    %c0_170 = arith.constant 0 : index
    %c0_171 = arith.constant 0 : index
    %122 = vector.load %arg6[%c0_170, %c0_171] : memref<1x128xf32, #tpu.memory_space<vmem>>, vector<1x128xf32>
    %123 = vector.shape_cast %122 : vector<1x128xf32> to vector<1x1x128xf32>
    %124 = vector.broadcast %123 : vector<1x1x128xf32> to vector<16x16x128xf32>
    %125 = arith.mulf %121, %124 : vector<16x16x128xf32>
    %c0_172 = arith.constant 0 : index
    %c0_173 = arith.constant 0 : index
    %126 = vector.load %arg7[%c0_172, %c0_173] : memref<1x128xf32, #tpu.memory_space<vmem>>, vector<1x128xf32>
    %127 = vector.shape_cast %126 : vector<1x128xf32> to vector<1x1x128xf32>
    %128 = vector.broadcast %127 : vector<1x1x128xf32> to vector<16x16x128xf32>
    %129 = arith.addf %125, %128 : vector<16x16x128xf32>
    %cst_174 = arith.constant 0.000000e+00 : f32
    %130 = vector.broadcast %cst_174 : f32 to vector<16x16x128xf32>
    %131 = arith.cmpf ogt, %129, %130 : vector<16x16x128xf32>
    %cst_175 = arith.constant 0.00999999977 : f32
    %132 = vector.broadcast %cst_175 : f32 to vector<16x16x128xf32>
    %133 = arith.mulf %132, %129 : vector<16x16x128xf32>
    %134 = arith.select %131, %129, %133 : vector<16x16x128xi1>, vector<16x16x128xf32>
    %c0_176 = arith.constant 0 : index
    %c0_177 = arith.constant 0 : index
    %c0_178 = arith.constant 0 : index
    %c0_179 = arith.constant 0 : index
    %135 = vector.load %arg8[%c0_176, %c0_177, %c0_178, %c0_179] : memref<1x16x16x128xf32, #tpu.memory_space<vmem>>, vector<1x16x16x128xf32>
    %136 = vector.shape_cast %135 : vector<1x16x16x128xf32> to vector<16x16x128xf32>
    %137 = vector.shape_cast %134 : vector<16x16x128xf32> to vector<1x16x16x128xf32>
    tpu.vector_store %arg8[%c0_176, %c0_177, %c0_178, %c0_179], %137 {strides = array<i32>} : memref<1x16x16x128xf32, #tpu.memory_space<vmem>>, vector<1x16x16x128xf32>,
    return
  }
  func.func @transform_0(%arg0: i32) -> (i32, i32, i32, i32) {
    %c0_i32 = arith.constant 0 : i32
    %c0_i32_0 = arith.constant 0 : i32
    %c0_i32_1 = arith.constant 0 : i32
    %c0_i32_2 = arith.constant 0 : i32
    return %arg0, %c0_i32, %c0_i32_0, %c0_i32_1 : i32, i32, i32, i32
  }
  func.func @transform_1(%arg0: i32) -> (i32, i32, i32, i32) {
    %c0_i32 = arith.constant 0 : i32
    %c0_i32_0 = arith.constant 0 : i32
    %c0_i32_1 = arith.constant 0 : i32
    %c0_i32_2 = arith.constant 0 : i32
    %c0_i32_3 = arith.constant 0 : i32
    return %c0_i32, %c0_i32_0, %c0_i32_1, %c0_i32_2 : i32, i32, i32, i32
  }
  func.func @transform_2(%arg0: i32) -> (i32, i32) {
    %c0_i32 = arith.constant 0 : i32
    %c0_i32_0 = arith.constant 0 : i32
    %c0_i32_1 = arith.constant 0 : i32
    return %c0_i32, %c0_i32_0 : i32, i32
  }
  func.func @transform_3(%arg0: i32) -> (i32, i32) {
    %c0_i32 = arith.constant 0 : i32
    %c0_i32_0 = arith.constant 0 : i32
    %c0_i32_1 = arith.constant 0 : i32
    return %c0_i32, %c0_i32_0 : i32, i32
  }
  func.func @transform_4(%arg0: i32) -> (i32, i32, i32, i32) {
    %c0_i32 = arith.constant 0 : i32
    %c0_i32_0 = arith.constant 0 : i32
    %c0_i32_1 = arith.constant 0 : i32
    %c0_i32_2 = arith.constant 0 : i32
    %c0_i32_3 = arith.constant 0 : i32
    return %c0_i32, %c0_i32_0, %c0_i32_1, %c0_i32_2 : i32, i32, i32, i32
  }
  func.func @transform_5(%arg0: i32) -> (i32, i32) {
    %c0_i32 = arith.constant 0 : i32
    %c0_i32_0 = arith.constant 0 : i32
    %c0_i32_1 = arith.constant 0 : i32
    return %c0_i32, %c0_i32_0 : i32, i32
  }
  func.func @transform_6(%arg0: i32) -> (i32, i32) {
    %c0_i32 = arith.constant 0 : i32
    %c0_i32_0 = arith.constant 0 : i32
    %c0_i32_1 = arith.constant 0 : i32
    return %c0_i32, %c0_i32_0 : i32, i32
  }
  func.func @transform_7(%arg0: i32) -> (i32, i32, i32, i32) {
    %c0_i32 = arith.constant 0 : i32
    %c0_i32_0 = arith.constant 0 : i32
    %c0_i32_1 = arith.constant 0 : i32
    %c0_i32_2 = arith.constant 0 : i32
    return %arg0, %c0_i32, %c0_i32_0, %c0_i32_1 : i32, i32, i32, i32
  }
}

</mosaic_0001>

<llo_original>
// kernel: double_conv.1
$region0: #{double_conv.1}
  #allocation0 [shape = 'u32[]', space=smem, size = 0x4, offset = 0x4, fixed_abs, tag = 'smem constant byte address 0x4 - core index']
  #allocation1 [shape = 'u32[144,128]{1,0:T(1,128)}', space=vmem, size = 0x12000, scoped, tag = 'internal scratch']
  #allocation2 [shape = 'bf16[18,48,128]{2,1,0:T(16,128)(2,1)}', space=vmem, size = 0x36000, scoped, tag = 'scratch operand']
  %s0 = inlined_call_operand.vmem [shape: bf16[2,18,18,128], index: 0, kind: input, shape index: {}]
  %s1 = inlined_call_operand.vmem [shape: bf16[3,3,128,128], index: 1, kind: input, shape index: {}]
  %s2 = inlined_call_operand.vmem [shape: f32[1,128], index: 2, kind: input, shape index: {}]
  %s3 = inlined_call_operand.vmem [shape: f32[1,128], index: 3, kind: input, shape index: {}]
  %s4 = inlined_call_operand.vmem [shape: bf16[3,3,128,128], index: 4, kind: input, shape index: {}]
  %s5 = inlined_call_operand.vmem [shape: f32[1,128], index: 5, kind: input, shape index: {}]
  %s6 = inlined_call_operand.vmem [shape: f32[1,128], index: 6, kind: input, shape index: {}]
  %s7 = inlined_call_operand.vmem [shape: f32[2,16,16,128], index: 7, kind: output, shape index: {}]
  %s8 = sld [smem:[#allocation0]]
  $region61: #{double_conv.1} parent=0
    _
  %s10 = ssub.s32 1, %s8
  %s11 = scalar_select 0, %s10, %s8
  loop: start=0, step=1, limit=4
  $region2: #{double_conv.1} parent=0 // loop_pre_header
    _
  $region3: #{double_conv.1} parent=0 // loop_header
    %s13 = sphi 0, %s17
    %p14 = scmp.ge.s32.totalorder %s13, 4
    %s23 = sphi 0, %s25
    %s26 = sphi 0, %s23
    %s27 = sphi 0, %s26
    %s43 = sphi 0, %s27
    %s47 = sphi 0, %s47
    %s49 = sphi 0, %s47
    %s50 = sphi 0, %s49
    %s64 = sphi 0, %s50
    %s68 = sphi 0, %s68
    %s70 = sphi 0, %s68
    %s71 = sphi 0, %s70
    %s85 = sphi 0, %s71
    %s89 = sphi 0, %s89
    %s91 = sphi 0, %s89
    %s92 = sphi 0, %s91
    %s106 = sphi 0, %s92
    %s110 = sphi 0, %s110
    %s112 = sphi 0, %s110
    %s113 = sphi 0, %s112
    %s127 = sphi 0, %s113
    %s131 = sphi 0, %s131
    %s133 = sphi 0, %s131
    %s134 = sphi 0, %s133
    %s148 = sphi 0, %s134
    %s152 = sphi 0, %s152
    %s154 = sphi 0, %s152
    %s155 = sphi 0, %s154
    %s169 = sphi 0, %s155
    %s175 = sphi 0, %s177
    %s178 = sphi 0, %s175
    %s179 = sphi 0, %s178
    %s195 = sphi 0, %s179
  $region4: #{double_conv.1} parent=0 // loop_header_branch
    %16 = sbr.rel (%p14) target = $region8
  $region5: #{double_conv.1} parent=0 // loop_body
    %s18 = ssub.s32 %s13, 1
    %s19 = ssub.s32 %s13, 2
    %s20 = sadd.s32 %s13, 1
    %s21 = ssub.s32 %s13, %s20
    %p22 = scmp.eq.s32.totalorder %s21, 0
    %s24 = sadd.s32 %s23, 1
    %s25 = scalar_select %p22, %s23, %s24
    %p28 = pneg %p22
    %p29 = scmp.eq.s32.totalorder %s13, 1
    %p30 = por %p28, %p29
    %p31 = scmp.ne.s32.totalorder %s23, %s26
    %p32 = scmp.eq.s32.totalorder %s13, 0
    %p33 = por %p31, %p32
    %p34 = scmp.ne.s32.totalorder %s23, %s26
    %p35 = scmp.eq.s32.totalorder %s18, 1
    %p36 = por %p34, %p35
    %p37 = scmp.ne.s32.totalorder %s26, %s27
    %p38 = scmp.eq.s32.totalorder %s18, 0
    %p39 = por %p37, %p38
    %p40 = scmp.ne.s32.totalorder %s26, %s27
    %p41 = scmp.eq.s32.totalorder %s19, 1
    %p42 = por %p40, %p41
    %p44 = scmp.ne.s32.totalorder %s27, %s43
    %p45 = scmp.eq.s32.totalorder %s19, 0
    %p46 = por %p44, %p45
    %s48 = sadd.s32 %s47, 1
    %p51 = scmp.eq.s32.totalorder %s13, 1
    %p52 = scmp.ne.s32.totalorder %s47, %s49
    %p53 = scmp.eq.s32.totalorder %s13, 0
    %p54 = por %p52, %p53
    %p55 = scmp.ne.s32.totalorder %s47, %s49
    %p56 = scmp.eq.s32.totalorder %s18, 1
    %p57 = por %p55, %p56
    %p58 = scmp.ne.s32.totalorder %s49, %s50
    %p59 = scmp.eq.s32.totalorder %s18, 0
    %p60 = por %p58, %p59
    %p61 = scmp.ne.s32.totalorder %s49, %s50
    %p62 = scmp.eq.s32.totalorder %s19, 1
    %p63 = por %p61, %p62
    %p65 = scmp.ne.s32.totalorder %s50, %s64
    %p66 = scmp.eq.s32.totalorder %s19, 0
    %p67 = por %p65, %p66
    %s69 = sadd.s32 %s68, 1
    %p72 = scmp.eq.s32.totalorder %s13, 1
    %p73 = scmp.ne.s32.totalorder %s68, %s70
    %p74 = scmp.eq.s32.totalorder %s13, 0
    %p75 = por %p73, %p74
    %p76 = scmp.ne.s32.totalorder %s68, %s70
    %p77 = scmp.eq.s32.totalorder %s18, 1
    %p78 = por %p76, %p77
    %p79 = scmp.ne.s32.totalorder %s70, %s71
    %p80 = scmp.eq.s32.totalorder %s18, 0
    %p81 = por %p79, %p80
    %p82 = scmp.ne.s32.totalorder %s70, %s71
    %p83 = scmp.eq.s32.totalorder %s19, 1
    %p84 = por %p82, %p83
    %p86 = scmp.ne.s32.totalorder %s71, %s85
    %p87 = scmp.eq.s32.totalorder %s19, 0
    %p88 = por %p86, %p87
    %s90 = sadd.s32 %s89, 1
    %p93 = scmp.eq.s32.totalorder %s13, 1
    %p94 = scmp.ne.s32.totalorder %s89, %s91
    %p95 = scmp.eq.s32.totalorder %s13, 0
    %p96 = por %p94, %p95
    %p97 = scmp.ne.s32.totalorder %s89, %s91
    %p98 = scmp.eq.s32.totalorder %s18, 1
    %p99 = por %p97, %p98
    %p100 = scmp.ne.s32.totalorder %s91, %s92
    %p101 = scmp.eq.s32.totalorder %s18, 0
    %p102 = por %p100, %p101
    %p103 = scmp.ne.s32.totalorder %s91, %s92
    %p104 = scmp.eq.s32.totalorder %s19, 1
    %p105 = por %p103, %p104
    %p107 = scmp.ne.s32.totalorder %s92, %s106
    %p108 = scmp.eq.s32.totalorder %s19, 0
    %p109 = por %p107, %p108
    %s111 = sadd.s32 %s110, 1
    %p114 = scmp.eq.s32.totalorder %s13, 1
    %p115 = scmp.ne.s32.totalorder %s110, %s112
    %p116 = scmp.eq.s32.totalorder %s13, 0
    %p117 = por %p115, %p116
    %p118 = scmp.ne.s32.totalorder %s110, %s112
    %p119 = scmp.eq.s32.totalorder %s18, 1
    %p120 = por %p118, %p119
    %p121 = scmp.ne.s32.totalorder %s112, %s113
    %p122 = scmp.eq.s32.totalorder %s18, 0
    %p123 = por %p121, %p122
    %p124 = scmp.ne.s32.totalorder %s112, %s113
    %p125 = scmp.eq.s32.totalorder %s19, 1
    %p126 = por %p124, %p125
    %p128 = scmp.ne.s32.totalorder %s113, %s127
    %p129 = scmp.eq.s32.totalorder %s19, 0
    %p130 = por %p128, %p129
    %s132 = sadd.s32 %s131, 1
    %p135 = scmp.eq.s32.totalorder %s13, 1
    %p136 = scmp.ne.s32.totalorder %s131, %s133
    %p137 = scmp.eq.s32.totalorder %s13, 0
    %p138 = por %p136, %p137
    %p139 = scmp.ne.s32.totalorder %s131, %s133
    %p140 = scmp.eq.s32.totalorder %s18, 1
    %p141 = por %p139, %p140
    %p142 = scmp.ne.s32.totalorder %s133, %s134
    %p143 = scmp.eq.s32.totalorder %s18, 0
    %p144 = por %p142, %p143
    %p145 = scmp.ne.s32.totalorder %s133, %s134
    %p146 = scmp.eq.s32.totalorder %s19, 1
    %p147 = por %p145, %p146
    %p149 = scmp.ne.s32.totalorder %s134, %s148
    %p150 = scmp.eq.s32.totalorder %s19, 0
    %p151 = por %p149, %p150
    %s153 = sadd.s32 %s152, 1
    %p156 = scmp.eq.s32.totalorder %s13, 1
    %p157 = scmp.ne.s32.totalorder %s152, %s154
    %p158 = scmp.eq.s32.totalorder %s13, 0
    %p159 = por %p157, %p158
    %p160 = scmp.ne.s32.totalorder %s152, %s154
    %p161 = scmp.eq.s32.totalorder %s18, 1
    %p162 = por %p160, %p161
    %p163 = scmp.ne.s32.totalorder %s154, %s155
    %p164 = scmp.eq.s32.totalorder %s18, 0
    %p165 = por %p163, %p164
    %p166 = scmp.ne.s32.totalorder %s154, %s155
    %p167 = scmp.eq.s32.totalorder %s19, 1
    %p168 = por %p166, %p167
    %p170 = scmp.ne.s32.totalorder %s155, %s169
    %p171 = scmp.eq.s32.totalorder %s19, 0
    %p172 = por %p170, %p171
    %s173 = ssub.s32 %s13, %s20
    %p174 = scmp.eq.s32.totalorder %s173, 0
    %s176 = sadd.s32 %s175, 1
    %s177 = scalar_select %p174, %s175, %s176
    %p180 = pneg %p174
    %p181 = scmp.eq.s32.totalorder %s13, 1
    %p182 = por %p180, %p181
    %p183 = scmp.ne.s32.totalorder %s175, %s178
    %p184 = scmp.eq.s32.totalorder %s13, 0
    %p185 = por %p183, %p184
    %p186 = scmp.ne.s32.totalorder %s175, %s178
    %p187 = scmp.eq.s32.totalorder %s18, 1
    %p188 = por %p186, %p187
    %p189 = scmp.ne.s32.totalorder %s178, %s179
    %p190 = scmp.eq.s32.totalorder %s18, 0
    %p191 = por %p189, %p190
    %p192 = scmp.ne.s32.totalorder %s178, %s179
    %p193 = scmp.eq.s32.totalorder %s19, 1
    %p194 = por %p192, %p193
    %p196 = scmp.ne.s32.totalorder %s179, %s195
    %p197 = scmp.eq.s32.totalorder %s19, 0
    %p198 = por %p196, %p197
    %p199 = scmp.le.s32.totalorder 1, %s13
    %p200 = scmp.lt.s32.totalorder %s13, 3
    %p201 = pnand %p199, %p200
    %p202 = pneg %p201
    // Predicated region
    $region9: #{double_conv.1} parent=5 // pred_check
      _
    $region10: #{double_conv.1} parent=5 // pred_check_branch
      %204 = sbr.rel (%p201) target = $region12
    $region11: #{double_conv.1} parent=5 // pred_region
      %s205 = ssub.s32 %s13, 1
      // Predicated region
      $region13: #{double_conv.1} parent=11 // pred_check
        %p206 = pneg %p60
      $region14: #{double_conv.1} parent=11 // pred_check_branch
        %208 = sbr.rel (%p206) target = $region16
      $region15: #{double_conv.1} parent=11 // pred_region
        _
      $region16: #{double_conv.1} parent=11 // pred_fallthru
        _
      // Predicated region
      $region17: #{double_conv.1} parent=11 // pred_check
        %p209 = pneg %p81
      $region18: #{double_conv.1} parent=11 // pred_check_branch
        %211 = sbr.rel (%p209) target = $region20
      $region19: #{double_conv.1} parent=11 // pred_region
        _
      $region20: #{double_conv.1} parent=11 // pred_fallthru
        _
      // Predicated region
      $region21: #{double_conv.1} parent=11 // pred_check
        %p212 = pneg %p102
      $region22: #{double_conv.1} parent=11 // pred_check_branch
        %214 = sbr.rel (%p212) target = $region24
      $region23: #{double_conv.1} parent=11 // pred_region
        _
      $region24: #{double_conv.1} parent=11 // pred_fallthru
        _
      // Predicated region
      $region25: #{double_conv.1} parent=11 // pred_check
        %p215 = pneg %p123
      $region26: #{double_conv.1} parent=11 // pred_check_branch
        %217 = sbr.rel (%p215) target = $region28
      $region27: #{double_conv.1} parent=11 // pred_region
        _
      $region28: #{double_conv.1} parent=11 // pred_fallthru
        _
      // Predicated region
      $region29: #{double_conv.1} parent=11 // pred_check
        %p218 = pneg %p144
      $region30: #{double_conv.1} parent=11 // pred_check_branch
        %220 = sbr.rel (%p218) target = $region32
      $region31: #{double_conv.1} parent=11 // pred_region
        _
      $region32: #{double_conv.1} parent=11 // pred_fallthru
        _
      // Predicated region
      $region33: #{double_conv.1} parent=11 // pred_check
        %p221 = pneg %p165
      $region34: #{double_conv.1} parent=11 // pred_check_branch
        %223 = sbr.rel (%p221) target = $region36
      $region35: #{double_conv.1} parent=11 // pred_region
        _
      $region36: #{double_conv.1} parent=11 // pred_fallthru
        _
    $region12: #{double_conv.1} parent=5 // pred_fallthru
      _
    %p224 = scmp.lt.s32.totalorder %s13, 2
    // Predicated region
    $region37: #{double_conv.1} parent=5 // pred_check
      %p225 = pneg %p224
    $region38: #{double_conv.1} parent=5 // pred_check_branch
      %227 = sbr.rel (%p225) target = $region40
    $region39: #{double_conv.1} parent=5 // pred_region
      // Predicated region
      $region41: #{double_conv.1} parent=39 // pred_check
        %p228 = pneg %p33
      $region42: #{double_conv.1} parent=39 // pred_check_branch
        %230 = sbr.rel (%p228) target = $region44
      $region43: #{double_conv.1} parent=39 // pred_region
        %p231 = scmp.lt.s32.totalorder %s13, 1
        %s232 = scalar_select %p231, %s13, 1
        %s233 = smul.addr %s232, 54
        %s234 = smul.addr %s233, 4
        %s235 = scalar_lea.vmem %s0, %s234
      $region44: #{double_conv.1} parent=39 // pred_fallthru
        _
    $region40: #{double_conv.1} parent=5 // pred_fallthru
      _
    %p236 = scmp.le.s32.totalorder 1, %s13
    %p237 = scmp.lt.s32.totalorder %s13, 3
    %p238 = pnand %p236, %p237
    %p239 = pneg %p238
    // Predicated region
    $region45: #{double_conv.1} parent=5 // pred_check
      _
    $region46: #{double_conv.1} parent=5 // pred_check_branch
      %241 = sbr.rel (%p238) target = $region48
    $region47: #{double_conv.1} parent=5 // pred_region
      %s242 = ssub.s32 %s13, 1
      %p243 = scmp.lt.s32.totalorder %s18, 1
      %s244 = scalar_select %p243, %s18, 1
      %s245 = smul.addr %s244, 54
      %s246 = smul.addr %s245, 4
      %s247 = scalar_lea.vmem %s0, %s246
      %p248 = pneg %p39
      %p249 = pneg %p36
      %p250 = pneg %p60
      %p251 = pneg %p57
      %p252 = pneg %p81
      %p253 = pneg %p78
      %p254 = pneg %p102
      %p255 = pneg %p99
      %p256 = pneg %p123
      %p257 = pneg %p120
      %p258 = pneg %p144
      %p259 = pneg %p141
      %p260 = pneg %p165
      %p261 = pneg %p162
      %p262 = pneg %p191
      %p263 = pneg %p188
      %p264 = scmp.lt.s32.totalorder %s18, 1
      %s265 = scalar_select %p264, %s18, 1
      %s266 = smul.addr %s265, 32
      %s267 = smul.addr %s266, 8
      %s268 = scalar_lea.vmem %s7, %s267
      %p269 = scmp.lt.s32.totalorder %s18, 1
      %s270 = scalar_select %p269, %s18, 1
      %s271 = smul.addr %s270, 54
      %s272 = smul.addr %s271, 4
      %s273 = scalar_lea.vmem %s0, %s272
      %p274 = scmp.lt.s32.totalorder %s18, 1
      %s275 = scalar_select %p274, %s18, 1
      %s276 = smul.addr %s275, 32
      %s277 = smul.addr %s276, 8
      %s278 = scalar_lea.vmem %s7, %s277
      %v280 = vld [vmem:[%s273] sm:$0xf]
      %v281 = vld [vmem:[%s273 + $0x4] sm:$0xf]
      %v282 = vld [vmem:[%s273 + $0xc] sm:$0xf]
      %v283 = vld [vmem:[%s273 + $0x10] sm:$0xf]
      %v284 = vld [vmem:[%s273 + $0x18] sm:$0xf]
      %v285 = vld [vmem:[%s273 + $0x1c] sm:$0xf]
      %v286 = vld [vmem:[%s273 + $0x24] sm:$0xf]
      %v287 = vld [vmem:[%s273 + $0x28] sm:$0xf]
      %v288 = vld [vmem:[%s273 + $0x30] sm:$0xf]
      %v289 = vld [vmem:[%s273 + $0x34] sm:$0xf]
      %v290 = vld [vmem:[%s273 + $0x3c] sm:$0xf]
      %v291 = vld [vmem:[%s273 + $0x40] sm:$0xf]
      %v292 = vld [vmem:[%s273 + $0x48] sm:$0xf]
      %v293 = vld [vmem:[%s273 + $0x4c] sm:$0xf]
      %v294 = vld [vmem:[%s273 + $0x54] sm:$0xf]
      %v295 = vld [vmem:[%s273 + $0x58] sm:$0xf]
      %v296 = vld [vmem:[%s273 + $0x60] sm:$0xf]
      %v297 = vld [vmem:[%s273 + $0x64] sm:$0xf]
      %v298 = vld [vmem:[%s273 + $0x6c] sm:$0xf]
      %v299 = vld [vmem:[%s273 + $0x70] sm:$0xf]
      %v300 = vld [vmem:[%s273 + $0x78] sm:$0xf]
      %v301 = vld [vmem:[%s273 + $0x7c] sm:$0xf]
      %v302 = vld [vmem:[%s273 + $0x84] sm:$0xf]
      %v303 = vld [vmem:[%s273 + $0x88] sm:$0xf]
      %v304 = vld [vmem:[%s273 + $0x90] sm:$0xf]
      %v305 = vld [vmem:[%s273 + $0x94] sm:$0xf]
      %v306 = vld [vmem:[%s273 + $0x9c] sm:$0xf]
      %v307 = vld [vmem:[%s273 + $0xa0] sm:$0xf]
      %v308 = vld [vmem:[%s273 + $0xa8] sm:$0xf]
      %v309 = vld [vmem:[%s273 + $0xac] sm:$0xf]
      %v310 = vld [vmem:[%s273 + $0xb4] sm:$0xf]
      %v311 = vld [vmem:[%s273 + $0xb8] sm:$0xf]
      %v312 = vld [vmem:[%s1] sm:$0xf]
      %v313 = vld [vmem:[%s1 + $0x4] sm:$0xf]
      %v314 = vld [vmem:[%s1 + $0x8] sm:$0xf]
      %v315 = vld [vmem:[%s1 + $0xc] sm:$0xf]
      %v316 = vld [vmem:[%s1 + $0x10] sm:$0xf]
      %v317 = vld [vmem:[%s1 + $0x14] sm:$0xf]
      %v318 = vld [vmem:[%s1 + $0x18] sm:$0xf]
      %v319 = vld [vmem:[%s1 + $0x1c] sm:$0xf]
      %v320 = vld [vmem:[%s1 + $0x20] sm:$0xf]
      %v321 = vld [vmem:[%s1 + $0x24] sm:$0xf]
      %v322 = vld [vmem:[%s1 + $0x28] sm:$0xf]
      %v323 = vld [vmem:[%s1 + $0x2c] sm:$0xf]
      %v324 = vld [vmem:[%s1 + $0x30] sm:$0xf]
      %v325 = vld [vmem:[%s1 + $0x34] sm:$0xf]
      %v326 = vld [vmem:[%s1 + $0x38] sm:$0xf]
      %v327 = vld [vmem:[%s1 + $0x3c] sm:$0xf]
      %v328 = vld [vmem:[%s273 + $0x8] sm:$0x1]
      %v329 = vld [vmem:[%s273 + $0x14] sm:$0x1]
      %v330 = vld [vmem:[%s273 + $0x20] sm:$0x1]
      %v331 = vld [vmem:[%s273 + $0x2c] sm:$0x1]
      %v332 = vld [vmem:[%s273 + $0x38] sm:$0x1]
      %v333 = vld [vmem:[%s273 + $0x44] sm:$0x1]
      %v334 = vld [vmem:[%s273 + $0x50] sm:$0x1]
      %v335 = vld [vmem:[%s273 + $0x5c] sm:$0x1]
      %v336 = vld [vmem:[%s273 + $0x68] sm:$0x1]
      %v337 = vld [vmem:[%s273 + $0x74] sm:$0x1]
      %v338 = vld [vmem:[%s273 + $0x80] sm:$0x1]
      %v339 = vld [vmem:[%s273 + $0x8c] sm:$0x1]
      %v340 = vld [vmem:[%s273 + $0x98] sm:$0x1]
      %v341 = vld [vmem:[%s273 + $0xa4] sm:$0x1]
      %v342 = vld [vmem:[%s273 + $0xb0] sm:$0x1]
      %v343 = vld [vmem:[%s273 + $0xbc] sm:$0x1]
      %s344 = scalar_lea.vmem %s1, 64
      %v345 = vld [vmem:[%s344] sm:$0xf]
      %v346 = vld [vmem:[%s344 + $0x4] sm:$0xf]
      %v347 = vld [vmem:[%s344 + $0x8] sm:$0xf]
      %v348 = vld [vmem:[%s344 + $0xc] sm:$0xf]
      %v349 = vld [vmem:[%s344 + $0x10] sm:$0xf]
      %v350 = vld [vmem:[%s344 + $0x14] sm:$0xf]
      %v351 = vld [vmem:[%s344 + $0x18] sm:$0xf]
      %v352 = vld [vmem:[%s344 + $0x1c] sm:$0xf]
      %v353 = vld [vmem:[%s344 + $0x20] sm:$0xf]
      %v354 = vld [vmem:[%s344 + $0x24] sm:$0xf]
      %v355 = vld [vmem:[%s344 + $0x28] sm:$0xf]
      %v356 = vld [vmem:[%s344 + $0x2c] sm:$0xf]
      %v357 = vld [vmem:[%s344 + $0x30] sm:$0xf]
      %v358 = vld [vmem:[%s344 + $0x34] sm:$0xf]
      %v359 = vld [vmem:[%s344 + $0x38] sm:$0xf]
      %v360 = vld [vmem:[%s344 + $0x3c] sm:$0xf]
      %vm361 = vsmask.f32 3328
      %vm362 = vsmask.f32 7440
      %vm363 = vmor %vm361, %vm362
      %v365 = vshrl.u32 %v280, 16
      %v367 = vrot.slane %v365, 4
      %v368 = vshll.u32 %v280, 16
      %v370 = vrot.slane %v368, 5
      %v371 = vor.u32 %v367, %v370
      %v372 = vrot.slane %v371, 4
      %v374 = vshll.u32 %v281, 16
      %v376 = vrot.slane %v374, 5
      %v377 = vsel %vm363, %v372, %v376
      %v378 = vshrl.u32 %v281, 16
      %v380 = vrot.slane %v378, 4
      %v381 = vor.u32 %v380, %v376
      %v382 = vrot.slane %v381, 4
      %v384 = vshll.u32 %v328, 16
      %v386 = vrot.slane %v384, 5
      %v387 = vsel %vm363, %v382, %v386
      %v389 = vshrl.u32 %v282, 16
      %v391 = vrot.slane %v389, 4
      %v392 = vshll.u32 %v282, 16
      %v394 = vrot.slane %v392, 5
      %v395 = vor.u32 %v391, %v394
      %v396 = vrot.slane %v395, 4
      %v398 = vshll.u32 %v283, 16
      %v400 = vrot.slane %v398, 5
      %v401 = vsel %vm363, %v396, %v400
      %v402 = vshrl.u32 %v283, 16
      %v404 = vrot.slane %v402, 4
      %v405 = vor.u32 %v404, %v400
      %v406 = vrot.slane %v405, 4
      %v408 = vshll.u32 %v329, 16
      %v410 = vrot.slane %v408, 5
      %v411 = vsel %vm363, %v406, %v410
      %v413 = vshrl.u32 %v284, 16
      %v415 = vrot.slane %v413, 4
      %v416 = vshll.u32 %v284, 16
      %v418 = vrot.slane %v416, 5
      %v419 = vor.u32 %v415, %v418
      %v420 = vrot.slane %v419, 4
      %v422 = vshll.u32 %v285, 16
      %v424 = vrot.slane %v422, 5
      %v425 = vsel %vm363, %v420, %v424
      %v426 = vshrl.u32 %v285, 16
      %v428 = vrot.slane %v426, 4
      %v429 = vor.u32 %v428, %v424
      %v430 = vrot.slane %v429, 4
      %v432 = vshll.u32 %v330, 16
      %v434 = vrot.slane %v432, 5
      %v435 = vsel %vm363, %v430, %v434
      %v437 = vshrl.u32 %v286, 16
      %v439 = vrot.slane %v437, 4
      %v440 = vshll.u32 %v286, 16
      %v442 = vrot.slane %v440, 5
      %v443 = vor.u32 %v439, %v442
      %v444 = vrot.slane %v443, 4
      %v446 = vshll.u32 %v287, 16
      %v448 = vrot.slane %v446, 5
      %v449 = vsel %vm363, %v444, %v448
      %v450 = vshrl.u32 %v287, 16
      %v452 = vrot.slane %v450, 4
      %v453 = vor.u32 %v452, %v448
      %v454 = vrot.slane %v453, 4
      %v456 = vshll.u32 %v331, 16
      %v458 = vrot.slane %v456, 5
      %v459 = vsel %vm363, %v454, %v458
      %v461 = vshrl.u32 %v288, 16
      %v463 = vrot.slane %v461, 4
      %v464 = vshll.u32 %v288, 16
      %v466 = vrot.slane %v464, 5
      %v467 = vor.u32 %v463, %v466
      %v468 = vrot.slane %v467, 4
      %v470 = vshll.u32 %v289, 16
      %v472 = vrot.slane %v470, 5
      %v473 = vsel %vm363, %v468, %v472
      %v474 = vshrl.u32 %v289, 16
      %v476 = vrot.slane %v474, 4
      %v477 = vor.u32 %v476, %v472
      %v478 = vrot.slane %v477, 4
      %v480 = vshll.u32 %v332, 16
      %v482 = vrot.slane %v480, 5
      %v483 = vsel %vm363, %v478, %v482
      %v485 = vshrl.u32 %v290, 16
      %v487 = vrot.slane %v485, 4
      %v488 = vshll.u32 %v290, 16
      %v490 = vrot.slane %v488, 5
      %v491 = vor.u32 %v487, %v490
      %v492 = vrot.slane %v491, 4
      %v494 = vshll.u32 %v291, 16
      %v496 = vrot.slane %v494, 5
      %v497 = vsel %vm363, %v492, %v496
      %v498 = vshrl.u32 %v291, 16
      %v500 = vrot.slane %v498, 4
      %v501 = vor.u32 %v500, %v496
      %v502 = vrot.slane %v501, 4
      %v504 = vshll.u32 %v333, 16
      %v506 = vrot.slane %v504, 5
      %v507 = vsel %vm363, %v502, %v506
      %v509 = vshrl.u32 %v292, 16
      %v511 = vrot.slane %v509, 4
      %v512 = vshll.u32 %v292, 16
      %v514 = vrot.slane %v512, 5
      %v515 = vor.u32 %v511, %v514
      %v516 = vrot.slane %v515, 4
      %v518 = vshll.u32 %v293, 16
      %v520 = vrot.slane %v518, 5
      %v521 = vsel %vm363, %v516, %v520
      %v522 = vshrl.u32 %v293, 16
      %v524 = vrot.slane %v522, 4
      %v525 = vor.u32 %v524, %v520
      %v526 = vrot.slane %v525, 4
      %v528 = vshll.u32 %v334, 16
      %v530 = vrot.slane %v528, 5
      %v531 = vsel %vm363, %v526, %v530
      %v533 = vshrl.u32 %v294, 16
      %v535 = vrot.slane %v533, 4
      %v536 = vshll.u32 %v294, 16
      %v538 = vrot.slane %v536, 5
      %v539 = vor.u32 %v535, %v538
      %v540 = vrot.slane %v539, 4
      %v542 = vshll.u32 %v295, 16
      %v544 = vrot.slane %v542, 5
      %v545 = vsel %vm363, %v540, %v544
      %v546 = vshrl.u32 %v295, 16
      %v548 = vrot.slane %v546, 4
      %v549 = vor.u32 %v548, %v544
      %v550 = vrot.slane %v549, 4
      %v552 = vshll.u32 %v335, 16
      %v554 = vrot.slane %v552, 5
      %v555 = vsel %vm363, %v550, %v554
      %v557 = vshrl.u32 %v296, 16
      %v559 = vrot.slane %v557, 4
      %v560 = vshll.u32 %v296, 16
      %v562 = vrot.slane %v560, 5
      %v563 = vor.u32 %v559, %v562
      %v564 = vrot.slane %v563, 4
      %v566 = vshll.u32 %v297, 16
      %v568 = vrot.slane %v566, 5
      %v569 = vsel %vm363, %v564, %v568
      %v570 = vshrl.u32 %v297, 16
      %v572 = vrot.slane %v570, 4
      %v573 = vor.u32 %v572, %v568
      %v574 = vrot.slane %v573, 4
      %v576 = vshll.u32 %v336, 16
      %v578 = vrot.slane %v576, 5
      %v579 = vsel %vm363, %v574, %v578
      %v581 = vshrl.u32 %v298, 16
      %v583 = vrot.slane %v581, 4
      %v584 = vshll.u32 %v298, 16
      %v586 = vrot.slane %v584, 5
      %v587 = vor.u32 %v583, %v586
      %v588 = vrot.slane %v587, 4
      %v590 = vshll.u32 %v299, 16
      %v592 = vrot.slane %v590, 5
      %v593 = vsel %vm363, %v588, %v592
      %v594 = vshrl.u32 %v299, 16
      %v596 = vrot.slane %v594, 4
      %v597 = vor.u32 %v596, %v592
      %v598 = vrot.slane %v597, 4
      %v600 = vshll.u32 %v337, 16
      %v602 = vrot.slane %v600, 5
      %v603 = vsel %vm363, %v598, %v602
      %v605 = vshrl.u32 %v300, 16
      %v607 = vrot.slane %v605, 4
      %v608 = vshll.u32 %v300, 16
      %v610 = vrot.slane %v608, 5
      %v611 = vor.u32 %v607, %v610
      %v612 = vrot.slane %v611, 4
      %v614 = vshll.u32 %v301, 16
      %v616 = vrot.slane %v614, 5
      %v617 = vsel %vm363, %v612, %v616
      %v618 = vshrl.u32 %v301, 16
      %v620 = vrot.slane %v618, 4
      %v621 = vor.u32 %v620, %v616
      %v622 = vrot.slane %v621, 4
      %v624 = vshll.u32 %v338, 16
      %v626 = vrot.slane %v624, 5
      %v627 = vsel %vm363, %v622, %v626
      %v629 = vshrl.u32 %v302, 16
      %v631 = vrot.slane %v629, 4
      %v632 = vshll.u32 %v302, 16
      %v634 = vrot.slane %v632, 5
      %v635 = vor.u32 %v631, %v634
      %v636 = vrot.slane %v635, 4
      %v638 = vshll.u32 %v303, 16
      %v640 = vrot.slane %v638, 5
      %v641 = vsel %vm363, %v636, %v640
      %v642 = vshrl.u32 %v303, 16
      %v644 = vrot.slane %v642, 4
      %v645 = vor.u32 %v644, %v640
      %v646 = vrot.slane %v645, 4
      %v648 = vshll.u32 %v339, 16
      %v650 = vrot.slane %v648, 5
      %v651 = vsel %vm363, %v646, %v650
      %v653 = vshrl.u32 %v304, 16
      %v655 = vrot.slane %v653, 4
      %v656 = vshll.u32 %v304, 16
      %v658 = vrot.slane %v656, 5
      %v659 = vor.u32 %v655, %v658
      %v660 = vrot.slane %v659, 4
      %v662 = vshll.u32 %v305, 16
      %v664 = vrot.slane %v662, 5
      %v665 = vsel %vm363, %v660, %v664
      %v666 = vshrl.u32 %v305, 16
      %v668 = vrot.slane %v666, 4
      %v669 = vor.u32 %v668, %v664
      %v670 = vrot.slane %v669, 4
      %v672 = vshll.u32 %v340, 16
      %v674 = vrot.slane %v672, 5
      %v675 = vsel %vm363, %v670, %v674
      %v677 = vshrl.u32 %v306, 16
      %v679 = vrot.slane %v677, 4
      %v680 = vshll.u32 %v306, 16
      %v682 = vrot.slane %v680, 5
      %v683 = vor.u32 %v679, %v682
      %v684 = vrot.slane %v683, 4
      %v686 = vshll.u32 %v307, 16
      %v688 = vrot.slane %v686, 5
      %v689 = vsel %vm363, %v684, %v688
      %v690 = vshrl.u32 %v307, 16
      %v692 = vrot.slane %v690, 4
      %v693 = vor.u32 %v692, %v688
      %v694 = vrot.slane %v693, 4
      %v696 = vshll.u32 %v341, 16
      %v698 = vrot.slane %v696, 5
      %v699 = vsel %vm363, %v694, %v698
      %v701 = vshrl.u32 %v308, 16
      %v703 = vrot.slane %v701, 4
      %v704 = vshll.u32 %v308, 16
      %v706 = vrot.slane %v704, 5
      %v707 = vor.u32 %v703, %v706
      %v708 = vrot.slane %v707, 4
      %v710 = vshll.u32 %v309, 16
      %v712 = vrot.slane %v710, 5
      %v713 = vsel %vm363, %v708, %v712
      %v714 = vshrl.u32 %v309, 16
      %v716 = vrot.slane %v714, 4
      %v717 = vor.u32 %v716, %v712
      %v718 = vrot.slane %v717, 4
      %v720 = vshll.u32 %v342, 16
      %v722 = vrot.slane %v720, 5
      %v723 = vsel %vm363, %v718, %v722
      %v725 = vshrl.u32 %v310, 16
      %v727 = vrot.slane %v725, 4
      %v728 = vshll.u32 %v310, 16
      %v730 = vrot.slane %v728, 5
      %v731 = vor.u32 %v727, %v730
      %v732 = vrot.slane %v731, 4
      %v734 = vshll.u32 %v311, 16
      %v736 = vrot.slane %v734, 5
      %v737 = vsel %vm363, %v732, %v736
      %v738 = vshrl.u32 %v311, 16
      %v740 = vrot.slane %v738, 4
      %v741 = vor.u32 %v740, %v736
      %v742 = vrot.slane %v741, 4
      %v744 = vshll.u32 %v343, 16
      %v746 = vrot.slane %v744, 5
      %v747 = vsel %vm363, %v742, %v746
      %v748 = vunpack.c.l.b16 %v377
      %v749 = vunpack.c.l.b16 %v387
      %v750 = vunpack.c.l.b16 %v401
      %v751 = vunpack.c.l.b16 %v411
      %v752 = vunpack.c.l.b16 %v425
      %v753 = vunpack.c.l.b16 %v435
      %v754 = vunpack.c.l.b16 %v449
      %v755 = vunpack.c.l.b16 %v459
      %v756 = vunpack.c.l.b16 %v473
      %v757 = vunpack.c.l.b16 %v483
      %v758 = vunpack.c.l.b16 %v497
      %v759 = vunpack.c.l.b16 %v507
      %v760 = vunpack.c.l.b16 %v521
      %v761 = vunpack.c.l.b16 %v531
      %v762 = vunpack.c.l.b16 %v545
      %v763 = vunpack.c.l.b16 %v555
      %v764 = vunpack.c.l.b16 %v569
      %v765 = vunpack.c.l.b16 %v579
      %v766 = vunpack.c.l.b16 %v593
      %v767 = vunpack.c.l.b16 %v603
      %v768 = vunpack.c.l.b16 %v617
      %v769 = vunpack.c.l.b16 %v627
      %v770 = vunpack.c.l.b16 %v641
      %v771 = vunpack.c.l.b16 %v651
      %v772 = vunpack.c.l.b16 %v665
      %v773 = vunpack.c.l.b16 %v675
      %v774 = vunpack.c.l.b16 %v689
      %v775 = vunpack.c.l.b16 %v699
      %v776 = vunpack.c.l.b16 %v713
      %v777 = vunpack.c.l.b16 %v723
      %v778 = vunpack.c.l.b16 %v737
      %v779 = vunpack.c.l.b16 %v747
      %v780 = vpack.c.b16 %v749, %v748
      %v781 = vpack.c.b16 %v751, %v750
      %v782 = vpack.c.b16 %v753, %v752
      %v783 = vpack.c.b16 %v755, %v754
      %v784 = vpack.c.b16 %v757, %v756
      %v785 = vpack.c.b16 %v759, %v758
      %v786 = vpack.c.b16 %v761, %v760
      %v787 = vpack.c.b16 %v763, %v762
      %v788 = vpack.c.b16 %v765, %v764
      %v789 = vpack.c.b16 %v767, %v766
      %v790 = vpack.c.b16 %v769, %v768
      %v791 = vpack.c.b16 %v771, %v770
      %v792 = vpack.c.b16 %v773, %v772
      %v793 = vpack.c.b16 %v775, %v774
      %v794 = vpack.c.b16 %v777, %v776
      %v795 = vpack.c.b16 %v779, %v778
      %v828 = vunpack.c.l.b16 %v345
      %v829 = vunpack.c.l.b16 %v346
      %v830 = vunpack.c.l.b16 %v347
      %v831 = vunpack.c.l.b16 %v348
      %v832 = vunpack.c.l.b16 %v349
      %v833 = vunpack.c.l.b16 %v350
      %v834 = vunpack.c.l.b16 %v351
      %v835 = vunpack.c.l.b16 %v352
      %v836 = vunpack.c.l.b16 %v353
      %v837 = vunpack.c.l.b16 %v354
      %v838 = vunpack.c.l.b16 %v355
      %v839 = vunpack.c.l.b16 %v356
      %v840 = vunpack.c.l.b16 %v357
      %v841 = vunpack.c.l.b16 %v358
      %v842 = vunpack.c.l.b16 %v359
      %v843 = vunpack.c.l.b16 %v360
      %v844 = vpack.c.b16 %v829, %v828
      %v845 = vpack.c.b16 %v831, %v830
      %v846 = vpack.c.b16 %v833, %v832
      %v847 = vpack.c.b16 %v835, %v834
      %v848 = vpack.c.b16 %v837, %v836
      %v849 = vpack.c.b16 %v839, %v838
      %v850 = vpack.c.b16 %v841, %v840
      %v851 = vpack.c.b16 %v843, %v842
      %860 = vmatprep.subr.bf16.mxu0 0
      %861 = vmatpush1.bf16.msra.mxu0 %v844
      %862 = vmatprep.subr.bf16.mxu0 0
      %863 = vmatpush1.bf16.msra.mxu0 %v845
      %864 = vmatprep.subr.bf16.mxu0 0
      %865 = vmatpush1.bf16.msra.mxu0 %v846
      %866 = vmatprep.subr.bf16.mxu0 0
      %867 = vmatpush1.bf16.msra.mxu0 %v847
      %868 = vmatprep.subr.bf16.mxu0 0
      %869 = vmatpush1.bf16.msra.mxu0 %v848
      %870 = vmatprep.subr.bf16.mxu0 0
      %871 = vmatpush1.bf16.msra.mxu0 %v849
      %872 = vmatprep.subr.bf16.mxu0 0
      %873 = vmatpush1.bf16.msra.mxu0 %v850
      %874 = vmatprep.subr.bf16.mxu0 0
      %875 = vmatpush1.bf16.msra.mxu0 %v851
      %876 = vmatprep.subr.bf16.mxu0 0
      %877 = vmatpush1.bf16.msra.mxu0 0
      %878 = vmatprep.subr.bf16.mxu0 0
      %879 = vmatpush1.bf16.msra.mxu0 0
      %880 = vmatprep.subr.bf16.mxu0 0
      %881 = vmatpush1.bf16.msra.mxu0 0
      %882 = vmatprep.subr.bf16.mxu0 0
      %883 = vmatpush1.bf16.msra.mxu0 0
      %884 = vmatprep.subr.bf16.mxu0 0
      %885 = vmatpush1.bf16.msra.mxu0 0
      %886 = vmatprep.subr.bf16.mxu0 0
      %887 = vmatpush1.bf16.msra.mxu0 0
      %888 = vmatprep.subr.bf16.mxu0 0
      %889 = vmatpush1.bf16.msra.mxu0 0
      %890 = vmatprep.subr.bf16.mxu0 0
      %891 = vmatpush1.bf16.msra.mxu0 0
      %892 = vmatprep.mubr.bf16.mxu0 0
      %893 = vmatmul.mubr.bf16.gmra.mrb[0].mxu0 %v780
      %v894 = vpop.f32.mrb[0].mxu0
      %v895 = vadd.f32 0.0, %v894
      %v896 = vpop.f32.mrb[0].mxu0
      %v897 = vpop.f32.mrb[0].mxu0
      %v898 = vadd.f32 0.0, %v897
      %v899 = vpop.f32.mrb[0].mxu0
      %900 = vmatprep.mubr.bf16.mxu0 0
      %901 = vmatmul.mubr.bf16.gmra.mrb[0].mxu0 %v781
      %v902 = vpop.f32.mrb[0].mxu0
      %v903 = vadd.f32 0.0, %v902
      %v904 = vpop.f32.mrb[0].mxu0
      %v905 = vpop.f32.mrb[0].mxu0
      %v906 = vadd.f32 0.0, %v905
      %v907 = vpop.f32.mrb[0].mxu0
      %908 = vmatprep.mubr.bf16.mxu0 0
      %909 = vmatmul.mubr.bf16.gmra.mrb[0].mxu0 %v782
      %v910 = vpop.f32.mrb[0].mxu0
      %v911 = vadd.f32 0.0, %v910
      %v912 = vpop.f32.mrb[0].mxu0
      %v913 = vpop.f32.mrb[0].mxu0
      %v914 = vadd.f32 0.0, %v913
      %v915 = vpop.f32.mrb[0].mxu0
      %916 = vmatprep.mubr.bf16.mxu0 0
      %917 = vmatmul.mubr.bf16.gmra.mrb[0].mxu0 %v783
      %v918 = vpop.f32.mrb[0].mxu0
      %v919 = vadd.f32 0.0, %v918
      %v920 = vpop.f32.mrb[0].mxu0
      %v921 = vpop.f32.mrb[0].mxu0
      %v922 = vadd.f32 0.0, %v921
      %v923 = vpop.f32.mrb[0].mxu0
      %924 = vmatprep.mubr.bf16.mxu0 0
      %925 = vmatmul.mubr.bf16.gmra.mrb[0].mxu0 %v784
      %v926 = vpop.f32.mrb[0].mxu0
      %v927 = vadd.f32 0.0, %v926
      %v928 = vpop.f32.mrb[0].mxu0
      %v929 = vpop.f32.mrb[0].mxu0
      %v930 = vadd.f32 0.0, %v929
      %v931 = vpop.f32.mrb[0].mxu0
      %932 = vmatprep.mubr.bf16.mxu0 0
      %933 = vmatmul.mubr.bf16.gmra.mrb[0].mxu0 %v785
      %v934 = vpop.f32.mrb[0].mxu0
      %v935 = vadd.f32 0.0, %v934
      %v936 = vpop.f32.mrb[0].mxu0
      %v937 = vpop.f32.mrb[0].mxu0
      %v938 = vadd.f32 0.0, %v937
      %v939 = vpop.f32.mrb[0].mxu0
      %940 = vmatprep.mubr.bf16.mxu0 0
      %941 = vmatmul.mubr.bf16.gmra.mrb[0].mxu0 %v786
      %v942 = vpop.f32.mrb[0].mxu0
      %v943 = vadd.f32 0.0, %v942
      %v944 = vpop.f32.mrb[0].mxu0
      %v945 = vpop.f32.mrb[0].mxu0
      %v946 = vadd.f32 0.0, %v945
      %v947 = vpop.f32.mrb[0].mxu0
      %948 = vmatprep.mubr.bf16.mxu0 0
      %949 = vmatmul.mubr.bf16.gmra.mrb[0].mxu0 %v787
      %v950 = vpop.f32.mrb[0].mxu0
      %v951 = vadd.f32 0.0, %v950
      %v952 = vpop.f32.mrb[0].mxu0
      %v953 = vpop.f32.mrb[0].mxu0
      %v954 = vadd.f32 0.0, %v953
      %v955 = vpop.f32.mrb[0].mxu0
      %956 = vmatprep.mubr.bf16.mxu0 0
      %957 = vmatmul.mubr.bf16.gmra.mrb[0].mxu0 %v788
      %v958 = vpop.f32.mrb[0].mxu0
      %v959 = vadd.f32 0.0, %v958
      %v960 = vpop.f32.mrb[0].mxu0
      %v961 = vpop.f32.mrb[0].mxu0
      %v962 = vadd.f32 0.0, %v961
      %v963 = vpop.f32.mrb[0].mxu0
      %964 = vmatprep.mubr.bf16.mxu0 0
      %965 = vmatmul.mubr.bf16.gmra.mrb[0].mxu0 %v789
      %v966 = vpop.f32.mrb[0].mxu0
      %v967 = vadd.f32 0.0, %v966
      %v968 = vpop.f32.mrb[0].mxu0
      %v969 = vpop.f32.mrb[0].mxu0
      %v970 = vadd.f32 0.0, %v969
      %v971 = vpop.f32.mrb[0].mxu0
      %972 = vmatprep.mubr.bf16.mxu0 0
      %973 = vmatmul.mubr.bf16.gmra.mrb[0].mxu0 %v790
      %v974 = vpop.f32.mrb[0].mxu0
      %v975 = vadd.f32 0.0, %v974
      %v976 = vpop.f32.mrb[0].mxu0
      %v977 = vpop.f32.mrb[0].mxu0
      %v978 = vadd.f32 0.0, %v977
      %v979 = vpop.f32.mrb[0].mxu0
      %980 = vmatprep.mubr.bf16.mxu0 0
      %981 = vmatmul.mubr.bf16.gmra.mrb[0].mxu0 %v791
      %v982 = vpop.f32.mrb[0].mxu0
      %v983 = vadd.f32 0.0, %v982
      %v984 = vpop.f32.mrb[0].mxu0
      %v985 = vpop.f32.mrb[0].mxu0
      %v986 = vadd.f32 0.0, %v985
      %v987 = vpop.f32.mrb[0].mxu0
      %988 = vmatprep.mubr.bf16.mxu0 0
      %989 = vmatmul.mubr.bf16.gmra.mrb[0].mxu0 %v792
      %v990 = vpop.f32.mrb[0].mxu0
      %v991 = vadd.f32 0.0, %v990
      %v992 = vpop.f32.mrb[0].mxu0
      %v993 = vpop.f32.mrb[0].mxu0
      %v994 = vadd.f32 0.0, %v993
      %v995 = vpop.f32.mrb[0].mxu0
      %996 = vmatprep.mubr.bf16.mxu0 0
      %997 = vmatmul.mubr.bf16.gmra.mrb[0].mxu0 %v793
      %v998 = vpop.f32.mrb[0].mxu0
      %v999 = vadd.f32 0.0, %v998
      %v1000 = vpop.f32.mrb[0].mxu0
      %v1001 = vpop.f32.mrb[0].mxu0
      %v1002 = vadd.f32 0.0, %v1001
      %v1003 = vpop.f32.mrb[0].mxu0
      %1004 = vmatprep.mubr.bf16.mxu0 0
      %1005 = vmatmul.mubr.bf16.gmra.mrb[0].mxu0 %v794
      %v1006 = vpop.f32.mrb[0].mxu0
      %v1007 = vadd.f32 0.0, %v1006
      %v1008 = vpop.f32.mrb[0].mxu0
      %v1009 = vpop.f32.mrb[0].mxu0
      %v1010 = vadd.f32 0.0, %v1009
      %v1011 = vpop.f32.mrb[0].mxu0
      %1012 = vmatprep.mubr.bf16.mxu0 0
      %1013 = vmatmul.mubr.bf16.gmra.mrb[0].mxu0 %v795
      %v1014 = vpop.f32.mrb[0].mxu0
      %v1015 = vadd.f32 0.0, %v1014
      %v1016 = vpop.f32.mrb[0].mxu0
      %v1017 = vpop.f32.mrb[0].mxu0
      %v1018 = vadd.f32 0.0, %v1017
      %v1019 = vpop.f32.mrb[0].mxu0
      %1020 = vdwg.mxu0
      %v1053 = vunpack.c.l.b16 %v280
      %v1054 = vunpack.c.l.b16 %v281
      %v1055 = vunpack.c.l.b16 %v282
      %v1056 = vunpack.c.l.b16 %v283
      %v1057 = vunpack.c.l.b16 %v284
      %v1058 = vunpack.c.l.b16 %v285
      %v1059 = vunpack.c.l.b16 %v286
      %v1060 = vunpack.c.l.b16 %v287
      %v1061 = vunpack.c.l.b16 %v288
      %v1062 = vunpack.c.l.b16 %v289
      %v1063 = vunpack.c.l.b16 %v290
      %v1064 = vunpack.c.l.b16 %v291
      %v1065 = vunpack.c.l.b16 %v292
      %v1066 = vunpack.c.l.b16 %v293
      %v1067 = vunpack.c.l.b16 %v294
      %v1068 = vunpack.c.l.b16 %v295
      %v1069 = vunpack.c.l.b16 %v296
      %v1070 = vunpack.c.l.b16 %v297
      %v1071 = vunpack.c.l.b16 %v298
      %v1072 = vunpack.c.l.b16 %v299
      %v1073 = vunpack.c.l.b16 %v300
      %v1074 = vunpack.c.l.b16 %v301
      %v1075 = vunpack.c.l.b16 %v302
      %v1076 = vunpack.c.l.b16 %v303
      %v1077 = vunpack.c.l.b16 %v304
      %v1078 = vunpack.c.l.b16 %v305
      %v1079 = vunpack.c.l.b16 %v306
      %v1080 = vunpack.c.l.b16 %v307
      %v1081 = vunpack.c.l.b16 %v308
      %v1082 = vunpack.c.l.b16 %v309
      %v1083 = vunpack.c.l.b16 %v310
      %v1084 = vunpack.c.l.b16 %v311
      %v1085 = vpack.c.b16 %v1054, %v1053
      %v1086 = vpack.c.b16 %v1056, %v1055
      %v1087 = vpack.c.b16 %v1058, %v1057
      %v1088 = vpack.c.b16 %v1060, %v1059
      %v1089 = vpack.c.b16 %v1062, %v1061
      %v1090 = vpack.c.b16 %v1064, %v1063
      %v1091 = vpack.c.b16 %v1066, %v1065
      %v1092 = vpack.c.b16 %v1068, %v1067
      %v1093 = vpack.c.b16 %v1070, %v1069
      %v1094 = vpack.c.b16 %v1072, %v1071
      %v1095 = vpack.c.b16 %v1074, %v1073
      %v1096 = vpack.c.b16 %v1076, %v1075
      %v1097 = vpack.c.b16 %v1078, %v1077
      %v1098 = vpack.c.b16 %v1080, %v1079
      %v1099 = vpack.c.b16 %v1082, %v1081
      %v1100 = vpack.c.b16 %v1084, %v1083
      %v1133 = vunpack.c.l.b16 %v312
      %v1134 = vunpack.c.l.b16 %v313
      %v1135 = vunpack.c.l.b16 %v314
      %v1136 = vunpack.c.l.b16 %v315
      %v1137 = vunpack.c.l.b16 %v316
      %v1138 = vunpack.c.l.b16 %v317
      %v1139 = vunpack.c.l.b16 %v318
      %v1140 = vunpack.c.l.b16 %v319
      %v1141 = vunpack.c.l.b16 %v320
      %v1142 = vunpack.c.l.b16 %v321
      %v1143 = vunpack.c.l.b16 %v322
      %v1144 = vunpack.c.l.b16 %v323
      %v1145 = vunpack.c.l.b16 %v324
      %v1146 = vunpack.c.l.b16 %v325
      %v1147 = vunpack.c.l.b16 %v326
      %v1148 = vunpack.c.l.b16 %v327
      %v1149 = vpack.c.b16 %v1134, %v1133
      %v1150 = vpack.c.b16 %v1136, %v1135
      %v1151 = vpack.c.b16 %v1138, %v1137
      %v1152 = vpack.c.b16 %v1140, %v1139
      %v1153 = vpack.c.b16 %v1142, %v1141
      %v1154 = vpack.c.b16 %v1144, %v1143
      %v1155 = vpack.c.b16 %v1146, %v1145
      %v1156 = vpack.c.b16 %v1148, %v1147
      %1165 = vmatprep.subr.bf16.mxu0 0
      %1166 = vmatpush1.bf16.msra.mxu0 %v1149
      %1167 = vmatprep.subr.bf16.mxu0 0
      %1168 = vmatpush1.bf16.msra.mxu0 %v1150
      %1169 = vmatprep.subr.bf16.mxu0 0
      %1170 = vmatpush1.bf16.msra.mxu0 %v1151
      %1171 = vmatprep.subr.bf16.mxu0 0
      %1172 = vmatpush1.bf16.msra.mxu0 %v1152
      %1173 = vmatprep.subr.bf16.mxu0 0
      %1174 = vmatpush1.bf16.msra.mxu0 %v1153
      %1175 = vmatprep.subr.bf16.mxu0 0
      %1176 = vmatpush1.bf16.msra.mxu0 %v1154
      %1177 = vmatprep.subr.bf16.mxu0 0
      %1178 = vmatpush1.bf16.msra.mxu0 %v1155
      %1179 = vmatprep.subr.bf16.mxu0 0
      %1180 = vmatpush1.bf16.msra.mxu0 %v1156
      %1181 = vmatprep.subr.bf16.mxu0 0
      %1182 = vmatpush1.bf16.msra.mxu0 0
      %1183 = vmatprep.subr.bf16.mxu0 0
      %1184 = vmatpush1.bf16.msra.mxu0 0
      %1185 = vmatprep.subr.bf16.mxu0 0
      %1186 = vmatpush1.bf16.msra.mxu0 0
      %1187 = vmatprep.subr.bf16.mxu0 0
      %1188 = vmatpush1.bf16.msra.mxu0 0
      %1189 = vmatprep.subr.bf16.mxu0 0
      %1190 = vmatpush1.bf16.msra.mxu0 0
      %1191 = vmatprep.subr.bf16.mxu0 0
      %1192 = vmatpush1.bf16.msra.mxu0 0
      %1193 = vmatprep.subr.bf16.mxu0 0
      %1194 = vmatpush1.bf16.msra.mxu0 0
      %1195 = vmatprep.subr.bf16.mxu0 0
      %1196 = vmatpush1.bf16.msra.mxu0 0
      %1197 = vmatprep.mubr.bf16.mxu0 0
      %1198 = vmatmul.mubr.bf16.gmra.mrb[0].mxu0 %v1085
      %v1199 = vpop.f32.mrb[0].mxu0
      %v1200 = vadd.f32 %v895, %v1199
      %v1201 = vpop.f32.mrb[0].mxu0
      %v1202 = vpop.f32.mrb[0].mxu0
      %v1203 = vadd.f32 %v898, %v1202
      %v1204 = vpop.f32.mrb[0].mxu0
      %1205 = vmatprep.mubr.bf16.mxu0 0
      %1206 = vmatmul.mubr.bf16.gmra.mrb[0].mxu0 %v1086
      %v1207 = vpop.f32.mrb[0].mxu0
      %v1208 = vadd.f32 %v903, %v1207
      %v1209 = vpop.f32.mrb[0].mxu0
      %v1210 = vpop.f32.mrb[0].mxu0
      %v1211 = vadd.f32 %v906, %v1210
      %v1212 = vpop.f32.mrb[0].mxu0
      %1213 = vmatprep.mubr.bf16.mxu0 0
      %1214 = vmatmul.mubr.bf16.gmra.mrb[0].mxu0 %v1087
      %v1215 = vpop.f32.mrb[0].mxu0
      %v1216 = vadd.f32 %v911, %v1215
      %v1217 = vpop.f32.mrb[0].mxu0
      %v1218 = vpop.f32.mrb[0].mxu0
      %v1219 = vadd.f32 %v914, %v1218
      %v1220 = vpop.f32.mrb[0].mxu0
      %1221 = vmatprep.mubr.bf16.mxu0 0
      %1222 = vmatmul.mubr.bf16.gmra.mrb[0].mxu0 %v1088
      %v1223 = vpop.f32.mrb[0].mxu0
      %v1224 = vadd.f32 %v919, %v1223
      %v1225 = vpop.f32.mrb[0].mxu0
      %v1226 = vpop.f32.mrb[0].mxu0
      %v1227 = vadd.f32 %v922, %v1226
      %v1228 = vpop.f32.mrb[0].mxu0
      %1229 = vmatprep.mubr.bf16.mxu0 0
      %1230 = vmatmul.mubr.bf16.gmra.mrb[0].mxu0 %v1089
      %v1231 = vpop.f32.mrb[0].mxu0
      %v1232 = vadd.f32 %v927, %v1231
      %v1233 = vpop.f32.mrb[0].mxu0
      %v1234 = vpop.f32.mrb[0].mxu0
      %v1235 = vadd.f32 %v930, %v1234
      %v1236 = vpop.f32.mrb[0].mxu0
      %1237 = vmatprep.mubr.bf16.mxu0 0
      %1238 = vmatmul.mubr.bf16.gmra.mrb[0].mxu0 %v1090
      %v1239 = vpop.f32.mrb[0].mxu0
      %v1240 = vadd.f32 %v935, %v1239
      %v1241 = vpop.f32.mrb[0].mxu0
      %v1242 = vpop.f32.mrb[0].mxu0
      %v1243 = vadd.f32 %v938, %v1242
      %v1244 = vpop.f32.mrb[0].mxu0
      %1245 = vmatprep.mubr.bf16.mxu0 0
      %1246 = vmatmul.mubr.bf16.gmra.mrb[0].mxu0 %v1091
      %v1247 = vpop.f32.mrb[0].mxu0
      %v1248 = vadd.f32 %v943, %v1247
      %v1249 = vpop.f32.mrb[0].mxu0
      %v1250 = vpop.f32.mrb[0].mxu0
      %v1251 = vadd.f32 %v946, %v1250
      %v1252 = vpop.f32.mrb[0].mxu0
      %1253 = vmatprep.mubr.bf16.mxu0 0
      %1254 = vmatmul.mubr.bf16.gmra.mrb[0].mxu0 %v1092
      %v1255 = vpop.f32.mrb[0].mxu0
      %v1256 = vadd.f32 %v951, %v1255
      %v1257 = vpop.f32.mrb[0].mxu0
      %v1258 = vpop.f32.mrb[0].mxu0
      %v1259 = vadd.f32 %v954, %v1258
      %v1260 = vpop.f32.mrb[0].mxu0
      %1261 = vmatprep.mubr.bf16.mxu0 0
      %1262 = vmatmul.mubr.bf16.gmra.mrb[0].mxu0 %v1093
      %v1263 = vpop.f32.mrb[0].mxu0
      %v1264 = vadd.f32 %v959, %v1263
      %v1265 = vpop.f32.mrb[0].mxu0
      %v1266 = vpop.f32.mrb[0].mxu0
      %v1267 = vadd.f32 %v962, %v1266
      %v1268 = vpop.f32.mrb[0].mxu0
      %1269 = vmatprep.mubr.bf16.mxu0 0
      %1270 = vmatmul.mubr.bf16.gmra.mrb[0].mxu0 %v1094
      %v1271 = vpop.f32.mrb[0].mxu0
      %v1272 = vadd.f32 %v967, %v1271
      %v1273 = vpop.f32.mrb[0].mxu0
      %v1274 = vpop.f32.mrb[0].mxu0
      %v1275 = vadd.f32 %v970, %v1274
      %v1276 = vpop.f32.mrb[0].mxu0
      %1277 = vmatprep.mubr.bf16.mxu0 0
      %1278 = vmatmul.mubr.bf16.gmra.mrb[0].mxu0 %v1095
      %v1279 = vpop.f32.mrb[0].mxu0
      %v1280 = vadd.f32 %v975, %v1279
      %v1281 = vpop.f32.mrb[0].mxu0
      %v1282 = vpop.f32.mrb[0].mxu0
      %v1283 = vadd.f32 %v978, %v1282
      %v1284 = vpop.f32.mrb[0].mxu0
      %1285 = vmatprep.mubr.bf16.mxu0 0
      %1286 = vmatmul.mubr.bf16.gmra.mrb[0].mxu0 %v1096
      %v1287 = vpop.f32.mrb[0].mxu0
      %v1288 = vadd.f32 %v983, %v1287
      %v1289 = vpop.f32.mrb[0].mxu0
      %v1290 = vpop.f32.mrb[0].mxu0
      %v1291 = vadd.f32 %v986, %v1290
      %v1292 = vpop.f32.mrb[0].mxu0
      %1293 = vmatprep.mubr.bf16.mxu0 0
      %1294 = vmatmul.mubr.bf16.gmra.mrb[0].mxu0 %v1097
      %v1295 = vpop.f32.mrb[0].mxu0
      %v1296 = vadd.f32 %v991, %v1295
      %v1297 = vpop.f32.mrb[0].mxu0
      %v1298 = vpop.f32.mrb[0].mxu0
      %v1299 = vadd.f32 %v994, %v1298
      %v1300 = vpop.f32.mrb[0].mxu0
      %1301 = vmatprep.mubr.bf16.mxu0 0
      %1302 = vmatmul.mubr.bf16.gmra.mrb[0].mxu0 %v1098
      %v1303 = vpop.f32.mrb[0].mxu0
      %v1304 = vadd.f32 %v999, %v1303
      %v1305 = vpop.f32.mrb[0].mxu0
      %v1306 = vpop.f32.mrb[0].mxu0
      %v1307 = vadd.f32 %v1002, %v1306
      %v1308 = vpop.f32.mrb[0].mxu0
      %1309 = vmatprep.mubr.bf16.mxu0 0
      %1310 = vmatmul.mubr.bf16.gmra.mrb[0].mxu0 %v1099
      %v1311 = vpop.f32.mrb[0].mxu0
      %v1312 = vadd.f32 %v1007, %v1311
      %v1313 = vpop.f32.mrb[0].mxu0
      %v1314 = vpop.f32.mrb[0].mxu0
      %v1315 = vadd.f32 %v1010, %v1314
      %v1316 = vpop.f32.mrb[0].mxu0
      %1317 = vmatprep.mubr.bf16.mxu0 0
      %1318 = vmatmul.mubr.bf16.gmra.mrb[0].mxu0 %v1100
      %v1319 = vpop.f32.mrb[0].mxu0
      %v1320 = vadd.f32 %v1015, %v1319
      %v1321 = vpop.f32.mrb[0].mxu0
      %v1322 = vpop.f32.mrb[0].mxu0
      %v1323 = vadd.f32 %v1018, %v1322
      %v1324 = vpop.f32.mrb[0].mxu0
      %1325 = vdwg.mxu0
      %v1326 = vld [vmem:[%s273] sm:$0xe]
      %v1327 = vld [vmem:[%s273 + $0xc] sm:$0xe]
      %v1328 = vld [vmem:[%s273 + $0x18] sm:$0xe]
      %v1329 = vld [vmem:[%s273 + $0x24] sm:$0xe]
      %v1330 = vld [vmem:[%s273 + $0x30] sm:$0xe]
      %v1331 = vld [vmem:[%s273 + $0x3c] sm:$0xe]
      %v1332 = vld [vmem:[%s273 + $0x48] sm:$0xe]
      %v1333 = vld [vmem:[%s273 + $0x54] sm:$0xe]
      %v1334 = vld [vmem:[%s273 + $0x60] sm:$0xe]
      %v1335 = vld [vmem:[%s273 + $0x6c] sm:$0xe]
      %v1336 = vld [vmem:[%s273 + $0x78] sm:$0xe]
      %v1337 = vld [vmem:[%s273 + $0x84] sm:$0xe]
      %v1338 = vld [vmem:[%s273 + $0x90] sm:$0xe]
      %v1339 = vld [vmem:[%s273 + $0x9c] sm:$0xe]
      %v1340 = vld [vmem:[%s273 + $0xa8] sm:$0xe]
      %v1341 = vld [vmem:[%s273 + $0xb4] sm:$0xe]
      %s1342 = scalar_lea.vmem %s1, 128
      %v1343 = vld [vmem:[%s1342] sm:$0xf]
      %v1344 = vld [vmem:[%s1342 + $0x4] sm:$0xf]
      %v1345 = vld [vmem:[%s1342 + $0x8] sm:$0xf]
      %v1346 = vld [vmem:[%s1342 + $0xc] sm:$0xf]
      %v1347 = vld [vmem:[%s1342 + $0x10] sm:$0xf]
      %v1348 = vld [vmem:[%s1342 + $0x14] sm:$0xf]
      %v1349 = vld [vmem:[%s1342 + $0x18] sm:$0xf]
      %v1350 = vld [vmem:[%s1342 + $0x1c] sm:$0xf]
      %v1351 = vld [vmem:[%s1342 + $0x20] sm:$0xf]
      %v1352 = vld [vmem:[%s1342 + $0x24] sm:$0xf]
      %v1353 = vld [vmem:[%s1342 + $0x28] sm:$0xf]
      %v1354 = vld [vmem:[%s1342 + $0x2c] sm:$0xf]
      %v1355 = vld [vmem:[%s1342 + $0x30] sm:$0xf]
      %v1356 = vld [vmem:[%s1342 + $0x34] sm:$0xf]
      %v1357 = vld [vmem:[%s1342 + $0x38] sm:$0xf]
      %v1358 = vld [vmem:[%s1342 + $0x3c] sm:$0xf]
      %vm1391 = vcmask 1042432
      %vm1392 = vcmask 1046532
      %vm1393 = vmor %vm1391, %vm1392
      %v1394 = vrot.slane %v1326, 5
      %v1395 = vrot.slane %v1394, 4
      %v1396 = vrot.slane %v281, 5
      %v1397 = vsel %vm1393, %v1395, %v1396
      %v1398 = vrot.slane %v1396, 4
      %v1399 = vrot.slane %v328, 5
      %v1400 = vsel %vm1393, %v1398, %v1399
      %v1401 = vrot.slane %v1327, 5
      %v1402 = vrot.slane %v1401, 4
      %v1403 = vrot.slane %v283, 5
      %v1404 = vsel %vm1393, %v1402, %v1403
      %v1405 = vrot.slane %v1403, 4
      %v1406 = vrot.slane %v329, 5
      %v1407 = vsel %vm1393, %v1405, %v1406
      %v1408 = vrot.slane %v1328, 5
      %v1409 = vrot.slane %v1408, 4
      %v1410 = vrot.slane %v285, 5
      %v1411 = vsel %vm1393, %v1409, %v1410
      %v1412 = vrot.slane %v1410, 4
      %v1413 = vrot.slane %v330, 5
      %v1414 = vsel %vm1393, %v1412, %v1413
      %v1415 = vrot.slane %v1329, 5
      %v1416 = vrot.slane %v1415, 4
      %v1417 = vrot.slane %v287, 5
      %v1418 = vsel %vm1393, %v1416, %v1417
      %v1419 = vrot.slane %v1417, 4
      %v1420 = vrot.slane %v331, 5
      %v1421 = vsel %vm1393, %v1419, %v1420
      %v1422 = vrot.slane %v1330, 5
      %v1423 = vrot.slane %v1422, 4
      %v1424 = vrot.slane %v289, 5
      %v1425 = vsel %vm1393, %v1423, %v1424
      %v1426 = vrot.slane %v1424, 4
      %v1427 = vrot.slane %v332, 5
      %v1428 = vsel %vm1393, %v1426, %v1427
      %v1429 = vrot.slane %v1331, 5
      %v1430 = vrot.slane %v1429, 4
      %v1431 = vrot.slane %v291, 5
      %v1432 = vsel %vm1393, %v1430, %v1431
      %v1433 = vrot.slane %v1431, 4
      %v1434 = vrot.slane %v333, 5
      %v1435 = vsel %vm1393, %v1433, %v1434
      %v1436 = vrot.slane %v1332, 5
      %v1437 = vrot.slane %v1436, 4
      %v1438 = vrot.slane %v293, 5
      %v1439 = vsel %vm1393, %v1437, %v1438
      %v1440 = vrot.slane %v1438, 4
      %v1441 = vrot.slane %v334, 5
      %v1442 = vsel %vm1393, %v1440, %v1441
      %v1443 = vrot.slane %v1333, 5
      %v1444 = vrot.slane %v1443, 4
      %v1445 = vrot.slane %v295, 5
      %v1446 = vsel %vm1393, %v1444, %v1445
      %v1447 = vrot.slane %v1445, 4
      %v1448 = vrot.slane %v335, 5
      %v1449 = vsel %vm1393, %v1447, %v1448
      %v1450 = vrot.slane %v1334, 5
      %v1451 = vrot.slane %v1450, 4
      %v1452 = vrot.slane %v297, 5
      %v1453 = vsel %vm1393, %v1451, %v1452
      %v1454 = vrot.slane %v1452, 4
      %v1455 = vrot.slane %v336, 5
      %v1456 = vsel %vm1393, %v1454, %v1455
      %v1457 = vrot.slane %v1335, 5
      %v1458 = vrot.slane %v1457, 4
      %v1459 = vrot.slane %v299, 5
      %v1460 = vsel %vm1393, %v1458, %v1459
      %v1461 = vrot.slane %v1459, 4
      %v1462 = vrot.slane %v337, 5
      %v1463 = vsel %vm1393, %v1461, %v1462
      %v1464 = vrot.slane %v1336, 5
      %v1465 = vrot.slane %v1464, 4
      %v1466 = vrot.slane %v301, 5
      %v1467 = vsel %vm1393, %v1465, %v1466
      %v1468 = vrot.slane %v1466, 4
      %v1469 = vrot.slane %v338, 5
      %v1470 = vsel %vm1393, %v1468, %v1469
      %v1471 = vrot.slane %v1337, 5
      %v1472 = vrot.slane %v1471, 4
      %v1473 = vrot.slane %v303, 5
      %v1474 = vsel %vm1393, %v1472, %v1473
      %v1475 = vrot.slane %v1473, 4
      %v1476 = vrot.slane %v339, 5
      %v1477 = vsel %vm1393, %v1475, %v1476
      %v1478 = vrot.slane %v1338, 5
      %v1479 = vrot.slane %v1478, 4
      %v1480 = vrot.slane %v305, 5
      %v1481 = vsel %vm1393, %v1479, %v1480
      %v1482 = vrot.slane %v1480, 4
      %v1483 = vrot.slane %v340, 5
      %v1484 = vsel %vm1393, %v1482, %v1483
      %v1485 = vrot.slane %v1339, 5
      %v1486 = vrot.slane %v1485, 4
      %v1487 = vrot.slane %v307, 5
      %v1488 = vsel %vm1393, %v1486, %v1487
      %v1489 = vrot.slane %v1487, 4
      %v1490 = vrot.slane %v341, 5
      %v1491 = vsel %vm1393, %v1489, %v1490
      %v1492 = vrot.slane %v1340, 5
      %v1493 = vrot.slane %v1492, 4
      %v1494 = vrot.slane %v309, 5
      %v1495 = vsel %vm1393, %v1493, %v1494
      %v1496 = vrot.slane %v1494, 4
      %v1497 = vrot.slane %v342, 5
      %v1498 = vsel %vm1393, %v1496, %v1497
      %v1499 = vrot.slane %v1341, 5
      %v1500 = vrot.slane %v1499, 4
      %v1501 = vrot.slane %v311, 5
      %v1502 = vsel %vm1393, %v1500, %v1501
      %v1503 = vrot.slane %v1501, 4
      %v1504 = vrot.slane %v343, 5
      %v1505 = vsel %vm1393, %v1503, %v1504
      %v1506 = vunpack.c.l.b16 %v1397
      %v1507 = vunpack.c.l.b16 %v1400
      %v1508 = vunpack.c.l.b16 %v1404
      %v1509 = vunpack.c.l.b16 %v1407
      %v1510 = vunpack.c.l.b16 %v1411
      %v1511 = vunpack.c.l.b16 %v1414
      %v1512 = vunpack.c.l.b16 %v1418
      %v1513 = vunpack.c.l.b16 %v1421
      %v1514 = vunpack.c.l.b16 %v1425
      %v1515 = vunpack.c.l.b16 %v1428
      %v1516 = vunpack.c.l.b16 %v1432
      %v1517 = vunpack.c.l.b16 %v1435
      %v1518 = vunpack.c.l.b16 %v1439
      %v1519 = vunpack.c.l.b16 %v1442
      %v1520 = vunpack.c.l.b16 %v1446
      %v1521 = vunpack.c.l.b16 %v1449
      %v1522 = vunpack.c.l.b16 %v1453
      %v1523 = vunpack.c.l.b16 %v1456
      %v1524 = vunpack.c.l.b16 %v1460
      %v1525 = vunpack.c.l.b16 %v1463
      %v1526 = vunpack.c.l.b16 %v1467
      %v1527 = vunpack.c.l.b16 %v1470
      %v1528 = vunpack.c.l.b16 %v1474
      %v1529 = vunpack.c.l.b16 %v1477
      %v1530 = vunpack.c.l.b16 %v1481
      %v1531 = vunpack.c.l.b16 %v1484
      %v1532 = vunpack.c.l.b16 %v1488
      %v1533 = vunpack.c.l.b16 %v1491
      %v1534 = vunpack.c.l.b16 %v1495
      %v1535 = vunpack.c.l.b16 %v1498
      %v1536 = vunpack.c.l.b16 %v1502
      %v1537 = vunpack.c.l.b16 %v1505
      %v1538 = vpack.c.b16 %v1507, %v1506
      %v1539 = vpack.c.b16 %v1509, %v1508
      %v1540 = vpack.c.b16 %v1511, %v1510
      %v1541 = vpack.c.b16 %v1513, %v1512
      %v1542 = vpack.c.b16 %v1515, %v1514
      %v1543 = vpack.c.b16 %v1517, %v1516
      %v1544 = vpack.c.b16 %v1519, %v1518
      %v1545 = vpack.c.b16 %v1521, %v1520
      %v1546 = vpack.c.b16 %v1523, %v1522
      %v1547 = vpack.c.b16 %v1525, %v1524
      %v1548 = vpack.c.b16 %v1527, %v1526
      %v1549 = vpack.c.b16 %v1529, %v1528
      %v1550 = vpack.c.b16 %v1531, %v1530
      %v1551 = vpack.c.b16 %v1533, %v1532
      %v1552 = vpack.c.b16 %v1535, %v1534
      %v1553 = vpack.c.b16 %v1537, %v1536
      %v1586 = vunpack.c.l.b16 %v1343
      %v1587 = vunpack.c.l.b16 %v1344
      %v1588 = vunpack.c.l.b16 %v1345
      %v1589 = vunpack.c.l.b16 %v1346
      %v1590 = vunpack.c.l.b16 %v1347
      %v1591 = vunpack.c.l.b16 %v1348
      %v1592 = vunpack.c.l.b16 %v1349
      %v1593 = vunpack.c.l.b16 %v1350
      %v1594 = vunpack.c.l.b16 %v1351
      %v1595 = vunpack.c.l.b16 %v1352
      %v1596 = vunpack.c.l.b16 %v1353
      %v1597 = vunpack.c.l.b16 %v1354
      %v1598 = vunpack.c.l.b16 %v1355
      %v1599 = vunpack.c.l.b16 %v1356
      %v1600 = vunpack.c.l.b16 %v1357
      %v1601 = vunpack.c.l.b16 %v1358
      %v1602 = vpack.c.b16 %v1587, %v1586
      %v1603 = vpack.c.b16 %v1589, %v1588
      %v1604 = vpack.c.b16 %v1591, %v1590
      %v1605 = vpack.c.b16 %v1593, %v1592
      %v1606 = vpack.c.b16 %v1595, %v1594
      %v1607 = vpack.c.b16 %v1597, %v1596
      %v1608 = vpack.c.b16 %v1599, %v1598
      %v1609 = vpack.c.b16 %v1601, %v1600
      %1618 = vmatprep.subr.bf16.mxu0 0
      %1619 = vmatpush1.bf16.msra.mxu0 %v1602
      %1620 = vmatprep.subr.bf16.mxu0 0
      %1621 = vmatpush1.bf16.msra.mxu0 %v1603
      %1622 = vmatprep.subr.bf16.mxu0 0
      %1623 = vmatpush1.bf16.msra.mxu0 %v1604
      %1624 = vmatprep.subr.bf16.mxu0 0
      %1625 = vmatpush1.bf16.msra.mxu0 %v1605
      %1626 = vmatprep.subr.bf16.mxu0 0
      %1627 = vmatpush1.bf16.msra.mxu0 %v1606
      %1628 = vmatprep.subr.bf16.mxu0 0
      %1629 = vmatpush1.bf16.msra.mxu0 %v1607
      %1630 = vmatprep.subr.bf16.mxu0 0
      %1631 = vmatpush1.bf16.msra.mxu0 %v1608
      %1632 = vmatprep.subr.bf16.mxu0 0
      %1633 = vmatpush1.bf16.msra.mxu0 %v1609
      %1634 = vmatprep.subr.bf16.mxu0 0
      %1635 = vmatpush1.bf16.msra.mxu0 0
      %1636 = vmatprep.subr.bf16.mxu0 0
      %1637 = vmatpush1.bf16.msra.mxu0 0
      %1638 = vmatprep.subr.bf16.mxu0 0
      %1639 = vmatpush1.bf16.msra.mxu0 0
      %1640 = vmatprep.subr.bf16.mxu0 0
      %1641 = vmatpush1.bf16.msra.mxu0 0
      %1642 = vmatprep.subr.bf16.mxu0 0
      %1643 = vmatpush1.bf16.msra.mxu0 0
      %1644 = vmatprep.subr.bf16.mxu0 0
      %1645 = vmatpush1.bf16.msra.mxu0 0
      %1646 = vmatprep.subr.bf16.mxu0 0
      %1647 = vmatpush1.bf16.msra.mxu0 0
      %1648 = vmatprep.subr.bf16.mxu0 0
      %1649 = vmatpush1.bf16.msra.mxu0 0
      %1650 = vmatprep.mubr.bf16.mxu0 0
      %1651 = vmatmul.mubr.bf16.gmra.mrb[0].mxu0 %v1538
      %v1652 = vpop.f32.mrb[0].mxu0
      %v1653 = vadd.f32 0.0, %v1652
      %v1654 = vpop.f32.mrb[0].mxu0
      %v1655 = vpop.f32.mrb[0].mxu0
      %v1656 = vadd.f32 0.0, %v1655
      %v1657 = vpop.f32.mrb[0].mxu0
      %1658 = vmatprep.mubr.bf16.mxu0 0
      %1659 = vmatmul.mubr.bf16.gmra.mrb[0].mxu0 %v1539
      %v1660 = vpop.f32.mrb[0].mxu0
      %v1661 = vadd.f32 0.0, %v1660
      %v1662 = vpop.f32.mrb[0].mxu0
      %v1663 = vpop.f32.mrb[0].mxu0
      %v1664 = vadd.f32 0.0, %v1663
      %v1665 = vpop.f32.mrb[0].mxu0
      %1666 = vmatprep.mubr.bf16.mxu0 0
      %1667 = vmatmul.mubr.bf16.gmra.mrb[0].mxu0 %v1540
      %v1668 = vpop.f32.mrb[0].mxu0
      %v1669 = vadd.f32 0.0, %v1668
      %v1670 = vpop.f32.mrb[0].mxu0
      %v1671 = vpop.f32.mrb[0].mxu0
      %v1672 = vadd.f32 0.0, %v1671
      %v1673 = vpop.f32.mrb[0].mxu0
      %1674 = vmatprep.mubr.bf16.mxu0 0
      %1675 = vmatmul.mubr.bf16.gmra.mrb[0].mxu0 %v1541
      %v1676 = vpop.f32.mrb[0].mxu0
      %v1677 = vadd.f32 0.0, %v1676
      %v1678 = vpop.f32.mrb[0].mxu0
      %v1679 = vpop.f32.mrb[0].mxu0
      %v1680 = vadd.f32 0.0, %v1679
      %v1681 = vpop.f32.mrb[0].mxu0
      %1682 = vmatprep.mubr.bf16.mxu0 0
      %1683 = vmatmul.mubr.bf16.gmra.mrb[0].mxu0 %v1542
      %v1684 = vpop.f32.mrb[0].mxu0
      %v1685 = vadd.f32 0.0, %v1684
      %v1686 = vpop.f32.mrb[0].mxu0
      %v1687 = vpop.f32.mrb[0].mxu0
      %v1688 = vadd.f32 0.0, %v1687
      %v1689 = vpop.f32.mrb[0].mxu0
      %1690 = vmatprep.mubr.bf16.mxu0 0
      %1691 = vmatmul.mubr.bf16.gmra.mrb[0].mxu0 %v1543
      %v1692 = vpop.f32.mrb[0].mxu0
      %v1693 = vadd.f32 0.0, %v1692
      %v1694 = vpop.f32.mrb[0].mxu0
      %v1695 = vpop.f32.mrb[0].mxu0
      %v1696 = vadd.f32 0.0, %v1695
      %v1697 = vpop.f32.mrb[0].mxu0
      %1698 = vmatprep.mubr.bf16.mxu0 0
      %1699 = vmatmul.mubr.bf16.gmra.mrb[0].mxu0 %v1544
      %v1700 = vpop.f32.mrb[0].mxu0
      %v1701 = vadd.f32 0.0, %v1700
      %v1702 = vpop.f32.mrb[0].mxu0
      %v1703 = vpop.f32.mrb[0].mxu0
      %v1704 = vadd.f32 0.0, %v1703
      %v1705 = vpop.f32.mrb[0].mxu0
      %1706 = vmatprep.mubr.bf16.mxu0 0
      %1707 = vmatmul.mubr.bf16.gmra.mrb[0].mxu0 %v1545
      %v1708 = vpop.f32.mrb[0].mxu0
      %v1709 = vadd.f32 0.0, %v1708
      %v1710 = vpop.f32.mrb[0].mxu0
      %v1711 = vpop.f32.mrb[0].mxu0
      %v1712 = vadd.f32 0.0, %v1711
      %v1713 = vpop.f32.mrb[0].mxu0
      %1714 = vmatprep.mubr.bf16.mxu0 0
      %1715 = vmatmul.mubr.bf16.gmra.mrb[0].mxu0 %v1546
      %v1716 = vpop.f32.mrb[0].mxu0
      %v1717 = vadd.f32 0.0, %v1716
      %v1718 = vpop.f32.mrb[0].mxu0
      %v1719 = vpop.f32.mrb[0].mxu0
      %v1720 = vadd.f32 0.0, %v1719
      %v1721 = vpop.f32.mrb[0].mxu0
      %1722 = vmatprep.mubr.bf16.mxu0 0
      %1723 = vmatmul.mubr.bf16.gmra.mrb[0].mxu0 %v1547
      %v1724 = vpop.f32.mrb[0].mxu0
      %v1725 = vadd.f32 0.0, %v1724
      %v1726 = vpop.f32.mrb[0].mxu0
      %v1727 = vpop.f32.mrb[0].mxu0
      %v1728 = vadd.f32 0.0, %v1727
      %v1729 = vpop.f32.mrb[0].mxu0
      %1730 = vmatprep.mubr.bf16.mxu0 0
      %1731 = vmatmul.mubr.bf16.gmra.mrb[0].mxu0 %v1548
      %v1732 = vpop.f32.mrb[0].mxu0
      %v1733 = vadd.f32 0.0, %v1732
      %v1734 = vpop.f32.mrb[0].mxu0
      %v1735 = vpop.f32.mrb[0].mxu0
      %v1736 = vadd.f32 0.0, %v1735
      %v1737 = vpop.f32.mrb[0].mxu0
      %1738 = vmatprep.mubr.bf16.mxu0 0
      %1739 = vmatmul.mubr.bf16.gmra.mrb[0].mxu0 %v1549
      %v1740 = vpop.f32.mrb[0].mxu0
      %v1741 = vadd.f32 0.0, %v1740
      %v1742 = vpop.f32.mrb[0].mxu0
      %v1743 = vpop.f32.mrb[0].mxu0
      %v1744 = vadd.f32 0.0, %v1743
      %v1745 = vpop.f32.mrb[0].mxu0
      %1746 = vmatprep.mubr.bf16.mxu0 0
      %1747 = vmatmul.mubr.bf16.gmra.mrb[0].mxu0 %v1550
      %v1748 = vpop.f32.mrb[0].mxu0
      %v1749 = vadd.f32 0.0, %v1748
      %v1750 = vpop.f32.mrb[0].mxu0
      %v1751 = vpop.f32.mrb[0].mxu0
      %v1752 = vadd.f32 0.0, %v1751
      %v1753 = vpop.f32.mrb[0].mxu0
      %1754 = vmatprep.mubr.bf16.mxu0 0
      %1755 = vmatmul.mubr.bf16.gmra.mrb[0].mxu0 %v1551
      %v1756 = vpop.f32.mrb[0].mxu0
      %v1757 = vadd.f32 0.0, %v1756
      %v1758 = vpop.f32.mrb[0].mxu0
      %v1759 = vpop.f32.mrb[0].mxu0
      %v1760 = vadd.f32 0.0, %v1759
      %v1761 = vpop.f32.mrb[0].mxu0
      %1762 = vmatprep.mubr.bf16.mxu0 0
      %1763 = vmatmul.mubr.bf16.gmra.mrb[0].mxu0 %v1552
      %v1764 = vpop.f32.mrb[0].mxu0
      %v1765 = vadd.f32 0.0, %v1764
      %v1766 = vpop.f32.mrb[0].mxu0
      %v1767 = vpop.f32.mrb[0].mxu0
      %v1768 = vadd.f32 0.0, %v1767
      %v1769 = vpop.f32.mrb[0].mxu0
      %1770 = vmatprep.mubr.bf16.mxu0 0
      %1771 = vmatmul.mubr.bf16.gmra.mrb[0].mxu0 %v1553
      %v1772 = vpop.f32.mrb[0].mxu0
      %v1773 = vadd.f32 0.0, %v1772
      %v1774 = vpop.f32.mrb[0].mxu0
      %v1775 = vpop.f32.mrb[0].mxu0
      %v1776 = vadd.f32 0.0, %v1775
      %v1777 = vpop.f32.mrb[0].mxu0
      %1778 = vdwg.mxu0
      %v1779 = vadd.f32 %v1200, %v1653
      %v1780 = vadd.f32 %v1203, %v1656
      %v1781 = vadd.f32 %v1208, %v1661
      %v1782 = vadd.f32 %v1211, %v1664
      %v1783 = vadd.f32 %v1216, %v1669
      %v1784 = vadd.f32 %v1219, %v1672
      %v1785 = vadd.f32 %v1224, %v1677
      %v1786 = vadd.f32 %v1227, %v1680
      %v1787 = vadd.f32 %v1232, %v1685
      %v1788 = vadd.f32 %v1235, %v1688
      %v1789 = vadd.f32 %v1240, %v1693
      %v1790 = vadd.f32 %v1243, %v1696
      %v1791 = vadd.f32 %v1248, %v1701
      %v1792 = vadd.f32 %v1251, %v1704
      %v1793 = vadd.f32 %v1256, %v1709
      %v1794 = vadd.f32 %v1259, %v1712
      %v1795 = vadd.f32 %v1264, %v1717
      %v1796 = vadd.f32 %v1267, %v1720
      %v1797 = vadd.f32 %v1272, %v1725
      %v1798 = vadd.f32 %v1275, %v1728
      %v1799 = vadd.f32 %v1280, %v1733
      %v1800 = vadd.f32 %v1283, %v1736
      %v1801 = vadd.f32 %v1288, %v1741
      %v1802 = vadd.f32 %v1291, %v1744
      %v1803 = vadd.f32 %v1296, %v1749
      %v1804 = vadd.f32 %v1299, %v1752
      %v1805 = vadd.f32 %v1304, %v1757
      %v1806 = vadd.f32 %v1307, %v1760
      %v1807 = vadd.f32 %v1312, %v1765
      %v1808 = vadd.f32 %v1315, %v1768
      %v1809 = vadd.f32 %v1320, %v1773
      %v1810 = vadd.f32 %v1323, %v1776
      %s1811 = scalar_lea.vmem %s273, 12
      %v1812 = vld [vmem:[%s1811] sm:$0xf]
      %v1813 = vld [vmem:[%s1811 + $0x4] sm:$0xf]
      %v1814 = vld [vmem:[%s1811 + $0xc] sm:$0xf]
      %v1815 = vld [vmem:[%s1811 + $0x10] sm:$0xf]
      %v1816 = vld [vmem:[%s1811 + $0x18] sm:$0xf]
      %v1817 = vld [vmem:[%s1811 + $0x1c] sm:$0xf]
      %v1818 = vld [vmem:[%s1811 + $0x24] sm:$0xf]
      %v1819 = vld [vmem:[%s1811 + $0x28] sm:$0xf]
      %v1820 = vld [vmem:[%s1811 + $0x30] sm:$0xf]
      %v1821 = vld [vmem:[%s1811 + $0x34] sm:$0xf]
      %v1822 = vld [vmem:[%s1811 + $0x3c] sm:$0xf]
      %v1823 = vld [vmem:[%s1811 + $0x40] sm:$0xf]
      %v1824 = vld [vmem:[%s1811 + $0x48] sm:$0xf]
      %v1825 = vld [vmem:[%s1811 + $0x4c] sm:$0xf]
      %v1826 = vld [vmem:[%s1811 + $0x54] sm:$0xf]
      %v1827 = vld [vmem:[%s1811 + $0x58] sm:$0xf]
      %v1828 = vld [vmem:[%s1811 + $0x60] sm:$0xf]
      %v1829 = vld [vmem:[%s1811 + $0x64] sm:$0xf]
      %v1830 = vld [vmem:[%s1811 + $0x6c] sm:$0xf]
      %v1831 = vld [vmem:[%s1811 + $0x70] sm:$0xf]
      %v1832 = vld [vmem:[%s1811 + $0x78] sm:$0xf]
      %v1833 = vld [vmem:[%s1811 + $0x7c] sm:$0xf]
      %v1834 = vld [vmem:[%s1811 + $0x84] sm:$0xf]
      %v1835 = vld [vmem:[%s1811 + $0x88] sm:$0xf]
      %v1836 = vld [vmem:[%s1811 + $0x90] sm:$0xf]
      %v1837 = vld [vmem:[%s1811 + $0x94] sm:$0xf]
      %v1838 = vld [vmem:[%s1811 + $0x9c] sm:$0xf]
      %v1839 = vld [vmem:[%s1811 + $0xa0] sm:$0xf]
      %v1840 = vld [vmem:[%s1811 + $0xa8] sm:$0xf]
      %v1841 = vld [vmem:[%s1811 + $0xac] sm:$0xf]
      %v1842 = vld [vmem:[%s1811 + $0xb4] sm:$0xf]
      %v1843 = vld [vmem:[%s1811 + $0xb8] sm:$0xf]
      %s1844 = scalar_lea.vmem %s1, 192
      %v1845 = vld [vmem:[%s1844] sm:$0xf]
      %v1846 = vld [vmem:[%s1844 + $0x4] sm:$0xf]
      %v1847 = vld [vmem:[%s1844 + $0x8] sm:$0xf]
      %v1848 = vld [vmem:[%s1844 + $0xc] sm:$0xf]
      %v1849 = vld [vmem:[%s1844 + $0x10] sm:$0xf]
      %v1850 = vld [vmem:[%s1844 + $0x14] sm:$0xf]
      %v1851 = vld [vmem:[%s1844 + $0x18] sm:$0xf]
      %v1852 = vld [vmem:[%s1844 + $0x1c] sm:$0xf]
      %v1853 = vld [vmem:[%s1844 + $0x20] sm:$0xf]
      %v1854 = vld [vmem:[%s1844 + $0x24] sm:$0xf]
      %v1855 = vld [vmem:[%s1844 + $0x28] sm:$0xf]
      %v1856 = vld [vmem:[%s1844 + $0x2c] sm:$0xf]
      %v1857 = vld [vmem:[%s1844 + $0x30] sm:$0xf]
      %v1858 = vld [vmem:[%s1844 + $0x34] sm:$0xf]
      %v1859 = vld [vmem:[%s1844 + $0x38] sm:$0xf]
      %v1860 = vld [vmem:[%s1844 + $0x3c] sm:$0xf]
      %v1893 = vunpack.c.l.b16 %v1812
      %v1894 = vunpack.c.l.b16 %v1813
      %v1895 = vunpack.c.l.b16 %v1814
      %v1896 = vunpack.c.l.b16 %v1815
      %v1897 = vunpack.c.l.b16 %v1816
      %v1898 = vunpack.c.l.b16 %v1817
      %v1899 = vunpack.c.l.b16 %v1818
      %v1900 = vunpack.c.l.b16 %v1819
      %v1901 = vunpack.c.l.b16 %v1820
      %v1902 = vunpack.c.l.b16 %v1821
      %v1903 = vunpack.c.l.b16 %v1822
      %v1904 = vunpack.c.l.b16 %v1823
      %v1905 = vunpack.c.l.b16 %v1824
      %v1906 = vunpack.c.l.b16 %v1825
      %v1907 = vunpack.c.l.b16 %v1826
      %v1908 = vunpack.c.l.b16 %v1827
      %v1909 = vunpack.c.l.b16 %v1828
      %v1910 = vunpack.c.l.b16 %v1829
      %v1911 = vunpack.c.l.b16 %v1830
      %v1912 = vunpack.c.l.b16 %v1831
      %v1913 = vunpack.c.l.b16 %v1832
      %v1914 = vunpack.c.l.b16 %v1833
      %v1915 = vunpack.c.l.b16 %v1834
      %v1916 = vunpack.c.l.b16 %v1835
      %v1917 = vunpack.c.l.b16 %v1836
      %v1918 = vunpack.c.l.b16 %v1837
      %v1919 = vunpack.c.l.b16 %v1838
      %v1920 = vunpack.c.l.b16 %v1839
      %v1921 = vunpack.c.l.b16 %v1840
      %v1922 = vunpack.c.l.b16 %v1841
      %v1923 = vunpack.c.l.b16 %v1842
      %v1924 = vunpack.c.l.b16 %v1843
      %v1925 = vpack.c.b16 %v1894, %v1893
      %v1926 = vpack.c.b16 %v1896, %v1895
      %v1927 = vpack.c.b16 %v1898, %v1897
      %v1928 = vpack.c.b16 %v1900, %v1899
      %v1929 = vpack.c.b16 %v1902, %v1901
      %v1930 = vpack.c.b16 %v1904, %v1903
      %v1931 = vpack.c.b16 %v1906, %v1905
      %v1932 = vpack.c.b16 %v1908, %v1907
      %v1933 = vpack.c.b16 %v1910, %v1909
      %v1934 = vpack.c.b16 %v1912, %v1911
      %v1935 = vpack.c.b16 %v1914, %v1913
      %v1936 = vpack.c.b16 %v1916, %v1915
      %v1937 = vpack.c.b16 %v1918, %v1917
      %v1938 = vpack.c.b16 %v1920, %v1919
      %v1939 = vpack.c.b16 %v1922, %v1921
      %v1940 = vpack.c.b16 %v1924, %v1923
      %v1973 = vunpack.c.l.b16 %v1845
      %v1974 = vunpack.c.l.b16 %v1846
      %v1975 = vunpack.c.l.b16 %v1847
      %v1976 = vunpack.c.l.b16 %v1848
      %v1977 = vunpack.c.l.b16 %v1849
      %v1978 = vunpack.c.l.b16 %v1850
      %v1979 = vunpack.c.l.b16 %v1851
      %v1980 = vunpack.c.l.b16 %v1852
      %v1981 = vunpack.c.l.b16 %v1853
      %v1982 = vunpack.c.l.b16 %v1854
      %v1983 = vunpack.c.l.b16 %v1855
      %v1984 = vunpack.c.l.b16 %v1856
      %v1985 = vunpack.c.l.b16 %v1857
      %v1986 = vunpack.c.l.b16 %v1858
      %v1987 = vunpack.c.l.b16 %v1859
      %v1988 = vunpack.c.l.b16 %v1860
      %v1989 = vpack.c.b16 %v1974, %v1973
      %v1990 = vpack.c.b16 %v1976, %v1975
      %v1991 = vpack.c.b16 %v1978, %v1977
      %v1992 = vpack.c.b16 %v1980, %v1979
      %v1993 = vpack.c.b16 %v1982, %v1981
      %v1994 = vpack.c.b16 %v1984, %v1983
      %v1995 = vpack.c.b16 %v1986, %v1985
      %v1996 = vpack.c.b16 %v1988, %v1987
      %2005 = vmatprep.subr.bf16.mxu0 0
      %2006 = vmatpush1.bf16.msra.mxu0 %v1989
      %2007 = vmatprep.subr.bf16.mxu0 0
      %2008 = vmatpush1.bf16.msra.mxu0 %v1990
      %2009 = vmatprep.subr.bf16.mxu0 0
      %2010 = vmatpush1.bf16.msra.mxu0 %v1991
      %2011 = vmatprep.subr.bf16.mxu0 0
      %2012 = vmatpush1.bf16.msra.mxu0 %v1992
      %2013 = vmatprep.subr.bf16.mxu0 0
      %2014 = vmatpush1.bf16.msra.mxu0 %v1993
      %2015 = vmatprep.subr.bf16.mxu0 0
      %2016 = vmatpush1.bf16.msra.mxu0 %v1994
      %2017 = vmatprep.subr.bf16.mxu0 0
      %2018 = vmatpush1.bf16.msra.mxu0 %v1995
      %2019 = vmatprep.subr.bf16.mxu0 0
      %2020 = vmatpush1.bf16.msra.mxu0 %v1996
      %2021 = vmatprep.subr.bf16.mxu0 0
      %2022 = vmatpush1.bf16.msra.mxu0 0
      %2023 = vmatprep.subr.bf16.mxu0 0
      %2024 = vmatpush1.bf16.msra.mxu0 0
      %2025 = vmatprep.subr.bf16.mxu0 0
      %2026 = vmatpush1.bf16.msra.mxu0 0
      %2027 = vmatprep.subr.bf16.mxu0 0
      %2028 = vmatpush1.bf16.msra.mxu0 0
      %2029 = vmatprep.subr.bf16.mxu0 0
      %2030 = vmatpush1.bf16.msra.mxu0 0
      %2031 = vmatprep.subr.bf16.mxu0 0
      %2032 = vmatpush1.bf16.msra.mxu0 0
      %2033 = vmatprep.subr.bf16.mxu0 0
      %2034 = vmatpush1.bf16.msra.mxu0 0
      %2035 = vmatprep.subr.bf16.mxu0 0
      %2036 = vmatpush1.bf16.msra.mxu0 0
      %2037 = vmatprep.mubr.bf16.mxu0 0
      %2038 = vmatmul.mubr.bf16.gmra.mrb[0].mxu0 %v1925
      %v2039 = vpop.f32.mrb[0].mxu0
      %v2040 = vadd.f32 0.0, %v2039
      %v2041 = vpop.f32.mrb[0].mxu0
      %v2042 = vpop.f32.mrb[0].mxu0
      %v2043 = vadd.f32 0.0, %v2042
      %v2044 = vpop.f32.mrb[0].mxu0
      %2045 = vmatprep.mubr.bf16.mxu0 0
      %2046 = vmatmul.mubr.bf16.gmra.mrb[0].mxu0 %v1926
      %v2047 = vpop.f32.mrb[0].mxu0
      %v2048 = vadd.f32 0.0, %v2047
      %v2049 = vpop.f32.mrb[0].mxu0
      %v2050 = vpop.f32.mrb[0].mxu0
      %v2051 = vadd.f32 0.0, %v2050
      %v2052 = vpop.f32.mrb[0].mxu0
      %2053 = vmatprep.mubr.bf16.mxu0 0
      %2054 = vmatmul.mubr.bf16.gmra.mrb[0].mxu0 %v1927
      %v2055 = vpop.f32.mrb[0].mxu0
      %v2056 = vadd.f32 0.0, %v2055
      %v2057 = vpop.f32.mrb[0].mxu0
      %v2058 = vpop.f32.mrb[0].mxu0
      %v2059 = vadd.f32 0.0, %v2058
      %v2060 = vpop.f32.mrb[0].mxu0
      %2061 = vmatprep.mubr.bf16.mxu0 0
      %2062 = vmatmul.mubr.bf16.gmra.mrb[0].mxu0 %v1928
      %v2063 = vpop.f32.mrb[0].mxu0
      %v2064 = vadd.f32 0.0, %v2063
      %v2065 = vpop.f32.mrb[0].mxu0
      %v2066 = vpop.f32.mrb[0].mxu0
      %v2067 = vadd.f32 0.0, %v2066
      %v2068 = vpop.f32.mrb[0].mxu0
      %2069 = vmatprep.mubr.bf16.mxu0 0
      %2070 = vmatmul.mubr.bf16.gmra.mrb[0].mxu0 %v1929
      %v2071 = vpop.f32.mrb[0].mxu0
      %v2072 = vadd.f32 0.0, %v2071
      %v2073 = vpop.f32.mrb[0].mxu0
      %v2074 = vpop.f32.mrb[0].mxu0
      %v2075 = vadd.f32 0.0, %v2074
      %v2076 = vpop.f32.mrb[0].mxu0
      %2077 = vmatprep.mubr.bf16.mxu0 0
      %2078 = vmatmul.mubr.bf16.gmra.mrb[0].mxu0 %v1930
      %v2079 = vpop.f32.mrb[0].mxu0
      %v2080 = vadd.f32 0.0, %v2079
      %v2081 = vpop.f32.mrb[0].mxu0
      %v2082 = vpop.f32.mrb[0].mxu0
      %v2083 = vadd.f32 0.0, %v2082
      %v2084 = vpop.f32.mrb[0].mxu0
      %2085 = vmatprep.mubr.bf16.mxu0 0
      %2086 = vmatmul.mubr.bf16.gmra.mrb[0].mxu0 %v1931
      %v2087 = vpop.f32.mrb[0].mxu0
      %v2088 = vadd.f32 0.0, %v2087
      %v2089 = vpop.f32.mrb[0].mxu0
      %v2090 = vpop.f32.mrb[0].mxu0
      %v2091 = vadd.f32 0.0, %v2090
      %v2092 = vpop.f32.mrb[0].mxu0
      %2093 = vmatprep.mubr.bf16.mxu0 0
      %2094 = vmatmul.mubr.bf16.gmra.mrb[0].mxu0 %v1932
      %v2095 = vpop.f32.mrb[0].mxu0
      %v2096 = vadd.f32 0.0, %v2095
      %v2097 = vpop.f32.mrb[0].mxu0
      %v2098 = vpop.f32.mrb[0].mxu0
      %v2099 = vadd.f32 0.0, %v2098
      %v2100 = vpop.f32.mrb[0].mxu0
      %2101 = vmatprep.mubr.bf16.mxu0 0
      %2102 = vmatmul.mubr.bf16.gmra.mrb[0].mxu0 %v1933
      %v2103 = vpop.f32.mrb[0].mxu0
      %v2104 = vadd.f32 0.0, %v2103
      %v2105 = vpop.f32.mrb[0].mxu0
      %v2106 = vpop.f32.mrb[0].mxu0
      %v2107 = vadd.f32 0.0, %v2106
      %v2108 = vpop.f32.mrb[0].mxu0
      %2109 = vmatprep.mubr.bf16.mxu0 0
      %2110 = vmatmul.mubr.bf16.gmra.mrb[0].mxu0 %v1934
      %v2111 = vpop.f32.mrb[0].mxu0
      %v2112 = vadd.f32 0.0, %v2111
      %v2113 = vpop.f32.mrb[0].mxu0
      %v2114 = vpop.f32.mrb[0].mxu0
      %v2115 = vadd.f32 0.0, %v2114
      %v2116 = vpop.f32.mrb[0].mxu0
      %2117 = vmatprep.mubr.bf16.mxu0 0
      %2118 = vmatmul.mubr.bf16.gmra.mrb[0].mxu0 %v1935
      %v2119 = vpop.f32.mrb[0].mxu0
      %v2120 = vadd.f32 0.0, %v2119
      %v2121 = vpop.f32.mrb[0].mxu0
      %v2122 = vpop.f32.mrb[0].mxu0
      %v2123 = vadd.f32 0.0, %v2122
      %v2124 = vpop.f32.mrb[0].mxu0
      %2125 = vmatprep.mubr.bf16.mxu0 0
      %2126 = vmatmul.mubr.bf16.gmra.mrb[0].mxu0 %v1936
      %v2127 = vpop.f32.mrb[0].mxu0
      %v2128 = vadd.f32 0.0, %v2127
      %v2129 = vpop.f32.mrb[0].mxu0
      %v2130 = vpop.f32.mrb[0].mxu0
      %v2131 = vadd.f32 0.0, %v2130
      %v2132 = vpop.f32.mrb[0].mxu0
      %2133 = vmatprep.mubr.bf16.mxu0 0
      %2134 = vmatmul.mubr.bf16.gmra.mrb[0].mxu0 %v1937
      %v2135 = vpop.f32.mrb[0].mxu0
      %v2136 = vadd.f32 0.0, %v2135
      %v2137 = vpop.f32.mrb[0].mxu0
      %v2138 = vpop.f32.mrb[0].mxu0
      %v2139 = vadd.f32 0.0, %v2138
      %v2140 = vpop.f32.mrb[0].mxu0
      %2141 = vmatprep.mubr.bf16.mxu0 0
      %2142 = vmatmul.mubr.bf16.gmra.mrb[0].mxu0 %v1938
      %v2143 = vpop.f32.mrb[0].mxu0
      %v2144 = vadd.f32 0.0, %v2143
      %v2145 = vpop.f32.mrb[0].mxu0
      %v2146 = vpop.f32.mrb[0].mxu0
      %v2147 = vadd.f32 0.0, %v2146
      %v2148 = vpop.f32.mrb[0].mxu0
      %2149 = vmatprep.mubr.bf16.mxu0 0
      %2150 = vmatmul.mubr.bf16.gmra.mrb[0].mxu0 %v1939
      %v2151 = vpop.f32.mrb[0].mxu0
      %v2152 = vadd.f32 0.0, %v2151
      %v2153 = vpop.f32.mrb[0].mxu0
      %v2154 = vpop.f32.mrb[0].mxu0
      %v2155 = vadd.f32 0.0, %v2154
      %v2156 = vpop.f32.mrb[0].mxu0
      %2157 = vmatprep.mubr.bf16.mxu0 0
      %2158 = vmatmul.mubr.bf16.gmra.mrb[0].mxu0 %v1940
      %v2159 = vpop.f32.mrb[0].mxu0
      %v2160 = vadd.f32 0.0, %v2159
      %v2161 = vpop.f32.mrb[0].mxu0
      %v2162 = vpop.f32.mrb[0].mxu0
      %v2163 = vadd.f32 0.0, %v2162
      %v2164 = vpop.f32.mrb[0].mxu0
      %2165 = vdwg.mxu0
      %v2166 = vadd.f32 %v1779, %v2040
      %v2167 = vadd.f32 %v1780, %v2043
      %v2168 = vadd.f32 %v1781, %v2048
      %v2169 = vadd.f32 %v1782, %v2051
      %v2170 = vadd.f32 %v1783, %v2056
      %v2171 = vadd.f32 %v1784, %v2059
      %v2172 = vadd.f32 %v1785, %v2064
      %v2173 = vadd.f32 %v1786, %v2067
      %v2174 = vadd.f32 %v1787, %v2072
      %v2175 = vadd.f32 %v1788, %v2075
      %v2176 = vadd.f32 %v1789, %v2080
      %v2177 = vadd.f32 %v1790, %v2083
      %v2178 = vadd.f32 %v1791, %v2088
      %v2179 = vadd.f32 %v1792, %v2091
      %v2180 = vadd.f32 %v1793, %v2096
      %v2181 = vadd.f32 %v1794, %v2099
      %v2182 = vadd.f32 %v1795, %v2104
      %v2183 = vadd.f32 %v1796, %v2107
      %v2184 = vadd.f32 %v1797, %v2112
      %v2185 = vadd.f32 %v1798, %v2115
      %v2186 = vadd.f32 %v1799, %v2120
      %v2187 = vadd.f32 %v1800, %v2123
      %v2188 = vadd.f32 %v1801, %v2128
      %v2189 = vadd.f32 %v1802, %v2131
      %v2190 = vadd.f32 %v1803, %v2136
      %v2191 = vadd.f32 %v1804, %v2139
      %v2192 = vadd.f32 %v1805, %v2144
      %v2193 = vadd.f32 %v1806, %v2147
      %v2194 = vadd.f32 %v1807, %v2152
      %v2195 = vadd.f32 %v1808, %v2155
      %v2196 = vadd.f32 %v1809, %v2160
      %v2197 = vadd.f32 %v1810, %v2163
      %v2198 = vld [vmem:[%s1811] sm:$0xf]
      %v2199 = vld [vmem:[%s1811 + $0x4] sm:$0xf]
      %v2200 = vld [vmem:[%s1811 + $0x8] sm:$0x1]
      %v2201 = vld [vmem:[%s1811 + $0xc] sm:$0xf]
      %v2202 = vld [vmem:[%s1811 + $0x10] sm:$0xf]
      %v2203 = vld [vmem:[%s1811 + $0x14] sm:$0x1]
      %v2204 = vld [vmem:[%s1811 + $0x18] sm:$0xf]
      %v2205 = vld [vmem:[%s1811 + $0x1c] sm:$0xf]
      %v2206 = vld [vmem:[%s1811 + $0x20] sm:$0x1]
      %v2207 = vld [vmem:[%s1811 + $0x24] sm:$0xf]
      %v2208 = vld [vmem:[%s1811 + $0x28] sm:$0xf]
      %v2209 = vld [vmem:[%s1811 + $0x2c] sm:$0x1]
      %v2210 = vld [vmem:[%s1811 + $0x30] sm:$0xf]
      %v2211 = vld [vmem:[%s1811 + $0x34] sm:$0xf]
      %v2212 = vld [vmem:[%s1811 + $0x38] sm:$0x1]
      %v2213 = vld [vmem:[%s1811 + $0x3c] sm:$0xf]
      %v2214 = vld [vmem:[%s1811 + $0x40] sm:$0xf]
      %v2215 = vld [vmem:[%s1811 + $0x44] sm:$0x1]
      %v2216 = vld [vmem:[%s1811 + $0x48] sm:$0xf]
      %v2217 = vld [vmem:[%s1811 + $0x4c] sm:$0xf]
      %v2218 = vld [vmem:[%s1811 + $0x50] sm:$0x1]
      %v2219 = vld [vmem:[%s1811 + $0x54] sm:$0xf]
      %v2220 = vld [vmem:[%s1811 + $0x58] sm:$0xf]
      %v2221 = vld [vmem:[%s1811 + $0x5c] sm:$0x1]
      %v2222 = vld [vmem:[%s1811 + $0x60] sm:$0xf]
      %v2223 = vld [vmem:[%s1811 + $0x64] sm:$0xf]
      %v2224 = vld [vmem:[%s1811 + $0x68] sm:$0x1]
      %v2225 = vld [vmem:[%s1811 + $0x6c] sm:$0xf]
      %v2226 = vld [vmem:[%s1811 + $0x70] sm:$0xf]
      %v2227 = vld [vmem:[%s1811 + $0x74] sm:$0x1]
      %v2228 = vld [vmem:[%s1811 + $0x78] sm:$0xf]
      %v2229 = vld [vmem:[%s1811 + $0x7c] sm:$0xf]
      %v2230 = vld [vmem:[%s1811 + $0x80] sm:$0x1]
      %v2231 = vld [vmem:[%s1811 + $0x84] sm:$0xf]
      %v2232 = vld [vmem:[%s1811 + $0x88] sm:$0xf]
      %v2233 = vld [vmem:[%s1811 + $0x8c] sm:$0x1]
      %v2234 = vld [vmem:[%s1811 + $0x90] sm:$0xf]
      %v2235 = vld [vmem:[%s1811 + $0x94] sm:$0xf]
      %v2236 = vld [vmem:[%s1811 + $0x98] sm:$0x1]
      %v2237 = vld [vmem:[%s1811 + $0x9c] sm:$0xf]
      %v2238 = vld [vmem:[%s1811 + $0xa0] sm:$0xf]
      %v2239 = vld [vmem:[%s1811 + $0xa4] sm:$0x1]
      %v2240 = vld [vmem:[%s1811 + $0xa8] sm:$0xf]
      %v2241 = vld [vmem:[%s1811 + $0xac] sm:$0xf]
      %v2242 = vld [vmem:[%s1811 + $0xb0] sm:$0x1]
      %v2243 = vld [vmem:[%s1811 + $0xb4] sm:$0xf]
      %v2244 = vld [vmem:[%s1811 + $0xb8] sm:$0xf]
      %v2245 = vld [vmem:[%s1811 + $0xbc] sm:$0x1]
      %s2246 = scalar_lea.vmem %s1, 256
      %v2247 = vld [vmem:[%s2246] sm:$0xf]
      %v2248 = vld [vmem:[%s2246 + $0x4] sm:$0xf]
      %v2249 = vld [vmem:[%s2246 + $0x8] sm:$0xf]
      %v2250 = vld [vmem:[%s2246 + $0xc] sm:$0xf]
      %v2251 = vld [vmem:[%s2246 + $0x10] sm:$0xf]
      %v2252 = vld [vmem:[%s2246 + $0x14] sm:$0xf]
      %v2253 = vld [vmem:[%s2246 + $0x18] sm:$0xf]
      %v2254 = vld [vmem:[%s2246 + $0x1c] sm:$0xf]
      %v2255 = vld [vmem:[%s2246 + $0x20] sm:$0xf]
      %v2256 = vld [vmem:[%s2246 + $0x24] sm:$0xf]
      %v2257 = vld [vmem:[%s2246 + $0x28] sm:$0xf]
      %v2258 = vld [vmem:[%s2246 + $0x2c] sm:$0xf]
      %v2259 = vld [vmem:[%s2246 + $0x30] sm:$0xf]
      %v2260 = vld [vmem:[%s2246 + $0x34] sm:$0xf]
      %v2261 = vld [vmem:[%s2246 + $0x38] sm:$0xf]
      %v2262 = vld [vmem:[%s2246 + $0x3c] sm:$0xf]
      %v2264 = vshrl.u32 %v2198, 16
      %v2266 = vrot.slane %v2264, 4
      %v2267 = vshll.u32 %v2198, 16
      %v2269 = vrot.slane %v2267, 5
      %v2270 = vor.u32 %v2266, %v2269
      %v2271 = vrot.slane %v2270, 4
      %v2273 = vshll.u32 %v2199, 16
      %v2275 = vrot.slane %v2273, 5
      %v2276 = vsel %vm363, %v2271, %v2275
      %v2277 = vshrl.u32 %v2199, 16
      %v2279 = vrot.slane %v2277, 4
      %v2280 = vor.u32 %v2279, %v2275
      %v2281 = vrot.slane %v2280, 4
      %v2283 = vshll.u32 %v2200, 16
      %v2285 = vrot.slane %v2283, 5
      %v2286 = vsel %vm363, %v2281, %v2285
      %v2288 = vshrl.u32 %v2201, 16
      %v2290 = vrot.slane %v2288, 4
      %v2291 = vshll.u32 %v2201, 16
      %v2293 = vrot.slane %v2291, 5
      %v2294 = vor.u32 %v2290, %v2293
      %v2295 = vrot.slane %v2294, 4
      %v2297 = vshll.u32 %v2202, 16
      %v2299 = vrot.slane %v2297, 5
      %v2300 = vsel %vm363, %v2295, %v2299
      %v2301 = vshrl.u32 %v2202, 16
      %v2303 = vrot.slane %v2301, 4
      %v2304 = vor.u32 %v2303, %v2299
      %v2305 = vrot.slane %v2304, 4
      %v2307 = vshll.u32 %v2203, 16
      %v2309 = vrot.slane %v2307, 5
      %v2310 = vsel %vm363, %v2305, %v2309
      %v2312 = vshrl.u32 %v2204, 16
      %v2314 = vrot.slane %v2312, 4
      %v2315 = vshll.u32 %v2204, 16
      %v2317 = vrot.slane %v2315, 5
      %v2318 = vor.u32 %v2314, %v2317
      %v2319 = vrot.slane %v2318, 4
      %v2321 = vshll.u32 %v2205, 16
      %v2323 = vrot.slane %v2321, 5
      %v2324 = vsel %vm363, %v2319, %v2323
      %v2325 = vshrl.u32 %v2205, 16
      %v2327 = vrot.slane %v2325, 4
      %v2328 = vor.u32 %v2327, %v2323
      %v2329 = vrot.slane %v2328, 4
      %v2331 = vshll.u32 %v2206, 16
      %v2333 = vrot.slane %v2331, 5
      %v2334 = vsel %vm363, %v2329, %v2333
      %v2336 = vshrl.u32 %v2207, 16
      %v2338 = vrot.slane %v2336, 4
      %v2339 = vshll.u32 %v2207, 16
      %v2341 = vrot.slane %v2339, 5
      %v2342 = vor.u32 %v2338, %v2341
      %v2343 = vrot.slane %v2342, 4
      %v2345 = vshll.u32 %v2208, 16
      %v2347 = vrot.slane %v2345, 5
      %v2348 = vsel %vm363, %v2343, %v2347
      %v2349 = vshrl.u32 %v2208, 16
      %v2351 = vrot.slane %v2349, 4
      %v2352 = vor.u32 %v2351, %v2347
      %v2353 = vrot.slane %v2352, 4
      %v2355 = vshll.u32 %v2209, 16
      %v2357 = vrot.slane %v2355, 5
      %v2358 = vsel %vm363, %v2353, %v2357
      %v2360 = vshrl.u32 %v2210, 16
      %v2362 = vrot.slane %v2360, 4
      %v2363 = vshll.u32 %v2210, 16
      %v2365 = vrot.slane %v2363, 5
      %v2366 = vor.u32 %v2362, %v2365
      %v2367 = vrot.slane %v2366, 4
      %v2369 = vshll.u32 %v2211, 16
      %v2371 = vrot.slane %v2369, 5
      %v2372 = vsel %vm363, %v2367, %v2371
      %v2373 = vshrl.u32 %v2211, 16
      %v2375 = vrot.slane %v2373, 4
      %v2376 = vor.u32 %v2375, %v2371
      %v2377 = vrot.slane %v2376, 4
      %v2379 = vshll.u32 %v2212, 16
      %v2381 = vrot.slane %v2379, 5
      %v2382 = vsel %vm363, %v2377, %v2381
      %v2384 = vshrl.u32 %v2213, 16
      %v2386 = vrot.slane %v2384, 4
      %v2387 = vshll.u32 %v2213, 16
      %v2389 = vrot.slane %v2387, 5
      %v2390 = vor.u32 %v2386, %v2389
      %v2391 = vrot.slane %v2390, 4
      %v2393 = vshll.u32 %v2214, 16
      %v2395 = vrot.slane %v2393, 5
      %v2396 = vsel %vm363, %v2391, %v2395
      %v2397 = vshrl.u32 %v2214, 16
      %v2399 = vrot.slane %v2397, 4
      %v2400 = vor.u32 %v2399, %v2395
      %v2401 = vrot.slane %v2400, 4
      %v2403 = vshll.u32 %v2215, 16
      %v2405 = vrot.slane %v2403, 5
      %v2406 = vsel %vm363, %v2401, %v2405
      %v2408 = vshrl.u32 %v2216, 16
      %v2410 = vrot.slane %v2408, 4
      %v2411 = vshll.u32 %v2216, 16
      %v2413 = vrot.slane %v2411, 5
      %v2414 = vor.u32 %v2410, %v2413
      %v2415 = vrot.slane %v2414, 4
      %v2417 = vshll.u32 %v2217, 16
      %v2419 = vrot.slane %v2417, 5
      %v2420 = vsel %vm363, %v2415, %v2419
      %v2421 = vshrl.u32 %v2217, 16
      %v2423 = vrot.slane %v2421, 4
      %v2424 = vor.u32 %v2423, %v2419
      %v2425 = vrot.slane %v2424, 4
      %v2427 = vshll.u32 %v2218, 16
      %v2429 = vrot.slane %v2427, 5
      %v2430 = vsel %vm363, %v2425, %v2429
      %v2432 = vshrl.u32 %v2219, 16
      %v2434 = vrot.slane %v2432, 4
      %v2435 = vshll.u32 %v2219, 16
      %v2437 = vrot.slane %v2435, 5
      %v2438 = vor.u32 %v2434, %v2437
      %v2439 = vrot.slane %v2438, 4
      %v2441 = vshll.u32 %v2220, 16
      %v2443 = vrot.slane %v2441, 5
      %v2444 = vsel %vm363, %v2439, %v2443
      %v2445 = vshrl.u32 %v2220, 16
      %v2447 = vrot.slane %v2445, 4
      %v2448 = vor.u32 %v2447, %v2443
      %v2449 = vrot.slane %v2448, 4
      %v2451 = vshll.u32 %v2221, 16
      %v2453 = vrot.slane %v2451, 5
      %v2454 = vsel %vm363, %v2449, %v2453
      %v2456 = vshrl.u32 %v2222, 16
      %v2458 = vrot.slane %v2456, 4
      %v2459 = vshll.u32 %v2222, 16
      %v2461 = vrot.slane %v2459, 5
      %v2462 = vor.u32 %v2458, %v2461
      %v2463 = vrot.slane %v2462, 4
      %v2465 = vshll.u32 %v2223, 16
      %v2467 = vrot.slane %v2465, 5
      %v2468 = vsel %vm363, %v2463, %v2467
      %v2469 = vshrl.u32 %v2223, 16
      %v2471 = vrot.slane %v2469, 4
      %v2472 = vor.u32 %v2471, %v2467
      %v2473 = vrot.slane %v2472, 4
      %v2475 = vshll.u32 %v2224, 16
      %v2477 = vrot.slane %v2475, 5
      %v2478 = vsel %vm363, %v2473, %v2477
      %v2480 = vshrl.u32 %v2225, 16
      %v2482 = vrot.slane %v2480, 4
      %v2483 = vshll.u32 %v2225, 16
      %v2485 = vrot.slane %v2483, 5
      %v2486 = vor.u32 %v2482, %v2485
      %v2487 = vrot.slane %v2486, 4
      %v2489 = vshll.u32 %v2226, 16
      %v2491 = vrot.slane %v2489, 5
      %v2492 = vsel %vm363, %v2487, %v2491
      %v2493 = vshrl.u32 %v2226, 16
      %v2495 = vrot.slane %v2493, 4
      %v2496 = vor.u32 %v2495, %v2491
      %v2497 = vrot.slane %v2496, 4
      %v2499 = vshll.u32 %v2227, 16
      %v2501 = vrot.slane %v2499, 5
      %v2502 = vsel %vm363, %v2497, %v2501
      %v2504 = vshrl.u32 %v2228, 16
      %v2506 = vrot.slane %v2504, 4
      %v2507 = vshll.u32 %v2228, 16
      %v2509 = vrot.slane %v2507, 5
      %v2510 = vor.u32 %v2506, %v2509
      %v2511 = vrot.slane %v2510, 4
      %v2513 = vshll.u32 %v2229, 16
      %v2515 = vrot.slane %v2513, 5
      %v2516 = vsel %vm363, %v2511, %v2515
      %v2517 = vshrl.u32 %v2229, 16
      %v2519 = vrot.slane %v2517, 4
      %v2520 = vor.u32 %v2519, %v2515
      %v2521 = vrot.slane %v2520, 4
      %v2523 = vshll.u32 %v2230, 16
      %v2525 = vrot.slane %v2523, 5
      %v2526 = vsel %vm363, %v2521, %v2525
      %v2528 = vshrl.u32 %v2231, 16
      %v2530 = vrot.slane %v2528, 4
      %v2531 = vshll.u32 %v2231, 16
      %v2533 = vrot.slane %v2531, 5
      %v2534 = vor.u32 %v2530, %v2533
      %v2535 = vrot.slane %v2534, 4
      %v2537 = vshll.u32 %v2232, 16
      %v2539 = vrot.slane %v2537, 5
      %v2540 = vsel %vm363, %v2535, %v2539
      %v2541 = vshrl.u32 %v2232, 16
      %v2543 = vrot.slane %v2541, 4
      %v2544 = vor.u32 %v2543, %v2539
      %v2545 = vrot.slane %v2544, 4
      %v2547 = vshll.u32 %v2233, 16
      %v2549 = vrot.slane %v2547, 5
      %v2550 = vsel %vm363, %v2545, %v2549
      %v2552 = vshrl.u32 %v2234, 16
      %v2554 = vrot.slane %v2552, 4
      %v2555 = vshll.u32 %v2234, 16
      %v2557 = vrot.slane %v2555, 5
      %v2558 = vor.u32 %v2554, %v2557
      %v2559 = vrot.slane %v2558, 4
      %v2561 = vshll.u32 %v2235, 16
      %v2563 = vrot.slane %v2561, 5
      %v2564 = vsel %vm363, %v2559, %v2563
      %v2565 = vshrl.u32 %v2235, 16
      %v2567 = vrot.slane %v2565, 4
      %v2568 = vor.u32 %v2567, %v2563
      %v2569 = vrot.slane %v2568, 4
      %v2571 = vshll.u32 %v2236, 16
      %v2573 = vrot.slane %v2571, 5
      %v2574 = vsel %vm363, %v2569, %v2573
      %v2576 = vshrl.u32 %v2237, 16
      %v2578 = vrot.slane %v2576, 4
      %v2579 = vshll.u32 %v2237, 16
      %v2581 = vrot.slane %v2579, 5
      %v2582 = vor.u32 %v2578, %v2581
      %v2583 = vrot.slane %v2582, 4
      %v2585 = vshll.u32 %v2238, 16
      %v2587 = vrot.slane %v2585, 5
      %v2588 = vsel %vm363, %v2583, %v2587
      %v2589 = vshrl.u32 %v2238, 16
      %v2591 = vrot.slane %v2589, 4
      %v2592 = vor.u32 %v2591, %v2587
      %v2593 = vrot.slane %v2592, 4
      %v2595 = vshll.u32 %v2239, 16
      %v2597 = vrot.slane %v2595, 5
      %v2598 = vsel %vm363, %v2593, %v2597
      %v2600 = vshrl.u32 %v2240, 16
      %v2602 = vrot.slane %v2600, 4
      %v2603 = vshll.u32 %v2240, 16
      %v2605 = vrot.slane %v2603, 5
      %v2606 = vor.u32 %v2602, %v2605
      %v2607 = vrot.slane %v2606, 4
      %v2609 = vshll.u32 %v2241, 16
      %v2611 = vrot.slane %v2609, 5
      %v2612 = vsel %vm363, %v2607, %v2611
      %v2613 = vshrl.u32 %v2241, 16
      %v2615 = vrot.slane %v2613, 4
      %v2616 = vor.u32 %v2615, %v2611
      %v2617 = vrot.slane %v2616, 4
      %v2619 = vshll.u32 %v2242, 16
      %v2621 = vrot.slane %v2619, 5
      %v2622 = vsel %vm363, %v2617, %v2621
      %v2624 = vshrl.u32 %v2243, 16
      %v2626 = vrot.slane %v2624, 4
      %v2627 = vshll.u32 %v2243, 16
      %v2629 = vrot.slane %v2627, 5
      %v2630 = vor.u32 %v2626, %v2629
      %v2631 = vrot.slane %v2630, 4
      %v2633 = vshll.u32 %v2244, 16
      %v2635 = vrot.slane %v2633, 5
      %v2636 = vsel %vm363, %v2631, %v2635
      %v2637 = vshrl.u32 %v2244, 16
      %v2639 = vrot.slane %v2637, 4
      %v2640 = vor.u32 %v2639, %v2635
      %v2641 = vrot.slane %v2640, 4
      %v2643 = vshll.u32 %v2245, 16
      %v2645 = vrot.slane %v2643, 5
      %v2646 = vsel %vm363, %v2641, %v2645
      %v2647 = vunpack.c.l.b16 %v2276
      %v2648 = vunpack.c.l.b16 %v2286
      %v2649 = vunpack.c.l.b16 %v2300
      %v2650 = vunpack.c.l.b16 %v2310
      %v2651 = vunpack.c.l.b16 %v2324
      %v2652 = vunpack.c.l.b16 %v2334
      %v2653 = vunpack.c.l.b16 %v2348
      %v2654 = vunpack.c.l.b16 %v2358
      %v2655 = vunpack.c.l.b16 %v2372
      %v2656 = vunpack.c.l.b16 %v2382
      %v2657 = vunpack.c.l.b16 %v2396
      %v2658 = vunpack.c.l.b16 %v2406
      %v2659 = vunpack.c.l.b16 %v2420
      %v2660 = vunpack.c.l.b16 %v2430
      %v2661 = vunpack.c.l.b16 %v2444
      %v2662 = vunpack.c.l.b16 %v2454
      %v2663 = vunpack.c.l.b16 %v2468
      %v2664 = vunpack.c.l.b16 %v2478
      %v2665 = vunpack.c.l.b16 %v2492
      %v2666 = vunpack.c.l.b16 %v2502
      %v2667 = vunpack.c.l.b16 %v2516
      %v2668 = vunpack.c.l.b16 %v2526
      %v2669 = vunpack.c.l.b16 %v2540
      %v2670 = vunpack.c.l.b16 %v2550
      %v2671 = vunpack.c.l.b16 %v2564
      %v2672 = vunpack.c.l.b16 %v2574
      %v2673 = vunpack.c.l.b16 %v2588
      %v2674 = vunpack.c.l.b16 %v2598
      %v2675 = vunpack.c.l.b16 %v2612
      %v2676 = vunpack.c.l.b16 %v2622
      %v2677 = vunpack.c.l.b16 %v2636
      %v2678 = vunpack.c.l.b16 %v2646
      %v2679 = vpack.c.b16 %v2648, %v2647
      %v2680 = vpack.c.b16 %v2650, %v2649
      %v2681 = vpack.c.b16 %v2652, %v2651
      %v2682 = vpack.c.b16 %v2654, %v2653
      %v2683 = vpack.c.b16 %v2656, %v2655
      %v2684 = vpack.c.b16 %v2658, %v2657
      %v2685 = vpack.c.b16 %v2660, %v2659
      %v2686 = vpack.c.b16 %v2662, %v2661
      %v2687 = vpack.c.b16 %v2664, %v2663
      %v2688 = vpack.c.b16 %v2666, %v2665
      %v2689 = vpack.c.b16 %v2668, %v2667
      %v2690 = vpack.c.b16 %v2670, %v2669
      %v2691 = vpack.c.b16 %v2672, %v2671
      %v2692 = vpack.c.b16 %v2674, %v2673
      %v2693 = vpack.c.b16 %v2676, %v2675
      %v2694 = vpack.c.b16 %v2678, %v2677
      %v2727 = vunpack.c.l.b16 %v2247
      %v2728 = vunpack.c.l.b16 %v2248
      %v2729 = vunpack.c.l.b16 %v2249
      %v2730 = vunpack.c.l.b16 %v2250
      %v2731 = vunpack.c.l.b16 %v2251
      %v2732 = vunpack.c.l.b16 %v2252
      %v2733 = vunpack.c.l.b16 %v2253
      %v2734 = vunpack.c.l.b16 %v2254
      %v2735 = vunpack.c.l.b16 %v2255
      %v2736 = vunpack.c.l.b16 %v2256
      %v2737 = vunpack.c.l.b16 %v2257
      %v2738 = vunpack.c.l.b16 %v2258
      %v2739 = vunpack.c.l.b16 %v2259
      %v2740 = vunpack.c.l.b16 %v2260
      %v2741 = vunpack.c.l.b16 %v2261
      %v2742 = vunpack.c.l.b16 %v2262
      %v2743 = vpack.c.b16 %v2728, %v2727
      %v2744 = vpack.c.b16 %v2730, %v2729
      %v2745 = vpack.c.b16 %v2732, %v2731
      %v2746 = vpack.c.b16 %v2734, %v2733
      %v2747 = vpack.c.b16 %v2736, %v2735
      %v2748 = vpack.c.b16 %v2738, %v2737
      %v2749 = vpack.c.b16 %v2740, %v2739
      %v2750 = vpack.c.b16 %v2742, %v2741
      %2759 = vmatprep.subr.bf16.mxu0 0
      %2760 = vmatpush1.bf16.msra.mxu0 %v2743
      %2761 = vmatprep.subr.bf16.mxu0 0
      %2762 = vmatpush1.bf16.msra.mxu0 %v2744
      %2763 = vmatprep.subr.bf16.mxu0 0
      %2764 = vmatpush1.bf16.msra.mxu0 %v2745
      %2765 = vmatprep.subr.bf16.mxu0 0
      %2766 = vmatpush1.bf16.msra.mxu0 %v2746
      %2767 = vmatprep.subr.bf16.mxu0 0
      %2768 = vmatpush1.bf16.msra.mxu0 %v2747
      %2769 = vmatprep.subr.bf16.mxu0 0
      %2770 = vmatpush1.bf16.msra.mxu0 %v2748
      %2771 = vmatprep.subr.bf16.mxu0 0
      %2772 = vmatpush1.bf16.msra.mxu0 %v2749
      %2773 = vmatprep.subr.bf16.mxu0 0
      %2774 = vmatpush1.bf16.msra.mxu0 %v2750
      %2775 = vmatprep.subr.bf16.mxu0 0
      %2776 = vmatpush1.bf16.msra.mxu0 0
      %2777 = vmatprep.subr.bf16.mxu0 0
      %2778 = vmatpush1.bf16.msra.mxu0 0
      %2779 = vmatprep.subr.bf16.mxu0 0
      %2780 = vmatpush1.bf16.msra.mxu0 0
      %2781 = vmatprep.subr.bf16.mxu0 0
      %2782 = vmatpush1.bf16.msra.mxu0 0
      %2783 = vmatprep.subr.bf16.mxu0 0
      %2784 = vmatpush1.bf16.msra.mxu0 0
      %2785 = vmatprep.subr.bf16.mxu0 0
      %2786 = vmatpush1.bf16.msra.mxu0 0
      %2787 = vmatprep.subr.bf16.mxu0 0
      %2788 = vmatpush1.bf16.msra.mxu0 0
      %2789 = vmatprep.subr.bf16.mxu0 0
      %2790 = vmatpush1.bf16.msra.mxu0 0
      %2791 = vmatprep.mubr.bf16.mxu0 0
      %2792 = vmatmul.mubr.bf16.gmra.mrb[0].mxu0 %v2679
      %v2793 = vpop.f32.mrb[0].mxu0
      %v2794 = vadd.f32 0.0, %v2793
      %v2795 = vpop.f32.mrb[0].mxu0
      %v2796 = vpop.f32.mrb[0].mxu0
      %v2797 = vadd.f32 0.0, %v2796
      %v2798 = vpop.f32.mrb[0].mxu0
      %2799 = vmatprep.mubr.bf16.mxu0 0
      %2800 = vmatmul.mubr.bf16.gmra.mrb[0].mxu0 %v2680
      %v2801 = vpop.f32.mrb[0].mxu0
      %v2802 = vadd.f32 0.0, %v2801
      %v2803 = vpop.f32.mrb[0].mxu0
      %v2804 = vpop.f32.mrb[0].mxu0
      %v2805 = vadd.f32 0.0, %v2804
      %v2806 = vpop.f32.mrb[0].mxu0
      %2807 = vmatprep.mubr.bf16.mxu0 0
      %2808 = vmatmul.mubr.bf16.gmra.mrb[0].mxu0 %v2681
      %v2809 = vpop.f32.mrb[0].mxu0
      %v2810 = vadd.f32 0.0, %v2809
      %v2811 = vpop.f32.mrb[0].mxu0
      %v2812 = vpop.f32.mrb[0].mxu0
      %v2813 = vadd.f32 0.0, %v2812
      %v2814 = vpop.f32.mrb[0].mxu0
      %2815 = vmatprep.mubr.bf16.mxu0 0
      %2816 = vmatmul.mubr.bf16.gmra.mrb[0].mxu0 %v2682
      %v2817 = vpop.f32.mrb[0].mxu0
      %v2818 = vadd.f32 0.0, %v2817
      %v2819 = vpop.f32.mrb[0].mxu0
      %v2820 = vpop.f32.mrb[0].mxu0
      %v2821 = vadd.f32 0.0, %v2820
      %v2822 = vpop.f32.mrb[0].mxu0
      %2823 = vmatprep.mubr.bf16.mxu0 0
      %2824 = vmatmul.mubr.bf16.gmra.mrb[0].mxu0 %v2683
      %v2825 = vpop.f32.mrb[0].mxu0
      %v2826 = vadd.f32 0.0, %v2825
      %v2827 = vpop.f32.mrb[0].mxu0
      %v2828 = vpop.f32.mrb[0].mxu0
      %v2829 = vadd.f32 0.0, %v2828
      %v2830 = vpop.f32.mrb[0].mxu0
      %2831 = vmatprep.mubr.bf16.mxu0 0
      %2832 = vmatmul.mubr.bf16.gmra.mrb[0].mxu0 %v2684
      %v2833 = vpop.f32.mrb[0].mxu0
      %v2834 = vadd.f32 0.0, %v2833
      %v2835 = vpop.f32.mrb[0].mxu0
      %v2836 = vpop.f32.mrb[0].mxu0
      %v2837 = vadd.f32 0.0, %v2836
      %v2838 = vpop.f32.mrb[0].mxu0
      %2839 = vmatprep.mubr.bf16.mxu0 0
      %2840 = vmatmul.mubr.bf16.gmra.mrb[0].mxu0 %v2685
      %v2841 = vpop.f32.mrb[0].mxu0
      %v2842 = vadd.f32 0.0, %v2841
      %v2843 = vpop.f32.mrb[0].mxu0
      %v2844 = vpop.f32.mrb[0].mxu0
      %v2845 = vadd.f32 0.0, %v2844
      %v2846 = vpop.f32.mrb[0].mxu0
      %2847 = vmatprep.mubr.bf16.mxu0 0
      %2848 = vmatmul.mubr.bf16.gmra.mrb[0].mxu0 %v2686
      %v2849 = vpop.f32.mrb[0].mxu0
      %v2850 = vadd.f32 0.0, %v2849
      %v2851 = vpop.f32.mrb[0].mxu0
      %v2852 = vpop.f32.mrb[0].mxu0
      %v2853 = vadd.f32 0.0, %v2852
      %v2854 = vpop.f32.mrb[0].mxu0
      %2855 = vmatprep.mubr.bf16.mxu0 0
      %2856 = vmatmul.mubr.bf16.gmra.mrb[0].mxu0 %v2687
      %v2857 = vpop.f32.mrb[0].mxu0
      %v2858 = vadd.f32 0.0, %v2857
      %v2859 = vpop.f32.mrb[0].mxu0
      %v2860 = vpop.f32.mrb[0].mxu0
      %v2861 = vadd.f32 0.0, %v2860
      %v2862 = vpop.f32.mrb[0].mxu0
      %2863 = vmatprep.mubr.bf16.mxu0 0
      %2864 = vmatmul.mubr.bf16.gmra.mrb[0].mxu0 %v2688
      %v2865 = vpop.f32.mrb[0].mxu0
      %v2866 = vadd.f32 0.0, %v2865
      %v2867 = vpop.f32.mrb[0].mxu0
      %v2868 = vpop.f32.mrb[0].mxu0
      %v2869 = vadd.f32 0.0, %v2868
      %v2870 = vpop.f32.mrb[0].mxu0
      %2871 = vmatprep.mubr.bf16.mxu0 0
      %2872 = vmatmul.mubr.bf16.gmra.mrb[0].mxu0 %v2689
      %v2873 = vpop.f32.mrb[0].mxu0
      %v2874 = vadd.f32 0.0, %v2873
      %v2875 = vpop.f32.mrb[0].mxu0
      %v2876 = vpop.f32.mrb[0].mxu0
      %v2877 = vadd.f32 0.0, %v2876
      %v2878 = vpop.f32.mrb[0].mxu0
      %2879 = vmatprep.mubr.bf16.mxu0 0
      %2880 = vmatmul.mubr.bf16.gmra.mrb[0].mxu0 %v2690
      %v2881 = vpop.f32.mrb[0].mxu0
      %v2882 = vadd.f32 0.0, %v2881
      %v2883 = vpop.f32.mrb[0].mxu0
      %v2884 = vpop.f32.mrb[0].mxu0
      %v2885 = vadd.f32 0.0, %v2884
      %v2886 = vpop.f32.mrb[0].mxu0
      %2887 = vmatprep.mubr.bf16.mxu0 0
      %2888 = vmatmul.mubr.bf16.gmra.mrb[0].mxu0 %v2691
      %v2889 = vpop.f32.mrb[0].mxu0
      %v2890 = vadd.f32 0.0, %v2889
      %v2891 = vpop.f32.mrb[0].mxu0
      %v2892 = vpop.f32.mrb[0].mxu0
      %v2893 = vadd.f32 0.0, %v2892
      %v2894 = vpop.f32.mrb[0].mxu0
      %2895 = vmatprep.mubr.bf16.mxu0 0
      %2896 = vmatmul.mubr.bf16.gmra.mrb[0].mxu0 %v2692
      %v2897 = vpop.f32.mrb[0].mxu0
      %v2898 = vadd.f32 0.0, %v2897
      %v2899 = vpop.f32.mrb[0].mxu0
      %v2900 = vpop.f32.mrb[0].mxu0
      %v2901 = vadd.f32 0.0, %v2900
      %v2902 = vpop.f32.mrb[0].mxu0
      %2903 = vmatprep.mubr.bf16.mxu0 0
      %2904 = vmatmul.mubr.bf16.gmra.mrb[0].mxu0 %v2693
      %v2905 = vpop.f32.mrb[0].mxu0
      %v2906 = vadd.f32 0.0, %v2905
      %v2907 = vpop.f32.mrb[0].mxu0
      %v2908 = vpop.f32.mrb[0].mxu0
      %v2909 = vadd.f32 0.0, %v2908
      %v2910 = vpop.f32.mrb[0].mxu0
      %2911 = vmatprep.mubr.bf16.mxu0 0
      %2912 = vmatmul.mubr.bf16.gmra.mrb[0].mxu0 %v2694
      %v2913 = vpop.f32.mrb[0].mxu0
      %v2914 = vadd.f32 0.0, %v2913
      %v2915 = vpop.f32.mrb[0].mxu0
      %v2916 = vpop.f32.mrb[0].mxu0
      %v2917 = vadd.f32 0.0, %v2916
      %v2918 = vpop.f32.mrb[0].mxu0
      %2919 = vdwg.mxu0
      %v2920 = vadd.f32 %v2166, %v2794
      %v2921 = vadd.f32 %v2167, %v2797
      %v2922 = vadd.f32 %v2168, %v2802
      %v2923 = vadd.f32 %v2169, %v2805
      %v2924 = vadd.f32 %v2170, %v2810
      %v2925 = vadd.f32 %v2171, %v2813
      %v2926 = vadd.f32 %v2172, %v2818
      %v2927 = vadd.f32 %v2173, %v2821
      %v2928 = vadd.f32 %v2174, %v2826
      %v2929 = vadd.f32 %v2175, %v2829
      %v2930 = vadd.f32 %v2176, %v2834
      %v2931 = vadd.f32 %v2177, %v2837
      %v2932 = vadd.f32 %v2178, %v2842
      %v2933 = vadd.f32 %v2179, %v2845
      %v2934 = vadd.f32 %v2180, %v2850
      %v2935 = vadd.f32 %v2181, %v2853
      %v2936 = vadd.f32 %v2182, %v2858
      %v2937 = vadd.f32 %v2183, %v2861
      %v2938 = vadd.f32 %v2184, %v2866
      %v2939 = vadd.f32 %v2185, %v2869
      %v2940 = vadd.f32 %v2186, %v2874
      %v2941 = vadd.f32 %v2187, %v2877
      %v2942 = vadd.f32 %v2188, %v2882
      %v2943 = vadd.f32 %v2189, %v2885
      %v2944 = vadd.f32 %v2190, %v2890
      %v2945 = vadd.f32 %v2191, %v2893
      %v2946 = vadd.f32 %v2192, %v2898
      %v2947 = vadd.f32 %v2193, %v2901
      %v2948 = vadd.f32 %v2194, %v2906
      %v2949 = vadd.f32 %v2195, %v2909
      %v2950 = vadd.f32 %v2196, %v2914
      %v2951 = vadd.f32 %v2197, %v2917
      %v2952 = vld [vmem:[%s1811] sm:$0xe]
      %v2953 = vld [vmem:[%s1811 + $0xc] sm:$0xe]
      %v2954 = vld [vmem:[%s1811 + $0x18] sm:$0xe]
      %v2955 = vld [vmem:[%s1811 + $0x24] sm:$0xe]
      %v2956 = vld [vmem:[%s1811 + $0x30] sm:$0xe]
      %v2957 = vld [vmem:[%s1811 + $0x3c] sm:$0xe]
      %v2958 = vld [vmem:[%s1811 + $0x48] sm:$0xe]
      %v2959 = vld [vmem:[%s1811 + $0x54] sm:$0xe]
      %v2960 = vld [vmem:[%s1811 + $0x60] sm:$0xe]
      %v2961 = vld [vmem:[%s1811 + $0x6c] sm:$0xe]
      %v2962 = vld [vmem:[%s1811 + $0x78] sm:$0xe]
      %v2963 = vld [vmem:[%s1811 + $0x84] sm:$0xe]
      %v2964 = vld [vmem:[%s1811 + $0x90] sm:$0xe]
      %v2965 = vld [vmem:[%s1811 + $0x9c] sm:$0xe]
      %v2966 = vld [vmem:[%s1811 + $0xa8] sm:$0xe]
      %v2967 = vld [vmem:[%s1811 + $0xb4] sm:$0xe]
      %s2968 = scalar_lea.vmem %s1, 320
      %v2969 = vld [vmem:[%s2968] sm:$0xf]
      %v2970 = vld [vmem:[%s2968 + $0x4] sm:$0xf]
      %v2971 = vld [vmem:[%s2968 + $0x8] sm:$0xf]
      %v2972 = vld [vmem:[%s2968 + $0xc] sm:$0xf]
      %v2973 = vld [vmem:[%s2968 + $0x10] sm:$0xf]
      %v2974 = vld [vmem:[%s2968 + $0x14] sm:$0xf]
      %v2975 = vld [vmem:[%s2968 + $0x18] sm:$0xf]
      %v2976 = vld [vmem:[%s2968 + $0x1c] sm:$0xf]
      %v2977 = vld [vmem:[%s2968 + $0x20] sm:$0xf]
      %v2978 = vld [vmem:[%s2968 + $0x24] sm:$0xf]
      %v2979 = vld [vmem:[%s2968 + $0x28] sm:$0xf]
      %v2980 = vld [vmem:[%s2968 + $0x2c] sm:$0xf]
      %v2981 = vld [vmem:[%s2968 + $0x30] sm:$0xf]
      %v2982 = vld [vmem:[%s2968 + $0x34] sm:$0xf]
      %v2983 = vld [vmem:[%s2968 + $0x38] sm:$0xf]
      %v2984 = vld [vmem:[%s2968 + $0x3c] sm:$0xf]
      %v3033 = vrot.slane %v2952, 5
      %v3034 = vrot.slane %v3033, 4
      %v3035 = vrot.slane %v2199, 5
      %v3036 = vsel %vm1393, %v3034, %v3035
      %v3037 = vrot.slane %v3035, 4
      %v3038 = vrot.slane %v2200, 5
      %v3039 = vsel %vm1393, %v3037, %v3038
      %v3040 = vrot.slane %v2953, 5
      %v3041 = vrot.slane %v3040, 4
      %v3042 = vrot.slane %v2202, 5
      %v3043 = vsel %vm1393, %v3041, %v3042
      %v3044 = vrot.slane %v3042, 4
      %v3045 = vrot.slane %v2203, 5
      %v3046 = vsel %vm1393, %v3044, %v3045
      %v3047 = vrot.slane %v2954, 5
      %v3048 = vrot.slane %v3047, 4
      %v3049 = vrot.slane %v2205, 5
      %v3050 = vsel %vm1393, %v3048, %v3049
      %v3051 = vrot.slane %v3049, 4
      %v3052 = vrot.slane %v2206, 5
      %v3053 = vsel %vm1393, %v3051, %v3052
      %v3054 = vrot.slane %v2955, 5
      %v3055 = vrot.slane %v3054, 4
      %v3056 = vrot.slane %v2208, 5
      %v3057 = vsel %vm1393, %v3055, %v3056
      %v3058 = vrot.slane %v3056, 4
      %v3059 = vrot.slane %v2209, 5
      %v3060 = vsel %vm1393, %v3058, %v3059
      %v3061 = vrot.slane %v2956, 5
      %v3062 = vrot.slane %v3061, 4
      %v3063 = vrot.slane %v2211, 5
      %v3064 = vsel %vm1393, %v3062, %v3063
      %v3065 = vrot.slane %v3063, 4
      %v3066 = vrot.slane %v2212, 5
      %v3067 = vsel %vm1393, %v3065, %v3066
      %v3068 = vrot.slane %v2957, 5
      %v3069 = vrot.slane %v3068, 4
      %v3070 = vrot.slane %v2214, 5
      %v3071 = vsel %vm1393, %v3069, %v3070
      %v3072 = vrot.slane %v3070, 4
      %v3073 = vrot.slane %v2215, 5
      %v3074 = vsel %vm1393, %v3072, %v3073
      %v3075 = vrot.slane %v2958, 5
      %v3076 = vrot.slane %v3075, 4
      %v3077 = vrot.slane %v2217, 5
      %v3078 = vsel %vm1393, %v3076, %v3077
      %v3079 = vrot.slane %v3077, 4
      %v3080 = vrot.slane %v2218, 5
      %v3081 = vsel %vm1393, %v3079, %v3080
      %v3082 = vrot.slane %v2959, 5
      %v3083 = vrot.slane %v3082, 4
      %v3084 = vrot.slane %v2220, 5
      %v3085 = vsel %vm1393, %v3083, %v3084
      %v3086 = vrot.slane %v3084, 4
      %v3087 = vrot.slane %v2221, 5
      %v3088 = vsel %vm1393, %v3086, %v3087
      %v3089 = vrot.slane %v2960, 5
      %v3090 = vrot.slane %v3089, 4
      %v3091 = vrot.slane %v2223, 5
      %v3092 = vsel %vm1393, %v3090, %v3091
      %v3093 = vrot.slane %v3091, 4
      %v3094 = vrot.slane %v2224, 5
      %v3095 = vsel %vm1393, %v3093, %v3094
      %v3096 = vrot.slane %v2961, 5
      %v3097 = vrot.slane %v3096, 4
      %v3098 = vrot.slane %v2226, 5
      %v3099 = vsel %vm1393, %v3097, %v3098
      %v3100 = vrot.slane %v3098, 4
      %v3101 = vrot.slane %v2227, 5
      %v3102 = vsel %vm1393, %v3100, %v3101
      %v3103 = vrot.slane %v2962, 5
      %v3104 = vrot.slane %v3103, 4
      %v3105 = vrot.slane %v2229, 5
      %v3106 = vsel %vm1393, %v3104, %v3105
      %v3107 = vrot.slane %v3105, 4
      %v3108 = vrot.slane %v2230, 5
      %v3109 = vsel %vm1393, %v3107, %v3108
      %v3110 = vrot.slane %v2963, 5
      %v3111 = vrot.slane %v3110, 4
      %v3112 = vrot.slane %v2232, 5
      %v3113 = vsel %vm1393, %v3111, %v3112
      %v3114 = vrot.slane %v3112, 4
      %v3115 = vrot.slane %v2233, 5
      %v3116 = vsel %vm1393, %v3114, %v3115
      %v3117 = vrot.slane %v2964, 5
      %v3118 = vrot.slane %v3117, 4
      %v3119 = vrot.slane %v2235, 5
      %v3120 = vsel %vm1393, %v3118, %v3119
      %v3121 = vrot.slane %v3119, 4
      %v3122 = vrot.slane %v2236, 5
      %v3123 = vsel %vm1393, %v3121, %v3122
      %v3124 = vrot.slane %v2965, 5
      %v3125 = vrot.slane %v3124, 4
      %v3126 = vrot.slane %v2238, 5
      %v3127 = vsel %vm1393, %v3125, %v3126
      %v3128 = vrot.slane %v3126, 4
      %v3129 = vrot.slane %v2239, 5
      %v3130 = vsel %vm1393, %v3128, %v3129
      %v3131 = vrot.slane %v2966, 5
      %v3132 = vrot.slane %v3131, 4
      %v3133 = vrot.slane %v2241, 5
      %v3134 = vsel %vm1393, %v3132, %v3133
      %v3135 = vrot.slane %v3133, 4
      %v3136 = vrot.slane %v2242, 5
      %v3137 = vsel %vm1393, %v3135, %v3136
      %v3138 = vrot.slane %v2967, 5
      %v3139 = vrot.slane %v3138, 4
      %v3140 = vrot.slane %v2244, 5
      %v3141 = vsel %vm1393, %v3139, %v3140
      %v3142 = vrot.slane %v3140, 4
      %v3143 = vrot.slane %v2245, 5
      %v3144 = vsel %vm1393, %v3142, %v3143
      %v3145 = vunpack.c.l.b16 %v3036
      %v3146 = vunpack.c.l.b16 %v3039
      %v3147 = vunpack.c.l.b16 %v3043
      %v3148 = vunpack.c.l.b16 %v3046
      %v3149 = vunpack.c.l.b16 %v3050
      %v3150 = vunpack.c.l.b16 %v3053
      %v3151 = vunpack.c.l.b16 %v3057
      %v3152 = vunpack.c.l.b16 %v3060
      %v3153 = vunpack.c.l.b16 %v3064
      %v3154 = vunpack.c.l.b16 %v3067
      %v3155 = vunpack.c.l.b16 %v3071
      %v3156 = vunpack.c.l.b16 %v3074
      %v3157 = vunpack.c.l.b16 %v3078
      %v3158 = vunpack.c.l.b16 %v3081
      %v3159 = vunpack.c.l.b16 %v3085
      %v3160 = vunpack.c.l.b16 %v3088
      %v3161 = vunpack.c.l.b16 %v3092
      %v3162 = vunpack.c.l.b16 %v3095
      %v3163 = vunpack.c.l.b16 %v3099
      %v3164 = vunpack.c.l.b16 %v3102
      %v3165 = vunpack.c.l.b16 %v3106
      %v3166 = vunpack.c.l.b16 %v3109
      %v3167 = vunpack.c.l.b16 %v3113
      %v3168 = vunpack.c.l.b16 %v3116
      %v3169 = vunpack.c.l.b16 %v3120
      %v3170 = vunpack.c.l.b16 %v3123
      %v3171 = vunpack.c.l.b16 %v3127
      %v3172 = vunpack.c.l.b16 %v3130
      %v3173 = vunpack.c.l.b16 %v3134
      %v3174 = vunpack.c.l.b16 %v3137
      %v3175 = vunpack.c.l.b16 %v3141
      %v3176 = vunpack.c.l.b16 %v3144
      %v3177 = vpack.c.b16 %v3146, %v3145
      %v3178 = vpack.c.b16 %v3148, %v3147
      %v3179 = vpack.c.b16 %v3150, %v3149
      %v3180 = vpack.c.b16 %v3152, %v3151
      %v3181 = vpack.c.b16 %v3154, %v3153
      %v3182 = vpack.c.b16 %v3156, %v3155
      %v3183 = vpack.c.b16 %v3158, %v3157
      %v3184 = vpack.c.b16 %v3160, %v3159
      %v3185 = vpack.c.b16 %v3162, %v3161
      %v3186 = vpack.c.b16 %v3164, %v3163
      %v3187 = vpack.c.b16 %v3166, %v3165
      %v3188 = vpack.c.b16 %v3168, %v3167
      %v3189 = vpack.c.b16 %v3170, %v3169
      %v3190 = vpack.c.b16 %v3172, %v3171
      %v3191 = vpack.c.b16 %v3174, %v3173
      %v3192 = vpack.c.b16 %v3176, %v3175
      %v3225 = vunpack.c.l.b16 %v2969
      %v3226 = vunpack.c.l.b16 %v2970
      %v3227 = vunpack.c.l.b16 %v2971
      %v3228 = vunpack.c.l.b16 %v2972
      %v3229 = vunpack.c.l.b16 %v2973
      %v3230 = vunpack.c.l.b16 %v2974
      %v3231 = vunpack.c.l.b16 %v2975
      %v3232 = vunpack.c.l.b16 %v2976
      %v3233 = vunpack.c.l.b16 %v2977
      %v3234 = vunpack.c.l.b16 %v2978
      %v3235 = vunpack.c.l.b16 %v2979
      %v3236 = vunpack.c.l.b16 %v2980
      %v3237 = vunpack.c.l.b16 %v2981
      %v3238 = vunpack.c.l.b16 %v2982
      %v3239 = vunpack.c.l.b16 %v2983
      %v3240 = vunpack.c.l.b16 %v2984
      %v3241 = vpack.c.b16 %v3226, %v3225
      %v3242 = vpack.c.b16 %v3228, %v3227
      %v3243 = vpack.c.b16 %v3230, %v3229
      %v3244 = vpack.c.b16 %v3232, %v3231
      %v3245 = vpack.c.b16 %v3234, %v3233
      %v3246 = vpack.c.b16 %v3236, %v3235
      %v3247 = vpack.c.b16 %v3238, %v3237
      %v3248 = vpack.c.b16 %v3240, %v3239
      %3257 = vmatprep.subr.bf16.mxu0 0
      %3258 = vmatpush1.bf16.msra.mxu0 %v3241
      %3259 = vmatprep.subr.bf16.mxu0 0
      %3260 = vmatpush1.bf16.msra.mxu0 %v3242
      %3261 = vmatprep.subr.bf16.mxu0 0
      %3262 = vmatpush1.bf16.msra.mxu0 %v3243
      %3263 = vmatprep.subr.bf16.mxu0 0
      %3264 = vmatpush1.bf16.msra.mxu0 %v3244
      %3265 = vmatprep.subr.bf16.mxu0 0
      %3266 = vmatpush1.bf16.msra.mxu0 %v3245
      %3267 = vmatprep.subr.bf16.mxu0 0
      %3268 = vmatpush1.bf16.msra.mxu0 %v3246
      %3269 = vmatprep.subr.bf16.mxu0 0
      %3270 = vmatpush1.bf16.msra.mxu0 %v3247
      %3271 = vmatprep.subr.bf16.mxu0 0
      %3272 = vmatpush1.bf16.msra.mxu0 %v3248
      %3273 = vmatprep.subr.bf16.mxu0 0
      %3274 = vmatpush1.bf16.msra.mxu0 0
      %3275 = vmatprep.subr.bf16.mxu0 0
      %3276 = vmatpush1.bf16.msra.mxu0 0
      %3277 = vmatprep.subr.bf16.mxu0 0
      %3278 = vmatpush1.bf16.msra.mxu0 0
      %3279 = vmatprep.subr.bf16.mxu0 0
      %3280 = vmatpush1.bf16.msra.mxu0 0
      %3281 = vmatprep.subr.bf16.mxu0 0
      %3282 = vmatpush1.bf16.msra.mxu0 0
      %3283 = vmatprep.subr.bf16.mxu0 0
      %3284 = vmatpush1.bf16.msra.mxu0 0
      %3285 = vmatprep.subr.bf16.mxu0 0
      %3286 = vmatpush1.bf16.msra.mxu0 0
      %3287 = vmatprep.subr.bf16.mxu0 0
      %3288 = vmatpush1.bf16.msra.mxu0 0
      %3289 = vmatprep.mubr.bf16.mxu0 0
      %3290 = vmatmul.mubr.bf16.gmra.mrb[0].mxu0 %v3177
      %v3291 = vpop.f32.mrb[0].mxu0
      %v3292 = vadd.f32 0.0, %v3291
      %v3293 = vpop.f32.mrb[0].mxu0
      %v3294 = vpop.f32.mrb[0].mxu0
      %v3295 = vadd.f32 0.0, %v3294
      %v3296 = vpop.f32.mrb[0].mxu0
      %3297 = vmatprep.mubr.bf16.mxu0 0
      %3298 = vmatmul.mubr.bf16.gmra.mrb[0].mxu0 %v3178
      %v3299 = vpop.f32.mrb[0].mxu0
      %v3300 = vadd.f32 0.0, %v3299
      %v3301 = vpop.f32.mrb[0].mxu0
      %v3302 = vpop.f32.mrb[0].mxu0
      %v3303 = vadd.f32 0.0, %v3302
      %v3304 = vpop.f32.mrb[0].mxu0
      %3305 = vmatprep.mubr.bf16.mxu0 0
      %3306 = vmatmul.mubr.bf16.gmra.mrb[0].mxu0 %v3179
      %v3307 = vpop.f32.mrb[0].mxu0
      %v3308 = vadd.f32 0.0, %v3307
      %v3309 = vpop.f32.mrb[0].mxu0
      %v3310 = vpop.f32.mrb[0].mxu0
      %v3311 = vadd.f32 0.0, %v3310
      %v3312 = vpop.f32.mrb[0].mxu0
      %3313 = vmatprep.mubr.bf16.mxu0 0
      %3314 = vmatmul.mubr.bf16.gmra.mrb[0].mxu0 %v3180
      %v3315 = vpop.f32.mrb[0].mxu0
      %v3316 = vadd.f32 0.0, %v3315
      %v3317 = vpop.f32.mrb[0].mxu0
      %v3318 = vpop.f32.mrb[0].mxu0
      %v3319 = vadd.f32 0.0, %v3318
      %v3320 = vpop.f32.mrb[0].mxu0
      %3321 = vmatprep.mubr.bf16.mxu0 0
      %3322 = vmatmul.mubr.bf16.gmra.mrb[0].mxu0 %v3181
      %v3323 = vpop.f32.mrb[0].mxu0
      %v3324 = vadd.f32 0.0, %v3323
      %v3325 = vpop.f32.mrb[0].mxu0
      %v3326 = vpop.f32.mrb[0].mxu0
      %v3327 = vadd.f32 0.0, %v3326
      %v3328 = vpop.f32.mrb[0].mxu0
      %3329 = vmatprep.mubr.bf16.mxu0 0
      %3330 = vmatmul.mubr.bf16.gmra.mrb[0].mxu0 %v3182
      %v3331 = vpop.f32.mrb[0].mxu0
      %v3332 = vadd.f32 0.0, %v3331
      %v3333 = vpop.f32.mrb[0].mxu0
      %v3334 = vpop.f32.mrb[0].mxu0
      %v3335 = vadd.f32 0.0, %v3334
      %v3336 = vpop.f32.mrb[0].mxu0
      %3337 = vmatprep.mubr.bf16.mxu0 0
      %3338 = vmatmul.mubr.bf16.gmra.mrb[0].mxu0 %v3183
      %v3339 = vpop.f32.mrb[0].mxu0
      %v3340 = vadd.f32 0.0, %v3339
      %v3341 = vpop.f32.mrb[0].mxu0
      %v3342 = vpop.f32.mrb[0].mxu0
      %v3343 = vadd.f32 0.0, %v3342
      %v3344 = vpop.f32.mrb[0].mxu0
      %3345 = vmatprep.mubr.bf16.mxu0 0
      %3346 = vmatmul.mubr.bf16.gmra.mrb[0].mxu0 %v3184
      %v3347 = vpop.f32.mrb[0].mxu0
      %v3348 = vadd.f32 0.0, %v3347
      %v3349 = vpop.f32.mrb[0].mxu0
      %v3350 = vpop.f32.mrb[0].mxu0
      %v3351 = vadd.f32 0.0, %v3350
      %v3352 = vpop.f32.mrb[0].mxu0
      %3353 = vmatprep.mubr.bf16.mxu0 0
      %3354 = vmatmul.mubr.bf16.gmra.mrb[0].mxu0 %v3185
      %v3355 = vpop.f32.mrb[0].mxu0
      %v3356 = vadd.f32 0.0, %v3355
      %v3357 = vpop.f32.mrb[0].mxu0
      %v3358 = vpop.f32.mrb[0].mxu0
      %v3359 = vadd.f32 0.0, %v3358
      %v3360 = vpop.f32.mrb[0].mxu0
      %3361 = vmatprep.mubr.bf16.mxu0 0
      %3362 = vmatmul.mubr.bf16.gmra.mrb[0].mxu0 %v3186
      %v3363 = vpop.f32.mrb[0].mxu0
      %v3364 = vadd.f32 0.0, %v3363
      %v3365 = vpop.f32.mrb[0].mxu0
      %v3366 = vpop.f32.mrb[0].mxu0
      %v3367 = vadd.f32 0.0, %v3366
      %v3368 = vpop.f32.mrb[0].mxu0
      %3369 = vmatprep.mubr.bf16.mxu0 0
      %3370 = vmatmul.mubr.bf16.gmra.mrb[0].mxu0 %v3187
      %v3371 = vpop.f32.mrb[0].mxu0
      %v3372 = vadd.f32 0.0, %v3371
      %v3373 = vpop.f32.mrb[0].mxu0
      %v3374 = vpop.f32.mrb[0].mxu0
      %v3375 = vadd.f32 0.0, %v3374
      %v3376 = vpop.f32.mrb[0].mxu0
      %3377 = vmatprep.mubr.bf16.mxu0 0
      %3378 = vmatmul.mubr.bf16.gmra.mrb[0].mxu0 %v3188
      %v3379 = vpop.f32.mrb[0].mxu0
      %v3380 = vadd.f32 0.0, %v3379
      %v3381 = vpop.f32.mrb[0].mxu0
      %v3382 = vpop.f32.mrb[0].mxu0
      %v3383 = vadd.f32 0.0, %v3382
      %v3384 = vpop.f32.mrb[0].mxu0
      %3385 = vmatprep.mubr.bf16.mxu0 0
      %3386 = vmatmul.mubr.bf16.gmra.mrb[0].mxu0 %v3189
      %v3387 = vpop.f32.mrb[0].mxu0
      %v3388 = vadd.f32 0.0, %v3387
      %v3389 = vpop.f32.mrb[0].mxu0
      %v3390 = vpop.f32.mrb[0].mxu0
      %v3391 = vadd.f32 0.0, %v3390
      %v3392 = vpop.f32.mrb[0].mxu0
      %3393 = vmatprep.mubr.bf16.mxu0 0
      %3394 = vmatmul.mubr.bf16.gmra.mrb[0].mxu0 %v3190
      %v3395 = vpop.f32.mrb[0].mxu0
      %v3396 = vadd.f32 0.0, %v3395
      %v3397 = vpop.f32.mrb[0].mxu0
      %v3398 = vpop.f32.mrb[0].mxu0
      %v3399 = vadd.f32 0.0, %v3398
      %v3400 = vpop.f32.mrb[0].mxu0
      %3401 = vmatprep.mubr.bf16.mxu0 0
      %3402 = vmatmul.mubr.bf16.gmra.mrb[0].mxu0 %v3191
      %v3403 = vpop.f32.mrb[0].mxu0
      %v3404 = vadd.f32 0.0, %v3403
      %v3405 = vpop.f32.mrb[0].mxu0
      %v3406 = vpop.f32.mrb[0].mxu0
      %v3407 = vadd.f32 0.0, %v3406
      %v3408 = vpop.f32.mrb[0].mxu0
      %3409 = vmatprep.mubr.bf16.mxu0 0
      %3410 = vmatmul.mubr.bf16.gmra.mrb[0].mxu0 %v3192
      %v3411 = vpop.f32.mrb[0].mxu0
      %v3412 = vadd.f32 0.0, %v3411
      %v3413 = vpop.f32.mrb[0].mxu0
      %v3414 = vpop.f32.mrb[0].mxu0
      %v3415 = vadd.f32 0.0, %v3414
      %v3416 = vpop.f32.mrb[0].mxu0
      %3417 = vdwg.mxu0
      %v3418 = vadd.f32 %v2920, %v3292
      %v3419 = vadd.f32 %v2921, %v3295
      %v3420 = vadd.f32 %v2922, %v3300
      %v3421 = vadd.f32 %v2923, %v3303
      %v3422 = vadd.f32 %v2924, %v3308
      %v3423 = vadd.f32 %v2925, %v3311
      %v3424 = vadd.f32 %v2926, %v3316
      %v3425 = vadd.f32 %v2927, %v3319
      %v3426 = vadd.f32 %v2928, %v3324
      %v3427 = vadd.f32 %v2929, %v3327
      %v3428 = vadd.f32 %v2930, %v3332
      %v3429 = vadd.f32 %v2931, %v3335
      %v3430 = vadd.f32 %v2932, %v3340
      %v3431 = vadd.f32 %v2933, %v3343
      %v3432 = vadd.f32 %v2934, %v3348
      %v3433 = vadd.f32 %v2935, %v3351
      %v3434 = vadd.f32 %v2936, %v3356
      %v3435 = vadd.f32 %v2937, %v3359
      %v3436 = vadd.f32 %v2938, %v3364
      %v3437 = vadd.f32 %v2939, %v3367
      %v3438 = vadd.f32 %v2940, %v3372
      %v3439 = vadd.f32 %v2941, %v3375
      %v3440 = vadd.f32 %v2942, %v3380
      %v3441 = vadd.f32 %v2943, %v3383
      %v3442 = vadd.f32 %v2944, %v3388
      %v3443 = vadd.f32 %v2945, %v3391
      %v3444 = vadd.f32 %v2946, %v3396
      %v3445 = vadd.f32 %v2947, %v3399
      %v3446 = vadd.f32 %v2948, %v3404
      %v3447 = vadd.f32 %v2949, %v3407
      %v3448 = vadd.f32 %v2950, %v3412
      %v3449 = vadd.f32 %v2951, %v3415
      %s3450 = scalar_lea.vmem %s273, 24
      %v3451 = vld [vmem:[%s3450] sm:$0xf]
      %v3452 = vld [vmem:[%s3450 + $0x4] sm:$0xf]
      %v3453 = vld [vmem:[%s3450 + $0xc] sm:$0xf]
      %v3454 = vld [vmem:[%s3450 + $0x10] sm:$0xf]
      %v3455 = vld [vmem:[%s3450 + $0x18] sm:$0xf]
      %v3456 = vld [vmem:[%s3450 + $0x1c] sm:$0xf]
      %v3457 = vld [vmem:[%s3450 + $0x24] sm:$0xf]
      %v3458 = vld [vmem:[%s3450 + $0x28] sm:$0xf]
      %v3459 = vld [vmem:[%s3450 + $0x30] sm:$0xf]
      %v3460 = vld [vmem:[%s3450 + $0x34] sm:$0xf]
      %v3461 = vld [vmem:[%s3450 + $0x3c] sm:$0xf]
      %v3462 = vld [vmem:[%s3450 + $0x40] sm:$0xf]
      %v3463 = vld [vmem:[%s3450 + $0x48] sm:$0xf]
      %v3464 = vld [vmem:[%s3450 + $0x4c] sm:$0xf]
      %v3465 = vld [vmem:[%s3450 + $0x54] sm:$0xf]
      %v3466 = vld [vmem:[%s3450 + $0x58] sm:$0xf]
      %v3467 = vld [vmem:[%s3450 + $0x60] sm:$0xf]
      %v3468 = vld [vmem:[%s3450 + $0x64] sm:$0xf]
      %v3469 = vld [vmem:[%s3450 + $0x6c] sm:$0xf]
      %v3470 = vld [vmem:[%s3450 + $0x70] sm:$0xf]
      %v3471 = vld [vmem:[%s3450 + $0x78] sm:$0xf]
      %v3472 = vld [vmem:[%s3450 + $0x7c] sm:$0xf]
      %v3473 = vld [vmem:[%s3450 + $0x84] sm:$0xf]
      %v3474 = vld [vmem:[%s3450 + $0x88] sm:$0xf]
      %v3475 = vld [vmem:[%s3450 + $0x90] sm:$0xf]
      %v3476 = vld [vmem:[%s3450 + $0x94] sm:$0xf]
      %v3477 = vld [vmem:[%s3450 + $0x9c] sm:$0xf]
      %v3478 = vld [vmem:[%s3450 + $0xa0] sm:$0xf]
      %v3479 = vld [vmem:[%s3450 + $0xa8] sm:$0xf]
      %v3480 = vld [vmem:[%s3450 + $0xac] sm:$0xf]
      %v3481 = vld [vmem:[%s3450 + $0xb4] sm:$0xf]
      %v3482 = vld [vmem:[%s3450 + $0xb8] sm:$0xf]
      %s3483 = scalar_lea.vmem %s1, 384
      %v3484 = vld [vmem:[%s3483] sm:$0xf]
      %v3485 = vld [vmem:[%s3483 + $0x4] sm:$0xf]
      %v3486 = vld [vmem:[%s3483 + $0x8] sm:$0xf]
      %v3487 = vld [vmem:[%s3483 + $0xc] sm:$0xf]
      %v3488 = vld [vmem:[%s3483 + $0x10] sm:$0xf]
      %v3489 = vld [vmem:[%s3483 + $0x14] sm:$0xf]
      %v3490 = vld [vmem:[%s3483 + $0x18] sm:$0xf]
      %v3491 = vld [vmem:[%s3483 + $0x1c] sm:$0xf]
      %v3492 = vld [vmem:[%s3483 + $0x20] sm:$0xf]
      %v3493 = vld [vmem:[%s3483 + $0x24] sm:$0xf]
      %v3494 = vld [vmem:[%s3483 + $0x28] sm:$0xf]
      %v3495 = vld [vmem:[%s3483 + $0x2c] sm:$0xf]
      %v3496 = vld [vmem:[%s3483 + $0x30] sm:$0xf]
      %v3497 = vld [vmem:[%s3483 + $0x34] sm:$0xf]
      %v3498 = vld [vmem:[%s3483 + $0x38] sm:$0xf]
      %v3499 = vld [vmem:[%s3483 + $0x3c] sm:$0xf]
      %v3532 = vunpack.c.l.b16 %v3451
      %v3533 = vunpack.c.l.b16 %v3452
      %v3534 = vunpack.c.l.b16 %v3453
      %v3535 = vunpack.c.l.b16 %v3454
      %v3536 = vunpack.c.l.b16 %v3455
      %v3537 = vunpack.c.l.b16 %v3456
      %v3538 = vunpack.c.l.b16 %v3457
      %v3539 = vunpack.c.l.b16 %v3458
      %v3540 = vunpack.c.l.b16 %v3459
      %v3541 = vunpack.c.l.b16 %v3460
      %v3542 = vunpack.c.l.b16 %v3461
      %v3543 = vunpack.c.l.b16 %v3462
      %v3544 = vunpack.c.l.b16 %v3463
      %v3545 = vunpack.c.l.b16 %v3464
      %v3546 = vunpack.c.l.b16 %v3465
      %v3547 = vunpack.c.l.b16 %v3466
      %v3548 = vunpack.c.l.b16 %v3467
      %v3549 = vunpack.c.l.b16 %v3468
      %v3550 = vunpack.c.l.b16 %v3469
      %v3551 = vunpack.c.l.b16 %v3470
      %v3552 = vunpack.c.l.b16 %v3471
      %v3553 = vunpack.c.l.b16 %v3472
      %v3554 = vunpack.c.l.b16 %v3473
      %v3555 = vunpack.c.l.b16 %v3474
      %v3556 = vunpack.c.l.b16 %v3475
      %v3557 = vunpack.c.l.b16 %v3476
      %v3558 = vunpack.c.l.b16 %v3477
      %v3559 = vunpack.c.l.b16 %v3478
      %v3560 = vunpack.c.l.b16 %v3479
      %v3561 = vunpack.c.l.b16 %v3480
      %v3562 = vunpack.c.l.b16 %v3481
      %v3563 = vunpack.c.l.b16 %v3482
      %v3564 = vpack.c.b16 %v3533, %v3532
      %v3565 = vpack.c.b16 %v3535, %v3534
      %v3566 = vpack.c.b16 %v3537, %v3536
      %v3567 = vpack.c.b16 %v3539, %v3538
      %v3568 = vpack.c.b16 %v3541, %v3540
      %v3569 = vpack.c.b16 %v3543, %v3542
      %v3570 = vpack.c.b16 %v3545, %v3544
      %v3571 = vpack.c.b16 %v3547, %v3546
      %v3572 = vpack.c.b16 %v3549, %v3548
      %v3573 = vpack.c.b16 %v3551, %v3550
      %v3574 = vpack.c.b16 %v3553, %v3552
      %v3575 = vpack.c.b16 %v3555, %v3554
      %v3576 = vpack.c.b16 %v3557, %v3556
      %v3577 = vpack.c.b16 %v3559, %v3558
      %v3578 = vpack.c.b16 %v3561, %v3560
      %v3579 = vpack.c.b16 %v3563, %v3562
      %v3612 = vunpack.c.l.b16 %v3484
      %v3613 = vunpack.c.l.b16 %v3485
      %v3614 = vunpack.c.l.b16 %v3486
      %v3615 = vunpack.c.l.b16 %v3487
      %v3616 = vunpack.c.l.b16 %v3488
      %v3617 = vunpack.c.l.b16 %v3489
      %v3618 = vunpack.c.l.b16 %v3490
      %v3619 = vunpack.c.l.b16 %v3491
      %v3620 = vunpack.c.l.b16 %v3492
      %v3621 = vunpack.c.l.b16 %v3493
      %v3622 = vunpack.c.l.b16 %v3494
      %v3623 = vunpack.c.l.b16 %v3495
      %v3624 = vunpack.c.l.b16 %v3496
      %v3625 = vunpack.c.l.b16 %v3497
      %v3626 = vunpack.c.l.b16 %v3498
      %v3627 = vunpack.c.l.b16 %v3499
      %v3628 = vpack.c.b16 %v3613, %v3612
      %v3629 = vpack.c.b16 %v3615, %v3614
      %v3630 = vpack.c.b16 %v3617, %v3616
      %v3631 = vpack.c.b16 %v3619, %v3618
      %v3632 = vpack.c.b16 %v3621, %v3620
      %v3633 = vpack.c.b16 %v3623, %v3622
      %v3634 = vpack.c.b16 %v3625, %v3624
      %v3635 = vpack.c.b16 %v3627, %v3626
      %3644 = vmatprep.subr.bf16.mxu0 0
      %3645 = vmatpush1.bf16.msra.mxu0 %v3628
      %3646 = vmatprep.subr.bf16.mxu0 0
      %3647 = vmatpush1.bf16.msra.mxu0 %v3629
      %3648 = vmatprep.subr.bf16.mxu0 0
      %3649 = vmatpush1.bf16.msra.mxu0 %v3630
      %3650 = vmatprep.subr.bf16.mxu0 0
      %3651 = vmatpush1.bf16.msra.mxu0 %v3631
      %3652 = vmatprep.subr.bf16.mxu0 0
      %3653 = vmatpush1.bf16.msra.mxu0 %v3632
      %3654 = vmatprep.subr.bf16.mxu0 0
      %3655 = vmatpush1.bf16.msra.mxu0 %v3633
      %3656 = vmatprep.subr.bf16.mxu0 0
      %3657 = vmatpush1.bf16.msra.mxu0 %v3634
      %3658 = vmatprep.subr.bf16.mxu0 0
      %3659 = vmatpush1.bf16.msra.mxu0 %v3635
      %3660 = vmatprep.subr.bf16.mxu0 0
      %3661 = vmatpush1.bf16.msra.mxu0 0
      %3662 = vmatprep.subr.bf16.mxu0 0
      %3663 = vmatpush1.bf16.msra.mxu0 0
      %3664 = vmatprep.subr.bf16.mxu0 0
      %3665 = vmatpush1.bf16.msra.mxu0 0
      %3666 = vmatprep.subr.bf16.mxu0 0
      %3667 = vmatpush1.bf16.msra.mxu0 0
      %3668 = vmatprep.subr.bf16.mxu0 0
      %3669 = vmatpush1.bf16.msra.mxu0 0
      %3670 = vmatprep.subr.bf16.mxu0 0
      %3671 = vmatpush1.bf16.msra.mxu0 0
      %3672 = vmatprep.subr.bf16.mxu0 0
      %3673 = vmatpush1.bf16.msra.mxu0 0
      %3674 = vmatprep.subr.bf16.mxu0 0
      %3675 = vmatpush1.bf16.msra.mxu0 0
      %3676 = vmatprep.mubr.bf16.mxu0 0
      %3677 = vmatmul.mubr.bf16.gmra.mrb[0].mxu0 %v3564
      %v3678 = vpop.f32.mrb[0].mxu0
      %v3679 = vadd.f32 0.0, %v3678
      %v3680 = vpop.f32.mrb[0].mxu0
      %v3681 = vpop.f32.mrb[0].mxu0
      %v3682 = vadd.f32 0.0, %v3681
      %v3683 = vpop.f32.mrb[0].mxu0
      %3684 = vmatprep.mubr.bf16.mxu0 0
      %3685 = vmatmul.mubr.bf16.gmra.mrb[0].mxu0 %v3565
      %v3686 = vpop.f32.mrb[0].mxu0
      %v3687 = vadd.f32 0.0, %v3686
      %v3688 = vpop.f32.mrb[0].mxu0
      %v3689 = vpop.f32.mrb[0].mxu0
      %v3690 = vadd.f32 0.0, %v3689
      %v3691 = vpop.f32.mrb[0].mxu0
      %3692 = vmatprep.mubr.bf16.mxu0 0
      %3693 = vmatmul.mubr.bf16.gmra.mrb[0].mxu0 %v3566
      %v3694 = vpop.f32.mrb[0].mxu0
      %v3695 = vadd.f32 0.0, %v3694
      %v3696 = vpop.f32.mrb[0].mxu0
      %v3697 = vpop.f32.mrb[0].mxu0
      %v3698 = vadd.f32 0.0, %v3697
      %v3699 = vpop.f32.mrb[0].mxu0
      %3700 = vmatprep.mubr.bf16.mxu0 0
      %3701 = vmatmul.mubr.bf16.gmra.mrb[0].mxu0 %v3567
      %v3702 = vpop.f32.mrb[0].mxu0
      %v3703 = vadd.f32 0.0, %v3702
      %v3704 = vpop.f32.mrb[0].mxu0
      %v3705 = vpop.f32.mrb[0].mxu0
      %v3706 = vadd.f32 0.0, %v3705
      %v3707 = vpop.f32.mrb[0].mxu0
      %3708 = vmatprep.mubr.bf16.mxu0 0
      %3709 = vmatmul.mubr.bf16.gmra.mrb[0].mxu0 %v3568
      %v3710 = vpop.f32.mrb[0].mxu0
      %v3711 = vadd.f32 0.0, %v3710
      %v3712 = vpop.f32.mrb[0].mxu0
      %v3713 = vpop.f32.mrb[0].mxu0
      %v3714 = vadd.f32 0.0, %v3713
      %v3715 = vpop.f32.mrb[0].mxu0
      %3716 = vmatprep.mubr.bf16.mxu0 0
      %3717 = vmatmul.mubr.bf16.gmra.mrb[0].mxu0 %v3569
      %v3718 = vpop.f32.mrb[0].mxu0
      %v3719 = vadd.f32 0.0, %v3718
      %v3720 = vpop.f32.mrb[0].mxu0
      %v3721 = vpop.f32.mrb[0].mxu0
      %v3722 = vadd.f32 0.0, %v3721
      %v3723 = vpop.f32.mrb[0].mxu0
      %3724 = vmatprep.mubr.bf16.mxu0 0
      %3725 = vmatmul.mubr.bf16.gmra.mrb[0].mxu0 %v3570
      %v3726 = vpop.f32.mrb[0].mxu0
      %v3727 = vadd.f32 0.0, %v3726
      %v3728 = vpop.f32.mrb[0].mxu0
      %v3729 = vpop.f32.mrb[0].mxu0
      %v3730 = vadd.f32 0.0, %v3729
      %v3731 = vpop.f32.mrb[0].mxu0
      %3732 = vmatprep.mubr.bf16.mxu0 0
      %3733 = vmatmul.mubr.bf16.gmra.mrb[0].mxu0 %v3571
      %v3734 = vpop.f32.mrb[0].mxu0
      %v3735 = vadd.f32 0.0, %v3734
      %v3736 = vpop.f32.mrb[0].mxu0
      %v3737 = vpop.f32.mrb[0].mxu0
      %v3738 = vadd.f32 0.0, %v3737
      %v3739 = vpop.f32.mrb[0].mxu0
      %3740 = vmatprep.mubr.bf16.mxu0 0
      %3741 = vmatmul.mubr.bf16.gmra.mrb[0].mxu0 %v3572
      %v3742 = vpop.f32.mrb[0].mxu0
      %v3743 = vadd.f32 0.0, %v3742
      %v3744 = vpop.f32.mrb[0].mxu0
      %v3745 = vpop.f32.mrb[0].mxu0
      %v3746 = vadd.f32 0.0, %v3745
      %v3747 = vpop.f32.mrb[0].mxu0
      %3748 = vmatprep.mubr.bf16.mxu0 0
      %3749 = vmatmul.mubr.bf16.gmra.mrb[0].mxu0 %v3573
      %v3750 = vpop.f32.mrb[0].mxu0
      %v3751 = vadd.f32 0.0, %v3750
      %v3752 = vpop.f32.mrb[0].mxu0
      %v3753 = vpop.f32.mrb[0].mxu0
      %v3754 = vadd.f32 0.0, %v3753
      %v3755 = vpop.f32.mrb[0].mxu0
      %3756 = vmatprep.mubr.bf16.mxu0 0
      %3757 = vmatmul.mubr.bf16.gmra.mrb[0].mxu0 %v3574
      %v3758 = vpop.f32.mrb[0].mxu0
      %v3759 = vadd.f32 0.0, %v3758
      %v3760 = vpop.f32.mrb[0].mxu0
      %v3761 = vpop.f32.mrb[0].mxu0
      %v3762 = vadd.f32 0.0, %v3761
      %v3763 = vpop.f32.mrb[0].mxu0
      %3764 = vmatprep.mubr.bf16.mxu0 0
      %3765 = vmatmul.mubr.bf16.gmra.mrb[0].mxu0 %v3575
      %v3766 = vpop.f32.mrb[0].mxu0
      %v3767 = vadd.f32 0.0, %v3766
      %v3768 = vpop.f32.mrb[0].mxu0
      %v3769 = vpop.f32.mrb[0].mxu0
      %v3770 = vadd.f32 0.0, %v3769
      %v3771 = vpop.f32.mrb[0].mxu0
      %3772 = vmatprep.mubr.bf16.mxu0 0
      %3773 = vmatmul.mubr.bf16.gmra.mrb[0].mxu0 %v3576
      %v3774 = vpop.f32.mrb[0].mxu0
      %v3775 = vadd.f32 0.0, %v3774
      %v3776 = vpop.f32.mrb[0].mxu0
      %v3777 = vpop.f32.mrb[0].mxu0
      %v3778 = vadd.f32 0.0, %v3777
      %v3779 = vpop.f32.mrb[0].mxu0
      %3780 = vmatprep.mubr.bf16.mxu0 0
      %3781 = vmatmul.mubr.bf16.gmra.mrb[0].mxu0 %v3577
      %v3782 = vpop.f32.mrb[0].mxu0
      %v3783 = vadd.f32 0.0, %v3782
      %v3784 = vpop.f32.mrb[0].mxu0
      %v3785 = vpop.f32.mrb[0].mxu0
      %v3786 = vadd.f32 0.0, %v3785
      %v3787 = vpop.f32.mrb[0].mxu0
      %3788 = vmatprep.mubr.bf16.mxu0 0
      %3789 = vmatmul.mubr.bf16.gmra.mrb[0].mxu0 %v3578
      %v3790 = vpop.f32.mrb[0].mxu0
      %v3791 = vadd.f32 0.0, %v3790
      %v3792 = vpop.f32.mrb[0].mxu0
      %v3793 = vpop.f32.mrb[0].mxu0
      %v3794 = vadd.f32 0.0, %v3793
      %v3795 = vpop.f32.mrb[0].mxu0
      %3796 = vmatprep.mubr.bf16.mxu0 0
      %3797 = vmatmul.mubr.bf16.gmra.mrb[0].mxu0 %v3579
      %v3798 = vpop.f32.mrb[0].mxu0
      %v3799 = vadd.f32 0.0, %v3798
      %v3800 = vpop.f32.mrb[0].mxu0
      %v3801 = vpop.f32.mrb[0].mxu0
      %v3802 = vadd.f32 0.0, %v3801
      %v3803 = vpop.f32.mrb[0].mxu0
      %3804 = vdwg.mxu0
      %v3805 = vadd.f32 %v3418, %v3679
      %v3806 = vadd.f32 %v3419, %v3682
      %v3807 = vadd.f32 %v3420, %v3687
      %v3808 = vadd.f32 %v3421, %v3690
      %v3809 = vadd.f32 %v3422, %v3695
      %v3810 = vadd.f32 %v3423, %v3698
      %v3811 = vadd.f32 %v3424, %v3703
      %v3812 = vadd.f32 %v3425, %v3706
      %v3813 = vadd.f32 %v3426, %v3711
      %v3814 = vadd.f32 %v3427, %v3714
      %v3815 = vadd.f32 %v3428, %v3719
      %v3816 = vadd.f32 %v3429, %v3722
      %v3817 = vadd.f32 %v3430, %v3727
      %v3818 = vadd.f32 %v3431, %v3730
      %v3819 = vadd.f32 %v3432, %v3735
      %v3820 = vadd.f32 %v3433, %v3738
      %v3821 = vadd.f32 %v3434, %v3743
      %v3822 = vadd.f32 %v3435, %v3746
      %v3823 = vadd.f32 %v3436, %v3751
      %v3824 = vadd.f32 %v3437, %v3754
      %v3825 = vadd.f32 %v3438, %v3759
      %v3826 = vadd.f32 %v3439, %v3762
      %v3827 = vadd.f32 %v3440, %v3767
      %v3828 = vadd.f32 %v3441, %v3770
      %v3829 = vadd.f32 %v3442, %v3775
      %v3830 = vadd.f32 %v3443, %v3778
      %v3831 = vadd.f32 %v3444, %v3783
      %v3832 = vadd.f32 %v3445, %v3786
      %v3833 = vadd.f32 %v3446, %v3791
      %v3834 = vadd.f32 %v3447, %v3794
      %v3835 = vadd.f32 %v3448, %v3799
      %v3836 = vadd.f32 %v3449, %v3802
      %v3837 = vld [vmem:[%s3450] sm:$0xf]
      %v3838 = vld [vmem:[%s3450 + $0x4] sm:$0xf]
      %v3839 = vld [vmem:[%s3450 + $0x8] sm:$0x1]
      %v3840 = vld [vmem:[%s3450 + $0xc] sm:$0xf]
      %v3841 = vld [vmem:[%s3450 + $0x10] sm:$0xf]
      %v3842 = vld [vmem:[%s3450 + $0x14] sm:$0x1]
      %v3843 = vld [vmem:[%s3450 + $0x18] sm:$0xf]
      %v3844 = vld [vmem:[%s3450 + $0x1c] sm:$0xf]
      %v3845 = vld [vmem:[%s3450 + $0x20] sm:$0x1]
      %v3846 = vld [vmem:[%s3450 + $0x24] sm:$0xf]
      %v3847 = vld [vmem:[%s3450 + $0x28] sm:$0xf]
      %v3848 = vld [vmem:[%s3450 + $0x2c] sm:$0x1]
      %v3849 = vld [vmem:[%s3450 + $0x30] sm:$0xf]
      %v3850 = vld [vmem:[%s3450 + $0x34] sm:$0xf]
      %v3851 = vld [vmem:[%s3450 + $0x38] sm:$0x1]
      %v3852 = vld [vmem:[%s3450 + $0x3c] sm:$0xf]
      %v3853 = vld [vmem:[%s3450 + $0x40] sm:$0xf]
      %v3854 = vld [vmem:[%s3450 + $0x44] sm:$0x1]
      %v3855 = vld [vmem:[%s3450 + $0x48] sm:$0xf]
      %v3856 = vld [vmem:[%s3450 + $0x4c] sm:$0xf]
      %v3857 = vld [vmem:[%s3450 + $0x50] sm:$0x1]
      %v3858 = vld [vmem:[%s3450 + $0x54] sm:$0xf]
      %v3859 = vld [vmem:[%s3450 + $0x58] sm:$0xf]
      %v3860 = vld [vmem:[%s3450 + $0x5c] sm:$0x1]
      %v3861 = vld [vmem:[%s3450 + $0x60] sm:$0xf]
      %v3862 = vld [vmem:[%s3450 + $0x64] sm:$0xf]
      %v3863 = vld [vmem:[%s3450 + $0x68] sm:$0x1]
      %v3864 = vld [vmem:[%s3450 + $0x6c] sm:$0xf]
      %v3865 = vld [vmem:[%s3450 + $0x70] sm:$0xf]
      %v3866 = vld [vmem:[%s3450 + $0x74] sm:$0x1]
      %v3867 = vld [vmem:[%s3450 + $0x78] sm:$0xf]
      %v3868 = vld [vmem:[%s3450 + $0x7c] sm:$0xf]
      %v3869 = vld [vmem:[%s3450 + $0x80] sm:$0x1]
      %v3870 = vld [vmem:[%s3450 + $0x84] sm:$0xf]
      %v3871 = vld [vmem:[%s3450 + $0x88] sm:$0xf]
      %v3872 = vld [vmem:[%s3450 + $0x8c] sm:$0x1]
      %v3873 = vld [vmem:[%s3450 + $0x90] sm:$0xf]
      %v3874 = vld [vmem:[%s3450 + $0x94] sm:$0xf]
      %v3875 = vld [vmem:[%s3450 + $0x98] sm:$0x1]
      %v3876 = vld [vmem:[%s3450 + $0x9c] sm:$0xf]
      %v3877 = vld [vmem:[%s3450 + $0xa0] sm:$0xf]
      %v3878 = vld [vmem:[%s3450 + $0xa4] sm:$0x1]
      %v3879 = vld [vmem:[%s3450 + $0xa8] sm:$0xf]
      %v3880 = vld [vmem:[%s3450 + $0xac] sm:$0xf]
      %v3881 = vld [vmem:[%s3450 + $0xb0] sm:$0x1]
      %v3882 = vld [vmem:[%s3450 + $0xb4] sm:$0xf]
      %v3883 = vld [vmem:[%s3450 + $0xb8] sm:$0xf]
      %v3884 = vld [vmem:[%s3450 + $0xbc] sm:$0x1]
      %s3885 = scalar_lea.vmem %s1, 448
      %v3886 = vld [vmem:[%s3885] sm:$0xf]
      %v3887 = vld [vmem:[%s3885 + $0x4] sm:$0xf]
      %v3888 = vld [vmem:[%s3885 + $0x8] sm:$0xf]
      %v3889 = vld [vmem:[%s3885 + $0xc] sm:$0xf]
      %v3890 = vld [vmem:[%s3885 + $0x10] sm:$0xf]
      %v3891 = vld [vmem:[%s3885 + $0x14] sm:$0xf]
      %v3892 = vld [vmem:[%s3885 + $0x18] sm:$0xf]
      %v3893 = vld [vmem:[%s3885 + $0x1c] sm:$0xf]
      %v3894 = vld [vmem:[%s3885 + $0x20] sm:$0xf]
      %v3895 = vld [vmem:[%s3885 + $0x24] sm:$0xf]
      %v3896 = vld [vmem:[%s3885 + $0x28] sm:$0xf]
      %v3897 = vld [vmem:[%s3885 + $0x2c] sm:$0xf]
      %v3898 = vld [vmem:[%s3885 + $0x30] sm:$0xf]
      %v3899 = vld [vmem:[%s3885 + $0x34] sm:$0xf]
      %v3900 = vld [vmem:[%s3885 + $0x38] sm:$0xf]
      %v3901 = vld [vmem:[%s3885 + $0x3c] sm:$0xf]
      %v3903 = vshrl.u32 %v3837, 16
      %v3905 = vrot.slane %v3903, 4
      %v3906 = vshll.u32 %v3837, 16
      %v3908 = vrot.slane %v3906, 5
      %v3909 = vor.u32 %v3905, %v3908
      %v3910 = vrot.slane %v3909, 4
      %v3912 = vshll.u32 %v3838, 16
      %v3914 = vrot.slane %v3912, 5
      %v3915 = vsel %vm363, %v3910, %v3914
      %v3916 = vshrl.u32 %v3838, 16
      %v3918 = vrot.slane %v3916, 4
      %v3919 = vor.u32 %v3918, %v3914
      %v3920 = vrot.slane %v3919, 4
      %v3922 = vshll.u32 %v3839, 16
      %v3924 = vrot.slane %v3922, 5
      %v3925 = vsel %vm363, %v3920, %v3924
      %v3927 = vshrl.u32 %v3840, 16
      %v3929 = vrot.slane %v3927, 4
      %v3930 = vshll.u32 %v3840, 16
      %v3932 = vrot.slane %v3930, 5
      %v3933 = vor.u32 %v3929, %v3932
      %v3934 = vrot.slane %v3933, 4
      %v3936 = vshll.u32 %v3841, 16
      %v3938 = vrot.slane %v3936, 5
      %v3939 = vsel %vm363, %v3934, %v3938
      %v3940 = vshrl.u32 %v3841, 16
      %v3942 = vrot.slane %v3940, 4
      %v3943 = vor.u32 %v3942, %v3938
      %v3944 = vrot.slane %v3943, 4
      %v3946 = vshll.u32 %v3842, 16
      %v3948 = vrot.slane %v3946, 5
      %v3949 = vsel %vm363, %v3944, %v3948
      %v3951 = vshrl.u32 %v3843, 16
      %v3953 = vrot.slane %v3951, 4
      %v3954 = vshll.u32 %v3843, 16
      %v3956 = vrot.slane %v3954, 5
      %v3957 = vor.u32 %v3953, %v3956
      %v3958 = vrot.slane %v3957, 4
      %v3960 = vshll.u32 %v3844, 16
      %v3962 = vrot.slane %v3960, 5
      %v3963 = vsel %vm363, %v3958, %v3962
      %v3964 = vshrl.u32 %v3844, 16
      %v3966 = vrot.slane %v3964, 4
      %v3967 = vor.u32 %v3966, %v3962
      %v3968 = vrot.slane %v3967, 4
      %v3970 = vshll.u32 %v3845, 16
      %v3972 = vrot.slane %v3970, 5
      %v3973 = vsel %vm363, %v3968, %v3972
      %v3975 = vshrl.u32 %v3846, 16
      %v3977 = vrot.slane %v3975, 4
      %v3978 = vshll.u32 %v3846, 16
      %v3980 = vrot.slane %v3978, 5
      %v3981 = vor.u32 %v3977, %v3980
      %v3982 = vrot.slane %v3981, 4
      %v3984 = vshll.u32 %v3847, 16
      %v3986 = vrot.slane %v3984, 5
      %v3987 = vsel %vm363, %v3982, %v3986
      %v3988 = vshrl.u32 %v3847, 16
      %v3990 = vrot.slane %v3988, 4
      %v3991 = vor.u32 %v3990, %v3986
      %v3992 = vrot.slane %v3991, 4
      %v3994 = vshll.u32 %v3848, 16
      %v3996 = vrot.slane %v3994, 5
      %v3997 = vsel %vm363, %v3992, %v3996
      %v3999 = vshrl.u32 %v3849, 16
      %v4001 = vrot.slane %v3999, 4
      %v4002 = vshll.u32 %v3849, 16
      %v4004 = vrot.slane %v4002, 5
      %v4005 = vor.u32 %v4001, %v4004
      %v4006 = vrot.slane %v4005, 4
      %v4008 = vshll.u32 %v3850, 16
      %v4010 = vrot.slane %v4008, 5
      %v4011 = vsel %vm363, %v4006, %v4010
      %v4012 = vshrl.u32 %v3850, 16
      %v4014 = vrot.slane %v4012, 4
      %v4015 = vor.u32 %v4014, %v4010
      %v4016 = vrot.slane %v4015, 4
      %v4018 = vshll.u32 %v3851, 16
      %v4020 = vrot.slane %v4018, 5
      %v4021 = vsel %vm363, %v4016, %v4020
      %v4023 = vshrl.u32 %v3852, 16
      %v4025 = vrot.slane %v4023, 4
      %v4026 = vshll.u32 %v3852, 16
      %v4028 = vrot.slane %v4026, 5
      %v4029 = vor.u32 %v4025, %v4028
      %v4030 = vrot.slane %v4029, 4
      %v4032 = vshll.u32 %v3853, 16
      %v4034 = vrot.slane %v4032, 5
      %v4035 = vsel %vm363, %v4030, %v4034
      %v4036 = vshrl.u32 %v3853, 16
      %v4038 = vrot.slane %v4036, 4
      %v4039 = vor.u32 %v4038, %v4034
      %v4040 = vrot.slane %v4039, 4
      %v4042 = vshll.u32 %v3854, 16
      %v4044 = vrot.slane %v4042, 5
      %v4045 = vsel %vm363, %v4040, %v4044
      %v4047 = vshrl.u32 %v3855, 16
      %v4049 = vrot.slane %v4047, 4
      %v4050 = vshll.u32 %v3855, 16
      %v4052 = vrot.slane %v4050, 5
      %v4053 = vor.u32 %v4049, %v4052
      %v4054 = vrot.slane %v4053, 4
      %v4056 = vshll.u32 %v3856, 16
      %v4058 = vrot.slane %v4056, 5
      %v4059 = vsel %vm363, %v4054, %v4058
      %v4060 = vshrl.u32 %v3856, 16
      %v4062 = vrot.slane %v4060, 4
      %v4063 = vor.u32 %v4062, %v4058
      %v4064 = vrot.slane %v4063, 4
      %v4066 = vshll.u32 %v3857, 16
      %v4068 = vrot.slane %v4066, 5
      %v4069 = vsel %vm363, %v4064, %v4068
      %v4071 = vshrl.u32 %v3858, 16
      %v4073 = vrot.slane %v4071, 4
      %v4074 = vshll.u32 %v3858, 16
      %v4076 = vrot.slane %v4074, 5
      %v4077 = vor.u32 %v4073, %v4076
      %v4078 = vrot.slane %v4077, 4
      %v4080 = vshll.u32 %v3859, 16
      %v4082 = vrot.slane %v4080, 5
      %v4083 = vsel %vm363, %v4078, %v4082
      %v4084 = vshrl.u32 %v3859, 16
      %v4086 = vrot.slane %v4084, 4
      %v4087 = vor.u32 %v4086, %v4082
      %v4088 = vrot.slane %v4087, 4
      %v4090 = vshll.u32 %v3860, 16
      %v4092 = vrot.slane %v4090, 5
      %v4093 = vsel %vm363, %v4088, %v4092
      %v4095 = vshrl.u32 %v3861, 16
      %v4097 = vrot.slane %v4095, 4
      %v4098 = vshll.u32 %v3861, 16
      %v4100 = vrot.slane %v4098, 5
      %v4101 = vor.u32 %v4097, %v4100
      %v4102 = vrot.slane %v4101, 4
      %v4104 = vshll.u32 %v3862, 16
      %v4106 = vrot.slane %v4104, 5
      %v4107 = vsel %vm363, %v4102, %v4106
      %v4108 = vshrl.u32 %v3862, 16
      %v4110 = vrot.slane %v4108, 4
      %v4111 = vor.u32 %v4110, %v4106
      %v4112 = vrot.slane %v4111, 4
      %v4114 = vshll.u32 %v3863, 16
      %v4116 = vrot.slane %v4114, 5
      %v4117 = vsel %vm363, %v4112, %v4116
      %v4119 = vshrl.u32 %v3864, 16
      %v4121 = vrot.slane %v4119, 4
      %v4122 = vshll.u32 %v3864, 16
      %v4124 = vrot.slane %v4122, 5
      %v4125 = vor.u32 %v4121, %v4124
      %v4126 = vrot.slane %v4125, 4
      %v4128 = vshll.u32 %v3865, 16
      %v4130 = vrot.slane %v4128, 5
      %v4131 = vsel %vm363, %v4126, %v4130
      %v4132 = vshrl.u32 %v3865, 16
      %v4134 = vrot.slane %v4132, 4
      %v4135 = vor.u32 %v4134, %v4130
      %v4136 = vrot.slane %v4135, 4
      %v4138 = vshll.u32 %v3866, 16
      %v4140 = vrot.slane %v4138, 5
      %v4141 = vsel %vm363, %v4136, %v4140
      %v4143 = vshrl.u32 %v3867, 16
      %v4145 = vrot.slane %v4143, 4
      %v4146 = vshll.u32 %v3867, 16
      %v4148 = vrot.slane %v4146, 5
      %v4149 = vor.u32 %v4145, %v4148
      %v4150 = vrot.slane %v4149, 4
      %v4152 = vshll.u32 %v3868, 16
      %v4154 = vrot.slane %v4152, 5
      %v4155 = vsel %vm363, %v4150, %v4154
      %v4156 = vshrl.u32 %v3868, 16
      %v4158 = vrot.slane %v4156, 4
      %v4159 = vor.u32 %v4158, %v4154
      %v4160 = vrot.slane %v4159, 4
      %v4162 = vshll.u32 %v3869, 16
      %v4164 = vrot.slane %v4162, 5
      %v4165 = vsel %vm363, %v4160, %v4164
      %v4167 = vshrl.u32 %v3870, 16
      %v4169 = vrot.slane %v4167, 4
      %v4170 = vshll.u32 %v3870, 16
      %v4172 = vrot.slane %v4170, 5
      %v4173 = vor.u32 %v4169, %v4172
      %v4174 = vrot.slane %v4173, 4
      %v4176 = vshll.u32 %v3871, 16
      %v4178 = vrot.slane %v4176, 5
      %v4179 = vsel %vm363, %v4174, %v4178
      %v4180 = vshrl.u32 %v3871, 16
      %v4182 = vrot.slane %v4180, 4
      %v4183 = vor.u32 %v4182, %v4178
      %v4184 = vrot.slane %v4183, 4
      %v4186 = vshll.u32 %v3872, 16
      %v4188 = vrot.slane %v4186, 5
      %v4189 = vsel %vm363, %v4184, %v4188
      %v4191 = vshrl.u32 %v3873, 16
      %v4193 = vrot.slane %v4191, 4
      %v4194 = vshll.u32 %v3873, 16
      %v4196 = vrot.slane %v4194, 5
      %v4197 = vor.u32 %v4193, %v4196
      %v4198 = vrot.slane %v4197, 4
      %v4200 = vshll.u32 %v3874, 16
      %v4202 = vrot.slane %v4200, 5
      %v4203 = vsel %vm363, %v4198, %v4202
      %v4204 = vshrl.u32 %v3874, 16
      %v4206 = vrot.slane %v4204, 4
      %v4207 = vor.u32 %v4206, %v4202
      %v4208 = vrot.slane %v4207, 4
      %v4210 = vshll.u32 %v3875, 16
      %v4212 = vrot.slane %v4210, 5
      %v4213 = vsel %vm363, %v4208, %v4212
      %v4215 = vshrl.u32 %v3876, 16
      %v4217 = vrot.slane %v4215, 4
      %v4218 = vshll.u32 %v3876, 16
      %v4220 = vrot.slane %v4218, 5
      %v4221 = vor.u32 %v4217, %v4220
      %v4222 = vrot.slane %v4221, 4
      %v4224 = vshll.u32 %v3877, 16
      %v4226 = vrot.slane %v4224, 5
      %v4227 = vsel %vm363, %v4222, %v4226
      %v4228 = vshrl.u32 %v3877, 16
      %v4230 = vrot.slane %v4228, 4
      %v4231 = vor.u32 %v4230, %v4226
      %v4232 = vrot.slane %v4231, 4
      %v4234 = vshll.u32 %v3878, 16
      %v4236 = vrot.slane %v4234, 5
      %v4237 = vsel %vm363, %v4232, %v4236
      %v4239 = vshrl.u32 %v3879, 16
      %v4241 = vrot.slane %v4239, 4
      %v4242 = vshll.u32 %v3879, 16
      %v4244 = vrot.slane %v4242, 5
      %v4245 = vor.u32 %v4241, %v4244
      %v4246 = vrot.slane %v4245, 4
      %v4248 = vshll.u32 %v3880, 16
      %v4250 = vrot.slane %v4248, 5
      %v4251 = vsel %vm363, %v4246, %v4250
      %v4252 = vshrl.u32 %v3880, 16
      %v4254 = vrot.slane %v4252, 4
      %v4255 = vor.u32 %v4254, %v4250
      %v4256 = vrot.slane %v4255, 4
      %v4258 = vshll.u32 %v3881, 16
      %v4260 = vrot.slane %v4258, 5
      %v4261 = vsel %vm363, %v4256, %v4260
      %v4263 = vshrl.u32 %v3882, 16
      %v4265 = vrot.slane %v4263, 4
      %v4266 = vshll.u32 %v3882, 16
      %v4268 = vrot.slane %v4266, 5
      %v4269 = vor.u32 %v4265, %v4268
      %v4270 = vrot.slane %v4269, 4
      %v4272 = vshll.u32 %v3883, 16
      %v4274 = vrot.slane %v4272, 5
      %v4275 = vsel %vm363, %v4270, %v4274
      %v4276 = vshrl.u32 %v3883, 16
      %v4278 = vrot.slane %v4276, 4
      %v4279 = vor.u32 %v4278, %v4274
      %v4280 = vrot.slane %v4279, 4
      %v4282 = vshll.u32 %v3884, 16
      %v4284 = vrot.slane %v4282, 5
      %v4285 = vsel %vm363, %v4280, %v4284
      %v4286 = vunpack.c.l.b16 %v3915
      %v4287 = vunpack.c.l.b16 %v3925
      %v4288 = vunpack.c.l.b16 %v3939
      %v4289 = vunpack.c.l.b16 %v3949
      %v4290 = vunpack.c.l.b16 %v3963
      %v4291 = vunpack.c.l.b16 %v3973
      %v4292 = vunpack.c.l.b16 %v3987
      %v4293 = vunpack.c.l.b16 %v3997
      %v4294 = vunpack.c.l.b16 %v4011
      %v4295 = vunpack.c.l.b16 %v4021
      %v4296 = vunpack.c.l.b16 %v4035
      %v4297 = vunpack.c.l.b16 %v4045
      %v4298 = vunpack.c.l.b16 %v4059
      %v4299 = vunpack.c.l.b16 %v4069
      %v4300 = vunpack.c.l.b16 %v4083
      %v4301 = vunpack.c.l.b16 %v4093
      %v4302 = vunpack.c.l.b16 %v4107
      %v4303 = vunpack.c.l.b16 %v4117
      %v4304 = vunpack.c.l.b16 %v4131
      %v4305 = vunpack.c.l.b16 %v4141
      %v4306 = vunpack.c.l.b16 %v4155
      %v4307 = vunpack.c.l.b16 %v4165
      %v4308 = vunpack.c.l.b16 %v4179
      %v4309 = vunpack.c.l.b16 %v4189
      %v4310 = vunpack.c.l.b16 %v4203
      %v4311 = vunpack.c.l.b16 %v4213
      %v4312 = vunpack.c.l.b16 %v4227
      %v4313 = vunpack.c.l.b16 %v4237
      %v4314 = vunpack.c.l.b16 %v4251
      %v4315 = vunpack.c.l.b16 %v4261
      %v4316 = vunpack.c.l.b16 %v4275
      %v4317 = vunpack.c.l.b16 %v4285
      %v4318 = vpack.c.b16 %v4287, %v4286
      %v4319 = vpack.c.b16 %v4289, %v4288
      %v4320 = vpack.c.b16 %v4291, %v4290
      %v4321 = vpack.c.b16 %v4293, %v4292
      %v4322 = vpack.c.b16 %v4295, %v4294
      %v4323 = vpack.c.b16 %v4297, %v4296
      %v4324 = vpack.c.b16 %v4299, %v4298
      %v4325 = vpack.c.b16 %v4301, %v4300
      %v4326 = vpack.c.b16 %v4303, %v4302
      %v4327 = vpack.c.b16 %v4305, %v4304
      %v4328 = vpack.c.b16 %v4307, %v4306
      %v4329 = vpack.c.b16 %v4309, %v4308
      %v4330 = vpack.c.b16 %v4311, %v4310
      %v4331 = vpack.c.b16 %v4313, %v4312
      %v4332 = vpack.c.b16 %v4315, %v4314
      %v4333 = vpack.c.b16 %v4317, %v4316
      %v4366 = vunpack.c.l.b16 %v3886
      %v4367 = vunpack.c.l.b16 %v3887
      %v4368 = vunpack.c.l.b16 %v3888
      %v4369 = vunpack.c.l.b16 %v3889
      %v4370 = vunpack.c.l.b16 %v3890
      %v4371 = vunpack.c.l.b16 %v3891
      %v4372 = vunpack.c.l.b16 %v3892
      %v4373 = vunpack.c.l.b16 %v3893
      %v4374 = vunpack.c.l.b16 %v3894
      %v4375 = vunpack.c.l.b16 %v3895
      %v4376 = vunpack.c.l.b16 %v3896
      %v4377 = vunpack.c.l.b16 %v3897
      %v4378 = vunpack.c.l.b16 %v3898
      %v4379 = vunpack.c.l.b16 %v3899
      %v4380 = vunpack.c.l.b16 %v3900
      %v4381 = vunpack.c.l.b16 %v3901
      %v4382 = vpack.c.b16 %v4367, %v4366
      %v4383 = vpack.c.b16 %v4369, %v4368
      %v4384 = vpack.c.b16 %v4371, %v4370
      %v4385 = vpack.c.b16 %v4373, %v4372
      %v4386 = vpack.c.b16 %v4375, %v4374
      %v4387 = vpack.c.b16 %v4377, %v4376
      %v4388 = vpack.c.b16 %v4379, %v4378
      %v4389 = vpack.c.b16 %v4381, %v4380
      %4398 = vmatprep.subr.bf16.mxu0 0
      %4399 = vmatpush1.bf16.msra.mxu0 %v4382
      %4400 = vmatprep.subr.bf16.mxu0 0
      %4401 = vmatpush1.bf16.msra.mxu0 %v4383
      %4402 = vmatprep.subr.bf16.mxu0 0
      %4403 = vmatpush1.bf16.msra.mxu0 %v4384
      %4404 = vmatprep.subr.bf16.mxu0 0
      %4405 = vmatpush1.bf16.msra.mxu0 %v4385
      %4406 = vmatprep.subr.bf16.mxu0 0
      %4407 = vmatpush1.bf16.msra.mxu0 %v4386
      %4408 = vmatprep.subr.bf16.mxu0 0
      %4409 = vmatpush1.bf16.msra.mxu0 %v4387
      %4410 = vmatprep.subr.bf16.mxu0 0
      %4411 = vmatpush1.bf16.msra.mxu0 %v4388
      %4412 = vmatprep.subr.bf16.mxu0 0
      %4413 = vmatpush1.bf16.msra.mxu0 %v4389
      %4414 = vmatprep.subr.bf16.mxu0 0
      %4415 = vmatpush1.bf16.msra.mxu0 0
      %4416 = vmatprep.subr.bf16.mxu0 0
      %4417 = vmatpush1.bf16.msra.mxu0 0
      %4418 = vmatprep.subr.bf16.mxu0 0
      %4419 = vmatpush1.bf16.msra.mxu0 0
      %4420 = vmatprep.subr.bf16.mxu0 0
      %4421 = vmatpush1.bf16.msra.mxu0 0
      %4422 = vmatprep.subr.bf16.mxu0 0
      %4423 = vmatpush1.bf16.msra.mxu0 0
      %4424 = vmatprep.subr.bf16.mxu0 0
      %4425 = vmatpush1.bf16.msra.mxu0 0
      %4426 = vmatprep.subr.bf16.mxu0 0
      %4427 = vmatpush1.bf16.msra.mxu0 0
      %4428 = vmatprep.subr.bf16.mxu0 0
      %4429 = vmatpush1.bf16.msra.mxu0 0
      %4430 = vmatprep.mubr.bf16.mxu0 0
      %4431 = vmatmul.mubr.bf16.gmra.mrb[0].mxu0 %v4318
      %v4432 = vpop.f32.mrb[0].mxu0
      %v4433 = vadd.f32 0.0, %v4432
      %v4434 = vpop.f32.mrb[0].mxu0
      %v4435 = vpop.f32.mrb[0].mxu0
      %v4436 = vadd.f32 0.0, %v4435
      %v4437 = vpop.f32.mrb[0].mxu0
      %4438 = vmatprep.mubr.bf16.mxu0 0
      %4439 = vmatmul.mubr.bf16.gmra.mrb[0].mxu0 %v4319
      %v4440 = vpop.f32.mrb[0].mxu0
      %v4441 = vadd.f32 0.0, %v4440
      %v4442 = vpop.f32.mrb[0].mxu0
      %v4443 = vpop.f32.mrb[0].mxu0
      %v4444 = vadd.f32 0.0, %v4443
      %v4445 = vpop.f32.mrb[0].mxu0
      %4446 = vmatprep.mubr.bf16.mxu0 0
      %4447 = vmatmul.mubr.bf16.gmra.mrb[0].mxu0 %v4320
      %v4448 = vpop.f32.mrb[0].mxu0
      %v4449 = vadd.f32 0.0, %v4448
      %v4450 = vpop.f32.mrb[0].mxu0
      %v4451 = vpop.f32.mrb[0].mxu0
      %v4452 = vadd.f32 0.0, %v4451
      %v4453 = vpop.f32.mrb[0].mxu0
      %4454 = vmatprep.mubr.bf16.mxu0 0
      %4455 = vmatmul.mubr.bf16.gmra.mrb[0].mxu0 %v4321
      %v4456 = vpop.f32.mrb[0].mxu0
      %v4457 = vadd.f32 0.0, %v4456
      %v4458 = vpop.f32.mrb[0].mxu0
      %v4459 = vpop.f32.mrb[0].mxu0
      %v4460 = vadd.f32 0.0, %v4459
      %v4461 = vpop.f32.mrb[0].mxu0
      %4462 = vmatprep.mubr.bf16.mxu0 0
      %4463 = vmatmul.mubr.bf16.gmra.mrb[0].mxu0 %v4322
      %v4464 = vpop.f32.mrb[0].mxu0
      %v4465 = vadd.f32 0.0, %v4464
      %v4466 = vpop.f32.mrb[0].mxu0
      %v4467 = vpop.f32.mrb[0].mxu0
      %v4468 = vadd.f32 0.0, %v4467
      %v4469 = vpop.f32.mrb[0].mxu0
      %4470 = vmatprep.mubr.bf16.mxu0 0
      %4471 = vmatmul.mubr.bf16.gmra.mrb[0].mxu0 %v4323
      %v4472 = vpop.f32.mrb[0].mxu0
      %v4473 = vadd.f32 0.0, %v4472
      %v4474 = vpop.f32.mrb[0].mxu0
      %v4475 = vpop.f32.mrb[0].mxu0
      %v4476 = vadd.f32 0.0, %v4475
      %v4477 = vpop.f32.mrb[0].mxu0
      %4478 = vmatprep.mubr.bf16.mxu0 0
      %4479 = vmatmul.mubr.bf16.gmra.mrb[0].mxu0 %v4324
      %v4480 = vpop.f32.mrb[0].mxu0
      %v4481 = vadd.f32 0.0, %v4480
      %v4482 = vpop.f32.mrb[0].mxu0
      %v4483 = vpop.f32.mrb[0].mxu0
      %v4484 = vadd.f32 0.0, %v4483
      %v4485 = vpop.f32.mrb[0].mxu0
      %4486 = vmatprep.mubr.bf16.mxu0 0
      %4487 = vmatmul.mubr.bf16.gmra.mrb[0].mxu0 %v4325
      %v4488 = vpop.f32.mrb[0].mxu0
      %v4489 = vadd.f32 0.0, %v4488
      %v4490 = vpop.f32.mrb[0].mxu0
      %v4491 = vpop.f32.mrb[0].mxu0
      %v4492 = vadd.f32 0.0, %v4491
      %v4493 = vpop.f32.mrb[0].mxu0
      %4494 = vmatprep.mubr.bf16.mxu0 0
      %4495 = vmatmul.mubr.bf16.gmra.mrb[0].mxu0 %v4326
      %v4496 = vpop.f32.mrb[0].mxu0
      %v4497 = vadd.f32 0.0, %v4496
      %v4498 = vpop.f32.mrb[0].mxu0
      %v4499 = vpop.f32.mrb[0].mxu0
      %v4500 = vadd.f32 0.0, %v4499
      %v4501 = vpop.f32.mrb[0].mxu0
      %4502 = vmatprep.mubr.bf16.mxu0 0
      %4503 = vmatmul.mubr.bf16.gmra.mrb[0].mxu0 %v4327
      %v4504 = vpop.f32.mrb[0].mxu0
      %v4505 = vadd.f32 0.0, %v4504
      %v4506 = vpop.f32.mrb[0].mxu0
      %v4507 = vpop.f32.mrb[0].mxu0
      %v4508 = vadd.f32 0.0, %v4507
      %v4509 = vpop.f32.mrb[0].mxu0
      %4510 = vmatprep.mubr.bf16.mxu0 0
      %4511 = vmatmul.mubr.bf16.gmra.mrb[0].mxu0 %v4328
      %v4512 = vpop.f32.mrb[0].mxu0
      %v4513 = vadd.f32 0.0, %v4512
      %v4514 = vpop.f32.mrb[0].mxu0
      %v4515 = vpop.f32.mrb[0].mxu0
      %v4516 = vadd.f32 0.0, %v4515
      %v4517 = vpop.f32.mrb[0].mxu0
      %4518 = vmatprep.mubr.bf16.mxu0 0
      %4519 = vmatmul.mubr.bf16.gmra.mrb[0].mxu0 %v4329
      %v4520 = vpop.f32.mrb[0].mxu0
      %v4521 = vadd.f32 0.0, %v4520
      %v4522 = vpop.f32.mrb[0].mxu0
      %v4523 = vpop.f32.mrb[0].mxu0
      %v4524 = vadd.f32 0.0, %v4523
      %v4525 = vpop.f32.mrb[0].mxu0
      %4526 = vmatprep.mubr.bf16.mxu0 0
      %4527 = vmatmul.mubr.bf16.gmra.mrb[0].mxu0 %v4330
      %v4528 = vpop.f32.mrb[0].mxu0
      %v4529 = vadd.f32 0.0, %v4528
      %v4530 = vpop.f32.mrb[0].mxu0
      %v4531 = vpop.f32.mrb[0].mxu0
      %v4532 = vadd.f32 0.0, %v4531
      %v4533 = vpop.f32.mrb[0].mxu0
      %4534 = vmatprep.mubr.bf16.mxu0 0
      %4535 = vmatmul.mubr.bf16.gmra.mrb[0].mxu0 %v4331
      %v4536 = vpop.f32.mrb[0].mxu0
      %v4537 = vadd.f32 0.0, %v4536
      %v4538 = vpop.f32.mrb[0].mxu0
      %v4539 = vpop.f32.mrb[0].mxu0
      %v4540 = vadd.f32 0.0, %v4539
      %v4541 = vpop.f32.mrb[0].mxu0
      %4542 = vmatprep.mubr.bf16.mxu0 0
      %4543 = vmatmul.mubr.bf16.gmra.mrb[0].mxu0 %v4332
      %v4544 = vpop.f32.mrb[0].mxu0
      %v4545 = vadd.f32 0.0, %v4544
      %v4546 = vpop.f32.mrb[0].mxu0
      %v4547 = vpop.f32.mrb[0].mxu0
      %v4548 = vadd.f32 0.0, %v4547
      %v4549 = vpop.f32.mrb[0].mxu0
      %4550 = vmatprep.mubr.bf16.mxu0 0
      %4551 = vmatmul.mubr.bf16.gmra.mrb[0].mxu0 %v4333
      %v4552 = vpop.f32.mrb[0].mxu0
      %v4553 = vadd.f32 0.0, %v4552
      %v4554 = vpop.f32.mrb[0].mxu0
      %v4555 = vpop.f32.mrb[0].mxu0
      %v4556 = vadd.f32 0.0, %v4555
      %v4557 = vpop.f32.mrb[0].mxu0
      %4558 = vdwg.mxu0
      %v4559 = vadd.f32 %v3805, %v4433
      %v4560 = vadd.f32 %v3806, %v4436
      %v4561 = vadd.f32 %v3807, %v4441
      %v4562 = vadd.f32 %v3808, %v4444
      %v4563 = vadd.f32 %v3809, %v4449
      %v4564 = vadd.f32 %v3810, %v4452
      %v4565 = vadd.f32 %v3811, %v4457
      %v4566 = vadd.f32 %v3812, %v4460
      %v4567 = vadd.f32 %v3813, %v4465
      %v4568 = vadd.f32 %v3814, %v4468
      %v4569 = vadd.f32 %v3815, %v4473
      %v4570 = vadd.f32 %v3816, %v4476
      %v4571 = vadd.f32 %v3817, %v4481
      %v4572 = vadd.f32 %v3818, %v4484
      %v4573 = vadd.f32 %v3819, %v4489
      %v4574 = vadd.f32 %v3820, %v4492
      %v4575 = vadd.f32 %v3821, %v4497
      %v4576 = vadd.f32 %v3822, %v4500
      %v4577 = vadd.f32 %v3823, %v4505
      %v4578 = vadd.f32 %v3824, %v4508
      %v4579 = vadd.f32 %v3825, %v4513
      %v4580 = vadd.f32 %v3826, %v4516
      %v4581 = vadd.f32 %v3827, %v4521
      %v4582 = vadd.f32 %v3828, %v4524
      %v4583 = vadd.f32 %v3829, %v4529
      %v4584 = vadd.f32 %v3830, %v4532
      %v4585 = vadd.f32 %v3831, %v4537
      %v4586 = vadd.f32 %v3832, %v4540
      %v4587 = vadd.f32 %v3833, %v4545
      %v4588 = vadd.f32 %v3834, %v4548
      %v4589 = vadd.f32 %v3835, %v4553
      %v4590 = vadd.f32 %v3836, %v4556
      %v4591 = vld [vmem:[%s3450] sm:$0xe]
      %v4592 = vld [vmem:[%s3450 + $0xc] sm:$0xe]
      %v4593 = vld [vmem:[%s3450 + $0x18] sm:$0xe]
      %v4594 = vld [vmem:[%s3450 + $0x24] sm:$0xe]
      %v4595 = vld [vmem:[%s3450 + $0x30] sm:$0xe]
      %v4596 = vld [vmem:[%s3450 + $0x3c] sm:$0xe]
      %v4597 = vld [vmem:[%s3450 + $0x48] sm:$0xe]
      %v4598 = vld [vmem:[%s3450 + $0x54] sm:$0xe]
      %v4599 = vld [vmem:[%s3450 + $0x60] sm:$0xe]
      %v4600 = vld [vmem:[%s3450 + $0x6c] sm:$0xe]
      %v4601 = vld [vmem:[%s3450 + $0x78] sm:$0xe]
      %v4602 = vld [vmem:[%s3450 + $0x84] sm:$0xe]
      %v4603 = vld [vmem:[%s3450 + $0x90] sm:$0xe]
      %v4604 = vld [vmem:[%s3450 + $0x9c] sm:$0xe]
      %v4605 = vld [vmem:[%s3450 + $0xa8] sm:$0xe]
      %v4606 = vld [vmem:[%s3450 + $0xb4] sm:$0xe]
      %s4607 = scalar_lea.vmem %s1, 512
      %v4608 = vld [vmem:[%s4607] sm:$0xf]
      %v4609 = vld [vmem:[%s4607 + $0x4] sm:$0xf]
      %v4610 = vld [vmem:[%s4607 + $0x8] sm:$0xf]
      %v4611 = vld [vmem:[%s4607 + $0xc] sm:$0xf]
      %v4612 = vld [vmem:[%s4607 + $0x10] sm:$0xf]
      %v4613 = vld [vmem:[%s4607 + $0x14] sm:$0xf]
      %v4614 = vld [vmem:[%s4607 + $0x18] sm:$0xf]
      %v4615 = vld [vmem:[%s4607 + $0x1c] sm:$0xf]
      %v4616 = vld [vmem:[%s4607 + $0x20] sm:$0xf]
      %v4617 = vld [vmem:[%s4607 + $0x24] sm:$0xf]
      %v4618 = vld [vmem:[%s4607 + $0x28] sm:$0xf]
      %v4619 = vld [vmem:[%s4607 + $0x2c] sm:$0xf]
      %v4620 = vld [vmem:[%s4607 + $0x30] sm:$0xf]
      %v4621 = vld [vmem:[%s4607 + $0x34] sm:$0xf]
      %v4622 = vld [vmem:[%s4607 + $0x38] sm:$0xf]
      %v4623 = vld [vmem:[%s4607 + $0x3c] sm:$0xf]
      %v4672 = vrot.slane %v4591, 5
      %v4673 = vrot.slane %v4672, 4
      %v4674 = vrot.slane %v3838, 5
      %v4675 = vsel %vm1393, %v4673, %v4674
      %v4676 = vrot.slane %v4674, 4
      %v4677 = vrot.slane %v3839, 5
      %v4678 = vsel %vm1393, %v4676, %v4677
      %v4679 = vrot.slane %v4592, 5
      %v4680 = vrot.slane %v4679, 4
      %v4681 = vrot.slane %v3841, 5
      %v4682 = vsel %vm1393, %v4680, %v4681
      %v4683 = vrot.slane %v4681, 4
      %v4684 = vrot.slane %v3842, 5
      %v4685 = vsel %vm1393, %v4683, %v4684
      %v4686 = vrot.slane %v4593, 5
      %v4687 = vrot.slane %v4686, 4
      %v4688 = vrot.slane %v3844, 5
      %v4689 = vsel %vm1393, %v4687, %v4688
      %v4690 = vrot.slane %v4688, 4
      %v4691 = vrot.slane %v3845, 5
      %v4692 = vsel %vm1393, %v4690, %v4691
      %v4693 = vrot.slane %v4594, 5
      %v4694 = vrot.slane %v4693, 4
      %v4695 = vrot.slane %v3847, 5
      %v4696 = vsel %vm1393, %v4694, %v4695
      %v4697 = vrot.slane %v4695, 4
      %v4698 = vrot.slane %v3848, 5
      %v4699 = vsel %vm1393, %v4697, %v4698
      %v4700 = vrot.slane %v4595, 5
      %v4701 = vrot.slane %v4700, 4
      %v4702 = vrot.slane %v3850, 5
      %v4703 = vsel %vm1393, %v4701, %v4702
      %v4704 = vrot.slane %v4702, 4
      %v4705 = vrot.slane %v3851, 5
      %v4706 = vsel %vm1393, %v4704, %v4705
      %v4707 = vrot.slane %v4596, 5
      %v4708 = vrot.slane %v4707, 4
      %v4709 = vrot.slane %v3853, 5
      %v4710 = vsel %vm1393, %v4708, %v4709
      %v4711 = vrot.slane %v4709, 4
      %v4712 = vrot.slane %v3854, 5
      %v4713 = vsel %vm1393, %v4711, %v4712
      %v4714 = vrot.slane %v4597, 5
      %v4715 = vrot.slane %v4714, 4
      %v4716 = vrot.slane %v3856, 5
      %v4717 = vsel %vm1393, %v4715, %v4716
      %v4718 = vrot.slane %v4716, 4
      %v4719 = vrot.slane %v3857, 5
      %v4720 = vsel %vm1393, %v4718, %v4719
      %v4721 = vrot.slane %v4598, 5
      %v4722 = vrot.slane %v4721, 4
      %v4723 = vrot.slane %v3859, 5
      %v4724 = vsel %vm1393, %v4722, %v4723
      %v4725 = vrot.slane %v4723, 4
      %v4726 = vrot.slane %v3860, 5
      %v4727 = vsel %vm1393, %v4725, %v4726
      %v4728 = vrot.slane %v4599, 5
      %v4729 = vrot.slane %v4728, 4
      %v4730 = vrot.slane %v3862, 5
      %v4731 = vsel %vm1393, %v4729, %v4730
      %v4732 = vrot.slane %v4730, 4
      %v4733 = vrot.slane %v3863, 5
      %v4734 = vsel %vm1393, %v4732, %v4733
      %v4735 = vrot.slane %v4600, 5
      %v4736 = vrot.slane %v4735, 4
      %v4737 = vrot.slane %v3865, 5
      %v4738 = vsel %vm1393, %v4736, %v4737
      %v4739 = vrot.slane %v4737, 4
      %v4740 = vrot.slane %v3866, 5
      %v4741 = vsel %vm1393, %v4739, %v4740
      %v4742 = vrot.slane %v4601, 5
      %v4743 = vrot.slane %v4742, 4
      %v4744 = vrot.slane %v3868, 5
      %v4745 = vsel %vm1393, %v4743, %v4744
      %v4746 = vrot.slane %v4744, 4
      %v4747 = vrot.slane %v3869, 5
      %v4748 = vsel %vm1393, %v4746, %v4747
      %v4749 = vrot.slane %v4602, 5
      %v4750 = vrot.slane %v4749, 4
      %v4751 = vrot.slane %v3871, 5
      %v4752 = vsel %vm1393, %v4750, %v4751
      %v4753 = vrot.slane %v4751, 4
      %v4754 = vrot.slane %v3872, 5
      %v4755 = vsel %vm1393, %v4753, %v4754
      %v4756 = vrot.slane %v4603, 5
      %v4757 = vrot.slane %v4756, 4
      %v4758 = vrot.slane %v3874, 5
      %v4759 = vsel %vm1393, %v4757, %v4758
      %v4760 = vrot.slane %v4758, 4
      %v4761 = vrot.slane %v3875, 5
      %v4762 = vsel %vm1393, %v4760, %v4761
      %v4763 = vrot.slane %v4604, 5
      %v4764 = vrot.slane %v4763, 4
      %v4765 = vrot.slane %v3877, 5
      %v4766 = vsel %vm1393, %v4764, %v4765
      %v4767 = vrot.slane %v4765, 4
      %v4768 = vrot.slane %v3878, 5
      %v4769 = vsel %vm1393, %v4767, %v4768
      %v4770 = vrot.slane %v4605, 5
      %v4771 = vrot.slane %v4770, 4
      %v4772 = vrot.slane %v3880, 5
      %v4773 = vsel %vm1393, %v4771, %v4772
      %v4774 = vrot.slane %v4772, 4
      %v4775 = vrot.slane %v3881, 5
      %v4776 = vsel %vm1393, %v4774, %v4775
      %v4777 = vrot.slane %v4606, 5
      %v4778 = vrot.slane %v4777, 4
      %v4779 = vrot.slane %v3883, 5
      %v4780 = vsel %vm1393, %v4778, %v4779
      %v4781 = vrot.slane %v4779, 4
      %v4782 = vrot.slane %v3884, 5
      %v4783 = vsel %vm1393, %v4781, %v4782
      %v4784 = vunpack.c.l.b16 %v4675
      %v4785 = vunpack.c.l.b16 %v4678
      %v4786 = vunpack.c.l.b16 %v4682
      %v4787 = vunpack.c.l.b16 %v4685
      %v4788 = vunpack.c.l.b16 %v4689
      %v4789 = vunpack.c.l.b16 %v4692
      %v4790 = vunpack.c.l.b16 %v4696
      %v4791 = vunpack.c.l.b16 %v4699
      %v4792 = vunpack.c.l.b16 %v4703
      %v4793 = vunpack.c.l.b16 %v4706
      %v4794 = vunpack.c.l.b16 %v4710
      %v4795 = vunpack.c.l.b16 %v4713
      %v4796 = vunpack.c.l.b16 %v4717
      %v4797 = vunpack.c.l.b16 %v4720
      %v4798 = vunpack.c.l.b16 %v4724
      %v4799 = vunpack.c.l.b16 %v4727
      %v4800 = vunpack.c.l.b16 %v4731
      %v4801 = vunpack.c.l.b16 %v4734
      %v4802 = vunpack.c.l.b16 %v4738
      %v4803 = vunpack.c.l.b16 %v4741
      %v4804 = vunpack.c.l.b16 %v4745
      %v4805 = vunpack.c.l.b16 %v4748
      %v4806 = vunpack.c.l.b16 %v4752
      %v4807 = vunpack.c.l.b16 %v4755
      %v4808 = vunpack.c.l.b16 %v4759
      %v4809 = vunpack.c.l.b16 %v4762
      %v4810 = vunpack.c.l.b16 %v4766
      %v4811 = vunpack.c.l.b16 %v4769
      %v4812 = vunpack.c.l.b16 %v4773
      %v4813 = vunpack.c.l.b16 %v4776
      %v4814 = vunpack.c.l.b16 %v4780
      %v4815 = vunpack.c.l.b16 %v4783
      %v4816 = vpack.c.b16 %v4785, %v4784
      %v4817 = vpack.c.b16 %v4787, %v4786
      %v4818 = vpack.c.b16 %v4789, %v4788
      %v4819 = vpack.c.b16 %v4791, %v4790
      %v4820 = vpack.c.b16 %v4793, %v4792
      %v4821 = vpack.c.b16 %v4795, %v4794
      %v4822 = vpack.c.b16 %v4797, %v4796
      %v4823 = vpack.c.b16 %v4799, %v4798
      %v4824 = vpack.c.b16 %v4801, %v4800
      %v4825 = vpack.c.b16 %v4803, %v4802
      %v4826 = vpack.c.b16 %v4805, %v4804
      %v4827 = vpack.c.b16 %v4807, %v4806
      %v4828 = vpack.c.b16 %v4809, %v4808
      %v4829 = vpack.c.b16 %v4811, %v4810
      %v4830 = vpack.c.b16 %v4813, %v4812
      %v4831 = vpack.c.b16 %v4815, %v4814
      %v4864 = vunpack.c.l.b16 %v4608
      %v4865 = vunpack.c.l.b16 %v4609
      %v4866 = vunpack.c.l.b16 %v4610
      %v4867 = vunpack.c.l.b16 %v4611
      %v4868 = vunpack.c.l.b16 %v4612
      %v4869 = vunpack.c.l.b16 %v4613
      %v4870 = vunpack.c.l.b16 %v4614
      %v4871 = vunpack.c.l.b16 %v4615
      %v4872 = vunpack.c.l.b16 %v4616
      %v4873 = vunpack.c.l.b16 %v4617
      %v4874 = vunpack.c.l.b16 %v4618
      %v4875 = vunpack.c.l.b16 %v4619
      %v4876 = vunpack.c.l.b16 %v4620
      %v4877 = vunpack.c.l.b16 %v4621
      %v4878 = vunpack.c.l.b16 %v4622
      %v4879 = vunpack.c.l.b16 %v4623
      %v4880 = vpack.c.b16 %v4865, %v4864
      %v4881 = vpack.c.b16 %v4867, %v4866
      %v4882 = vpack.c.b16 %v4869, %v4868
      %v4883 = vpack.c.b16 %v4871, %v4870
      %v4884 = vpack.c.b16 %v4873, %v4872
      %v4885 = vpack.c.b16 %v4875, %v4874
      %v4886 = vpack.c.b16 %v4877, %v4876
      %v4887 = vpack.c.b16 %v4879, %v4878
      %4896 = vmatprep.subr.bf16.mxu0 0
      %4897 = vmatpush1.bf16.msra.mxu0 %v4880
      %4898 = vmatprep.subr.bf16.mxu0 0
      %4899 = vmatpush1.bf16.msra.mxu0 %v4881
      %4900 = vmatprep.subr.bf16.mxu0 0
      %4901 = vmatpush1.bf16.msra.mxu0 %v4882
      %4902 = vmatprep.subr.bf16.mxu0 0
      %4903 = vmatpush1.bf16.msra.mxu0 %v4883
      %4904 = vmatprep.subr.bf16.mxu0 0
      %4905 = vmatpush1.bf16.msra.mxu0 %v4884
      %4906 = vmatprep.subr.bf16.mxu0 0
      %4907 = vmatpush1.bf16.msra.mxu0 %v4885
      %4908 = vmatprep.subr.bf16.mxu0 0
      %4909 = vmatpush1.bf16.msra.mxu0 %v4886
      %4910 = vmatprep.subr.bf16.mxu0 0
      %4911 = vmatpush1.bf16.msra.mxu0 %v4887
      %4912 = vmatprep.subr.bf16.mxu0 0
      %4913 = vmatpush1.bf16.msra.mxu0 0
      %4914 = vmatprep.subr.bf16.mxu0 0
      %4915 = vmatpush1.bf16.msra.mxu0 0
      %4916 = vmatprep.subr.bf16.mxu0 0
      %4917 = vmatpush1.bf16.msra.mxu0 0
      %4918 = vmatprep.subr.bf16.mxu0 0
      %4919 = vmatpush1.bf16.msra.mxu0 0
      %4920 = vmatprep.subr.bf16.mxu0 0
      %4921 = vmatpush1.bf16.msra.mxu0 0
      %4922 = vmatprep.subr.bf16.mxu0 0
      %4923 = vmatpush1.bf16.msra.mxu0 0
      %4924 = vmatprep.subr.bf16.mxu0 0
      %4925 = vmatpush1.bf16.msra.mxu0 0
      %4926 = vmatprep.subr.bf16.mxu0 0
      %4927 = vmatpush1.bf16.msra.mxu0 0
      %4928 = vmatprep.mubr.bf16.mxu0 0
      %4929 = vmatmul.mubr.bf16.gmra.mrb[0].mxu0 %v4816
      %v4930 = vpop.f32.mrb[0].mxu0
      %v4931 = vadd.f32 0.0, %v4930
      %v4932 = vpop.f32.mrb[0].mxu0
      %v4933 = vpop.f32.mrb[0].mxu0
      %v4934 = vadd.f32 0.0, %v4933
      %v4935 = vpop.f32.mrb[0].mxu0
      %4936 = vmatprep.mubr.bf16.mxu0 0
      %4937 = vmatmul.mubr.bf16.gmra.mrb[0].mxu0 %v4817
      %v4938 = vpop.f32.mrb[0].mxu0
      %v4939 = vadd.f32 0.0, %v4938
      %v4940 = vpop.f32.mrb[0].mxu0
      %v4941 = vpop.f32.mrb[0].mxu0
      %v4942 = vadd.f32 0.0, %v4941
      %v4943 = vpop.f32.mrb[0].mxu0
      %4944 = vmatprep.mubr.bf16.mxu0 0
      %4945 = vmatmul.mubr.bf16.gmra.mrb[0].mxu0 %v4818
      %v4946 = vpop.f32.mrb[0].mxu0
      %v4947 = vadd.f32 0.0, %v4946
      %v4948 = vpop.f32.mrb[0].mxu0
      %v4949 = vpop.f32.mrb[0].mxu0
      %v4950 = vadd.f32 0.0, %v4949
      %v4951 = vpop.f32.mrb[0].mxu0
      %4952 = vmatprep.mubr.bf16.mxu0 0
      %4953 = vmatmul.mubr.bf16.gmra.mrb[0].mxu0 %v4819
      %v4954 = vpop.f32.mrb[0].mxu0
      %v4955 = vadd.f32 0.0, %v4954
      %v4956 = vpop.f32.mrb[0].mxu0
      %v4957 = vpop.f32.mrb[0].mxu0
      %v4958 = vadd.f32 0.0, %v4957
      %v4959 = vpop.f32.mrb[0].mxu0
      %4960 = vmatprep.mubr.bf16.mxu0 0
      %4961 = vmatmul.mubr.bf16.gmra.mrb[0].mxu0 %v4820
      %v4962 = vpop.f32.mrb[0].mxu0
      %v4963 = vadd.f32 0.0, %v4962
      %v4964 = vpop.f32.mrb[0].mxu0
      %v4965 = vpop.f32.mrb[0].mxu0
      %v4966 = vadd.f32 0.0, %v4965
      %v4967 = vpop.f32.mrb[0].mxu0
      %4968 = vmatprep.mubr.bf16.mxu0 0
      %4969 = vmatmul.mubr.bf16.gmra.mrb[0].mxu0 %v4821
      %v4970 = vpop.f32.mrb[0].mxu0
      %v4971 = vadd.f32 0.0, %v4970
      %v4972 = vpop.f32.mrb[0].mxu0
      %v4973 = vpop.f32.mrb[0].mxu0
      %v4974 = vadd.f32 0.0, %v4973
      %v4975 = vpop.f32.mrb[0].mxu0
      %4976 = vmatprep.mubr.bf16.mxu0 0
      %4977 = vmatmul.mubr.bf16.gmra.mrb[0].mxu0 %v4822
      %v4978 = vpop.f32.mrb[0].mxu0
      %v4979 = vadd.f32 0.0, %v4978
      %v4980 = vpop.f32.mrb[0].mxu0
      %v4981 = vpop.f32.mrb[0].mxu0
      %v4982 = vadd.f32 0.0, %v4981
      %v4983 = vpop.f32.mrb[0].mxu0
      %4984 = vmatprep.mubr.bf16.mxu0 0
      %4985 = vmatmul.mubr.bf16.gmra.mrb[0].mxu0 %v4823
      %v4986 = vpop.f32.mrb[0].mxu0
      %v4987 = vadd.f32 0.0, %v4986
      %v4988 = vpop.f32.mrb[0].mxu0
      %v4989 = vpop.f32.mrb[0].mxu0
      %v4990 = vadd.f32 0.0, %v4989
      %v4991 = vpop.f32.mrb[0].mxu0
      %4992 = vmatprep.mubr.bf16.mxu0 0
      %4993 = vmatmul.mubr.bf16.gmra.mrb[0].mxu0 %v4824
      %v4994 = vpop.f32.mrb[0].mxu0
      %v4995 = vadd.f32 0.0, %v4994
      %v4996 = vpop.f32.mrb[0].mxu0
      %v4997 = vpop.f32.mrb[0].mxu0
      %v4998 = vadd.f32 0.0, %v4997
      %v4999 = vpop.f32.mrb[0].mxu0
      %5000 = vmatprep.mubr.bf16.mxu0 0
      %5001 = vmatmul.mubr.bf16.gmra.mrb[0].mxu0 %v4825
      %v5002 = vpop.f32.mrb[0].mxu0
      %v5003 = vadd.f32 0.0, %v5002
      %v5004 = vpop.f32.mrb[0].mxu0
      %v5005 = vpop.f32.mrb[0].mxu0
      %v5006 = vadd.f32 0.0, %v5005
      %v5007 = vpop.f32.mrb[0].mxu0
      %5008 = vmatprep.mubr.bf16.mxu0 0
      %5009 = vmatmul.mubr.bf16.gmra.mrb[0].mxu0 %v4826
      %v5010 = vpop.f32.mrb[0].mxu0
      %v5011 = vadd.f32 0.0, %v5010
      %v5012 = vpop.f32.mrb[0].mxu0
      %v5013 = vpop.f32.mrb[0].mxu0
      %v5014 = vadd.f32 0.0, %v5013
      %v5015 = vpop.f32.mrb[0].mxu0
      %5016 = vmatprep.mubr.bf16.mxu0 0
      %5017 = vmatmul.mubr.bf16.gmra.mrb[0].mxu0 %v4827
      %v5018 = vpop.f32.mrb[0].mxu0
      %v5019 = vadd.f32 0.0, %v5018
      %v5020 = vpop.f32.mrb[0].mxu0
      %v5021 = vpop.f32.mrb[0].mxu0
      %v5022 = vadd.f32 0.0, %v5021
      %v5023 = vpop.f32.mrb[0].mxu0
      %5024 = vmatprep.mubr.bf16.mxu0 0
      %5025 = vmatmul.mubr.bf16.gmra.mrb[0].mxu0 %v4828
      %v5026 = vpop.f32.mrb[0].mxu0
      %v5027 = vadd.f32 0.0, %v5026
      %v5028 = vpop.f32.mrb[0].mxu0
      %v5029 = vpop.f32.mrb[0].mxu0
      %v5030 = vadd.f32 0.0, %v5029
      %v5031 = vpop.f32.mrb[0].mxu0
      %5032 = vmatprep.mubr.bf16.mxu0 0
      %5033 = vmatmul.mubr.bf16.gmra.mrb[0].mxu0 %v4829
      %v5034 = vpop.f32.mrb[0].mxu0
      %v5035 = vadd.f32 0.0, %v5034
      %v5036 = vpop.f32.mrb[0].mxu0
      %v5037 = vpop.f32.mrb[0].mxu0
      %v5038 = vadd.f32 0.0, %v5037
      %v5039 = vpop.f32.mrb[0].mxu0
      %5040 = vmatprep.mubr.bf16.mxu0 0
      %5041 = vmatmul.mubr.bf16.gmra.mrb[0].mxu0 %v4830
      %v5042 = vpop.f32.mrb[0].mxu0
      %v5043 = vadd.f32 0.0, %v5042
      %v5044 = vpop.f32.mrb[0].mxu0
      %v5045 = vpop.f32.mrb[0].mxu0
      %v5046 = vadd.f32 0.0, %v5045
      %v5047 = vpop.f32.mrb[0].mxu0
      %5048 = vmatprep.mubr.bf16.mxu0 0
      %5049 = vmatmul.mubr.bf16.gmra.mrb[0].mxu0 %v4831
      %v5050 = vpop.f32.mrb[0].mxu0
      %v5051 = vadd.f32 0.0, %v5050
      %v5052 = vpop.f32.mrb[0].mxu0
      %v5053 = vpop.f32.mrb[0].mxu0
      %v5054 = vadd.f32 0.0, %v5053
      %v5055 = vpop.f32.mrb[0].mxu0
      %5056 = vdwg.mxu0
      %v5057 = vadd.f32 %v4559, %v4931
      %v5058 = vadd.f32 %v4560, %v4934
      %v5059 = vadd.f32 %v4561, %v4939
      %v5060 = vadd.f32 %v4562, %v4942
      %v5061 = vadd.f32 %v4563, %v4947
      %v5062 = vadd.f32 %v4564, %v4950
      %v5063 = vadd.f32 %v4565, %v4955
      %v5064 = vadd.f32 %v4566, %v4958
      %v5065 = vadd.f32 %v4567, %v4963
      %v5066 = vadd.f32 %v4568, %v4966
      %v5067 = vadd.f32 %v4569, %v4971
      %v5068 = vadd.f32 %v4570, %v4974
      %v5069 = vadd.f32 %v4571, %v4979
      %v5070 = vadd.f32 %v4572, %v4982
      %v5071 = vadd.f32 %v4573, %v4987
      %v5072 = vadd.f32 %v4574, %v4990
      %v5073 = vadd.f32 %v4575, %v4995
      %v5074 = vadd.f32 %v4576, %v4998
      %v5075 = vadd.f32 %v4577, %v5003
      %v5076 = vadd.f32 %v4578, %v5006
      %v5077 = vadd.f32 %v4579, %v5011
      %v5078 = vadd.f32 %v4580, %v5014
      %v5079 = vadd.f32 %v4581, %v5019
      %v5080 = vadd.f32 %v4582, %v5022
      %v5081 = vadd.f32 %v4583, %v5027
      %v5082 = vadd.f32 %v4584, %v5030
      %v5083 = vadd.f32 %v4585, %v5035
      %v5084 = vadd.f32 %v4586, %v5038
      %v5085 = vadd.f32 %v4587, %v5043
      %v5086 = vadd.f32 %v4588, %v5046
      %v5087 = vadd.f32 %v4589, %v5051
      %v5088 = vadd.f32 %v4590, %v5054
      %v5089 = vld [vmem:[%s2] sm:$0x1]
      %v5091 = vlaneseq
      %v5092 = vshrl.u32 %v5091, 7
      %v5093 = vsub.s32 0, %v5092
      %v5094 = vrot.slane %v5089, %v5093
      %v5096 = vmul.f32 %v5057, %v5094
      %v5097 = vmul.f32 %v5058, %v5094
      %v5098 = vmul.f32 %v5059, %v5094
      %v5099 = vmul.f32 %v5060, %v5094
      %v5100 = vmul.f32 %v5061, %v5094
      %v5101 = vmul.f32 %v5062, %v5094
      %v5102 = vmul.f32 %v5063, %v5094
      %v5103 = vmul.f32 %v5064, %v5094
      %v5104 = vmul.f32 %v5065, %v5094
      %v5105 = vmul.f32 %v5066, %v5094
      %v5106 = vmul.f32 %v5067, %v5094
      %v5107 = vmul.f32 %v5068, %v5094
      %v5108 = vmul.f32 %v5069, %v5094
      %v5109 = vmul.f32 %v5070, %v5094
      %v5110 = vmul.f32 %v5071, %v5094
      %v5111 = vmul.f32 %v5072, %v5094
      %v5112 = vmul.f32 %v5073, %v5094
      %v5113 = vmul.f32 %v5074, %v5094
      %v5114 = vmul.f32 %v5075, %v5094
      %v5115 = vmul.f32 %v5076, %v5094
      %v5116 = vmul.f32 %v5077, %v5094
      %v5117 = vmul.f32 %v5078, %v5094
      %v5118 = vmul.f32 %v5079, %v5094
      %v5119 = vmul.f32 %v5080, %v5094
      %v5120 = vmul.f32 %v5081, %v5094
      %v5121 = vmul.f32 %v5082, %v5094
      %v5122 = vmul.f32 %v5083, %v5094
      %v5123 = vmul.f32 %v5084, %v5094
      %v5124 = vmul.f32 %v5085, %v5094
      %v5125 = vmul.f32 %v5086, %v5094
      %v5126 = vmul.f32 %v5087, %v5094
      %v5127 = vmul.f32 %v5088, %v5094
      %v5128 = vld [vmem:[%s3] sm:$0x1]
      %v5130 = vlaneseq
      %v5131 = vshrl.u32 %v5130, 7
      %v5132 = vsub.s32 0, %v5131
      %v5133 = vrot.slane %v5128, %v5132
      %v5135 = vadd.f32 %v5096, %v5133
      %v5136 = vadd.f32 %v5097, %v5133
      %v5137 = vadd.f32 %v5098, %v5133
      %v5138 = vadd.f32 %v5099, %v5133
      %v5139 = vadd.f32 %v5100, %v5133
      %v5140 = vadd.f32 %v5101, %v5133
      %v5141 = vadd.f32 %v5102, %v5133
      %v5142 = vadd.f32 %v5103, %v5133
      %v5143 = vadd.f32 %v5104, %v5133
      %v5144 = vadd.f32 %v5105, %v5133
      %v5145 = vadd.f32 %v5106, %v5133
      %v5146 = vadd.f32 %v5107, %v5133
      %v5147 = vadd.f32 %v5108, %v5133
      %v5148 = vadd.f32 %v5109, %v5133
      %v5149 = vadd.f32 %v5110, %v5133
      %v5150 = vadd.f32 %v5111, %v5133
      %v5151 = vadd.f32 %v5112, %v5133
      %v5152 = vadd.f32 %v5113, %v5133
      %v5153 = vadd.f32 %v5114, %v5133
      %v5154 = vadd.f32 %v5115, %v5133
      %v5155 = vadd.f32 %v5116, %v5133
      %v5156 = vadd.f32 %v5117, %v5133
      %v5157 = vadd.f32 %v5118, %v5133
      %v5158 = vadd.f32 %v5119, %v5133
      %v5159 = vadd.f32 %v5120, %v5133
      %v5160 = vadd.f32 %v5121, %v5133
      %v5161 = vadd.f32 %v5122, %v5133
      %v5162 = vadd.f32 %v5123, %v5133
      %v5163 = vadd.f32 %v5124, %v5133
      %v5164 = vadd.f32 %v5125, %v5133
      %v5165 = vadd.f32 %v5126, %v5133
      %v5166 = vadd.f32 %v5127, %v5133
      %vm5167 = vcmp.gt.f32.partialorder %v5135, 0.0
      %vm5168 = vcmp.gt.f32.partialorder %v5136, 0.0
      %vm5169 = vcmp.gt.f32.partialorder %v5137, 0.0
      %vm5170 = vcmp.gt.f32.partialorder %v5138, 0.0
      %vm5171 = vcmp.gt.f32.partialorder %v5139, 0.0
      %vm5172 = vcmp.gt.f32.partialorder %v5140, 0.0
      %vm5173 = vcmp.gt.f32.partialorder %v5141, 0.0
      %vm5174 = vcmp.gt.f32.partialorder %v5142, 0.0
      %vm5175 = vcmp.gt.f32.partialorder %v5143, 0.0
      %vm5176 = vcmp.gt.f32.partialorder %v5144, 0.0
      %vm5177 = vcmp.gt.f32.partialorder %v5145, 0.0
      %vm5178 = vcmp.gt.f32.partialorder %v5146, 0.0
      %vm5179 = vcmp.gt.f32.partialorder %v5147, 0.0
      %vm5180 = vcmp.gt.f32.partialorder %v5148, 0.0
      %vm5181 = vcmp.gt.f32.partialorder %v5149, 0.0
      %vm5182 = vcmp.gt.f32.partialorder %v5150, 0.0
      %vm5183 = vcmp.gt.f32.partialorder %v5151, 0.0
      %vm5184 = vcmp.gt.f32.partialorder %v5152, 0.0
      %vm5185 = vcmp.gt.f32.partialorder %v5153, 0.0
      %vm5186 = vcmp.gt.f32.partialorder %v5154, 0.0
      %vm5187 = vcmp.gt.f32.partialorder %v5155, 0.0
      %vm5188 = vcmp.gt.f32.partialorder %v5156, 0.0
      %vm5189 = vcmp.gt.f32.partialorder %v5157, 0.0
      %vm5190 = vcmp.gt.f32.partialorder %v5158, 0.0
      %vm5191 = vcmp.gt.f32.partialorder %v5159, 0.0
      %vm5192 = vcmp.gt.f32.partialorder %v5160, 0.0
      %vm5193 = vcmp.gt.f32.partialorder %v5161, 0.0
      %vm5194 = vcmp.gt.f32.partialorder %v5162, 0.0
      %vm5195 = vcmp.gt.f32.partialorder %v5163, 0.0
      %vm5196 = vcmp.gt.f32.partialorder %v5164, 0.0
      %vm5197 = vcmp.gt.f32.partialorder %v5165, 0.0
      %vm5198 = vcmp.gt.f32.partialorder %v5166, 0.0
      %v5199 = vmul.f32 %v5135, 0.01
      %v5200 = vmul.f32 %v5136, 0.01
      %v5201 = vmul.f32 %v5137, 0.01
      %v5202 = vmul.f32 %v5138, 0.01
      %v5203 = vmul.f32 %v5139, 0.01
      %v5204 = vmul.f32 %v5140, 0.01
      %v5205 = vmul.f32 %v5141, 0.01
      %v5206 = vmul.f32 %v5142, 0.01
      %v5207 = vmul.f32 %v5143, 0.01
      %v5208 = vmul.f32 %v5144, 0.01
      %v5209 = vmul.f32 %v5145, 0.01
      %v5210 = vmul.f32 %v5146, 0.01
      %v5211 = vmul.f32 %v5147, 0.01
      %v5212 = vmul.f32 %v5148, 0.01
      %v5213 = vmul.f32 %v5149, 0.01
      %v5214 = vmul.f32 %v5150, 0.01
      %v5215 = vmul.f32 %v5151, 0.01
      %v5216 = vmul.f32 %v5152, 0.01
      %v5217 = vmul.f32 %v5153, 0.01
      %v5218 = vmul.f32 %v5154, 0.01
      %v5219 = vmul.f32 %v5155, 0.01
      %v5220 = vmul.f32 %v5156, 0.01
      %v5221 = vmul.f32 %v5157, 0.01
      %v5222 = vmul.f32 %v5158, 0.01
      %v5223 = vmul.f32 %v5159, 0.01
      %v5224 = vmul.f32 %v5160, 0.01
      %v5225 = vmul.f32 %v5161, 0.01
      %v5226 = vmul.f32 %v5162, 0.01
      %v5227 = vmul.f32 %v5163, 0.01
      %v5228 = vmul.f32 %v5164, 0.01
      %v5229 = vmul.f32 %v5165, 0.01
      %v5230 = vmul.f32 %v5166, 0.01
      %v5231 = vsel %vm5167, %v5135, %v5199
      %v5232 = vsel %vm5168, %v5136, %v5200
      %v5233 = vsel %vm5169, %v5137, %v5201
      %v5234 = vsel %vm5170, %v5138, %v5202
      %v5235 = vsel %vm5171, %v5139, %v5203
      %v5236 = vsel %vm5172, %v5140, %v5204
      %v5237 = vsel %vm5173, %v5141, %v5205
      %v5238 = vsel %vm5174, %v5142, %v5206
      %v5239 = vsel %vm5175, %v5143, %v5207
      %v5240 = vsel %vm5176, %v5144, %v5208
      %v5241 = vsel %vm5177, %v5145, %v5209
      %v5242 = vsel %vm5178, %v5146, %v5210
      %v5243 = vsel %vm5179, %v5147, %v5211
      %v5244 = vsel %vm5180, %v5148, %v5212
      %v5245 = vsel %vm5181, %v5149, %v5213
      %v5246 = vsel %vm5182, %v5150, %v5214
      %v5247 = vsel %vm5183, %v5151, %v5215
      %v5248 = vsel %vm5184, %v5152, %v5216
      %v5249 = vsel %vm5185, %v5153, %v5217
      %v5250 = vsel %vm5186, %v5154, %v5218
      %v5251 = vsel %vm5187, %v5155, %v5219
      %v5252 = vsel %vm5188, %v5156, %v5220
      %v5253 = vsel %vm5189, %v5157, %v5221
      %v5254 = vsel %vm5190, %v5158, %v5222
      %v5255 = vsel %vm5191, %v5159, %v5223
      %v5256 = vsel %vm5192, %v5160, %v5224
      %v5257 = vsel %vm5193, %v5161, %v5225
      %v5258 = vsel %vm5194, %v5162, %v5226
      %v5259 = vsel %vm5195, %v5163, %v5227
      %v5260 = vsel %vm5196, %v5164, %v5228
      %v5261 = vsel %vm5197, %v5165, %v5229
      %v5262 = vsel %vm5198, %v5166, %v5230
      %5263 = vst [vmem:[#allocation2] sm:$0xff] 0
      %5264 = vst [vmem:[#allocation2 + $0x8] sm:$0xff] 0
      %5265 = vst [vmem:[#allocation2 + $0x10] sm:$0xff] 0
      %s5266 = scalar_lea.vmem [#allocation2], 408
      %5267 = vst [vmem:[%s5266] sm:$0xff] 0
      %5268 = vst [vmem:[%s5266 + $0x8] sm:$0xff] 0
      %5269 = vst [vmem:[%s5266 + $0x10] sm:$0xff] 0
      %vm5270 = vcmask 1047559
      %vm5271 = vsmask.f32 7966
      %vm5272 = vmand %vm5270, %vm5271
      %v5273 = vld [vmem:[#allocation2] sm:$0x80]
      %v5274 = vsel %vm5272, 0, %v5273
      %5275 = vst [vmem:[#allocation2] sm:$0x80] %v5274
      %v5276 = vld [vmem:[#allocation2 + $0x18] sm:$0x80]
      %v5277 = vsel %vm5272, 0, %v5276
      %5278 = vst [vmem:[#allocation2 + $0x18] sm:$0x80] %v5277
      %v5279 = vld [vmem:[#allocation2 + $0x30] sm:$0x80]
      %v5280 = vsel %vm5272, 0, %v5279
      %5281 = vst [vmem:[#allocation2 + $0x30] sm:$0x80] %v5280
      %v5282 = vld [vmem:[#allocation2 + $0x48] sm:$0x80]
      %v5283 = vsel %vm5272, 0, %v5282
      %5284 = vst [vmem:[#allocation2 + $0x48] sm:$0x80] %v5283
      %v5285 = vld [vmem:[#allocation2 + $0x60] sm:$0x80]
      %v5286 = vsel %vm5272, 0, %v5285
      %5287 = vst [vmem:[#allocation2 + $0x60] sm:$0x80] %v5286
      %v5288 = vld [vmem:[#allocation2 + $0x78] sm:$0x80]
      %v5289 = vsel %vm5272, 0, %v5288
      %5290 = vst [vmem:[#allocation2 + $0x78] sm:$0x80] %v5289
      %v5291 = vld [vmem:[#allocation2 + $0x90] sm:$0x80]
      %v5292 = vsel %vm5272, 0, %v5291
      %5293 = vst [vmem:[#allocation2 + $0x90] sm:$0x80] %v5292
      %v5294 = vld [vmem:[#allocation2 + $0xa8] sm:$0x80]
      %v5295 = vsel %vm5272, 0, %v5294
      %5296 = vst [vmem:[#allocation2 + $0xa8] sm:$0x80] %v5295
      %v5297 = vld [vmem:[#allocation2 + $0xc0] sm:$0x80]
      %v5298 = vsel %vm5272, 0, %v5297
      %5299 = vst [vmem:[#allocation2 + $0xc0] sm:$0x80] %v5298
      %v5300 = vld [vmem:[#allocation2 + $0xd8] sm:$0x80]
      %v5301 = vsel %vm5272, 0, %v5300
      %5302 = vst [vmem:[#allocation2 + $0xd8] sm:$0x80] %v5301
      %v5303 = vld [vmem:[#allocation2 + $0xf0] sm:$0x80]
      %v5304 = vsel %vm5272, 0, %v5303
      %5305 = vst [vmem:[#allocation2 + $0xf0] sm:$0x80] %v5304
      %v5306 = vld [vmem:[#allocation2 + $0x108] sm:$0x80]
      %v5307 = vsel %vm5272, 0, %v5306
      %5308 = vst [vmem:[#allocation2 + $0x108] sm:$0x80] %v5307
      %v5309 = vld [vmem:[#allocation2 + $0x120] sm:$0x80]
      %v5310 = vsel %vm5272, 0, %v5309
      %5311 = vst [vmem:[#allocation2 + $0x120] sm:$0x80] %v5310
      %v5312 = vld [vmem:[#allocation2 + $0x138] sm:$0x80]
      %v5313 = vsel %vm5272, 0, %v5312
      %5314 = vst [vmem:[#allocation2 + $0x138] sm:$0x80] %v5313
      %v5315 = vld [vmem:[#allocation2 + $0x150] sm:$0x80]
      %v5316 = vsel %vm5272, 0, %v5315
      %5317 = vst [vmem:[#allocation2 + $0x150] sm:$0x80] %v5316
      %v5318 = vld [vmem:[#allocation2 + $0x168] sm:$0x80]
      %v5319 = vsel %vm5272, 0, %v5318
      %5320 = vst [vmem:[#allocation2 + $0x168] sm:$0x80] %v5319
      %v5321 = vld [vmem:[#allocation2 + $0x180] sm:$0x80]
      %v5322 = vsel %vm5272, 0, %v5321
      %5323 = vst [vmem:[#allocation2 + $0x180] sm:$0x80] %v5322
      %v5324 = vld [vmem:[#allocation2 + $0x198] sm:$0x80]
      %v5325 = vsel %vm5272, 0, %v5324
      %5326 = vst [vmem:[#allocation2 + $0x198] sm:$0x80] %v5325
      %vm5327 = vcmask 1040384
      %vm5328 = vsmask.f32 256
      %vm5329 = vmand %vm5327, %vm5328
      %v5330 = vld [vmem:[#allocation2 + $0x10] sm:$0x1]
      %v5331 = vsel %vm5329, 0, %v5330
      %5332 = vst [vmem:[#allocation2 + $0x10] sm:$0x1] %v5331
      %v5333 = vld [vmem:[#allocation2 + $0x28] sm:$0x1]
      %v5334 = vsel %vm5329, 0, %v5333
      %5335 = vst [vmem:[#allocation2 + $0x28] sm:$0x1] %v5334
      %v5336 = vld [vmem:[#allocation2 + $0x40] sm:$0x1]
      %v5337 = vsel %vm5329, 0, %v5336
      %5338 = vst [vmem:[#allocation2 + $0x40] sm:$0x1] %v5337
      %v5339 = vld [vmem:[#allocation2 + $0x58] sm:$0x1]
      %v5340 = vsel %vm5329, 0, %v5339
      %5341 = vst [vmem:[#allocation2 + $0x58] sm:$0x1] %v5340
      %v5342 = vld [vmem:[#allocation2 + $0x70] sm:$0x1]
      %v5343 = vsel %vm5329, 0, %v5342
      %5344 = vst [vmem:[#allocation2 + $0x70] sm:$0x1] %v5343
      %v5345 = vld [vmem:[#allocation2 + $0x88] sm:$0x1]
      %v5346 = vsel %vm5329, 0, %v5345
      %5347 = vst [vmem:[#allocation2 + $0x88] sm:$0x1] %v5346
      %v5348 = vld [vmem:[#allocation2 + $0xa0] sm:$0x1]
      %v5349 = vsel %vm5329, 0, %v5348
      %5350 = vst [vmem:[#allocation2 + $0xa0] sm:$0x1] %v5349
      %v5351 = vld [vmem:[#allocation2 + $0xb8] sm:$0x1]
      %v5352 = vsel %vm5329, 0, %v5351
      %5353 = vst [vmem:[#allocation2 + $0xb8] sm:$0x1] %v5352
      %v5354 = vld [vmem:[#allocation2 + $0xd0] sm:$0x1]
      %v5355 = vsel %vm5329, 0, %v5354
      %5356 = vst [vmem:[#allocation2 + $0xd0] sm:$0x1] %v5355
      %v5357 = vld [vmem:[#allocation2 + $0xe8] sm:$0x1]
      %v5358 = vsel %vm5329, 0, %v5357
      %5359 = vst [vmem:[#allocation2 + $0xe8] sm:$0x1] %v5358
      %v5360 = vld [vmem:[#allocation2 + $0x100] sm:$0x1]
      %v5361 = vsel %vm5329, 0, %v5360
      %5362 = vst [vmem:[#allocation2 + $0x100] sm:$0x1] %v5361
      %v5363 = vld [vmem:[#allocation2 + $0x118] sm:$0x1]
      %v5364 = vsel %vm5329, 0, %v5363
      %5365 = vst [vmem:[#allocation2 + $0x118] sm:$0x1] %v5364
      %v5366 = vld [vmem:[#allocation2 + $0x130] sm:$0x1]
      %v5367 = vsel %vm5329, 0, %v5366
      %5368 = vst [vmem:[#allocation2 + $0x130] sm:$0x1] %v5367
      %v5369 = vld [vmem:[#allocation2 + $0x148] sm:$0x1]
      %v5370 = vsel %vm5329, 0, %v5369
      %5371 = vst [vmem:[#allocation2 + $0x148] sm:$0x1] %v5370
      %v5372 = vld [vmem:[#allocation2 + $0x160] sm:$0x1]
      %v5373 = vsel %vm5329, 0, %v5372
      %5374 = vst [vmem:[#allocation2 + $0x160] sm:$0x1] %v5373
      %v5375 = vld [vmem:[#allocation2 + $0x178] sm:$0x1]
      %v5376 = vsel %vm5329, 0, %v5375
      %5377 = vst [vmem:[#allocation2 + $0x178] sm:$0x1] %v5376
      %v5378 = vld [vmem:[#allocation2 + $0x190] sm:$0x1]
      %v5379 = vsel %vm5329, 0, %v5378
      %5380 = vst [vmem:[#allocation2 + $0x190] sm:$0x1] %v5379
      %v5381 = vld [vmem:[#allocation2 + $0x1a8] sm:$0x1]
      %v5382 = vsel %vm5329, 0, %v5381
      %5383 = vst [vmem:[#allocation2 + $0x1a8] sm:$0x1] %v5382
      %v5384 = vpack.c.bf16 %v5232, %v5231
      %v5385 = vpack.c.bf16 %v5234, %v5233
      %v5386 = vpack.c.bf16 %v5236, %v5235
      %v5387 = vpack.c.bf16 %v5238, %v5237
      %v5388 = vpack.c.bf16 %v5240, %v5239
      %v5389 = vpack.c.bf16 %v5242, %v5241
      %v5390 = vpack.c.bf16 %v5244, %v5243
      %v5391 = vpack.c.bf16 %v5246, %v5245
      %v5392 = vpack.c.bf16 %v5248, %v5247
      %v5393 = vpack.c.bf16 %v5250, %v5249
      %v5394 = vpack.c.bf16 %v5252, %v5251
      %v5395 = vpack.c.bf16 %v5254, %v5253
      %v5396 = vpack.c.bf16 %v5256, %v5255
      %v5397 = vpack.c.bf16 %v5258, %v5257
      %v5398 = vpack.c.bf16 %v5260, %v5259
      %v5399 = vpack.c.bf16 %v5262, %v5261
      %s5400 = scalar_lea.vmem [#allocation2], 24
      %5401 = vst [vmem:[%s5400 + $0x8] sm:$0xff] %v5384
      %5402 = vst [vmem:[%s5400 + $0x20] sm:$0xff] %v5385
      %5403 = vst [vmem:[%s5400 + $0x38] sm:$0xff] %v5386
      %5404 = vst [vmem:[%s5400 + $0x50] sm:$0xff] %v5387
      %5405 = vst [vmem:[%s5400 + $0x68] sm:$0xff] %v5388
      %5406 = vst [vmem:[%s5400 + $0x80] sm:$0xff] %v5389
      %5407 = vst [vmem:[%s5400 + $0x98] sm:$0xff] %v5390
      %5408 = vst [vmem:[%s5400 + $0xb0] sm:$0xff] %v5391
      %5409 = vst [vmem:[%s5400 + $0xc8] sm:$0xff] %v5392
      %5410 = vst [vmem:[%s5400 + $0xe0] sm:$0xff] %v5393
      %5411 = vst [vmem:[%s5400 + $0xf8] sm:$0xff] %v5394
      %5412 = vst [vmem:[%s5400 + $0x110] sm:$0xff] %v5395
      %5413 = vst [vmem:[%s5400 + $0x128] sm:$0xff] %v5396
      %5414 = vst [vmem:[%s5400 + $0x140] sm:$0xff] %v5397
      %5415 = vst [vmem:[%s5400 + $0x158] sm:$0xff] %v5398
      %5416 = vst [vmem:[%s5400 + $0x170] sm:$0xff] %v5399
      %v5417 = vld [vmem:[#allocation2] sm:$0x80]
      %v5418 = vld [vmem:[#allocation2 + $0x8] sm:$0xff]
      %v5419 = vld [vmem:[#allocation2 + $0x18] sm:$0x80]
      %v5420 = vld [vmem:[#allocation2 + $0x20] sm:$0xff]
      %v5421 = vld [vmem:[#allocation2 + $0x30] sm:$0x80]
      %v5422 = vld [vmem:[#allocation2 + $0x38] sm:$0xff]
      %v5423 = vld [vmem:[#allocation2 + $0x48] sm:$0x80]
      %v5424 = vld [vmem:[#allocation2 + $0x50] sm:$0xff]
      %v5425 = vld [vmem:[#allocation2 + $0x60] sm:$0x80]
      %v5426 = vld [vmem:[#allocation2 + $0x68] sm:$0xff]
      %v5427 = vld [vmem:[#allocation2 + $0x78] sm:$0x80]
      %v5428 = vld [vmem:[#allocation2 + $0x80] sm:$0xff]
      %v5429 = vld [vmem:[#allocation2 + $0x90] sm:$0x80]
      %v5430 = vld [vmem:[#allocation2 + $0x98] sm:$0xff]
      %v5431 = vld [vmem:[#allocation2 + $0xa8] sm:$0x80]
      %v5432 = vld [vmem:[#allocation2 + $0xb0] sm:$0xff]
      %v5433 = vld [vmem:[#allocation2 + $0xc0] sm:$0x80]
      %v5434 = vld [vmem:[#allocation2 + $0xc8] sm:$0xff]
      %v5435 = vld [vmem:[#allocation2 + $0xd8] sm:$0x80]
      %v5436 = vld [vmem:[#allocation2 + $0xe0] sm:$0xff]
      %v5437 = vld [vmem:[#allocation2 + $0xf0] sm:$0x80]
      %v5438 = vld [vmem:[#allocation2 + $0xf8] sm:$0xff]
      %v5439 = vld [vmem:[#allocation2 + $0x108] sm:$0x80]
      %v5440 = vld [vmem:[#allocation2 + $0x110] sm:$0xff]
      %v5441 = vld [vmem:[#allocation2 + $0x120] sm:$0x80]
      %v5442 = vld [vmem:[#allocation2 + $0x128] sm:$0xff]
      %v5443 = vld [vmem:[#allocation2 + $0x138] sm:$0x80]
      %v5444 = vld [vmem:[#allocation2 + $0x140] sm:$0xff]
      %v5445 = vld [vmem:[#allocation2 + $0x150] sm:$0x80]
      %v5446 = vld [vmem:[#allocation2 + $0x158] sm:$0xff]
      %v5447 = vld [vmem:[#allocation2 + $0x168] sm:$0x80]
      %v5448 = vld [vmem:[#allocation2 + $0x170] sm:$0xff]
      %v5449 = vld [vmem:[%s4] sm:$0xf]
      %v5450 = vld [vmem:[%s4 + $0x4] sm:$0xf]
      %v5451 = vld [vmem:[%s4 + $0x8] sm:$0xf]
      %v5452 = vld [vmem:[%s4 + $0xc] sm:$0xf]
      %v5453 = vld [vmem:[%s4 + $0x10] sm:$0xf]
      %v5454 = vld [vmem:[%s4 + $0x14] sm:$0xf]
      %v5455 = vld [vmem:[%s4 + $0x18] sm:$0xf]
      %v5456 = vld [vmem:[%s4 + $0x1c] sm:$0xf]
      %v5457 = vld [vmem:[%s4 + $0x20] sm:$0xf]
      %v5458 = vld [vmem:[%s4 + $0x24] sm:$0xf]
      %v5459 = vld [vmem:[%s4 + $0x28] sm:$0xf]
      %v5460 = vld [vmem:[%s4 + $0x2c] sm:$0xf]
      %v5461 = vld [vmem:[%s4 + $0x30] sm:$0xf]
      %v5462 = vld [vmem:[%s4 + $0x34] sm:$0xf]
      %v5463 = vld [vmem:[%s4 + $0x38] sm:$0xf]
      %v5464 = vld [vmem:[%s4 + $0x3c] sm:$0xf]
      %s5465 = scalar_lea.vmem %s4, 64
      %v5466 = vld [vmem:[%s5465] sm:$0xf]
      %v5467 = vld [vmem:[%s5465 + $0x4] sm:$0xf]
      %v5468 = vld [vmem:[%s5465 + $0x8] sm:$0xf]
      %v5469 = vld [vmem:[%s5465 + $0xc] sm:$0xf]
      %v5470 = vld [vmem:[%s5465 + $0x10] sm:$0xf]
      %v5471 = vld [vmem:[%s5465 + $0x14] sm:$0xf]
      %v5472 = vld [vmem:[%s5465 + $0x18] sm:$0xf]
      %v5473 = vld [vmem:[%s5465 + $0x1c] sm:$0xf]
      %v5474 = vld [vmem:[%s5465 + $0x20] sm:$0xf]
      %v5475 = vld [vmem:[%s5465 + $0x24] sm:$0xf]
      %v5476 = vld [vmem:[%s5465 + $0x28] sm:$0xf]
      %v5477 = vld [vmem:[%s5465 + $0x2c] sm:$0xf]
      %v5478 = vld [vmem:[%s5465 + $0x30] sm:$0xf]
      %v5479 = vld [vmem:[%s5465 + $0x34] sm:$0xf]
      %v5480 = vld [vmem:[%s5465 + $0x38] sm:$0xf]
      %v5481 = vld [vmem:[%s5465 + $0x3c] sm:$0xf]
      %v5498 = vunpack.c.l.b16 %v5466
      %v5499 = vunpack.c.l.b16 %v5467
      %v5500 = vunpack.c.l.b16 %v5468
      %v5501 = vunpack.c.l.b16 %v5469
      %v5502 = vunpack.c.l.b16 %v5470
      %v5503 = vunpack.c.l.b16 %v5471
      %v5504 = vunpack.c.l.b16 %v5472
      %v5505 = vunpack.c.l.b16 %v5473
      %v5506 = vunpack.c.l.b16 %v5474
      %v5507 = vunpack.c.l.b16 %v5475
      %v5508 = vunpack.c.l.b16 %v5476
      %v5509 = vunpack.c.l.b16 %v5477
      %v5510 = vunpack.c.l.b16 %v5478
      %v5511 = vunpack.c.l.b16 %v5479
      %v5512 = vunpack.c.l.b16 %v5480
      %v5513 = vunpack.c.l.b16 %v5481
      %v5514 = vpack.c.b16 %v5499, %v5498
      %v5515 = vpack.c.b16 %v5501, %v5500
      %v5516 = vpack.c.b16 %v5503, %v5502
      %v5517 = vpack.c.b16 %v5505, %v5504
      %v5518 = vpack.c.b16 %v5507, %v5506
      %v5519 = vpack.c.b16 %v5509, %v5508
      %v5520 = vpack.c.b16 %v5511, %v5510
      %v5521 = vpack.c.b16 %v5513, %v5512
      %5530 = vmatprep.subr.bf16.mxu0 0
      %5531 = vmatpush1.bf16.msra.mxu0 %v5514
      %5532 = vmatprep.subr.bf16.mxu0 0
      %5533 = vmatpush1.bf16.msra.mxu0 %v5515
      %5534 = vmatprep.subr.bf16.mxu0 0
      %5535 = vmatpush1.bf16.msra.mxu0 %v5516
      %5536 = vmatprep.subr.bf16.mxu0 0
      %5537 = vmatpush1.bf16.msra.mxu0 %v5517
      %5538 = vmatprep.subr.bf16.mxu0 0
      %5539 = vmatpush1.bf16.msra.mxu0 %v5518
      %5540 = vmatprep.subr.bf16.mxu0 0
      %5541 = vmatpush1.bf16.msra.mxu0 %v5519
      %5542 = vmatprep.subr.bf16.mxu0 0
      %5543 = vmatpush1.bf16.msra.mxu0 %v5520
      %5544 = vmatprep.subr.bf16.mxu0 0
      %5545 = vmatpush1.bf16.msra.mxu0 %v5521
      %5546 = vmatprep.subr.bf16.mxu0 0
      %5547 = vmatpush1.bf16.msra.mxu0 0
      %5548 = vmatprep.subr.bf16.mxu0 0
      %5549 = vmatpush1.bf16.msra.mxu0 0
      %5550 = vmatprep.subr.bf16.mxu0 0
      %5551 = vmatpush1.bf16.msra.mxu0 0
      %5552 = vmatprep.subr.bf16.mxu0 0
      %5553 = vmatpush1.bf16.msra.mxu0 0
      %5554 = vmatprep.subr.bf16.mxu0 0
      %5555 = vmatpush1.bf16.msra.mxu0 0
      %5556 = vmatprep.subr.bf16.mxu0 0
      %5557 = vmatpush1.bf16.msra.mxu0 0
      %5558 = vmatprep.subr.bf16.mxu0 0
      %5559 = vmatpush1.bf16.msra.mxu0 0
      %5560 = vmatprep.subr.bf16.mxu0 0
      %5561 = vmatpush1.bf16.msra.mxu0 0
      %5562 = vmatprep.mubr.bf16.mxu0 0
      %5563 = vmatmul.mubr.bf16.gmra.mrb[0].mxu0 %v5418
      %v5564 = vpop.f32.mrb[0].mxu0
      %v5565 = vadd.f32 0.0, %v5564
      %v5566 = vpop.f32.mrb[0].mxu0
      %v5567 = vpop.f32.mrb[0].mxu0
      %v5568 = vadd.f32 0.0, %v5567
      %v5569 = vpop.f32.mrb[0].mxu0
      %5570 = vmatprep.mubr.bf16.mxu0 0
      %5571 = vmatmul.mubr.bf16.gmra.mrb[0].mxu0 %v5420
      %v5572 = vpop.f32.mrb[0].mxu0
      %v5573 = vadd.f32 0.0, %v5572
      %v5574 = vpop.f32.mrb[0].mxu0
      %v5575 = vpop.f32.mrb[0].mxu0
      %v5576 = vadd.f32 0.0, %v5575
      %v5577 = vpop.f32.mrb[0].mxu0
      %5578 = vmatprep.mubr.bf16.mxu0 0
      %5579 = vmatmul.mubr.bf16.gmra.mrb[0].mxu0 %v5422
      %v5580 = vpop.f32.mrb[0].mxu0
      %v5581 = vadd.f32 0.0, %v5580
      %v5582 = vpop.f32.mrb[0].mxu0
      %v5583 = vpop.f32.mrb[0].mxu0
      %v5584 = vadd.f32 0.0, %v5583
      %v5585 = vpop.f32.mrb[0].mxu0
      %5586 = vmatprep.mubr.bf16.mxu0 0
      %5587 = vmatmul.mubr.bf16.gmra.mrb[0].mxu0 %v5424
      %v5588 = vpop.f32.mrb[0].mxu0
      %v5589 = vadd.f32 0.0, %v5588
      %v5590 = vpop.f32.mrb[0].mxu0
      %v5591 = vpop.f32.mrb[0].mxu0
      %v5592 = vadd.f32 0.0, %v5591
      %v5593 = vpop.f32.mrb[0].mxu0
      %5594 = vmatprep.mubr.bf16.mxu0 0
      %5595 = vmatmul.mubr.bf16.gmra.mrb[0].mxu0 %v5426
      %v5596 = vpop.f32.mrb[0].mxu0
      %v5597 = vadd.f32 0.0, %v5596
      %v5598 = vpop.f32.mrb[0].mxu0
      %v5599 = vpop.f32.mrb[0].mxu0
      %v5600 = vadd.f32 0.0, %v5599
      %v5601 = vpop.f32.mrb[0].mxu0
      %5602 = vmatprep.mubr.bf16.mxu0 0
      %5603 = vmatmul.mubr.bf16.gmra.mrb[0].mxu0 %v5428
      %v5604 = vpop.f32.mrb[0].mxu0
      %v5605 = vadd.f32 0.0, %v5604
      %v5606 = vpop.f32.mrb[0].mxu0
      %v5607 = vpop.f32.mrb[0].mxu0
      %v5608 = vadd.f32 0.0, %v5607
      %v5609 = vpop.f32.mrb[0].mxu0
      %5610 = vmatprep.mubr.bf16.mxu0 0
      %5611 = vmatmul.mubr.bf16.gmra.mrb[0].mxu0 %v5430
      %v5612 = vpop.f32.mrb[0].mxu0
      %v5613 = vadd.f32 0.0, %v5612
      %v5614 = vpop.f32.mrb[0].mxu0
      %v5615 = vpop.f32.mrb[0].mxu0
      %v5616 = vadd.f32 0.0, %v5615
      %v5617 = vpop.f32.mrb[0].mxu0
      %5618 = vmatprep.mubr.bf16.mxu0 0
      %5619 = vmatmul.mubr.bf16.gmra.mrb[0].mxu0 %v5432
      %v5620 = vpop.f32.mrb[0].mxu0
      %v5621 = vadd.f32 0.0, %v5620
      %v5622 = vpop.f32.mrb[0].mxu0
      %v5623 = vpop.f32.mrb[0].mxu0
      %v5624 = vadd.f32 0.0, %v5623
      %v5625 = vpop.f32.mrb[0].mxu0
      %5626 = vmatprep.mubr.bf16.mxu0 0
      %5627 = vmatmul.mubr.bf16.gmra.mrb[0].mxu0 %v5434
      %v5628 = vpop.f32.mrb[0].mxu0
      %v5629 = vadd.f32 0.0, %v5628
      %v5630 = vpop.f32.mrb[0].mxu0
      %v5631 = vpop.f32.mrb[0].mxu0
      %v5632 = vadd.f32 0.0, %v5631
      %v5633 = vpop.f32.mrb[0].mxu0
      %5634 = vmatprep.mubr.bf16.mxu0 0
      %5635 = vmatmul.mubr.bf16.gmra.mrb[0].mxu0 %v5436
      %v5636 = vpop.f32.mrb[0].mxu0
      %v5637 = vadd.f32 0.0, %v5636
      %v5638 = vpop.f32.mrb[0].mxu0
      %v5639 = vpop.f32.mrb[0].mxu0
      %v5640 = vadd.f32 0.0, %v5639
      %v5641 = vpop.f32.mrb[0].mxu0
      %5642 = vmatprep.mubr.bf16.mxu0 0
      %5643 = vmatmul.mubr.bf16.gmra.mrb[0].mxu0 %v5438
      %v5644 = vpop.f32.mrb[0].mxu0
      %v5645 = vadd.f32 0.0, %v5644
      %v5646 = vpop.f32.mrb[0].mxu0
      %v5647 = vpop.f32.mrb[0].mxu0
      %v5648 = vadd.f32 0.0, %v5647
      %v5649 = vpop.f32.mrb[0].mxu0
      %5650 = vmatprep.mubr.bf16.mxu0 0
      %5651 = vmatmul.mubr.bf16.gmra.mrb[0].mxu0 %v5440
      %v5652 = vpop.f32.mrb[0].mxu0
      %v5653 = vadd.f32 0.0, %v5652
      %v5654 = vpop.f32.mrb[0].mxu0
      %v5655 = vpop.f32.mrb[0].mxu0
      %v5656 = vadd.f32 0.0, %v5655
      %v5657 = vpop.f32.mrb[0].mxu0
      %5658 = vmatprep.mubr.bf16.mxu0 0
      %5659 = vmatmul.mubr.bf16.gmra.mrb[0].mxu0 %v5442
      %v5660 = vpop.f32.mrb[0].mxu0
      %v5661 = vadd.f32 0.0, %v5660
      %v5662 = vpop.f32.mrb[0].mxu0
      %v5663 = vpop.f32.mrb[0].mxu0
      %v5664 = vadd.f32 0.0, %v5663
      %v5665 = vpop.f32.mrb[0].mxu0
      %5666 = vmatprep.mubr.bf16.mxu0 0
      %5667 = vmatmul.mubr.bf16.gmra.mrb[0].mxu0 %v5444
      %v5668 = vpop.f32.mrb[0].mxu0
      %v5669 = vadd.f32 0.0, %v5668
      %v5670 = vpop.f32.mrb[0].mxu0
      %v5671 = vpop.f32.mrb[0].mxu0
      %v5672 = vadd.f32 0.0, %v5671
      %v5673 = vpop.f32.mrb[0].mxu0
      %5674 = vmatprep.mubr.bf16.mxu0 0
      %5675 = vmatmul.mubr.bf16.gmra.mrb[0].mxu0 %v5446
      %v5676 = vpop.f32.mrb[0].mxu0
      %v5677 = vadd.f32 0.0, %v5676
      %v5678 = vpop.f32.mrb[0].mxu0
      %v5679 = vpop.f32.mrb[0].mxu0
      %v5680 = vadd.f32 0.0, %v5679
      %v5681 = vpop.f32.mrb[0].mxu0
      %5682 = vmatprep.mubr.bf16.mxu0 0
      %5683 = vmatmul.mubr.bf16.gmra.mrb[0].mxu0 %v5448
      %v5684 = vpop.f32.mrb[0].mxu0
      %v5685 = vadd.f32 0.0, %v5684
      %v5686 = vpop.f32.mrb[0].mxu0
      %v5687 = vpop.f32.mrb[0].mxu0
      %v5688 = vadd.f32 0.0, %v5687
      %v5689 = vpop.f32.mrb[0].mxu0
      %5690 = vdwg.mxu0
      %v5692 = vshrl.u32 %v5417, 16
      %v5694 = vrot.slane %v5692, 7
      %v5696 = vshrl.u32 %v5418, 16
      %v5698 = vrot.slane %v5696, 7
      %v5699 = vshll.u32 %v5418, 16
      %v5701 = vor.u32 %v5698, %v5699
      %v5702 = vsel %vm5328, %v5694, %v5701
      %v5704 = vshrl.u32 %v5419, 16
      %v5706 = vrot.slane %v5704, 7
      %v5708 = vshrl.u32 %v5420, 16
      %v5710 = vrot.slane %v5708, 7
      %v5711 = vshll.u32 %v5420, 16
      %v5713 = vor.u32 %v5710, %v5711
      %v5714 = vsel %vm5328, %v5706, %v5713
      %v5716 = vshrl.u32 %v5421, 16
      %v5718 = vrot.slane %v5716, 7
      %v5720 = vshrl.u32 %v5422, 16
      %v5722 = vrot.slane %v5720, 7
      %v5723 = vshll.u32 %v5422, 16
      %v5725 = vor.u32 %v5722, %v5723
      %v5726 = vsel %vm5328, %v5718, %v5725
      %v5728 = vshrl.u32 %v5423, 16
      %v5730 = vrot.slane %v5728, 7
      %v5732 = vshrl.u32 %v5424, 16
      %v5734 = vrot.slane %v5732, 7
      %v5735 = vshll.u32 %v5424, 16
      %v5737 = vor.u32 %v5734, %v5735
      %v5738 = vsel %vm5328, %v5730, %v5737
      %v5740 = vshrl.u32 %v5425, 16
      %v5742 = vrot.slane %v5740, 7
      %v5744 = vshrl.u32 %v5426, 16
      %v5746 = vrot.slane %v5744, 7
      %v5747 = vshll.u32 %v5426, 16
      %v5749 = vor.u32 %v5746, %v5747
      %v5750 = vsel %vm5328, %v5742, %v5749
      %v5752 = vshrl.u32 %v5427, 16
      %v5754 = vrot.slane %v5752, 7
      %v5756 = vshrl.u32 %v5428, 16
      %v5758 = vrot.slane %v5756, 7
      %v5759 = vshll.u32 %v5428, 16
      %v5761 = vor.u32 %v5758, %v5759
      %v5762 = vsel %vm5328, %v5754, %v5761
      %v5764 = vshrl.u32 %v5429, 16
      %v5766 = vrot.slane %v5764, 7
      %v5768 = vshrl.u32 %v5430, 16
      %v5770 = vrot.slane %v5768, 7
      %v5771 = vshll.u32 %v5430, 16
      %v5773 = vor.u32 %v5770, %v5771
      %v5774 = vsel %vm5328, %v5766, %v5773
      %v5776 = vshrl.u32 %v5431, 16
      %v5778 = vrot.slane %v5776, 7
      %v5780 = vshrl.u32 %v5432, 16
      %v5782 = vrot.slane %v5780, 7
      %v5783 = vshll.u32 %v5432, 16
      %v5785 = vor.u32 %v5782, %v5783
      %v5786 = vsel %vm5328, %v5778, %v5785
      %v5788 = vshrl.u32 %v5433, 16
      %v5790 = vrot.slane %v5788, 7
      %v5792 = vshrl.u32 %v5434, 16
      %v5794 = vrot.slane %v5792, 7
      %v5795 = vshll.u32 %v5434, 16
      %v5797 = vor.u32 %v5794, %v5795
      %v5798 = vsel %vm5328, %v5790, %v5797
      %v5800 = vshrl.u32 %v5435, 16
      %v5802 = vrot.slane %v5800, 7
      %v5804 = vshrl.u32 %v5436, 16
      %v5806 = vrot.slane %v5804, 7
      %v5807 = vshll.u32 %v5436, 16
      %v5809 = vor.u32 %v5806, %v5807
      %v5810 = vsel %vm5328, %v5802, %v5809
      %v5812 = vshrl.u32 %v5437, 16
      %v5814 = vrot.slane %v5812, 7
      %v5816 = vshrl.u32 %v5438, 16
      %v5818 = vrot.slane %v5816, 7
      %v5819 = vshll.u32 %v5438, 16
      %v5821 = vor.u32 %v5818, %v5819
      %v5822 = vsel %vm5328, %v5814, %v5821
      %v5824 = vshrl.u32 %v5439, 16
      %v5826 = vrot.slane %v5824, 7
      %v5828 = vshrl.u32 %v5440, 16
      %v5830 = vrot.slane %v5828, 7
      %v5831 = vshll.u32 %v5440, 16
      %v5833 = vor.u32 %v5830, %v5831
      %v5834 = vsel %vm5328, %v5826, %v5833
      %v5836 = vshrl.u32 %v5441, 16
      %v5838 = vrot.slane %v5836, 7
      %v5840 = vshrl.u32 %v5442, 16
      %v5842 = vrot.slane %v5840, 7
      %v5843 = vshll.u32 %v5442, 16
      %v5845 = vor.u32 %v5842, %v5843
      %v5846 = vsel %vm5328, %v5838, %v5845
      %v5848 = vshrl.u32 %v5443, 16
      %v5850 = vrot.slane %v5848, 7
      %v5852 = vshrl.u32 %v5444, 16
      %v5854 = vrot.slane %v5852, 7
      %v5855 = vshll.u32 %v5444, 16
      %v5857 = vor.u32 %v5854, %v5855
      %v5858 = vsel %vm5328, %v5850, %v5857
      %v5860 = vshrl.u32 %v5445, 16
      %v5862 = vrot.slane %v5860, 7
      %v5864 = vshrl.u32 %v5446, 16
      %v5866 = vrot.slane %v5864, 7
      %v5867 = vshll.u32 %v5446, 16
      %v5869 = vor.u32 %v5866, %v5867
      %v5870 = vsel %vm5328, %v5862, %v5869
      %v5872 = vshrl.u32 %v5447, 16
      %v5874 = vrot.slane %v5872, 7
      %v5876 = vshrl.u32 %v5448, 16
      %v5878 = vrot.slane %v5876, 7
      %v5879 = vshll.u32 %v5448, 16
      %v5881 = vor.u32 %v5878, %v5879
      %v5882 = vsel %vm5328, %v5874, %v5881
      %v5915 = vunpack.c.l.b16 %v5449
      %v5916 = vunpack.c.l.b16 %v5450
      %v5917 = vunpack.c.l.b16 %v5451
      %v5918 = vunpack.c.l.b16 %v5452
      %v5919 = vunpack.c.l.b16 %v5453
      %v5920 = vunpack.c.l.b16 %v5454
      %v5921 = vunpack.c.l.b16 %v5455
      %v5922 = vunpack.c.l.b16 %v5456
      %v5923 = vunpack.c.l.b16 %v5457
      %v5924 = vunpack.c.l.b16 %v5458
      %v5925 = vunpack.c.l.b16 %v5459
      %v5926 = vunpack.c.l.b16 %v5460
      %v5927 = vunpack.c.l.b16 %v5461
      %v5928 = vunpack.c.l.b16 %v5462
      %v5929 = vunpack.c.l.b16 %v5463
      %v5930 = vunpack.c.l.b16 %v5464
      %v5931 = vpack.c.b16 %v5916, %v5915
      %v5932 = vpack.c.b16 %v5918, %v5917
      %v5933 = vpack.c.b16 %v5920, %v5919
      %v5934 = vpack.c.b16 %v5922, %v5921
      %v5935 = vpack.c.b16 %v5924, %v5923
      %v5936 = vpack.c.b16 %v5926, %v5925
      %v5937 = vpack.c.b16 %v5928, %v5927
      %v5938 = vpack.c.b16 %v5930, %v5929
      %5947 = vmatprep.subr.bf16.mxu0 0
      %5948 = vmatpush1.bf16.msra.mxu0 %v5931
      %5949 = vmatprep.subr.bf16.mxu0 0
      %5950 = vmatpush1.bf16.msra.mxu0 %v5932
      %5951 = vmatprep.subr.bf16.mxu0 0
      %5952 = vmatpush1.bf16.msra.mxu0 %v5933
      %5953 = vmatprep.subr.bf16.mxu0 0
      %5954 = vmatpush1.bf16.msra.mxu0 %v5934
      %5955 = vmatprep.subr.bf16.mxu0 0
      %5956 = vmatpush1.bf16.msra.mxu0 %v5935
      %5957 = vmatprep.subr.bf16.mxu0 0
      %5958 = vmatpush1.bf16.msra.mxu0 %v5936
      %5959 = vmatprep.subr.bf16.mxu0 0
      %5960 = vmatpush1.bf16.msra.mxu0 %v5937
      %5961 = vmatprep.subr.bf16.mxu0 0
      %5962 = vmatpush1.bf16.msra.mxu0 %v5938
      %5963 = vmatprep.subr.bf16.mxu0 0
      %5964 = vmatpush1.bf16.msra.mxu0 0
      %5965 = vmatprep.subr.bf16.mxu0 0
      %5966 = vmatpush1.bf16.msra.mxu0 0
      %5967 = vmatprep.subr.bf16.mxu0 0
      %5968 = vmatpush1.bf16.msra.mxu0 0
      %5969 = vmatprep.subr.bf16.mxu0 0
      %5970 = vmatpush1.bf16.msra.mxu0 0
      %5971 = vmatprep.subr.bf16.mxu0 0
      %5972 = vmatpush1.bf16.msra.mxu0 0
      %5973 = vmatprep.subr.bf16.mxu0 0
      %5974 = vmatpush1.bf16.msra.mxu0 0
      %5975 = vmatprep.subr.bf16.mxu0 0
      %5976 = vmatpush1.bf16.msra.mxu0 0
      %5977 = vmatprep.subr.bf16.mxu0 0
      %5978 = vmatpush1.bf16.msra.mxu0 0
      %5979 = vmatprep.mubr.bf16.mxu0 0
      %5980 = vmatmul.mubr.bf16.gmra.mrb[0].mxu0 %v5702
      %v5981 = vpop.f32.mrb[0].mxu0
      %v5982 = vadd.f32 %v5565, %v5981
      %v5983 = vpop.f32.mrb[0].mxu0
      %v5984 = vpop.f32.mrb[0].mxu0
      %v5985 = vadd.f32 %v5568, %v5984
      %v5986 = vpop.f32.mrb[0].mxu0
      %5987 = vmatprep.mubr.bf16.mxu0 0
      %5988 = vmatmul.mubr.bf16.gmra.mrb[0].mxu0 %v5714
      %v5989 = vpop.f32.mrb[0].mxu0
      %v5990 = vadd.f32 %v5573, %v5989
      %v5991 = vpop.f32.mrb[0].mxu0
      %v5992 = vpop.f32.mrb[0].mxu0
      %v5993 = vadd.f32 %v5576, %v5992
      %v5994 = vpop.f32.mrb[0].mxu0
      %5995 = vmatprep.mubr.bf16.mxu0 0
      %5996 = vmatmul.mubr.bf16.gmra.mrb[0].mxu0 %v5726
      %v5997 = vpop.f32.mrb[0].mxu0
      %v5998 = vadd.f32 %v5581, %v5997
      %v5999 = vpop.f32.mrb[0].mxu0
      %v6000 = vpop.f32.mrb[0].mxu0
      %v6001 = vadd.f32 %v5584, %v6000
      %v6002 = vpop.f32.mrb[0].mxu0
      %6003 = vmatprep.mubr.bf16.mxu0 0
      %6004 = vmatmul.mubr.bf16.gmra.mrb[0].mxu0 %v5738
      %v6005 = vpop.f32.mrb[0].mxu0
      %v6006 = vadd.f32 %v5589, %v6005
      %v6007 = vpop.f32.mrb[0].mxu0
      %v6008 = vpop.f32.mrb[0].mxu0
      %v6009 = vadd.f32 %v5592, %v6008
      %v6010 = vpop.f32.mrb[0].mxu0
      %6011 = vmatprep.mubr.bf16.mxu0 0
      %6012 = vmatmul.mubr.bf16.gmra.mrb[0].mxu0 %v5750
      %v6013 = vpop.f32.mrb[0].mxu0
      %v6014 = vadd.f32 %v5597, %v6013
      %v6015 = vpop.f32.mrb[0].mxu0
      %v6016 = vpop.f32.mrb[0].mxu0
      %v6017 = vadd.f32 %v5600, %v6016
      %v6018 = vpop.f32.mrb[0].mxu0
      %6019 = vmatprep.mubr.bf16.mxu0 0
      %6020 = vmatmul.mubr.bf16.gmra.mrb[0].mxu0 %v5762
      %v6021 = vpop.f32.mrb[0].mxu0
      %v6022 = vadd.f32 %v5605, %v6021
      %v6023 = vpop.f32.mrb[0].mxu0
      %v6024 = vpop.f32.mrb[0].mxu0
      %v6025 = vadd.f32 %v5608, %v6024
      %v6026 = vpop.f32.mrb[0].mxu0
      %6027 = vmatprep.mubr.bf16.mxu0 0
      %6028 = vmatmul.mubr.bf16.gmra.mrb[0].mxu0 %v5774
      %v6029 = vpop.f32.mrb[0].mxu0
      %v6030 = vadd.f32 %v5613, %v6029
      %v6031 = vpop.f32.mrb[0].mxu0
      %v6032 = vpop.f32.mrb[0].mxu0
      %v6033 = vadd.f32 %v5616, %v6032
      %v6034 = vpop.f32.mrb[0].mxu0
      %6035 = vmatprep.mubr.bf16.mxu0 0
      %6036 = vmatmul.mubr.bf16.gmra.mrb[0].mxu0 %v5786
      %v6037 = vpop.f32.mrb[0].mxu0
      %v6038 = vadd.f32 %v5621, %v6037
      %v6039 = vpop.f32.mrb[0].mxu0
      %v6040 = vpop.f32.mrb[0].mxu0
      %v6041 = vadd.f32 %v5624, %v6040
      %v6042 = vpop.f32.mrb[0].mxu0
      %6043 = vmatprep.mubr.bf16.mxu0 0
      %6044 = vmatmul.mubr.bf16.gmra.mrb[0].mxu0 %v5798
      %v6045 = vpop.f32.mrb[0].mxu0
      %v6046 = vadd.f32 %v5629, %v6045
      %v6047 = vpop.f32.mrb[0].mxu0
      %v6048 = vpop.f32.mrb[0].mxu0
      %v6049 = vadd.f32 %v5632, %v6048
      %v6050 = vpop.f32.mrb[0].mxu0
      %6051 = vmatprep.mubr.bf16.mxu0 0
      %6052 = vmatmul.mubr.bf16.gmra.mrb[0].mxu0 %v5810
      %v6053 = vpop.f32.mrb[0].mxu0
      %v6054 = vadd.f32 %v5637, %v6053
      %v6055 = vpop.f32.mrb[0].mxu0
      %v6056 = vpop.f32.mrb[0].mxu0
      %v6057 = vadd.f32 %v5640, %v6056
      %v6058 = vpop.f32.mrb[0].mxu0
      %6059 = vmatprep.mubr.bf16.mxu0 0
      %6060 = vmatmul.mubr.bf16.gmra.mrb[0].mxu0 %v5822
      %v6061 = vpop.f32.mrb[0].mxu0
      %v6062 = vadd.f32 %v5645, %v6061
      %v6063 = vpop.f32.mrb[0].mxu0
      %v6064 = vpop.f32.mrb[0].mxu0
      %v6065 = vadd.f32 %v5648, %v6064
      %v6066 = vpop.f32.mrb[0].mxu0
      %6067 = vmatprep.mubr.bf16.mxu0 0
      %6068 = vmatmul.mubr.bf16.gmra.mrb[0].mxu0 %v5834
      %v6069 = vpop.f32.mrb[0].mxu0
      %v6070 = vadd.f32 %v5653, %v6069
      %v6071 = vpop.f32.mrb[0].mxu0
      %v6072 = vpop.f32.mrb[0].mxu0
      %v6073 = vadd.f32 %v5656, %v6072
      %v6074 = vpop.f32.mrb[0].mxu0
      %6075 = vmatprep.mubr.bf16.mxu0 0
      %6076 = vmatmul.mubr.bf16.gmra.mrb[0].mxu0 %v5846
      %v6077 = vpop.f32.mrb[0].mxu0
      %v6078 = vadd.f32 %v5661, %v6077
      %v6079 = vpop.f32.mrb[0].mxu0
      %v6080 = vpop.f32.mrb[0].mxu0
      %v6081 = vadd.f32 %v5664, %v6080
      %v6082 = vpop.f32.mrb[0].mxu0
      %6083 = vmatprep.mubr.bf16.mxu0 0
      %6084 = vmatmul.mubr.bf16.gmra.mrb[0].mxu0 %v5858
      %v6085 = vpop.f32.mrb[0].mxu0
      %v6086 = vadd.f32 %v5669, %v6085
      %v6087 = vpop.f32.mrb[0].mxu0
      %v6088 = vpop.f32.mrb[0].mxu0
      %v6089 = vadd.f32 %v5672, %v6088
      %v6090 = vpop.f32.mrb[0].mxu0
      %6091 = vmatprep.mubr.bf16.mxu0 0
      %6092 = vmatmul.mubr.bf16.gmra.mrb[0].mxu0 %v5870
      %v6093 = vpop.f32.mrb[0].mxu0
      %v6094 = vadd.f32 %v5677, %v6093
      %v6095 = vpop.f32.mrb[0].mxu0
      %v6096 = vpop.f32.mrb[0].mxu0
      %v6097 = vadd.f32 %v5680, %v6096
      %v6098 = vpop.f32.mrb[0].mxu0
      %6099 = vmatprep.mubr.bf16.mxu0 0
      %6100 = vmatmul.mubr.bf16.gmra.mrb[0].mxu0 %v5882
      %v6101 = vpop.f32.mrb[0].mxu0
      %v6102 = vadd.f32 %v5685, %v6101
      %v6103 = vpop.f32.mrb[0].mxu0
      %v6104 = vpop.f32.mrb[0].mxu0
      %v6105 = vadd.f32 %v5688, %v6104
      %v6106 = vpop.f32.mrb[0].mxu0
      %6107 = vdwg.mxu0
      %v6108 = vld [vmem:[#allocation2 + $0x8] sm:$0xff]
      %v6109 = vld [vmem:[#allocation2 + $0x10] sm:$0x1]
      %v6110 = vld [vmem:[#allocation2 + $0x20] sm:$0xff]
      %v6111 = vld [vmem:[#allocation2 + $0x28] sm:$0x1]
      %v6112 = vld [vmem:[#allocation2 + $0x38] sm:$0xff]
      %v6113 = vld [vmem:[#allocation2 + $0x40] sm:$0x1]
      %v6114 = vld [vmem:[#allocation2 + $0x50] sm:$0xff]
      %v6115 = vld [vmem:[#allocation2 + $0x58] sm:$0x1]
      %v6116 = vld [vmem:[#allocation2 + $0x68] sm:$0xff]
      %v6117 = vld [vmem:[#allocation2 + $0x70] sm:$0x1]
      %v6118 = vld [vmem:[#allocation2 + $0x80] sm:$0xff]
      %v6119 = vld [vmem:[#allocation2 + $0x88] sm:$0x1]
      %v6120 = vld [vmem:[#allocation2 + $0x98] sm:$0xff]
      %v6121 = vld [vmem:[#allocation2 + $0xa0] sm:$0x1]
      %v6122 = vld [vmem:[#allocation2 + $0xb0] sm:$0xff]
      %v6123 = vld [vmem:[#allocation2 + $0xb8] sm:$0x1]
      %v6124 = vld [vmem:[#allocation2 + $0xc8] sm:$0xff]
      %v6125 = vld [vmem:[#allocation2 + $0xd0] sm:$0x1]
      %v6126 = vld [vmem:[#allocation2 + $0xe0] sm:$0xff]
      %v6127 = vld [vmem:[#allocation2 + $0xe8] sm:$0x1]
      %v6128 = vld [vmem:[#allocation2 + $0xf8] sm:$0xff]
      %v6129 = vld [vmem:[#allocation2 + $0x100] sm:$0x1]
      %v6130 = vld [vmem:[#allocation2 + $0x110] sm:$0xff]
      %v6131 = vld [vmem:[#allocation2 + $0x118] sm:$0x1]
      %v6132 = vld [vmem:[#allocation2 + $0x128] sm:$0xff]
      %v6133 = vld [vmem:[#allocation2 + $0x130] sm:$0x1]
      %v6134 = vld [vmem:[#allocation2 + $0x140] sm:$0xff]
      %v6135 = vld [vmem:[#allocation2 + $0x148] sm:$0x1]
      %v6136 = vld [vmem:[#allocation2 + $0x158] sm:$0xff]
      %v6137 = vld [vmem:[#allocation2 + $0x160] sm:$0x1]
      %v6138 = vld [vmem:[#allocation2 + $0x170] sm:$0xff]
      %v6139 = vld [vmem:[#allocation2 + $0x178] sm:$0x1]
      %s6140 = scalar_lea.vmem %s4, 128
      %v6141 = vld [vmem:[%s6140] sm:$0xf]
      %v6142 = vld [vmem:[%s6140 + $0x4] sm:$0xf]
      %v6143 = vld [vmem:[%s6140 + $0x8] sm:$0xf]
      %v6144 = vld [vmem:[%s6140 + $0xc] sm:$0xf]
      %v6145 = vld [vmem:[%s6140 + $0x10] sm:$0xf]
      %v6146 = vld [vmem:[%s6140 + $0x14] sm:$0xf]
      %v6147 = vld [vmem:[%s6140 + $0x18] sm:$0xf]
      %v6148 = vld [vmem:[%s6140 + $0x1c] sm:$0xf]
      %v6149 = vld [vmem:[%s6140 + $0x20] sm:$0xf]
      %v6150 = vld [vmem:[%s6140 + $0x24] sm:$0xf]
      %v6151 = vld [vmem:[%s6140 + $0x28] sm:$0xf]
      %v6152 = vld [vmem:[%s6140 + $0x2c] sm:$0xf]
      %v6153 = vld [vmem:[%s6140 + $0x30] sm:$0xf]
      %v6154 = vld [vmem:[%s6140 + $0x34] sm:$0xf]
      %v6155 = vld [vmem:[%s6140 + $0x38] sm:$0xf]
      %v6156 = vld [vmem:[%s6140 + $0x3c] sm:$0xf]
      %vm6157 = vsmask.f32 7424
      %v6159 = vshrl.u32 %v6108, 16
      %v6161 = vshll.u32 %v6108, 16
      %v6163 = vrot.slane %v6161, 1
      %v6164 = vor.u32 %v6159, %v6163
      %v6166 = vshll.u32 %v6109, 16
      %v6168 = vrot.slane %v6166, 1
      %v6169 = vsel %vm6157, %v6164, %v6168
      %v6171 = vshrl.u32 %v6110, 16
      %v6173 = vshll.u32 %v6110, 16
      %v6175 = vrot.slane %v6173, 1
      %v6176 = vor.u32 %v6171, %v6175
      %v6178 = vshll.u32 %v6111, 16
      %v6180 = vrot.slane %v6178, 1
      %v6181 = vsel %vm6157, %v6176, %v6180
      %v6183 = vshrl.u32 %v6112, 16
      %v6185 = vshll.u32 %v6112, 16
      %v6187 = vrot.slane %v6185, 1
      %v6188 = vor.u32 %v6183, %v6187
      %v6190 = vshll.u32 %v6113, 16
      %v6192 = vrot.slane %v6190, 1
      %v6193 = vsel %vm6157, %v6188, %v6192
      %v6195 = vshrl.u32 %v6114, 16
      %v6197 = vshll.u32 %v6114, 16
      %v6199 = vrot.slane %v6197, 1
      %v6200 = vor.u32 %v6195, %v6199
      %v6202 = vshll.u32 %v6115, 16
      %v6204 = vrot.slane %v6202, 1
      %v6205 = vsel %vm6157, %v6200, %v6204
      %v6207 = vshrl.u32 %v6116, 16
      %v6209 = vshll.u32 %v6116, 16
      %v6211 = vrot.slane %v6209, 1
      %v6212 = vor.u32 %v6207, %v6211
      %v6214 = vshll.u32 %v6117, 16
      %v6216 = vrot.slane %v6214, 1
      %v6217 = vsel %vm6157, %v6212, %v6216
      %v6219 = vshrl.u32 %v6118, 16
      %v6221 = vshll.u32 %v6118, 16
      %v6223 = vrot.slane %v6221, 1
      %v6224 = vor.u32 %v6219, %v6223
      %v6226 = vshll.u32 %v6119, 16
      %v6228 = vrot.slane %v6226, 1
      %v6229 = vsel %vm6157, %v6224, %v6228
      %v6231 = vshrl.u32 %v6120, 16
      %v6233 = vshll.u32 %v6120, 16
      %v6235 = vrot.slane %v6233, 1
      %v6236 = vor.u32 %v6231, %v6235
      %v6238 = vshll.u32 %v6121, 16
      %v6240 = vrot.slane %v6238, 1
      %v6241 = vsel %vm6157, %v6236, %v6240
      %v6243 = vshrl.u32 %v6122, 16
      %v6245 = vshll.u32 %v6122, 16
      %v6247 = vrot.slane %v6245, 1
      %v6248 = vor.u32 %v6243, %v6247
      %v6250 = vshll.u32 %v6123, 16
      %v6252 = vrot.slane %v6250, 1
      %v6253 = vsel %vm6157, %v6248, %v6252
      %v6255 = vshrl.u32 %v6124, 16
      %v6257 = vshll.u32 %v6124, 16
      %v6259 = vrot.slane %v6257, 1
      %v6260 = vor.u32 %v6255, %v6259
      %v6262 = vshll.u32 %v6125, 16
      %v6264 = vrot.slane %v6262, 1
      %v6265 = vsel %vm6157, %v6260, %v6264
      %v6267 = vshrl.u32 %v6126, 16
      %v6269 = vshll.u32 %v6126, 16
      %v6271 = vrot.slane %v6269, 1
      %v6272 = vor.u32 %v6267, %v6271
      %v6274 = vshll.u32 %v6127, 16
      %v6276 = vrot.slane %v6274, 1
      %v6277 = vsel %vm6157, %v6272, %v6276
      %v6279 = vshrl.u32 %v6128, 16
      %v6281 = vshll.u32 %v6128, 16
      %v6283 = vrot.slane %v6281, 1
      %v6284 = vor.u32 %v6279, %v6283
      %v6286 = vshll.u32 %v6129, 16
      %v6288 = vrot.slane %v6286, 1
      %v6289 = vsel %vm6157, %v6284, %v6288
      %v6291 = vshrl.u32 %v6130, 16
      %v6293 = vshll.u32 %v6130, 16
      %v6295 = vrot.slane %v6293, 1
      %v6296 = vor.u32 %v6291, %v6295
      %v6298 = vshll.u32 %v6131, 16
      %v6300 = vrot.slane %v6298, 1
      %v6301 = vsel %vm6157, %v6296, %v6300
      %v6303 = vshrl.u32 %v6132, 16
      %v6305 = vshll.u32 %v6132, 16
      %v6307 = vrot.slane %v6305, 1
      %v6308 = vor.u32 %v6303, %v6307
      %v6310 = vshll.u32 %v6133, 16
      %v6312 = vrot.slane %v6310, 1
      %v6313 = vsel %vm6157, %v6308, %v6312
      %v6315 = vshrl.u32 %v6134, 16
      %v6317 = vshll.u32 %v6134, 16
      %v6319 = vrot.slane %v6317, 1
      %v6320 = vor.u32 %v6315, %v6319
      %v6322 = vshll.u32 %v6135, 16
      %v6324 = vrot.slane %v6322, 1
      %v6325 = vsel %vm6157, %v6320, %v6324
      %v6327 = vshrl.u32 %v6136, 16
      %v6329 = vshll.u32 %v6136, 16
      %v6331 = vrot.slane %v6329, 1
      %v6332 = vor.u32 %v6327, %v6331
      %v6334 = vshll.u32 %v6137, 16
      %v6336 = vrot.slane %v6334, 1
      %v6337 = vsel %vm6157, %v6332, %v6336
      %v6339 = vshrl.u32 %v6138, 16
      %v6341 = vshll.u32 %v6138, 16
      %v6343 = vrot.slane %v6341, 1
      %v6344 = vor.u32 %v6339, %v6343
      %v6346 = vshll.u32 %v6139, 16
      %v6348 = vrot.slane %v6346, 1
      %v6349 = vsel %vm6157, %v6344, %v6348
      %v6382 = vunpack.c.l.b16 %v6141
      %v6383 = vunpack.c.l.b16 %v6142
      %v6384 = vunpack.c.l.b16 %v6143
      %v6385 = vunpack.c.l.b16 %v6144
      %v6386 = vunpack.c.l.b16 %v6145
      %v6387 = vunpack.c.l.b16 %v6146
      %v6388 = vunpack.c.l.b16 %v6147
      %v6389 = vunpack.c.l.b16 %v6148
      %v6390 = vunpack.c.l.b16 %v6149
      %v6391 = vunpack.c.l.b16 %v6150
      %v6392 = vunpack.c.l.b16 %v6151
      %v6393 = vunpack.c.l.b16 %v6152
      %v6394 = vunpack.c.l.b16 %v6153
      %v6395 = vunpack.c.l.b16 %v6154
      %v6396 = vunpack.c.l.b16 %v6155
      %v6397 = vunpack.c.l.b16 %v6156
      %v6398 = vpack.c.b16 %v6383, %v6382
      %v6399 = vpack.c.b16 %v6385, %v6384
      %v6400 = vpack.c.b16 %v6387, %v6386
      %v6401 = vpack.c.b16 %v6389, %v6388
      %v6402 = vpack.c.b16 %v6391, %v6390
      %v6403 = vpack.c.b16 %v6393, %v6392
      %v6404 = vpack.c.b16 %v6395, %v6394
      %v6405 = vpack.c.b16 %v6397, %v6396
      %6414 = vmatprep.subr.bf16.mxu0 0
      %6415 = vmatpush1.bf16.msra.mxu0 %v6398
      %6416 = vmatprep.subr.bf16.mxu0 0
      %6417 = vmatpush1.bf16.msra.mxu0 %v6399
      %6418 = vmatprep.subr.bf16.mxu0 0
      %6419 = vmatpush1.bf16.msra.mxu0 %v6400
      %6420 = vmatprep.subr.bf16.mxu0 0
      %6421 = vmatpush1.bf16.msra.mxu0 %v6401
      %6422 = vmatprep.subr.bf16.mxu0 0
      %6423 = vmatpush1.bf16.msra.mxu0 %v6402
      %6424 = vmatprep.subr.bf16.mxu0 0
      %6425 = vmatpush1.bf16.msra.mxu0 %v6403
      %6426 = vmatprep.subr.bf16.mxu0 0
      %6427 = vmatpush1.bf16.msra.mxu0 %v6404
      %6428 = vmatprep.subr.bf16.mxu0 0
      %6429 = vmatpush1.bf16.msra.mxu0 %v6405
      %6430 = vmatprep.subr.bf16.mxu0 0
      %6431 = vmatpush1.bf16.msra.mxu0 0
      %6432 = vmatprep.subr.bf16.mxu0 0
      %6433 = vmatpush1.bf16.msra.mxu0 0
      %6434 = vmatprep.subr.bf16.mxu0 0
      %6435 = vmatpush1.bf16.msra.mxu0 0
      %6436 = vmatprep.subr.bf16.mxu0 0
      %6437 = vmatpush1.bf16.msra.mxu0 0
      %6438 = vmatprep.subr.bf16.mxu0 0
      %6439 = vmatpush1.bf16.msra.mxu0 0
      %6440 = vmatprep.subr.bf16.mxu0 0
      %6441 = vmatpush1.bf16.msra.mxu0 0
      %6442 = vmatprep.subr.bf16.mxu0 0
      %6443 = vmatpush1.bf16.msra.mxu0 0
      %6444 = vmatprep.subr.bf16.mxu0 0
      %6445 = vmatpush1.bf16.msra.mxu0 0
      %6446 = vmatprep.mubr.bf16.mxu0 0
      %6447 = vmatmul.mubr.bf16.gmra.mrb[0].mxu0 %v6169
      %v6448 = vpop.f32.mrb[0].mxu0
      %v6449 = vadd.f32 0.0, %v6448
      %v6450 = vpop.f32.mrb[0].mxu0
      %v6451 = vpop.f32.mrb[0].mxu0
      %v6452 = vadd.f32 0.0, %v6451
      %v6453 = vpop.f32.mrb[0].mxu0
      %6454 = vmatprep.mubr.bf16.mxu0 0
      %6455 = vmatmul.mubr.bf16.gmra.mrb[0].mxu0 %v6181
      %v6456 = vpop.f32.mrb[0].mxu0
      %v6457 = vadd.f32 0.0, %v6456
      %v6458 = vpop.f32.mrb[0].mxu0
      %v6459 = vpop.f32.mrb[0].mxu0
      %v6460 = vadd.f32 0.0, %v6459
      %v6461 = vpop.f32.mrb[0].mxu0
      %6462 = vmatprep.mubr.bf16.mxu0 0
      %6463 = vmatmul.mubr.bf16.gmra.mrb[0].mxu0 %v6193
      %v6464 = vpop.f32.mrb[0].mxu0
      %v6465 = vadd.f32 0.0, %v6464
      %v6466 = vpop.f32.mrb[0].mxu0
      %v6467 = vpop.f32.mrb[0].mxu0
      %v6468 = vadd.f32 0.0, %v6467
      %v6469 = vpop.f32.mrb[0].mxu0
      %6470 = vmatprep.mubr.bf16.mxu0 0
      %6471 = vmatmul.mubr.bf16.gmra.mrb[0].mxu0 %v6205
      %v6472 = vpop.f32.mrb[0].mxu0
      %v6473 = vadd.f32 0.0, %v6472
      %v6474 = vpop.f32.mrb[0].mxu0
      %v6475 = vpop.f32.mrb[0].mxu0
      %v6476 = vadd.f32 0.0, %v6475
      %v6477 = vpop.f32.mrb[0].mxu0
      %6478 = vmatprep.mubr.bf16.mxu0 0
      %6479 = vmatmul.mubr.bf16.gmra.mrb[0].mxu0 %v6217
      %v6480 = vpop.f32.mrb[0].mxu0
      %v6481 = vadd.f32 0.0, %v6480
      %v6482 = vpop.f32.mrb[0].mxu0
      %v6483 = vpop.f32.mrb[0].mxu0
      %v6484 = vadd.f32 0.0, %v6483
      %v6485 = vpop.f32.mrb[0].mxu0
      %6486 = vmatprep.mubr.bf16.mxu0 0
      %6487 = vmatmul.mubr.bf16.gmra.mrb[0].mxu0 %v6229
      %v6488 = vpop.f32.mrb[0].mxu0
      %v6489 = vadd.f32 0.0, %v6488
      %v6490 = vpop.f32.mrb[0].mxu0
      %v6491 = vpop.f32.mrb[0].mxu0
      %v6492 = vadd.f32 0.0, %v6491
      %v6493 = vpop.f32.mrb[0].mxu0
      %6494 = vmatprep.mubr.bf16.mxu0 0
      %6495 = vmatmul.mubr.bf16.gmra.mrb[0].mxu0 %v6241
      %v6496 = vpop.f32.mrb[0].mxu0
      %v6497 = vadd.f32 0.0, %v6496
      %v6498 = vpop.f32.mrb[0].mxu0
      %v6499 = vpop.f32.mrb[0].mxu0
      %v6500 = vadd.f32 0.0, %v6499
      %v6501 = vpop.f32.mrb[0].mxu0
      %6502 = vmatprep.mubr.bf16.mxu0 0
      %6503 = vmatmul.mubr.bf16.gmra.mrb[0].mxu0 %v6253
      %v6504 = vpop.f32.mrb[0].mxu0
      %v6505 = vadd.f32 0.0, %v6504
      %v6506 = vpop.f32.mrb[0].mxu0
      %v6507 = vpop.f32.mrb[0].mxu0
      %v6508 = vadd.f32 0.0, %v6507
      %v6509 = vpop.f32.mrb[0].mxu0
      %6510 = vmatprep.mubr.bf16.mxu0 0
      %6511 = vmatmul.mubr.bf16.gmra.mrb[0].mxu0 %v6265
      %v6512 = vpop.f32.mrb[0].mxu0
      %v6513 = vadd.f32 0.0, %v6512
      %v6514 = vpop.f32.mrb[0].mxu0
      %v6515 = vpop.f32.mrb[0].mxu0
      %v6516 = vadd.f32 0.0, %v6515
      %v6517 = vpop.f32.mrb[0].mxu0
      %6518 = vmatprep.mubr.bf16.mxu0 0
      %6519 = vmatmul.mubr.bf16.gmra.mrb[0].mxu0 %v6277
      %v6520 = vpop.f32.mrb[0].mxu0
      %v6521 = vadd.f32 0.0, %v6520
      %v6522 = vpop.f32.mrb[0].mxu0
      %v6523 = vpop.f32.mrb[0].mxu0
      %v6524 = vadd.f32 0.0, %v6523
      %v6525 = vpop.f32.mrb[0].mxu0
      %6526 = vmatprep.mubr.bf16.mxu0 0
      %6527 = vmatmul.mubr.bf16.gmra.mrb[0].mxu0 %v6289
      %v6528 = vpop.f32.mrb[0].mxu0
      %v6529 = vadd.f32 0.0, %v6528
      %v6530 = vpop.f32.mrb[0].mxu0
      %v6531 = vpop.f32.mrb[0].mxu0
      %v6532 = vadd.f32 0.0, %v6531
      %v6533 = vpop.f32.mrb[0].mxu0
      %6534 = vmatprep.mubr.bf16.mxu0 0
      %6535 = vmatmul.mubr.bf16.gmra.mrb[0].mxu0 %v6301
      %v6536 = vpop.f32.mrb[0].mxu0
      %v6537 = vadd.f32 0.0, %v6536
      %v6538 = vpop.f32.mrb[0].mxu0
      %v6539 = vpop.f32.mrb[0].mxu0
      %v6540 = vadd.f32 0.0, %v6539
      %v6541 = vpop.f32.mrb[0].mxu0
      %6542 = vmatprep.mubr.bf16.mxu0 0
      %6543 = vmatmul.mubr.bf16.gmra.mrb[0].mxu0 %v6313
      %v6544 = vpop.f32.mrb[0].mxu0
      %v6545 = vadd.f32 0.0, %v6544
      %v6546 = vpop.f32.mrb[0].mxu0
      %v6547 = vpop.f32.mrb[0].mxu0
      %v6548 = vadd.f32 0.0, %v6547
      %v6549 = vpop.f32.mrb[0].mxu0
      %6550 = vmatprep.mubr.bf16.mxu0 0
      %6551 = vmatmul.mubr.bf16.gmra.mrb[0].mxu0 %v6325
      %v6552 = vpop.f32.mrb[0].mxu0
      %v6553 = vadd.f32 0.0, %v6552
      %v6554 = vpop.f32.mrb[0].mxu0
      %v6555 = vpop.f32.mrb[0].mxu0
      %v6556 = vadd.f32 0.0, %v6555
      %v6557 = vpop.f32.mrb[0].mxu0
      %6558 = vmatprep.mubr.bf16.mxu0 0
      %6559 = vmatmul.mubr.bf16.gmra.mrb[0].mxu0 %v6337
      %v6560 = vpop.f32.mrb[0].mxu0
      %v6561 = vadd.f32 0.0, %v6560
      %v6562 = vpop.f32.mrb[0].mxu0
      %v6563 = vpop.f32.mrb[0].mxu0
      %v6564 = vadd.f32 0.0, %v6563
      %v6565 = vpop.f32.mrb[0].mxu0
      %6566 = vmatprep.mubr.bf16.mxu0 0
      %6567 = vmatmul.mubr.bf16.gmra.mrb[0].mxu0 %v6349
      %v6568 = vpop.f32.mrb[0].mxu0
      %v6569 = vadd.f32 0.0, %v6568
      %v6570 = vpop.f32.mrb[0].mxu0
      %v6571 = vpop.f32.mrb[0].mxu0
      %v6572 = vadd.f32 0.0, %v6571
      %v6573 = vpop.f32.mrb[0].mxu0
      %6574 = vdwg.mxu0
      %v6575 = vadd.f32 %v5982, %v6449
      %v6576 = vadd.f32 %v5985, %v6452
      %v6577 = vadd.f32 %v5990, %v6457
      %v6578 = vadd.f32 %v5993, %v6460
      %v6579 = vadd.f32 %v5998, %v6465
      %v6580 = vadd.f32 %v6001, %v6468
      %v6581 = vadd.f32 %v6006, %v6473
      %v6582 = vadd.f32 %v6009, %v6476
      %v6583 = vadd.f32 %v6014, %v6481
      %v6584 = vadd.f32 %v6017, %v6484
      %v6585 = vadd.f32 %v6022, %v6489
      %v6586 = vadd.f32 %v6025, %v6492
      %v6587 = vadd.f32 %v6030, %v6497
      %v6588 = vadd.f32 %v6033, %v6500
      %v6589 = vadd.f32 %v6038, %v6505
      %v6590 = vadd.f32 %v6041, %v6508
      %v6591 = vadd.f32 %v6046, %v6513
      %v6592 = vadd.f32 %v6049, %v6516
      %v6593 = vadd.f32 %v6054, %v6521
      %v6594 = vadd.f32 %v6057, %v6524
      %v6595 = vadd.f32 %v6062, %v6529
      %v6596 = vadd.f32 %v6065, %v6532
      %v6597 = vadd.f32 %v6070, %v6537
      %v6598 = vadd.f32 %v6073, %v6540
      %v6599 = vadd.f32 %v6078, %v6545
      %v6600 = vadd.f32 %v6081, %v6548
      %v6601 = vadd.f32 %v6086, %v6553
      %v6602 = vadd.f32 %v6089, %v6556
      %v6603 = vadd.f32 %v6094, %v6561
      %v6604 = vadd.f32 %v6097, %v6564
      %v6605 = vadd.f32 %v6102, %v6569
      %v6606 = vadd.f32 %v6105, %v6572
      %v6607 = vld [vmem:[%s5400] sm:$0x80]
      %v6608 = vld [vmem:[%s5400 + $0x8] sm:$0xff]
      %v6609 = vld [vmem:[%s5400 + $0x18] sm:$0x80]
      %v6610 = vld [vmem:[%s5400 + $0x20] sm:$0xff]
      %v6611 = vld [vmem:[%s5400 + $0x30] sm:$0x80]
      %v6612 = vld [vmem:[%s5400 + $0x38] sm:$0xff]
      %v6613 = vld [vmem:[%s5400 + $0x48] sm:$0x80]
      %v6614 = vld [vmem:[%s5400 + $0x50] sm:$0xff]
      %v6615 = vld [vmem:[%s5400 + $0x60] sm:$0x80]
      %v6616 = vld [vmem:[%s5400 + $0x68] sm:$0xff]
      %v6617 = vld [vmem:[%s5400 + $0x78] sm:$0x80]
      %v6618 = vld [vmem:[%s5400 + $0x80] sm:$0xff]
      %v6619 = vld [vmem:[%s5400 + $0x90] sm:$0x80]
      %v6620 = vld [vmem:[%s5400 + $0x98] sm:$0xff]
      %v6621 = vld [vmem:[%s5400 + $0xa8] sm:$0x80]
      %v6622 = vld [vmem:[%s5400 + $0xb0] sm:$0xff]
      %v6623 = vld [vmem:[%s5400 + $0xc0] sm:$0x80]
      %v6624 = vld [vmem:[%s5400 + $0xc8] sm:$0xff]
      %v6625 = vld [vmem:[%s5400 + $0xd8] sm:$0x80]
      %v6626 = vld [vmem:[%s5400 + $0xe0] sm:$0xff]
      %v6627 = vld [vmem:[%s5400 + $0xf0] sm:$0x80]
      %v6628 = vld [vmem:[%s5400 + $0xf8] sm:$0xff]
      %v6629 = vld [vmem:[%s5400 + $0x108] sm:$0x80]
      %v6630 = vld [vmem:[%s5400 + $0x110] sm:$0xff]
      %v6631 = vld [vmem:[%s5400 + $0x120] sm:$0x80]
      %v6632 = vld [vmem:[%s5400 + $0x128] sm:$0xff]
      %v6633 = vld [vmem:[%s5400 + $0x138] sm:$0x80]
      %v6634 = vld [vmem:[%s5400 + $0x140] sm:$0xff]
      %v6635 = vld [vmem:[%s5400 + $0x150] sm:$0x80]
      %v6636 = vld [vmem:[%s5400 + $0x158] sm:$0xff]
      %v6637 = vld [vmem:[%s5400 + $0x168] sm:$0x80]
      %v6638 = vld [vmem:[%s5400 + $0x170] sm:$0xff]
      %s6639 = scalar_lea.vmem %s4, 192
      %v6640 = vld [vmem:[%s6639] sm:$0xf]
      %v6641 = vld [vmem:[%s6639 + $0x4] sm:$0xf]
      %v6642 = vld [vmem:[%s6639 + $0x8] sm:$0xf]
      %v6643 = vld [vmem:[%s6639 + $0xc] sm:$0xf]
      %v6644 = vld [vmem:[%s6639 + $0x10] sm:$0xf]
      %v6645 = vld [vmem:[%s6639 + $0x14] sm:$0xf]
      %v6646 = vld [vmem:[%s6639 + $0x18] sm:$0xf]
      %v6647 = vld [vmem:[%s6639 + $0x1c] sm:$0xf]
      %v6648 = vld [vmem:[%s6639 + $0x20] sm:$0xf]
      %v6649 = vld [vmem:[%s6639 + $0x24] sm:$0xf]
      %v6650 = vld [vmem:[%s6639 + $0x28] sm:$0xf]
      %v6651 = vld [vmem:[%s6639 + $0x2c] sm:$0xf]
      %v6652 = vld [vmem:[%s6639 + $0x30] sm:$0xf]
      %v6653 = vld [vmem:[%s6639 + $0x34] sm:$0xf]
      %v6654 = vld [vmem:[%s6639 + $0x38] sm:$0xf]
      %v6655 = vld [vmem:[%s6639 + $0x3c] sm:$0xf]
      %v6657 = vshrl.u32 %v6607, 16
      %v6659 = vrot.slane %v6657, 7
      %v6661 = vshrl.u32 %v6608, 16
      %v6663 = vrot.slane %v6661, 7
      %v6664 = vshll.u32 %v6608, 16
      %v6666 = vor.u32 %v6663, %v6664
      %v6667 = vsel %vm5328, %v6659, %v6666
      %v6669 = vshrl.u32 %v6609, 16
      %v6671 = vrot.slane %v6669, 7
      %v6673 = vshrl.u32 %v6610, 16
      %v6675 = vrot.slane %v6673, 7
      %v6676 = vshll.u32 %v6610, 16
      %v6678 = vor.u32 %v6675, %v6676
      %v6679 = vsel %vm5328, %v6671, %v6678
      %v6681 = vshrl.u32 %v6611, 16
      %v6683 = vrot.slane %v6681, 7
      %v6685 = vshrl.u32 %v6612, 16
      %v6687 = vrot.slane %v6685, 7
      %v6688 = vshll.u32 %v6612, 16
      %v6690 = vor.u32 %v6687, %v6688
      %v6691 = vsel %vm5328, %v6683, %v6690
      %v6693 = vshrl.u32 %v6613, 16
      %v6695 = vrot.slane %v6693, 7
      %v6697 = vshrl.u32 %v6614, 16
      %v6699 = vrot.slane %v6697, 7
      %v6700 = vshll.u32 %v6614, 16
      %v6702 = vor.u32 %v6699, %v6700
      %v6703 = vsel %vm5328, %v6695, %v6702
      %v6705 = vshrl.u32 %v6615, 16
      %v6707 = vrot.slane %v6705, 7
      %v6709 = vshrl.u32 %v6616, 16
      %v6711 = vrot.slane %v6709, 7
      %v6712 = vshll.u32 %v6616, 16
      %v6714 = vor.u32 %v6711, %v6712
      %v6715 = vsel %vm5328, %v6707, %v6714
      %v6717 = vshrl.u32 %v6617, 16
      %v6719 = vrot.slane %v6717, 7
      %v6721 = vshrl.u32 %v6618, 16
      %v6723 = vrot.slane %v6721, 7
      %v6724 = vshll.u32 %v6618, 16
      %v6726 = vor.u32 %v6723, %v6724
      %v6727 = vsel %vm5328, %v6719, %v6726
      %v6729 = vshrl.u32 %v6619, 16
      %v6731 = vrot.slane %v6729, 7
      %v6733 = vshrl.u32 %v6620, 16
      %v6735 = vrot.slane %v6733, 7
      %v6736 = vshll.u32 %v6620, 16
      %v6738 = vor.u32 %v6735, %v6736
      %v6739 = vsel %vm5328, %v6731, %v6738
      %v6741 = vshrl.u32 %v6621, 16
      %v6743 = vrot.slane %v6741, 7
      %v6745 = vshrl.u32 %v6622, 16
      %v6747 = vrot.slane %v6745, 7
      %v6748 = vshll.u32 %v6622, 16
      %v6750 = vor.u32 %v6747, %v6748
      %v6751 = vsel %vm5328, %v6743, %v6750
      %v6753 = vshrl.u32 %v6623, 16
      %v6755 = vrot.slane %v6753, 7
      %v6757 = vshrl.u32 %v6624, 16
      %v6759 = vrot.slane %v6757, 7
      %v6760 = vshll.u32 %v6624, 16
      %v6762 = vor.u32 %v6759, %v6760
      %v6763 = vsel %vm5328, %v6755, %v6762
      %v6765 = vshrl.u32 %v6625, 16
      %v6767 = vrot.slane %v6765, 7
      %v6769 = vshrl.u32 %v6626, 16
      %v6771 = vrot.slane %v6769, 7
      %v6772 = vshll.u32 %v6626, 16
      %v6774 = vor.u32 %v6771, %v6772
      %v6775 = vsel %vm5328, %v6767, %v6774
      %v6777 = vshrl.u32 %v6627, 16
      %v6779 = vrot.slane %v6777, 7
      %v6781 = vshrl.u32 %v6628, 16
      %v6783 = vrot.slane %v6781, 7
      %v6784 = vshll.u32 %v6628, 16
      %v6786 = vor.u32 %v6783, %v6784
      %v6787 = vsel %vm5328, %v6779, %v6786
      %v6789 = vshrl.u32 %v6629, 16
      %v6791 = vrot.slane %v6789, 7
      %v6793 = vshrl.u32 %v6630, 16
      %v6795 = vrot.slane %v6793, 7
      %v6796 = vshll.u32 %v6630, 16
      %v6798 = vor.u32 %v6795, %v6796
      %v6799 = vsel %vm5328, %v6791, %v6798
      %v6801 = vshrl.u32 %v6631, 16
      %v6803 = vrot.slane %v6801, 7
      %v6805 = vshrl.u32 %v6632, 16
      %v6807 = vrot.slane %v6805, 7
      %v6808 = vshll.u32 %v6632, 16
      %v6810 = vor.u32 %v6807, %v6808
      %v6811 = vsel %vm5328, %v6803, %v6810
      %v6813 = vshrl.u32 %v6633, 16
      %v6815 = vrot.slane %v6813, 7
      %v6817 = vshrl.u32 %v6634, 16
      %v6819 = vrot.slane %v6817, 7
      %v6820 = vshll.u32 %v6634, 16
      %v6822 = vor.u32 %v6819, %v6820
      %v6823 = vsel %vm5328, %v6815, %v6822
      %v6825 = vshrl.u32 %v6635, 16
      %v6827 = vrot.slane %v6825, 7
      %v6829 = vshrl.u32 %v6636, 16
      %v6831 = vrot.slane %v6829, 7
      %v6832 = vshll.u32 %v6636, 16
      %v6834 = vor.u32 %v6831, %v6832
      %v6835 = vsel %vm5328, %v6827, %v6834
      %v6837 = vshrl.u32 %v6637, 16
      %v6839 = vrot.slane %v6837, 7
      %v6841 = vshrl.u32 %v6638, 16
      %v6843 = vrot.slane %v6841, 7
      %v6844 = vshll.u32 %v6638, 16
      %v6846 = vor.u32 %v6843, %v6844
      %v6847 = vsel %vm5328, %v6839, %v6846
      %v6880 = vunpack.c.l.b16 %v6640
      %v6881 = vunpack.c.l.b16 %v6641
      %v6882 = vunpack.c.l.b16 %v6642
      %v6883 = vunpack.c.l.b16 %v6643
      %v6884 = vunpack.c.l.b16 %v6644
      %v6885 = vunpack.c.l.b16 %v6645
      %v6886 = vunpack.c.l.b16 %v6646
      %v6887 = vunpack.c.l.b16 %v6647
      %v6888 = vunpack.c.l.b16 %v6648
      %v6889 = vunpack.c.l.b16 %v6649
      %v6890 = vunpack.c.l.b16 %v6650
      %v6891 = vunpack.c.l.b16 %v6651
      %v6892 = vunpack.c.l.b16 %v6652
      %v6893 = vunpack.c.l.b16 %v6653
      %v6894 = vunpack.c.l.b16 %v6654
      %v6895 = vunpack.c.l.b16 %v6655
      %v6896 = vpack.c.b16 %v6881, %v6880
      %v6897 = vpack.c.b16 %v6883, %v6882
      %v6898 = vpack.c.b16 %v6885, %v6884
      %v6899 = vpack.c.b16 %v6887, %v6886
      %v6900 = vpack.c.b16 %v6889, %v6888
      %v6901 = vpack.c.b16 %v6891, %v6890
      %v6902 = vpack.c.b16 %v6893, %v6892
      %v6903 = vpack.c.b16 %v6895, %v6894
      %6912 = vmatprep.subr.bf16.mxu0 0
      %6913 = vmatpush1.bf16.msra.mxu0 %v6896
      %6914 = vmatprep.subr.bf16.mxu0 0
      %6915 = vmatpush1.bf16.msra.mxu0 %v6897
      %6916 = vmatprep.subr.bf16.mxu0 0
      %6917 = vmatpush1.bf16.msra.mxu0 %v6898
      %6918 = vmatprep.subr.bf16.mxu0 0
      %6919 = vmatpush1.bf16.msra.mxu0 %v6899
      %6920 = vmatprep.subr.bf16.mxu0 0
      %6921 = vmatpush1.bf16.msra.mxu0 %v6900
      %6922 = vmatprep.subr.bf16.mxu0 0
      %6923 = vmatpush1.bf16.msra.mxu0 %v6901
      %6924 = vmatprep.subr.bf16.mxu0 0
      %6925 = vmatpush1.bf16.msra.mxu0 %v6902
      %6926 = vmatprep.subr.bf16.mxu0 0
      %6927 = vmatpush1.bf16.msra.mxu0 %v6903
      %6928 = vmatprep.subr.bf16.mxu0 0
      %6929 = vmatpush1.bf16.msra.mxu0 0
      %6930 = vmatprep.subr.bf16.mxu0 0
      %6931 = vmatpush1.bf16.msra.mxu0 0
      %6932 = vmatprep.subr.bf16.mxu0 0
      %6933 = vmatpush1.bf16.msra.mxu0 0
      %6934 = vmatprep.subr.bf16.mxu0 0
      %6935 = vmatpush1.bf16.msra.mxu0 0
      %6936 = vmatprep.subr.bf16.mxu0 0
      %6937 = vmatpush1.bf16.msra.mxu0 0
      %6938 = vmatprep.subr.bf16.mxu0 0
      %6939 = vmatpush1.bf16.msra.mxu0 0
      %6940 = vmatprep.subr.bf16.mxu0 0
      %6941 = vmatpush1.bf16.msra.mxu0 0
      %6942 = vmatprep.subr.bf16.mxu0 0
      %6943 = vmatpush1.bf16.msra.mxu0 0
      %6944 = vmatprep.mubr.bf16.mxu0 0
      %6945 = vmatmul.mubr.bf16.gmra.mrb[0].mxu0 %v6667
      %v6946 = vpop.f32.mrb[0].mxu0
      %v6947 = vadd.f32 0.0, %v6946
      %v6948 = vpop.f32.mrb[0].mxu0
      %v6949 = vpop.f32.mrb[0].mxu0
      %v6950 = vadd.f32 0.0, %v6949
      %v6951 = vpop.f32.mrb[0].mxu0
      %6952 = vmatprep.mubr.bf16.mxu0 0
      %6953 = vmatmul.mubr.bf16.gmra.mrb[0].mxu0 %v6679
      %v6954 = vpop.f32.mrb[0].mxu0
      %v6955 = vadd.f32 0.0, %v6954
      %v6956 = vpop.f32.mrb[0].mxu0
      %v6957 = vpop.f32.mrb[0].mxu0
      %v6958 = vadd.f32 0.0, %v6957
      %v6959 = vpop.f32.mrb[0].mxu0
      %6960 = vmatprep.mubr.bf16.mxu0 0
      %6961 = vmatmul.mubr.bf16.gmra.mrb[0].mxu0 %v6691
      %v6962 = vpop.f32.mrb[0].mxu0
      %v6963 = vadd.f32 0.0, %v6962
      %v6964 = vpop.f32.mrb[0].mxu0
      %v6965 = vpop.f32.mrb[0].mxu0
      %v6966 = vadd.f32 0.0, %v6965
      %v6967 = vpop.f32.mrb[0].mxu0
      %6968 = vmatprep.mubr.bf16.mxu0 0
      %6969 = vmatmul.mubr.bf16.gmra.mrb[0].mxu0 %v6703
      %v6970 = vpop.f32.mrb[0].mxu0
      %v6971 = vadd.f32 0.0, %v6970
      %v6972 = vpop.f32.mrb[0].mxu0
      %v6973 = vpop.f32.mrb[0].mxu0
      %v6974 = vadd.f32 0.0, %v6973
      %v6975 = vpop.f32.mrb[0].mxu0
      %6976 = vmatprep.mubr.bf16.mxu0 0
      %6977 = vmatmul.mubr.bf16.gmra.mrb[0].mxu0 %v6715
      %v6978 = vpop.f32.mrb[0].mxu0
      %v6979 = vadd.f32 0.0, %v6978
      %v6980 = vpop.f32.mrb[0].mxu0
      %v6981 = vpop.f32.mrb[0].mxu0
      %v6982 = vadd.f32 0.0, %v6981
      %v6983 = vpop.f32.mrb[0].mxu0
      %6984 = vmatprep.mubr.bf16.mxu0 0
      %6985 = vmatmul.mubr.bf16.gmra.mrb[0].mxu0 %v6727
      %v6986 = vpop.f32.mrb[0].mxu0
      %v6987 = vadd.f32 0.0, %v6986
      %v6988 = vpop.f32.mrb[0].mxu0
      %v6989 = vpop.f32.mrb[0].mxu0
      %v6990 = vadd.f32 0.0, %v6989
      %v6991 = vpop.f32.mrb[0].mxu0
      %6992 = vmatprep.mubr.bf16.mxu0 0
      %6993 = vmatmul.mubr.bf16.gmra.mrb[0].mxu0 %v6739
      %v6994 = vpop.f32.mrb[0].mxu0
      %v6995 = vadd.f32 0.0, %v6994
      %v6996 = vpop.f32.mrb[0].mxu0
      %v6997 = vpop.f32.mrb[0].mxu0
      %v6998 = vadd.f32 0.0, %v6997
      %v6999 = vpop.f32.mrb[0].mxu0
      %7000 = vmatprep.mubr.bf16.mxu0 0
      %7001 = vmatmul.mubr.bf16.gmra.mrb[0].mxu0 %v6751
      %v7002 = vpop.f32.mrb[0].mxu0
      %v7003 = vadd.f32 0.0, %v7002
      %v7004 = vpop.f32.mrb[0].mxu0
      %v7005 = vpop.f32.mrb[0].mxu0
      %v7006 = vadd.f32 0.0, %v7005
      %v7007 = vpop.f32.mrb[0].mxu0
      %7008 = vmatprep.mubr.bf16.mxu0 0
      %7009 = vmatmul.mubr.bf16.gmra.mrb[0].mxu0 %v6763
      %v7010 = vpop.f32.mrb[0].mxu0
      %v7011 = vadd.f32 0.0, %v7010
      %v7012 = vpop.f32.mrb[0].mxu0
      %v7013 = vpop.f32.mrb[0].mxu0
      %v7014 = vadd.f32 0.0, %v7013
      %v7015 = vpop.f32.mrb[0].mxu0
      %7016 = vmatprep.mubr.bf16.mxu0 0
      %7017 = vmatmul.mubr.bf16.gmra.mrb[0].mxu0 %v6775
      %v7018 = vpop.f32.mrb[0].mxu0
      %v7019 = vadd.f32 0.0, %v7018
      %v7020 = vpop.f32.mrb[0].mxu0
      %v7021 = vpop.f32.mrb[0].mxu0
      %v7022 = vadd.f32 0.0, %v7021
      %v7023 = vpop.f32.mrb[0].mxu0
      %7024 = vmatprep.mubr.bf16.mxu0 0
      %7025 = vmatmul.mubr.bf16.gmra.mrb[0].mxu0 %v6787
      %v7026 = vpop.f32.mrb[0].mxu0
      %v7027 = vadd.f32 0.0, %v7026
      %v7028 = vpop.f32.mrb[0].mxu0
      %v7029 = vpop.f32.mrb[0].mxu0
      %v7030 = vadd.f32 0.0, %v7029
      %v7031 = vpop.f32.mrb[0].mxu0
      %7032 = vmatprep.mubr.bf16.mxu0 0
      %7033 = vmatmul.mubr.bf16.gmra.mrb[0].mxu0 %v6799
      %v7034 = vpop.f32.mrb[0].mxu0
      %v7035 = vadd.f32 0.0, %v7034
      %v7036 = vpop.f32.mrb[0].mxu0
      %v7037 = vpop.f32.mrb[0].mxu0
      %v7038 = vadd.f32 0.0, %v7037
      %v7039 = vpop.f32.mrb[0].mxu0
      %7040 = vmatprep.mubr.bf16.mxu0 0
      %7041 = vmatmul.mubr.bf16.gmra.mrb[0].mxu0 %v6811
      %v7042 = vpop.f32.mrb[0].mxu0
      %v7043 = vadd.f32 0.0, %v7042
      %v7044 = vpop.f32.mrb[0].mxu0
      %v7045 = vpop.f32.mrb[0].mxu0
      %v7046 = vadd.f32 0.0, %v7045
      %v7047 = vpop.f32.mrb[0].mxu0
      %7048 = vmatprep.mubr.bf16.mxu0 0
      %7049 = vmatmul.mubr.bf16.gmra.mrb[0].mxu0 %v6823
      %v7050 = vpop.f32.mrb[0].mxu0
      %v7051 = vadd.f32 0.0, %v7050
      %v7052 = vpop.f32.mrb[0].mxu0
      %v7053 = vpop.f32.mrb[0].mxu0
      %v7054 = vadd.f32 0.0, %v7053
      %v7055 = vpop.f32.mrb[0].mxu0
      %7056 = vmatprep.mubr.bf16.mxu0 0
      %7057 = vmatmul.mubr.bf16.gmra.mrb[0].mxu0 %v6835
      %v7058 = vpop.f32.mrb[0].mxu0
      %v7059 = vadd.f32 0.0, %v7058
      %v7060 = vpop.f32.mrb[0].mxu0
      %v7061 = vpop.f32.mrb[0].mxu0
      %v7062 = vadd.f32 0.0, %v7061
      %v7063 = vpop.f32.mrb[0].mxu0
      %7064 = vmatprep.mubr.bf16.mxu0 0
      %7065 = vmatmul.mubr.bf16.gmra.mrb[0].mxu0 %v6847
      %v7066 = vpop.f32.mrb[0].mxu0
      %v7067 = vadd.f32 0.0, %v7066
      %v7068 = vpop.f32.mrb[0].mxu0
      %v7069 = vpop.f32.mrb[0].mxu0
      %v7070 = vadd.f32 0.0, %v7069
      %v7071 = vpop.f32.mrb[0].mxu0
      %7072 = vdwg.mxu0
      %v7073 = vadd.f32 %v6575, %v6947
      %v7074 = vadd.f32 %v6576, %v6950
      %v7075 = vadd.f32 %v6577, %v6955
      %v7076 = vadd.f32 %v6578, %v6958
      %v7077 = vadd.f32 %v6579, %v6963
      %v7078 = vadd.f32 %v6580, %v6966
      %v7079 = vadd.f32 %v6581, %v6971
      %v7080 = vadd.f32 %v6582, %v6974
      %v7081 = vadd.f32 %v6583, %v6979
      %v7082 = vadd.f32 %v6584, %v6982
      %v7083 = vadd.f32 %v6585, %v6987
      %v7084 = vadd.f32 %v6586, %v6990
      %v7085 = vadd.f32 %v6587, %v6995
      %v7086 = vadd.f32 %v6588, %v6998
      %v7087 = vadd.f32 %v6589, %v7003
      %v7088 = vadd.f32 %v6590, %v7006
      %v7089 = vadd.f32 %v6591, %v7011
      %v7090 = vadd.f32 %v6592, %v7014
      %v7091 = vadd.f32 %v6593, %v7019
      %v7092 = vadd.f32 %v6594, %v7022
      %v7093 = vadd.f32 %v6595, %v7027
      %v7094 = vadd.f32 %v6596, %v7030
      %v7095 = vadd.f32 %v6597, %v7035
      %v7096 = vadd.f32 %v6598, %v7038
      %v7097 = vadd.f32 %v6599, %v7043
      %v7098 = vadd.f32 %v6600, %v7046
      %v7099 = vadd.f32 %v6601, %v7051
      %v7100 = vadd.f32 %v6602, %v7054
      %v7101 = vadd.f32 %v6603, %v7059
      %v7102 = vadd.f32 %v6604, %v7062
      %v7103 = vadd.f32 %v6605, %v7067
      %v7104 = vadd.f32 %v6606, %v7070
      %s7105 = scalar_lea.vmem %s4, 256
      %v7106 = vld [vmem:[%s7105] sm:$0xf]
      %v7107 = vld [vmem:[%s7105 + $0x4] sm:$0xf]
      %v7108 = vld [vmem:[%s7105 + $0x8] sm:$0xf]
      %v7109 = vld [vmem:[%s7105 + $0xc] sm:$0xf]
      %v7110 = vld [vmem:[%s7105 + $0x10] sm:$0xf]
      %v7111 = vld [vmem:[%s7105 + $0x14] sm:$0xf]
      %v7112 = vld [vmem:[%s7105 + $0x18] sm:$0xf]
      %v7113 = vld [vmem:[%s7105 + $0x1c] sm:$0xf]
      %v7114 = vld [vmem:[%s7105 + $0x20] sm:$0xf]
      %v7115 = vld [vmem:[%s7105 + $0x24] sm:$0xf]
      %v7116 = vld [vmem:[%s7105 + $0x28] sm:$0xf]
      %v7117 = vld [vmem:[%s7105 + $0x2c] sm:$0xf]
      %v7118 = vld [vmem:[%s7105 + $0x30] sm:$0xf]
      %v7119 = vld [vmem:[%s7105 + $0x34] sm:$0xf]
      %v7120 = vld [vmem:[%s7105 + $0x38] sm:$0xf]
      %v7121 = vld [vmem:[%s7105 + $0x3c] sm:$0xf]
      %v7138 = vunpack.c.l.b16 %v7106
      %v7139 = vunpack.c.l.b16 %v7107
      %v7140 = vunpack.c.l.b16 %v7108
      %v7141 = vunpack.c.l.b16 %v7109
      %v7142 = vunpack.c.l.b16 %v7110
      %v7143 = vunpack.c.l.b16 %v7111
      %v7144 = vunpack.c.l.b16 %v7112
      %v7145 = vunpack.c.l.b16 %v7113
      %v7146 = vunpack.c.l.b16 %v7114
      %v7147 = vunpack.c.l.b16 %v7115
      %v7148 = vunpack.c.l.b16 %v7116
      %v7149 = vunpack.c.l.b16 %v7117
      %v7150 = vunpack.c.l.b16 %v7118
      %v7151 = vunpack.c.l.b16 %v7119
      %v7152 = vunpack.c.l.b16 %v7120
      %v7153 = vunpack.c.l.b16 %v7121
      %v7154 = vpack.c.b16 %v7139, %v7138
      %v7155 = vpack.c.b16 %v7141, %v7140
      %v7156 = vpack.c.b16 %v7143, %v7142
      %v7157 = vpack.c.b16 %v7145, %v7144
      %v7158 = vpack.c.b16 %v7147, %v7146
      %v7159 = vpack.c.b16 %v7149, %v7148
      %v7160 = vpack.c.b16 %v7151, %v7150
      %v7161 = vpack.c.b16 %v7153, %v7152
      %7170 = vmatprep.subr.bf16.mxu0 0
      %7171 = vmatpush1.bf16.msra.mxu0 %v7154
      %7172 = vmatprep.subr.bf16.mxu0 0
      %7173 = vmatpush1.bf16.msra.mxu0 %v7155
      %7174 = vmatprep.subr.bf16.mxu0 0
      %7175 = vmatpush1.bf16.msra.mxu0 %v7156
      %7176 = vmatprep.subr.bf16.mxu0 0
      %7177 = vmatpush1.bf16.msra.mxu0 %v7157
      %7178 = vmatprep.subr.bf16.mxu0 0
      %7179 = vmatpush1.bf16.msra.mxu0 %v7158
      %7180 = vmatprep.subr.bf16.mxu0 0
      %7181 = vmatpush1.bf16.msra.mxu0 %v7159
      %7182 = vmatprep.subr.bf16.mxu0 0
      %7183 = vmatpush1.bf16.msra.mxu0 %v7160
      %7184 = vmatprep.subr.bf16.mxu0 0
      %7185 = vmatpush1.bf16.msra.mxu0 %v7161
      %7186 = vmatprep.subr.bf16.mxu0 0
      %7187 = vmatpush1.bf16.msra.mxu0 0
      %7188 = vmatprep.subr.bf16.mxu0 0
      %7189 = vmatpush1.bf16.msra.mxu0 0
      %7190 = vmatprep.subr.bf16.mxu0 0
      %7191 = vmatpush1.bf16.msra.mxu0 0
      %7192 = vmatprep.subr.bf16.mxu0 0
      %7193 = vmatpush1.bf16.msra.mxu0 0
      %7194 = vmatprep.subr.bf16.mxu0 0
      %7195 = vmatpush1.bf16.msra.mxu0 0
      %7196 = vmatprep.subr.bf16.mxu0 0
      %7197 = vmatpush1.bf16.msra.mxu0 0
      %7198 = vmatprep.subr.bf16.mxu0 0
      %7199 = vmatpush1.bf16.msra.mxu0 0
      %7200 = vmatprep.subr.bf16.mxu0 0
      %7201 = vmatpush1.bf16.msra.mxu0 0
      %7202 = vmatprep.mubr.bf16.mxu0 0
      %7203 = vmatmul.mubr.bf16.gmra.mrb[0].mxu0 %v6608
      %v7204 = vpop.f32.mrb[0].mxu0
      %v7205 = vadd.f32 0.0, %v7204
      %v7206 = vpop.f32.mrb[0].mxu0
      %v7207 = vpop.f32.mrb[0].mxu0
      %v7208 = vadd.f32 0.0, %v7207
      %v7209 = vpop.f32.mrb[0].mxu0
      %7210 = vmatprep.mubr.bf16.mxu0 0
      %7211 = vmatmul.mubr.bf16.gmra.mrb[0].mxu0 %v6610
      %v7212 = vpop.f32.mrb[0].mxu0
      %v7213 = vadd.f32 0.0, %v7212
      %v7214 = vpop.f32.mrb[0].mxu0
      %v7215 = vpop.f32.mrb[0].mxu0
      %v7216 = vadd.f32 0.0, %v7215
      %v7217 = vpop.f32.mrb[0].mxu0
      %7218 = vmatprep.mubr.bf16.mxu0 0
      %7219 = vmatmul.mubr.bf16.gmra.mrb[0].mxu0 %v6612
      %v7220 = vpop.f32.mrb[0].mxu0
      %v7221 = vadd.f32 0.0, %v7220
      %v7222 = vpop.f32.mrb[0].mxu0
      %v7223 = vpop.f32.mrb[0].mxu0
      %v7224 = vadd.f32 0.0, %v7223
      %v7225 = vpop.f32.mrb[0].mxu0
      %7226 = vmatprep.mubr.bf16.mxu0 0
      %7227 = vmatmul.mubr.bf16.gmra.mrb[0].mxu0 %v6614
      %v7228 = vpop.f32.mrb[0].mxu0
      %v7229 = vadd.f32 0.0, %v7228
      %v7230 = vpop.f32.mrb[0].mxu0
      %v7231 = vpop.f32.mrb[0].mxu0
      %v7232 = vadd.f32 0.0, %v7231
      %v7233 = vpop.f32.mrb[0].mxu0
      %7234 = vmatprep.mubr.bf16.mxu0 0
      %7235 = vmatmul.mubr.bf16.gmra.mrb[0].mxu0 %v6616
      %v7236 = vpop.f32.mrb[0].mxu0
      %v7237 = vadd.f32 0.0, %v7236
      %v7238 = vpop.f32.mrb[0].mxu0
      %v7239 = vpop.f32.mrb[0].mxu0
      %v7240 = vadd.f32 0.0, %v7239
      %v7241 = vpop.f32.mrb[0].mxu0
      %7242 = vmatprep.mubr.bf16.mxu0 0
      %7243 = vmatmul.mubr.bf16.gmra.mrb[0].mxu0 %v6618
      %v7244 = vpop.f32.mrb[0].mxu0
      %v7245 = vadd.f32 0.0, %v7244
      %v7246 = vpop.f32.mrb[0].mxu0
      %v7247 = vpop.f32.mrb[0].mxu0
      %v7248 = vadd.f32 0.0, %v7247
      %v7249 = vpop.f32.mrb[0].mxu0
      %7250 = vmatprep.mubr.bf16.mxu0 0
      %7251 = vmatmul.mubr.bf16.gmra.mrb[0].mxu0 %v6620
      %v7252 = vpop.f32.mrb[0].mxu0
      %v7253 = vadd.f32 0.0, %v7252
      %v7254 = vpop.f32.mrb[0].mxu0
      %v7255 = vpop.f32.mrb[0].mxu0
      %v7256 = vadd.f32 0.0, %v7255
      %v7257 = vpop.f32.mrb[0].mxu0
      %7258 = vmatprep.mubr.bf16.mxu0 0
      %7259 = vmatmul.mubr.bf16.gmra.mrb[0].mxu0 %v6622
      %v7260 = vpop.f32.mrb[0].mxu0
      %v7261 = vadd.f32 0.0, %v7260
      %v7262 = vpop.f32.mrb[0].mxu0
      %v7263 = vpop.f32.mrb[0].mxu0
      %v7264 = vadd.f32 0.0, %v7263
      %v7265 = vpop.f32.mrb[0].mxu0
      %7266 = vmatprep.mubr.bf16.mxu0 0
      %7267 = vmatmul.mubr.bf16.gmra.mrb[0].mxu0 %v6624
      %v7268 = vpop.f32.mrb[0].mxu0
      %v7269 = vadd.f32 0.0, %v7268
      %v7270 = vpop.f32.mrb[0].mxu0
      %v7271 = vpop.f32.mrb[0].mxu0
      %v7272 = vadd.f32 0.0, %v7271
      %v7273 = vpop.f32.mrb[0].mxu0
      %7274 = vmatprep.mubr.bf16.mxu0 0
      %7275 = vmatmul.mubr.bf16.gmra.mrb[0].mxu0 %v6626
      %v7276 = vpop.f32.mrb[0].mxu0
      %v7277 = vadd.f32 0.0, %v7276
      %v7278 = vpop.f32.mrb[0].mxu0
      %v7279 = vpop.f32.mrb[0].mxu0
      %v7280 = vadd.f32 0.0, %v7279
      %v7281 = vpop.f32.mrb[0].mxu0
      %7282 = vmatprep.mubr.bf16.mxu0 0
      %7283 = vmatmul.mubr.bf16.gmra.mrb[0].mxu0 %v6628
      %v7284 = vpop.f32.mrb[0].mxu0
      %v7285 = vadd.f32 0.0, %v7284
      %v7286 = vpop.f32.mrb[0].mxu0
      %v7287 = vpop.f32.mrb[0].mxu0
      %v7288 = vadd.f32 0.0, %v7287
      %v7289 = vpop.f32.mrb[0].mxu0
      %7290 = vmatprep.mubr.bf16.mxu0 0
      %7291 = vmatmul.mubr.bf16.gmra.mrb[0].mxu0 %v6630
      %v7292 = vpop.f32.mrb[0].mxu0
      %v7293 = vadd.f32 0.0, %v7292
      %v7294 = vpop.f32.mrb[0].mxu0
      %v7295 = vpop.f32.mrb[0].mxu0
      %v7296 = vadd.f32 0.0, %v7295
      %v7297 = vpop.f32.mrb[0].mxu0
      %7298 = vmatprep.mubr.bf16.mxu0 0
      %7299 = vmatmul.mubr.bf16.gmra.mrb[0].mxu0 %v6632
      %v7300 = vpop.f32.mrb[0].mxu0
      %v7301 = vadd.f32 0.0, %v7300
      %v7302 = vpop.f32.mrb[0].mxu0
      %v7303 = vpop.f32.mrb[0].mxu0
      %v7304 = vadd.f32 0.0, %v7303
      %v7305 = vpop.f32.mrb[0].mxu0
      %7306 = vmatprep.mubr.bf16.mxu0 0
      %7307 = vmatmul.mubr.bf16.gmra.mrb[0].mxu0 %v6634
      %v7308 = vpop.f32.mrb[0].mxu0
      %v7309 = vadd.f32 0.0, %v7308
      %v7310 = vpop.f32.mrb[0].mxu0
      %v7311 = vpop.f32.mrb[0].mxu0
      %v7312 = vadd.f32 0.0, %v7311
      %v7313 = vpop.f32.mrb[0].mxu0
      %7314 = vmatprep.mubr.bf16.mxu0 0
      %7315 = vmatmul.mubr.bf16.gmra.mrb[0].mxu0 %v6636
      %v7316 = vpop.f32.mrb[0].mxu0
      %v7317 = vadd.f32 0.0, %v7316
      %v7318 = vpop.f32.mrb[0].mxu0
      %v7319 = vpop.f32.mrb[0].mxu0
      %v7320 = vadd.f32 0.0, %v7319
      %v7321 = vpop.f32.mrb[0].mxu0
      %7322 = vmatprep.mubr.bf16.mxu0 0
      %7323 = vmatmul.mubr.bf16.gmra.mrb[0].mxu0 %v6638
      %v7324 = vpop.f32.mrb[0].mxu0
      %v7325 = vadd.f32 0.0, %v7324
      %v7326 = vpop.f32.mrb[0].mxu0
      %v7327 = vpop.f32.mrb[0].mxu0
      %v7328 = vadd.f32 0.0, %v7327
      %v7329 = vpop.f32.mrb[0].mxu0
      %7330 = vdwg.mxu0
      %v7331 = vadd.f32 %v7073, %v7205
      %v7332 = vadd.f32 %v7074, %v7208
      %v7333 = vadd.f32 %v7075, %v7213
      %v7334 = vadd.f32 %v7076, %v7216
      %v7335 = vadd.f32 %v7077, %v7221
      %v7336 = vadd.f32 %v7078, %v7224
      %v7337 = vadd.f32 %v7079, %v7229
      %v7338 = vadd.f32 %v7080, %v7232
      %v7339 = vadd.f32 %v7081, %v7237
      %v7340 = vadd.f32 %v7082, %v7240
      %v7341 = vadd.f32 %v7083, %v7245
      %v7342 = vadd.f32 %v7084, %v7248
      %v7343 = vadd.f32 %v7085, %v7253
      %v7344 = vadd.f32 %v7086, %v7256
      %v7345 = vadd.f32 %v7087, %v7261
      %v7346 = vadd.f32 %v7088, %v7264
      %v7347 = vadd.f32 %v7089, %v7269
      %v7348 = vadd.f32 %v7090, %v7272
      %v7349 = vadd.f32 %v7091, %v7277
      %v7350 = vadd.f32 %v7092, %v7280
      %v7351 = vadd.f32 %v7093, %v7285
      %v7352 = vadd.f32 %v7094, %v7288
      %v7353 = vadd.f32 %v7095, %v7293
      %v7354 = vadd.f32 %v7096, %v7296
      %v7355 = vadd.f32 %v7097, %v7301
      %v7356 = vadd.f32 %v7098, %v7304
      %v7357 = vadd.f32 %v7099, %v7309
      %v7358 = vadd.f32 %v7100, %v7312
      %v7359 = vadd.f32 %v7101, %v7317
      %v7360 = vadd.f32 %v7102, %v7320
      %v7361 = vadd.f32 %v7103, %v7325
      %v7362 = vadd.f32 %v7104, %v7328
      %v7363 = vld [vmem:[%s5400 + $0x8] sm:$0xff]
      %v7364 = vld [vmem:[%s5400 + $0x10] sm:$0x1]
      %v7365 = vld [vmem:[%s5400 + $0x20] sm:$0xff]
      %v7366 = vld [vmem:[%s5400 + $0x28] sm:$0x1]
      %v7367 = vld [vmem:[%s5400 + $0x38] sm:$0xff]
      %v7368 = vld [vmem:[%s5400 + $0x40] sm:$0x1]
      %v7369 = vld [vmem:[%s5400 + $0x50] sm:$0xff]
      %v7370 = vld [vmem:[%s5400 + $0x58] sm:$0x1]
      %v7371 = vld [vmem:[%s5400 + $0x68] sm:$0xff]
      %v7372 = vld [vmem:[%s5400 + $0x70] sm:$0x1]
      %v7373 = vld [vmem:[%s5400 + $0x80] sm:$0xff]
      %v7374 = vld [vmem:[%s5400 + $0x88] sm:$0x1]
      %v7375 = vld [vmem:[%s5400 + $0x98] sm:$0xff]
      %v7376 = vld [vmem:[%s5400 + $0xa0] sm:$0x1]
      %v7377 = vld [vmem:[%s5400 + $0xb0] sm:$0xff]
      %v7378 = vld [vmem:[%s5400 + $0xb8] sm:$0x1]
      %v7379 = vld [vmem:[%s5400 + $0xc8] sm:$0xff]
      %v7380 = vld [vmem:[%s5400 + $0xd0] sm:$0x1]
      %v7381 = vld [vmem:[%s5400 + $0xe0] sm:$0xff]
      %v7382 = vld [vmem:[%s5400 + $0xe8] sm:$0x1]
      %v7383 = vld [vmem:[%s5400 + $0xf8] sm:$0xff]
      %v7384 = vld [vmem:[%s5400 + $0x100] sm:$0x1]
      %v7385 = vld [vmem:[%s5400 + $0x110] sm:$0xff]
      %v7386 = vld [vmem:[%s5400 + $0x118] sm:$0x1]
      %v7387 = vld [vmem:[%s5400 + $0x128] sm:$0xff]
      %v7388 = vld [vmem:[%s5400 + $0x130] sm:$0x1]
      %v7389 = vld [vmem:[%s5400 + $0x140] sm:$0xff]
      %v7390 = vld [vmem:[%s5400 + $0x148] sm:$0x1]
      %v7391 = vld [vmem:[%s5400 + $0x158] sm:$0xff]
      %v7392 = vld [vmem:[%s5400 + $0x160] sm:$0x1]
      %v7393 = vld [vmem:[%s5400 + $0x170] sm:$0xff]
      %v7394 = vld [vmem:[%s5400 + $0x178] sm:$0x1]
      %s7395 = scalar_lea.vmem %s4, 320
      %v7396 = vld [vmem:[%s7395] sm:$0xf]
      %v7397 = vld [vmem:[%s7395 + $0x4] sm:$0xf]
      %v7398 = vld [vmem:[%s7395 + $0x8] sm:$0xf]
      %v7399 = vld [vmem:[%s7395 + $0xc] sm:$0xf]
      %v7400 = vld [vmem:[%s7395 + $0x10] sm:$0xf]
      %v7401 = vld [vmem:[%s7395 + $0x14] sm:$0xf]
      %v7402 = vld [vmem:[%s7395 + $0x18] sm:$0xf]
      %v7403 = vld [vmem:[%s7395 + $0x1c] sm:$0xf]
      %v7404 = vld [vmem:[%s7395 + $0x20] sm:$0xf]
      %v7405 = vld [vmem:[%s7395 + $0x24] sm:$0xf]
      %v7406 = vld [vmem:[%s7395 + $0x28] sm:$0xf]
      %v7407 = vld [vmem:[%s7395 + $0x2c] sm:$0xf]
      %v7408 = vld [vmem:[%s7395 + $0x30] sm:$0xf]
      %v7409 = vld [vmem:[%s7395 + $0x34] sm:$0xf]
      %v7410 = vld [vmem:[%s7395 + $0x38] sm:$0xf]
      %v7411 = vld [vmem:[%s7395 + $0x3c] sm:$0xf]
      %v7413 = vshrl.u32 %v7363, 16
      %v7415 = vshll.u32 %v7363, 16
      %v7417 = vrot.slane %v7415, 1
      %v7418 = vor.u32 %v7413, %v7417
      %v7420 = vshll.u32 %v7364, 16
      %v7422 = vrot.slane %v7420, 1
      %v7423 = vsel %vm6157, %v7418, %v7422
      %v7425 = vshrl.u32 %v7365, 16
      %v7427 = vshll.u32 %v7365, 16
      %v7429 = vrot.slane %v7427, 1
      %v7430 = vor.u32 %v7425, %v7429
      %v7432 = vshll.u32 %v7366, 16
      %v7434 = vrot.slane %v7432, 1
      %v7435 = vsel %vm6157, %v7430, %v7434
      %v7437 = vshrl.u32 %v7367, 16
      %v7439 = vshll.u32 %v7367, 16
      %v7441 = vrot.slane %v7439, 1
      %v7442 = vor.u32 %v7437, %v7441
      %v7444 = vshll.u32 %v7368, 16
      %v7446 = vrot.slane %v7444, 1
      %v7447 = vsel %vm6157, %v7442, %v7446
      %v7449 = vshrl.u32 %v7369, 16
      %v7451 = vshll.u32 %v7369, 16
      %v7453 = vrot.slane %v7451, 1
      %v7454 = vor.u32 %v7449, %v7453
      %v7456 = vshll.u32 %v7370, 16
      %v7458 = vrot.slane %v7456, 1
      %v7459 = vsel %vm6157, %v7454, %v7458
      %v7461 = vshrl.u32 %v7371, 16
      %v7463 = vshll.u32 %v7371, 16
      %v7465 = vrot.slane %v7463, 1
      %v7466 = vor.u32 %v7461, %v7465
      %v7468 = vshll.u32 %v7372, 16
      %v7470 = vrot.slane %v7468, 1
      %v7471 = vsel %vm6157, %v7466, %v7470
      %v7473 = vshrl.u32 %v7373, 16
      %v7475 = vshll.u32 %v7373, 16
      %v7477 = vrot.slane %v7475, 1
      %v7478 = vor.u32 %v7473, %v7477
      %v7480 = vshll.u32 %v7374, 16
      %v7482 = vrot.slane %v7480, 1
      %v7483 = vsel %vm6157, %v7478, %v7482
      %v7485 = vshrl.u32 %v7375, 16
      %v7487 = vshll.u32 %v7375, 16
      %v7489 = vrot.slane %v7487, 1
      %v7490 = vor.u32 %v7485, %v7489
      %v7492 = vshll.u32 %v7376, 16
      %v7494 = vrot.slane %v7492, 1
      %v7495 = vsel %vm6157, %v7490, %v7494
      %v7497 = vshrl.u32 %v7377, 16
      %v7499 = vshll.u32 %v7377, 16
      %v7501 = vrot.slane %v7499, 1
      %v7502 = vor.u32 %v7497, %v7501
      %v7504 = vshll.u32 %v7378, 16
      %v7506 = vrot.slane %v7504, 1
      %v7507 = vsel %vm6157, %v7502, %v7506
      %v7509 = vshrl.u32 %v7379, 16
      %v7511 = vshll.u32 %v7379, 16
      %v7513 = vrot.slane %v7511, 1
      %v7514 = vor.u32 %v7509, %v7513
      %v7516 = vshll.u32 %v7380, 16
      %v7518 = vrot.slane %v7516, 1
      %v7519 = vsel %vm6157, %v7514, %v7518
      %v7521 = vshrl.u32 %v7381, 16
      %v7523 = vshll.u32 %v7381, 16
      %v7525 = vrot.slane %v7523, 1
      %v7526 = vor.u32 %v7521, %v7525
      %v7528 = vshll.u32 %v7382, 16
      %v7530 = vrot.slane %v7528, 1
      %v7531 = vsel %vm6157, %v7526, %v7530
      %v7533 = vshrl.u32 %v7383, 16
      %v7535 = vshll.u32 %v7383, 16
      %v7537 = vrot.slane %v7535, 1
      %v7538 = vor.u32 %v7533, %v7537
      %v7540 = vshll.u32 %v7384, 16
      %v7542 = vrot.slane %v7540, 1
      %v7543 = vsel %vm6157, %v7538, %v7542
      %v7545 = vshrl.u32 %v7385, 16
      %v7547 = vshll.u32 %v7385, 16
      %v7549 = vrot.slane %v7547, 1
      %v7550 = vor.u32 %v7545, %v7549
      %v7552 = vshll.u32 %v7386, 16
      %v7554 = vrot.slane %v7552, 1
      %v7555 = vsel %vm6157, %v7550, %v7554
      %v7557 = vshrl.u32 %v7387, 16
      %v7559 = vshll.u32 %v7387, 16
      %v7561 = vrot.slane %v7559, 1
      %v7562 = vor.u32 %v7557, %v7561
      %v7564 = vshll.u32 %v7388, 16
      %v7566 = vrot.slane %v7564, 1
      %v7567 = vsel %vm6157, %v7562, %v7566
      %v7569 = vshrl.u32 %v7389, 16
      %v7571 = vshll.u32 %v7389, 16
      %v7573 = vrot.slane %v7571, 1
      %v7574 = vor.u32 %v7569, %v7573
      %v7576 = vshll.u32 %v7390, 16
      %v7578 = vrot.slane %v7576, 1
      %v7579 = vsel %vm6157, %v7574, %v7578
      %v7581 = vshrl.u32 %v7391, 16
      %v7583 = vshll.u32 %v7391, 16
      %v7585 = vrot.slane %v7583, 1
      %v7586 = vor.u32 %v7581, %v7585
      %v7588 = vshll.u32 %v7392, 16
      %v7590 = vrot.slane %v7588, 1
      %v7591 = vsel %vm6157, %v7586, %v7590
      %v7593 = vshrl.u32 %v7393, 16
      %v7595 = vshll.u32 %v7393, 16
      %v7597 = vrot.slane %v7595, 1
      %v7598 = vor.u32 %v7593, %v7597
      %v7600 = vshll.u32 %v7394, 16
      %v7602 = vrot.slane %v7600, 1
      %v7603 = vsel %vm6157, %v7598, %v7602
      %v7636 = vunpack.c.l.b16 %v7396
      %v7637 = vunpack.c.l.b16 %v7397
      %v7638 = vunpack.c.l.b16 %v7398
      %v7639 = vunpack.c.l.b16 %v7399
      %v7640 = vunpack.c.l.b16 %v7400
      %v7641 = vunpack.c.l.b16 %v7401
      %v7642 = vunpack.c.l.b16 %v7402
      %v7643 = vunpack.c.l.b16 %v7403
      %v7644 = vunpack.c.l.b16 %v7404
      %v7645 = vunpack.c.l.b16 %v7405
      %v7646 = vunpack.c.l.b16 %v7406
      %v7647 = vunpack.c.l.b16 %v7407
      %v7648 = vunpack.c.l.b16 %v7408
      %v7649 = vunpack.c.l.b16 %v7409
      %v7650 = vunpack.c.l.b16 %v7410
      %v7651 = vunpack.c.l.b16 %v7411
      %v7652 = vpack.c.b16 %v7637, %v7636
      %v7653 = vpack.c.b16 %v7639, %v7638
      %v7654 = vpack.c.b16 %v7641, %v7640
      %v7655 = vpack.c.b16 %v7643, %v7642
      %v7656 = vpack.c.b16 %v7645, %v7644
      %v7657 = vpack.c.b16 %v7647, %v7646
      %v7658 = vpack.c.b16 %v7649, %v7648
      %v7659 = vpack.c.b16 %v7651, %v7650
      %7668 = vmatprep.subr.bf16.mxu0 0
      %7669 = vmatpush1.bf16.msra.mxu0 %v7652
      %7670 = vmatprep.subr.bf16.mxu0 0
      %7671 = vmatpush1.bf16.msra.mxu0 %v7653
      %7672 = vmatprep.subr.bf16.mxu0 0
      %7673 = vmatpush1.bf16.msra.mxu0 %v7654
      %7674 = vmatprep.subr.bf16.mxu0 0
      %7675 = vmatpush1.bf16.msra.mxu0 %v7655
      %7676 = vmatprep.subr.bf16.mxu0 0
      %7677 = vmatpush1.bf16.msra.mxu0 %v7656
      %7678 = vmatprep.subr.bf16.mxu0 0
      %7679 = vmatpush1.bf16.msra.mxu0 %v7657
      %7680 = vmatprep.subr.bf16.mxu0 0
      %7681 = vmatpush1.bf16.msra.mxu0 %v7658
      %7682 = vmatprep.subr.bf16.mxu0 0
      %7683 = vmatpush1.bf16.msra.mxu0 %v7659
      %7684 = vmatprep.subr.bf16.mxu0 0
      %7685 = vmatpush1.bf16.msra.mxu0 0
      %7686 = vmatprep.subr.bf16.mxu0 0
      %7687 = vmatpush1.bf16.msra.mxu0 0
      %7688 = vmatprep.subr.bf16.mxu0 0
      %7689 = vmatpush1.bf16.msra.mxu0 0
      %7690 = vmatprep.subr.bf16.mxu0 0
      %7691 = vmatpush1.bf16.msra.mxu0 0
      %7692 = vmatprep.subr.bf16.mxu0 0
      %7693 = vmatpush1.bf16.msra.mxu0 0
      %7694 = vmatprep.subr.bf16.mxu0 0
      %7695 = vmatpush1.bf16.msra.mxu0 0
      %7696 = vmatprep.subr.bf16.mxu0 0
      %7697 = vmatpush1.bf16.msra.mxu0 0
      %7698 = vmatprep.subr.bf16.mxu0 0
      %7699 = vmatpush1.bf16.msra.mxu0 0
      %7700 = vmatprep.mubr.bf16.mxu0 0
      %7701 = vmatmul.mubr.bf16.gmra.mrb[0].mxu0 %v7423
      %v7702 = vpop.f32.mrb[0].mxu0
      %v7703 = vadd.f32 0.0, %v7702
      %v7704 = vpop.f32.mrb[0].mxu0
      %v7705 = vpop.f32.mrb[0].mxu0
      %v7706 = vadd.f32 0.0, %v7705
      %v7707 = vpop.f32.mrb[0].mxu0
      %7708 = vmatprep.mubr.bf16.mxu0 0
      %7709 = vmatmul.mubr.bf16.gmra.mrb[0].mxu0 %v7435
      %v7710 = vpop.f32.mrb[0].mxu0
      %v7711 = vadd.f32 0.0, %v7710
      %v7712 = vpop.f32.mrb[0].mxu0
      %v7713 = vpop.f32.mrb[0].mxu0
      %v7714 = vadd.f32 0.0, %v7713
      %v7715 = vpop.f32.mrb[0].mxu0
      %7716 = vmatprep.mubr.bf16.mxu0 0
      %7717 = vmatmul.mubr.bf16.gmra.mrb[0].mxu0 %v7447
      %v7718 = vpop.f32.mrb[0].mxu0
      %v7719 = vadd.f32 0.0, %v7718
      %v7720 = vpop.f32.mrb[0].mxu0
      %v7721 = vpop.f32.mrb[0].mxu0
      %v7722 = vadd.f32 0.0, %v7721
      %v7723 = vpop.f32.mrb[0].mxu0
      %7724 = vmatprep.mubr.bf16.mxu0 0
      %7725 = vmatmul.mubr.bf16.gmra.mrb[0].mxu0 %v7459
      %v7726 = vpop.f32.mrb[0].mxu0
      %v7727 = vadd.f32 0.0, %v7726
      %v7728 = vpop.f32.mrb[0].mxu0
      %v7729 = vpop.f32.mrb[0].mxu0
      %v7730 = vadd.f32 0.0, %v7729
      %v7731 = vpop.f32.mrb[0].mxu0
      %7732 = vmatprep.mubr.bf16.mxu0 0
      %7733 = vmatmul.mubr.bf16.gmra.mrb[0].mxu0 %v7471
      %v7734 = vpop.f32.mrb[0].mxu0
      %v7735 = vadd.f32 0.0, %v7734
      %v7736 = vpop.f32.mrb[0].mxu0
      %v7737 = vpop.f32.mrb[0].mxu0
      %v7738 = vadd.f32 0.0, %v7737
      %v7739 = vpop.f32.mrb[0].mxu0
      %7740 = vmatprep.mubr.bf16.mxu0 0
      %7741 = vmatmul.mubr.bf16.gmra.mrb[0].mxu0 %v7483
      %v7742 = vpop.f32.mrb[0].mxu0
      %v7743 = vadd.f32 0.0, %v7742
      %v7744 = vpop.f32.mrb[0].mxu0
      %v7745 = vpop.f32.mrb[0].mxu0
      %v7746 = vadd.f32 0.0, %v7745
      %v7747 = vpop.f32.mrb[0].mxu0
      %7748 = vmatprep.mubr.bf16.mxu0 0
      %7749 = vmatmul.mubr.bf16.gmra.mrb[0].mxu0 %v7495
      %v7750 = vpop.f32.mrb[0].mxu0
      %v7751 = vadd.f32 0.0, %v7750
      %v7752 = vpop.f32.mrb[0].mxu0
      %v7753 = vpop.f32.mrb[0].mxu0
      %v7754 = vadd.f32 0.0, %v7753
      %v7755 = vpop.f32.mrb[0].mxu0
      %7756 = vmatprep.mubr.bf16.mxu0 0
      %7757 = vmatmul.mubr.bf16.gmra.mrb[0].mxu0 %v7507
      %v7758 = vpop.f32.mrb[0].mxu0
      %v7759 = vadd.f32 0.0, %v7758
      %v7760 = vpop.f32.mrb[0].mxu0
      %v7761 = vpop.f32.mrb[0].mxu0
      %v7762 = vadd.f32 0.0, %v7761
      %v7763 = vpop.f32.mrb[0].mxu0
      %7764 = vmatprep.mubr.bf16.mxu0 0
      %7765 = vmatmul.mubr.bf16.gmra.mrb[0].mxu0 %v7519
      %v7766 = vpop.f32.mrb[0].mxu0
      %v7767 = vadd.f32 0.0, %v7766
      %v7768 = vpop.f32.mrb[0].mxu0
      %v7769 = vpop.f32.mrb[0].mxu0
      %v7770 = vadd.f32 0.0, %v7769
      %v7771 = vpop.f32.mrb[0].mxu0
      %7772 = vmatprep.mubr.bf16.mxu0 0
      %7773 = vmatmul.mubr.bf16.gmra.mrb[0].mxu0 %v7531
      %v7774 = vpop.f32.mrb[0].mxu0
      %v7775 = vadd.f32 0.0, %v7774
      %v7776 = vpop.f32.mrb[0].mxu0
      %v7777 = vpop.f32.mrb[0].mxu0
      %v7778 = vadd.f32 0.0, %v7777
      %v7779 = vpop.f32.mrb[0].mxu0
      %7780 = vmatprep.mubr.bf16.mxu0 0
      %7781 = vmatmul.mubr.bf16.gmra.mrb[0].mxu0 %v7543
      %v7782 = vpop.f32.mrb[0].mxu0
      %v7783 = vadd.f32 0.0, %v7782
      %v7784 = vpop.f32.mrb[0].mxu0
      %v7785 = vpop.f32.mrb[0].mxu0
      %v7786 = vadd.f32 0.0, %v7785
      %v7787 = vpop.f32.mrb[0].mxu0
      %7788 = vmatprep.mubr.bf16.mxu0 0
      %7789 = vmatmul.mubr.bf16.gmra.mrb[0].mxu0 %v7555
      %v7790 = vpop.f32.mrb[0].mxu0
      %v7791 = vadd.f32 0.0, %v7790
      %v7792 = vpop.f32.mrb[0].mxu0
      %v7793 = vpop.f32.mrb[0].mxu0
      %v7794 = vadd.f32 0.0, %v7793
      %v7795 = vpop.f32.mrb[0].mxu0
      %7796 = vmatprep.mubr.bf16.mxu0 0
      %7797 = vmatmul.mubr.bf16.gmra.mrb[0].mxu0 %v7567
      %v7798 = vpop.f32.mrb[0].mxu0
      %v7799 = vadd.f32 0.0, %v7798
      %v7800 = vpop.f32.mrb[0].mxu0
      %v7801 = vpop.f32.mrb[0].mxu0
      %v7802 = vadd.f32 0.0, %v7801
      %v7803 = vpop.f32.mrb[0].mxu0
      %7804 = vmatprep.mubr.bf16.mxu0 0
      %7805 = vmatmul.mubr.bf16.gmra.mrb[0].mxu0 %v7579
      %v7806 = vpop.f32.mrb[0].mxu0
      %v7807 = vadd.f32 0.0, %v7806
      %v7808 = vpop.f32.mrb[0].mxu0
      %v7809 = vpop.f32.mrb[0].mxu0
      %v7810 = vadd.f32 0.0, %v7809
      %v7811 = vpop.f32.mrb[0].mxu0
      %7812 = vmatprep.mubr.bf16.mxu0 0
      %7813 = vmatmul.mubr.bf16.gmra.mrb[0].mxu0 %v7591
      %v7814 = vpop.f32.mrb[0].mxu0
      %v7815 = vadd.f32 0.0, %v7814
      %v7816 = vpop.f32.mrb[0].mxu0
      %v7817 = vpop.f32.mrb[0].mxu0
      %v7818 = vadd.f32 0.0, %v7817
      %v7819 = vpop.f32.mrb[0].mxu0
      %7820 = vmatprep.mubr.bf16.mxu0 0
      %7821 = vmatmul.mubr.bf16.gmra.mrb[0].mxu0 %v7603
      %v7822 = vpop.f32.mrb[0].mxu0
      %v7823 = vadd.f32 0.0, %v7822
      %v7824 = vpop.f32.mrb[0].mxu0
      %v7825 = vpop.f32.mrb[0].mxu0
      %v7826 = vadd.f32 0.0, %v7825
      %v7827 = vpop.f32.mrb[0].mxu0
      %7828 = vdwg.mxu0
      %v7829 = vadd.f32 %v7331, %v7703
      %v7830 = vadd.f32 %v7332, %v7706
      %v7831 = vadd.f32 %v7333, %v7711
      %v7832 = vadd.f32 %v7334, %v7714
      %v7833 = vadd.f32 %v7335, %v7719
      %v7834 = vadd.f32 %v7336, %v7722
      %v7835 = vadd.f32 %v7337, %v7727
      %v7836 = vadd.f32 %v7338, %v7730
      %v7837 = vadd.f32 %v7339, %v7735
      %v7838 = vadd.f32 %v7340, %v7738
      %v7839 = vadd.f32 %v7341, %v7743
      %v7840 = vadd.f32 %v7342, %v7746
      %v7841 = vadd.f32 %v7343, %v7751
      %v7842 = vadd.f32 %v7344, %v7754
      %v7843 = vadd.f32 %v7345, %v7759
      %v7844 = vadd.f32 %v7346, %v7762
      %v7845 = vadd.f32 %v7347, %v7767
      %v7846 = vadd.f32 %v7348, %v7770
      %v7847 = vadd.f32 %v7349, %v7775
      %v7848 = vadd.f32 %v7350, %v7778
      %v7849 = vadd.f32 %v7351, %v7783
      %v7850 = vadd.f32 %v7352, %v7786
      %v7851 = vadd.f32 %v7353, %v7791
      %v7852 = vadd.f32 %v7354, %v7794
      %v7853 = vadd.f32 %v7355, %v7799
      %v7854 = vadd.f32 %v7356, %v7802
      %v7855 = vadd.f32 %v7357, %v7807
      %v7856 = vadd.f32 %v7358, %v7810
      %v7857 = vadd.f32 %v7359, %v7815
      %v7858 = vadd.f32 %v7360, %v7818
      %v7859 = vadd.f32 %v7361, %v7823
      %v7860 = vadd.f32 %v7362, %v7826
      %s7861 = scalar_lea.vmem [#allocation2], 48
      %v7862 = vld [vmem:[%s7861] sm:$0x80]
      %v7863 = vld [vmem:[%s7861 + $0x8] sm:$0xff]
      %v7864 = vld [vmem:[%s7861 + $0x18] sm:$0x80]
      %v7865 = vld [vmem:[%s7861 + $0x20] sm:$0xff]
      %v7866 = vld [vmem:[%s7861 + $0x30] sm:$0x80]
      %v7867 = vld [vmem:[%s7861 + $0x38] sm:$0xff]
      %v7868 = vld [vmem:[%s7861 + $0x48] sm:$0x80]
      %v7869 = vld [vmem:[%s7861 + $0x50] sm:$0xff]
      %v7870 = vld [vmem:[%s7861 + $0x60] sm:$0x80]
      %v7871 = vld [vmem:[%s7861 + $0x68] sm:$0xff]
      %v7872 = vld [vmem:[%s7861 + $0x78] sm:$0x80]
      %v7873 = vld [vmem:[%s7861 + $0x80] sm:$0xff]
      %v7874 = vld [vmem:[%s7861 + $0x90] sm:$0x80]
      %v7875 = vld [vmem:[%s7861 + $0x98] sm:$0xff]
      %v7876 = vld [vmem:[%s7861 + $0xa8] sm:$0x80]
      %v7877 = vld [vmem:[%s7861 + $0xb0] sm:$0xff]
      %v7878 = vld [vmem:[%s7861 + $0xc0] sm:$0x80]
      %v7879 = vld [vmem:[%s7861 + $0xc8] sm:$0xff]
      %v7880 = vld [vmem:[%s7861 + $0xd8] sm:$0x80]
      %v7881 = vld [vmem:[%s7861 + $0xe0] sm:$0xff]
      %v7882 = vld [vmem:[%s7861 + $0xf0] sm:$0x80]
      %v7883 = vld [vmem:[%s7861 + $0xf8] sm:$0xff]
      %v7884 = vld [vmem:[%s7861 + $0x108] sm:$0x80]
      %v7885 = vld [vmem:[%s7861 + $0x110] sm:$0xff]
      %v7886 = vld [vmem:[%s7861 + $0x120] sm:$0x80]
      %v7887 = vld [vmem:[%s7861 + $0x128] sm:$0xff]
      %v7888 = vld [vmem:[%s7861 + $0x138] sm:$0x80]
      %v7889 = vld [vmem:[%s7861 + $0x140] sm:$0xff]
      %v7890 = vld [vmem:[%s7861 + $0x150] sm:$0x80]
      %v7891 = vld [vmem:[%s7861 + $0x158] sm:$0xff]
      %v7892 = vld [vmem:[%s7861 + $0x168] sm:$0x80]
      %v7893 = vld [vmem:[%s7861 + $0x170] sm:$0xff]
      %s7894 = scalar_lea.vmem %s4, 384
      %v7895 = vld [vmem:[%s7894] sm:$0xf]
      %v7896 = vld [vmem:[%s7894 + $0x4] sm:$0xf]
      %v7897 = vld [vmem:[%s7894 + $0x8] sm:$0xf]
      %v7898 = vld [vmem:[%s7894 + $0xc] sm:$0xf]
      %v7899 = vld [vmem:[%s7894 + $0x10] sm:$0xf]
      %v7900 = vld [vmem:[%s7894 + $0x14] sm:$0xf]
      %v7901 = vld [vmem:[%s7894 + $0x18] sm:$0xf]
      %v7902 = vld [vmem:[%s7894 + $0x1c] sm:$0xf]
      %v7903 = vld [vmem:[%s7894 + $0x20] sm:$0xf]
      %v7904 = vld [vmem:[%s7894 + $0x24] sm:$0xf]
      %v7905 = vld [vmem:[%s7894 + $0x28] sm:$0xf]
      %v7906 = vld [vmem:[%s7894 + $0x2c] sm:$0xf]
      %v7907 = vld [vmem:[%s7894 + $0x30] sm:$0xf]
      %v7908 = vld [vmem:[%s7894 + $0x34] sm:$0xf]
      %v7909 = vld [vmem:[%s7894 + $0x38] sm:$0xf]
      %v7910 = vld [vmem:[%s7894 + $0x3c] sm:$0xf]
      %v7912 = vshrl.u32 %v7862, 16
      %v7914 = vrot.slane %v7912, 7
      %v7916 = vshrl.u32 %v7863, 16
      %v7918 = vrot.slane %v7916, 7
      %v7919 = vshll.u32 %v7863, 16
      %v7921 = vor.u32 %v7918, %v7919
      %v7922 = vsel %vm5328, %v7914, %v7921
      %v7924 = vshrl.u32 %v7864, 16
      %v7926 = vrot.slane %v7924, 7
      %v7928 = vshrl.u32 %v7865, 16
      %v7930 = vrot.slane %v7928, 7
      %v7931 = vshll.u32 %v7865, 16
      %v7933 = vor.u32 %v7930, %v7931
      %v7934 = vsel %vm5328, %v7926, %v7933
      %v7936 = vshrl.u32 %v7866, 16
      %v7938 = vrot.slane %v7936, 7
      %v7940 = vshrl.u32 %v7867, 16
      %v7942 = vrot.slane %v7940, 7
      %v7943 = vshll.u32 %v7867, 16
      %v7945 = vor.u32 %v7942, %v7943
      %v7946 = vsel %vm5328, %v7938, %v7945
      %v7948 = vshrl.u32 %v7868, 16
      %v7950 = vrot.slane %v7948, 7
      %v7952 = vshrl.u32 %v7869, 16
      %v7954 = vrot.slane %v7952, 7
      %v7955 = vshll.u32 %v7869, 16
      %v7957 = vor.u32 %v7954, %v7955
      %v7958 = vsel %vm5328, %v7950, %v7957
      %v7960 = vshrl.u32 %v7870, 16
      %v7962 = vrot.slane %v7960, 7
      %v7964 = vshrl.u32 %v7871, 16
      %v7966 = vrot.slane %v7964, 7
      %v7967 = vshll.u32 %v7871, 16
      %v7969 = vor.u32 %v7966, %v7967
      %v7970 = vsel %vm5328, %v7962, %v7969
      %v7972 = vshrl.u32 %v7872, 16
      %v7974 = vrot.slane %v7972, 7
      %v7976 = vshrl.u32 %v7873, 16
      %v7978 = vrot.slane %v7976, 7
      %v7979 = vshll.u32 %v7873, 16
      %v7981 = vor.u32 %v7978, %v7979
      %v7982 = vsel %vm5328, %v7974, %v7981
      %v7984 = vshrl.u32 %v7874, 16
      %v7986 = vrot.slane %v7984, 7
      %v7988 = vshrl.u32 %v7875, 16
      %v7990 = vrot.slane %v7988, 7
      %v7991 = vshll.u32 %v7875, 16
      %v7993 = vor.u32 %v7990, %v7991
      %v7994 = vsel %vm5328, %v7986, %v7993
      %v7996 = vshrl.u32 %v7876, 16
      %v7998 = vrot.slane %v7996, 7
      %v8000 = vshrl.u32 %v7877, 16
      %v8002 = vrot.slane %v8000, 7
      %v8003 = vshll.u32 %v7877, 16
      %v8005 = vor.u32 %v8002, %v8003
      %v8006 = vsel %vm5328, %v7998, %v8005
      %v8008 = vshrl.u32 %v7878, 16
      %v8010 = vrot.slane %v8008, 7
      %v8012 = vshrl.u32 %v7879, 16
      %v8014 = vrot.slane %v8012, 7
      %v8015 = vshll.u32 %v7879, 16
      %v8017 = vor.u32 %v8014, %v8015
      %v8018 = vsel %vm5328, %v8010, %v8017
      %v8020 = vshrl.u32 %v7880, 16
      %v8022 = vrot.slane %v8020, 7
      %v8024 = vshrl.u32 %v7881, 16
      %v8026 = vrot.slane %v8024, 7
      %v8027 = vshll.u32 %v7881, 16
      %v8029 = vor.u32 %v8026, %v8027
      %v8030 = vsel %vm5328, %v8022, %v8029
      %v8032 = vshrl.u32 %v7882, 16
      %v8034 = vrot.slane %v8032, 7
      %v8036 = vshrl.u32 %v7883, 16
      %v8038 = vrot.slane %v8036, 7
      %v8039 = vshll.u32 %v7883, 16
      %v8041 = vor.u32 %v8038, %v8039
      %v8042 = vsel %vm5328, %v8034, %v8041
      %v8044 = vshrl.u32 %v7884, 16
      %v8046 = vrot.slane %v8044, 7
      %v8048 = vshrl.u32 %v7885, 16
      %v8050 = vrot.slane %v8048, 7
      %v8051 = vshll.u32 %v7885, 16
      %v8053 = vor.u32 %v8050, %v8051
      %v8054 = vsel %vm5328, %v8046, %v8053
      %v8056 = vshrl.u32 %v7886, 16
      %v8058 = vrot.slane %v8056, 7
      %v8060 = vshrl.u32 %v7887, 16
      %v8062 = vrot.slane %v8060, 7
      %v8063 = vshll.u32 %v7887, 16
      %v8065 = vor.u32 %v8062, %v8063
      %v8066 = vsel %vm5328, %v8058, %v8065
      %v8068 = vshrl.u32 %v7888, 16
      %v8070 = vrot.slane %v8068, 7
      %v8072 = vshrl.u32 %v7889, 16
      %v8074 = vrot.slane %v8072, 7
      %v8075 = vshll.u32 %v7889, 16
      %v8077 = vor.u32 %v8074, %v8075
      %v8078 = vsel %vm5328, %v8070, %v8077
      %v8080 = vshrl.u32 %v7890, 16
      %v8082 = vrot.slane %v8080, 7
      %v8084 = vshrl.u32 %v7891, 16
      %v8086 = vrot.slane %v8084, 7
      %v8087 = vshll.u32 %v7891, 16
      %v8089 = vor.u32 %v8086, %v8087
      %v8090 = vsel %vm5328, %v8082, %v8089
      %v8092 = vshrl.u32 %v7892, 16
      %v8094 = vrot.slane %v8092, 7
      %v8096 = vshrl.u32 %v7893, 16
      %v8098 = vrot.slane %v8096, 7
      %v8099 = vshll.u32 %v7893, 16
      %v8101 = vor.u32 %v8098, %v8099
      %v8102 = vsel %vm5328, %v8094, %v8101
      %v8135 = vunpack.c.l.b16 %v7895
      %v8136 = vunpack.c.l.b16 %v7896
      %v8137 = vunpack.c.l.b16 %v7897
      %v8138 = vunpack.c.l.b16 %v7898
      %v8139 = vunpack.c.l.b16 %v7899
      %v8140 = vunpack.c.l.b16 %v7900
      %v8141 = vunpack.c.l.b16 %v7901
      %v8142 = vunpack.c.l.b16 %v7902
      %v8143 = vunpack.c.l.b16 %v7903
      %v8144 = vunpack.c.l.b16 %v7904
      %v8145 = vunpack.c.l.b16 %v7905
      %v8146 = vunpack.c.l.b16 %v7906
      %v8147 = vunpack.c.l.b16 %v7907
      %v8148 = vunpack.c.l.b16 %v7908
      %v8149 = vunpack.c.l.b16 %v7909
      %v8150 = vunpack.c.l.b16 %v7910
      %v8151 = vpack.c.b16 %v8136, %v8135
      %v8152 = vpack.c.b16 %v8138, %v8137
      %v8153 = vpack.c.b16 %v8140, %v8139
      %v8154 = vpack.c.b16 %v8142, %v8141
      %v8155 = vpack.c.b16 %v8144, %v8143
      %v8156 = vpack.c.b16 %v8146, %v8145
      %v8157 = vpack.c.b16 %v8148, %v8147
      %v8158 = vpack.c.b16 %v8150, %v8149
      %8167 = vmatprep.subr.bf16.mxu0 0
      %8168 = vmatpush1.bf16.msra.mxu0 %v8151
      %8169 = vmatprep.subr.bf16.mxu0 0
      %8170 = vmatpush1.bf16.msra.mxu0 %v8152
      %8171 = vmatprep.subr.bf16.mxu0 0
      %8172 = vmatpush1.bf16.msra.mxu0 %v8153
      %8173 = vmatprep.subr.bf16.mxu0 0
      %8174 = vmatpush1.bf16.msra.mxu0 %v8154
      %8175 = vmatprep.subr.bf16.mxu0 0
      %8176 = vmatpush1.bf16.msra.mxu0 %v8155
      %8177 = vmatprep.subr.bf16.mxu0 0
      %8178 = vmatpush1.bf16.msra.mxu0 %v8156
      %8179 = vmatprep.subr.bf16.mxu0 0
      %8180 = vmatpush1.bf16.msra.mxu0 %v8157
      %8181 = vmatprep.subr.bf16.mxu0 0
      %8182 = vmatpush1.bf16.msra.mxu0 %v8158
      %8183 = vmatprep.subr.bf16.mxu0 0
      %8184 = vmatpush1.bf16.msra.mxu0 0
      %8185 = vmatprep.subr.bf16.mxu0 0
      %8186 = vmatpush1.bf16.msra.mxu0 0
      %8187 = vmatprep.subr.bf16.mxu0 0
      %8188 = vmatpush1.bf16.msra.mxu0 0
      %8189 = vmatprep.subr.bf16.mxu0 0
      %8190 = vmatpush1.bf16.msra.mxu0 0
      %8191 = vmatprep.subr.bf16.mxu0 0
      %8192 = vmatpush1.bf16.msra.mxu0 0
      %8193 = vmatprep.subr.bf16.mxu0 0
      %8194 = vmatpush1.bf16.msra.mxu0 0
      %8195 = vmatprep.subr.bf16.mxu0 0
      %8196 = vmatpush1.bf16.msra.mxu0 0
      %8197 = vmatprep.subr.bf16.mxu0 0
      %8198 = vmatpush1.bf16.msra.mxu0 0
      %8199 = vmatprep.mubr.bf16.mxu0 0
      %8200 = vmatmul.mubr.bf16.gmra.mrb[0].mxu0 %v7922
      %v8201 = vpop.f32.mrb[0].mxu0
      %v8202 = vadd.f32 0.0, %v8201
      %v8203 = vpop.f32.mrb[0].mxu0
      %v8204 = vpop.f32.mrb[0].mxu0
      %v8205 = vadd.f32 0.0, %v8204
      %v8206 = vpop.f32.mrb[0].mxu0
      %8207 = vmatprep.mubr.bf16.mxu0 0
      %8208 = vmatmul.mubr.bf16.gmra.mrb[0].mxu0 %v7934
      %v8209 = vpop.f32.mrb[0].mxu0
      %v8210 = vadd.f32 0.0, %v8209
      %v8211 = vpop.f32.mrb[0].mxu0
      %v8212 = vpop.f32.mrb[0].mxu0
      %v8213 = vadd.f32 0.0, %v8212
      %v8214 = vpop.f32.mrb[0].mxu0
      %8215 = vmatprep.mubr.bf16.mxu0 0
      %8216 = vmatmul.mubr.bf16.gmra.mrb[0].mxu0 %v7946
      %v8217 = vpop.f32.mrb[0].mxu0
      %v8218 = vadd.f32 0.0, %v8217
      %v8219 = vpop.f32.mrb[0].mxu0
      %v8220 = vpop.f32.mrb[0].mxu0
      %v8221 = vadd.f32 0.0, %v8220
      %v8222 = vpop.f32.mrb[0].mxu0
      %8223 = vmatprep.mubr.bf16.mxu0 0
      %8224 = vmatmul.mubr.bf16.gmra.mrb[0].mxu0 %v7958
      %v8225 = vpop.f32.mrb[0].mxu0
      %v8226 = vadd.f32 0.0, %v8225
      %v8227 = vpop.f32.mrb[0].mxu0
      %v8228 = vpop.f32.mrb[0].mxu0
      %v8229 = vadd.f32 0.0, %v8228
      %v8230 = vpop.f32.mrb[0].mxu0
      %8231 = vmatprep.mubr.bf16.mxu0 0
      %8232 = vmatmul.mubr.bf16.gmra.mrb[0].mxu0 %v7970
      %v8233 = vpop.f32.mrb[0].mxu0
      %v8234 = vadd.f32 0.0, %v8233
      %v8235 = vpop.f32.mrb[0].mxu0
      %v8236 = vpop.f32.mrb[0].mxu0
      %v8237 = vadd.f32 0.0, %v8236
      %v8238 = vpop.f32.mrb[0].mxu0
      %8239 = vmatprep.mubr.bf16.mxu0 0
      %8240 = vmatmul.mubr.bf16.gmra.mrb[0].mxu0 %v7982
      %v8241 = vpop.f32.mrb[0].mxu0
      %v8242 = vadd.f32 0.0, %v8241
      %v8243 = vpop.f32.mrb[0].mxu0
      %v8244 = vpop.f32.mrb[0].mxu0
      %v8245 = vadd.f32 0.0, %v8244
      %v8246 = vpop.f32.mrb[0].mxu0
      %8247 = vmatprep.mubr.bf16.mxu0 0
      %8248 = vmatmul.mubr.bf16.gmra.mrb[0].mxu0 %v7994
      %v8249 = vpop.f32.mrb[0].mxu0
      %v8250 = vadd.f32 0.0, %v8249
      %v8251 = vpop.f32.mrb[0].mxu0
      %v8252 = vpop.f32.mrb[0].mxu0
      %v8253 = vadd.f32 0.0, %v8252
      %v8254 = vpop.f32.mrb[0].mxu0
      %8255 = vmatprep.mubr.bf16.mxu0 0
      %8256 = vmatmul.mubr.bf16.gmra.mrb[0].mxu0 %v8006
      %v8257 = vpop.f32.mrb[0].mxu0
      %v8258 = vadd.f32 0.0, %v8257
      %v8259 = vpop.f32.mrb[0].mxu0
      %v8260 = vpop.f32.mrb[0].mxu0
      %v8261 = vadd.f32 0.0, %v8260
      %v8262 = vpop.f32.mrb[0].mxu0
      %8263 = vmatprep.mubr.bf16.mxu0 0
      %8264 = vmatmul.mubr.bf16.gmra.mrb[0].mxu0 %v8018
      %v8265 = vpop.f32.mrb[0].mxu0
      %v8266 = vadd.f32 0.0, %v8265
      %v8267 = vpop.f32.mrb[0].mxu0
      %v8268 = vpop.f32.mrb[0].mxu0
      %v8269 = vadd.f32 0.0, %v8268
      %v8270 = vpop.f32.mrb[0].mxu0
      %8271 = vmatprep.mubr.bf16.mxu0 0
      %8272 = vmatmul.mubr.bf16.gmra.mrb[0].mxu0 %v8030
      %v8273 = vpop.f32.mrb[0].mxu0
      %v8274 = vadd.f32 0.0, %v8273
      %v8275 = vpop.f32.mrb[0].mxu0
      %v8276 = vpop.f32.mrb[0].mxu0
      %v8277 = vadd.f32 0.0, %v8276
      %v8278 = vpop.f32.mrb[0].mxu0
      %8279 = vmatprep.mubr.bf16.mxu0 0
      %8280 = vmatmul.mubr.bf16.gmra.mrb[0].mxu0 %v8042
      %v8281 = vpop.f32.mrb[0].mxu0
      %v8282 = vadd.f32 0.0, %v8281
      %v8283 = vpop.f32.mrb[0].mxu0
      %v8284 = vpop.f32.mrb[0].mxu0
      %v8285 = vadd.f32 0.0, %v8284
      %v8286 = vpop.f32.mrb[0].mxu0
      %8287 = vmatprep.mubr.bf16.mxu0 0
      %8288 = vmatmul.mubr.bf16.gmra.mrb[0].mxu0 %v8054
      %v8289 = vpop.f32.mrb[0].mxu0
      %v8290 = vadd.f32 0.0, %v8289
      %v8291 = vpop.f32.mrb[0].mxu0
      %v8292 = vpop.f32.mrb[0].mxu0
      %v8293 = vadd.f32 0.0, %v8292
      %v8294 = vpop.f32.mrb[0].mxu0
      %8295 = vmatprep.mubr.bf16.mxu0 0
      %8296 = vmatmul.mubr.bf16.gmra.mrb[0].mxu0 %v8066
      %v8297 = vpop.f32.mrb[0].mxu0
      %v8298 = vadd.f32 0.0, %v8297
      %v8299 = vpop.f32.mrb[0].mxu0
      %v8300 = vpop.f32.mrb[0].mxu0
      %v8301 = vadd.f32 0.0, %v8300
      %v8302 = vpop.f32.mrb[0].mxu0
      %8303 = vmatprep.mubr.bf16.mxu0 0
      %8304 = vmatmul.mubr.bf16.gmra.mrb[0].mxu0 %v8078
      %v8305 = vpop.f32.mrb[0].mxu0
      %v8306 = vadd.f32 0.0, %v8305
      %v8307 = vpop.f32.mrb[0].mxu0
      %v8308 = vpop.f32.mrb[0].mxu0
      %v8309 = vadd.f32 0.0, %v8308
      %v8310 = vpop.f32.mrb[0].mxu0
      %8311 = vmatprep.mubr.bf16.mxu0 0
      %8312 = vmatmul.mubr.bf16.gmra.mrb[0].mxu0 %v8090
      %v8313 = vpop.f32.mrb[0].mxu0
      %v8314 = vadd.f32 0.0, %v8313
      %v8315 = vpop.f32.mrb[0].mxu0
      %v8316 = vpop.f32.mrb[0].mxu0
      %v8317 = vadd.f32 0.0, %v8316
      %v8318 = vpop.f32.mrb[0].mxu0
      %8319 = vmatprep.mubr.bf16.mxu0 0
      %8320 = vmatmul.mubr.bf16.gmra.mrb[0].mxu0 %v8102
      %v8321 = vpop.f32.mrb[0].mxu0
      %v8322 = vadd.f32 0.0, %v8321
      %v8323 = vpop.f32.mrb[0].mxu0
      %v8324 = vpop.f32.mrb[0].mxu0
      %v8325 = vadd.f32 0.0, %v8324
      %v8326 = vpop.f32.mrb[0].mxu0
      %8327 = vdwg.mxu0
      %v8328 = vadd.f32 %v7829, %v8202
      %v8329 = vadd.f32 %v7830, %v8205
      %v8330 = vadd.f32 %v7831, %v8210
      %v8331 = vadd.f32 %v7832, %v8213
      %v8332 = vadd.f32 %v7833, %v8218
      %v8333 = vadd.f32 %v7834, %v8221
      %v8334 = vadd.f32 %v7835, %v8226
      %v8335 = vadd.f32 %v7836, %v8229
      %v8336 = vadd.f32 %v7837, %v8234
      %v8337 = vadd.f32 %v7838, %v8237
      %v8338 = vadd.f32 %v7839, %v8242
      %v8339 = vadd.f32 %v7840, %v8245
      %v8340 = vadd.f32 %v7841, %v8250
      %v8341 = vadd.f32 %v7842, %v8253
      %v8342 = vadd.f32 %v7843, %v8258
      %v8343 = vadd.f32 %v7844, %v8261
      %v8344 = vadd.f32 %v7845, %v8266
      %v8345 = vadd.f32 %v7846, %v8269
      %v8346 = vadd.f32 %v7847, %v8274
      %v8347 = vadd.f32 %v7848, %v8277
      %v8348 = vadd.f32 %v7849, %v8282
      %v8349 = vadd.f32 %v7850, %v8285
      %v8350 = vadd.f32 %v7851, %v8290
      %v8351 = vadd.f32 %v7852, %v8293
      %v8352 = vadd.f32 %v7853, %v8298
      %v8353 = vadd.f32 %v7854, %v8301
      %v8354 = vadd.f32 %v7855, %v8306
      %v8355 = vadd.f32 %v7856, %v8309
      %v8356 = vadd.f32 %v7857, %v8314
      %v8357 = vadd.f32 %v7858, %v8317
      %v8358 = vadd.f32 %v7859, %v8322
      %v8359 = vadd.f32 %v7860, %v8325
      %s8360 = scalar_lea.vmem %s4, 448
      %v8361 = vld [vmem:[%s8360] sm:$0xf]
      %v8362 = vld [vmem:[%s8360 + $0x4] sm:$0xf]
      %v8363 = vld [vmem:[%s8360 + $0x8] sm:$0xf]
      %v8364 = vld [vmem:[%s8360 + $0xc] sm:$0xf]
      %v8365 = vld [vmem:[%s8360 + $0x10] sm:$0xf]
      %v8366 = vld [vmem:[%s8360 + $0x14] sm:$0xf]
      %v8367 = vld [vmem:[%s8360 + $0x18] sm:$0xf]
      %v8368 = vld [vmem:[%s8360 + $0x1c] sm:$0xf]
      %v8369 = vld [vmem:[%s8360 + $0x20] sm:$0xf]
      %v8370 = vld [vmem:[%s8360 + $0x24] sm:$0xf]
      %v8371 = vld [vmem:[%s8360 + $0x28] sm:$0xf]
      %v8372 = vld [vmem:[%s8360 + $0x2c] sm:$0xf]
      %v8373 = vld [vmem:[%s8360 + $0x30] sm:$0xf]
      %v8374 = vld [vmem:[%s8360 + $0x34] sm:$0xf]
      %v8375 = vld [vmem:[%s8360 + $0x38] sm:$0xf]
      %v8376 = vld [vmem:[%s8360 + $0x3c] sm:$0xf]
      %v8393 = vunpack.c.l.b16 %v8361
      %v8394 = vunpack.c.l.b16 %v8362
      %v8395 = vunpack.c.l.b16 %v8363
      %v8396 = vunpack.c.l.b16 %v8364
      %v8397 = vunpack.c.l.b16 %v8365
      %v8398 = vunpack.c.l.b16 %v8366
      %v8399 = vunpack.c.l.b16 %v8367
      %v8400 = vunpack.c.l.b16 %v8368
      %v8401 = vunpack.c.l.b16 %v8369
      %v8402 = vunpack.c.l.b16 %v8370
      %v8403 = vunpack.c.l.b16 %v8371
      %v8404 = vunpack.c.l.b16 %v8372
      %v8405 = vunpack.c.l.b16 %v8373
      %v8406 = vunpack.c.l.b16 %v8374
      %v8407 = vunpack.c.l.b16 %v8375
      %v8408 = vunpack.c.l.b16 %v8376
      %v8409 = vpack.c.b16 %v8394, %v8393
      %v8410 = vpack.c.b16 %v8396, %v8395
      %v8411 = vpack.c.b16 %v8398, %v8397
      %v8412 = vpack.c.b16 %v8400, %v8399
      %v8413 = vpack.c.b16 %v8402, %v8401
      %v8414 = vpack.c.b16 %v8404, %v8403
      %v8415 = vpack.c.b16 %v8406, %v8405
      %v8416 = vpack.c.b16 %v8408, %v8407
      %8425 = vmatprep.subr.bf16.mxu0 0
      %8426 = vmatpush1.bf16.msra.mxu0 %v8409
      %8427 = vmatprep.subr.bf16.mxu0 0
      %8428 = vmatpush1.bf16.msra.mxu0 %v8410
      %8429 = vmatprep.subr.bf16.mxu0 0
      %8430 = vmatpush1.bf16.msra.mxu0 %v8411
      %8431 = vmatprep.subr.bf16.mxu0 0
      %8432 = vmatpush1.bf16.msra.mxu0 %v8412
      %8433 = vmatprep.subr.bf16.mxu0 0
      %8434 = vmatpush1.bf16.msra.mxu0 %v8413
      %8435 = vmatprep.subr.bf16.mxu0 0
      %8436 = vmatpush1.bf16.msra.mxu0 %v8414
      %8437 = vmatprep.subr.bf16.mxu0 0
      %8438 = vmatpush1.bf16.msra.mxu0 %v8415
      %8439 = vmatprep.subr.bf16.mxu0 0
      %8440 = vmatpush1.bf16.msra.mxu0 %v8416
      %8441 = vmatprep.subr.bf16.mxu0 0
      %8442 = vmatpush1.bf16.msra.mxu0 0
      %8443 = vmatprep.subr.bf16.mxu0 0
      %8444 = vmatpush1.bf16.msra.mxu0 0
      %8445 = vmatprep.subr.bf16.mxu0 0
      %8446 = vmatpush1.bf16.msra.mxu0 0
      %8447 = vmatprep.subr.bf16.mxu0 0
      %8448 = vmatpush1.bf16.msra.mxu0 0
      %8449 = vmatprep.subr.bf16.mxu0 0
      %8450 = vmatpush1.bf16.msra.mxu0 0
      %8451 = vmatprep.subr.bf16.mxu0 0
      %8452 = vmatpush1.bf16.msra.mxu0 0
      %8453 = vmatprep.subr.bf16.mxu0 0
      %8454 = vmatpush1.bf16.msra.mxu0 0
      %8455 = vmatprep.subr.bf16.mxu0 0
      %8456 = vmatpush1.bf16.msra.mxu0 0
      %8457 = vmatprep.mubr.bf16.mxu0 0
      %8458 = vmatmul.mubr.bf16.gmra.mrb[0].mxu0 %v7863
      %v8459 = vpop.f32.mrb[0].mxu0
      %v8460 = vadd.f32 0.0, %v8459
      %v8461 = vpop.f32.mrb[0].mxu0
      %v8462 = vpop.f32.mrb[0].mxu0
      %v8463 = vadd.f32 0.0, %v8462
      %v8464 = vpop.f32.mrb[0].mxu0
      %8465 = vmatprep.mubr.bf16.mxu0 0
      %8466 = vmatmul.mubr.bf16.gmra.mrb[0].mxu0 %v7865
      %v8467 = vpop.f32.mrb[0].mxu0
      %v8468 = vadd.f32 0.0, %v8467
      %v8469 = vpop.f32.mrb[0].mxu0
      %v8470 = vpop.f32.mrb[0].mxu0
      %v8471 = vadd.f32 0.0, %v8470
      %v8472 = vpop.f32.mrb[0].mxu0
      %8473 = vmatprep.mubr.bf16.mxu0 0
      %8474 = vmatmul.mubr.bf16.gmra.mrb[0].mxu0 %v7867
      %v8475 = vpop.f32.mrb[0].mxu0
      %v8476 = vadd.f32 0.0, %v8475
      %v8477 = vpop.f32.mrb[0].mxu0
      %v8478 = vpop.f32.mrb[0].mxu0
      %v8479 = vadd.f32 0.0, %v8478
      %v8480 = vpop.f32.mrb[0].mxu0
      %8481 = vmatprep.mubr.bf16.mxu0 0
      %8482 = vmatmul.mubr.bf16.gmra.mrb[0].mxu0 %v7869
      %v8483 = vpop.f32.mrb[0].mxu0
      %v8484 = vadd.f32 0.0, %v8483
      %v8485 = vpop.f32.mrb[0].mxu0
      %v8486 = vpop.f32.mrb[0].mxu0
      %v8487 = vadd.f32 0.0, %v8486
      %v8488 = vpop.f32.mrb[0].mxu0
      %8489 = vmatprep.mubr.bf16.mxu0 0
      %8490 = vmatmul.mubr.bf16.gmra.mrb[0].mxu0 %v7871
      %v8491 = vpop.f32.mrb[0].mxu0
      %v8492 = vadd.f32 0.0, %v8491
      %v8493 = vpop.f32.mrb[0].mxu0
      %v8494 = vpop.f32.mrb[0].mxu0
      %v8495 = vadd.f32 0.0, %v8494
      %v8496 = vpop.f32.mrb[0].mxu0
      %8497 = vmatprep.mubr.bf16.mxu0 0
      %8498 = vmatmul.mubr.bf16.gmra.mrb[0].mxu0 %v7873
      %v8499 = vpop.f32.mrb[0].mxu0
      %v8500 = vadd.f32 0.0, %v8499
      %v8501 = vpop.f32.mrb[0].mxu0
      %v8502 = vpop.f32.mrb[0].mxu0
      %v8503 = vadd.f32 0.0, %v8502
      %v8504 = vpop.f32.mrb[0].mxu0
      %8505 = vmatprep.mubr.bf16.mxu0 0
      %8506 = vmatmul.mubr.bf16.gmra.mrb[0].mxu0 %v7875
      %v8507 = vpop.f32.mrb[0].mxu0
      %v8508 = vadd.f32 0.0, %v8507
      %v8509 = vpop.f32.mrb[0].mxu0
      %v8510 = vpop.f32.mrb[0].mxu0
      %v8511 = vadd.f32 0.0, %v8510
      %v8512 = vpop.f32.mrb[0].mxu0
      %8513 = vmatprep.mubr.bf16.mxu0 0
      %8514 = vmatmul.mubr.bf16.gmra.mrb[0].mxu0 %v7877
      %v8515 = vpop.f32.mrb[0].mxu0
      %v8516 = vadd.f32 0.0, %v8515
      %v8517 = vpop.f32.mrb[0].mxu0
      %v8518 = vpop.f32.mrb[0].mxu0
      %v8519 = vadd.f32 0.0, %v8518
      %v8520 = vpop.f32.mrb[0].mxu0
      %8521 = vmatprep.mubr.bf16.mxu0 0
      %8522 = vmatmul.mubr.bf16.gmra.mrb[0].mxu0 %v7879
      %v8523 = vpop.f32.mrb[0].mxu0
      %v8524 = vadd.f32 0.0, %v8523
      %v8525 = vpop.f32.mrb[0].mxu0
      %v8526 = vpop.f32.mrb[0].mxu0
      %v8527 = vadd.f32 0.0, %v8526
      %v8528 = vpop.f32.mrb[0].mxu0
      %8529 = vmatprep.mubr.bf16.mxu0 0
      %8530 = vmatmul.mubr.bf16.gmra.mrb[0].mxu0 %v7881
      %v8531 = vpop.f32.mrb[0].mxu0
      %v8532 = vadd.f32 0.0, %v8531
      %v8533 = vpop.f32.mrb[0].mxu0
      %v8534 = vpop.f32.mrb[0].mxu0
      %v8535 = vadd.f32 0.0, %v8534
      %v8536 = vpop.f32.mrb[0].mxu0
      %8537 = vmatprep.mubr.bf16.mxu0 0
      %8538 = vmatmul.mubr.bf16.gmra.mrb[0].mxu0 %v7883
      %v8539 = vpop.f32.mrb[0].mxu0
      %v8540 = vadd.f32 0.0, %v8539
      %v8541 = vpop.f32.mrb[0].mxu0
      %v8542 = vpop.f32.mrb[0].mxu0
      %v8543 = vadd.f32 0.0, %v8542
      %v8544 = vpop.f32.mrb[0].mxu0
      %8545 = vmatprep.mubr.bf16.mxu0 0
      %8546 = vmatmul.mubr.bf16.gmra.mrb[0].mxu0 %v7885
      %v8547 = vpop.f32.mrb[0].mxu0
      %v8548 = vadd.f32 0.0, %v8547
      %v8549 = vpop.f32.mrb[0].mxu0
      %v8550 = vpop.f32.mrb[0].mxu0
      %v8551 = vadd.f32 0.0, %v8550
      %v8552 = vpop.f32.mrb[0].mxu0
      %8553 = vmatprep.mubr.bf16.mxu0 0
      %8554 = vmatmul.mubr.bf16.gmra.mrb[0].mxu0 %v7887
      %v8555 = vpop.f32.mrb[0].mxu0
      %v8556 = vadd.f32 0.0, %v8555
      %v8557 = vpop.f32.mrb[0].mxu0
      %v8558 = vpop.f32.mrb[0].mxu0
      %v8559 = vadd.f32 0.0, %v8558
      %v8560 = vpop.f32.mrb[0].mxu0
      %8561 = vmatprep.mubr.bf16.mxu0 0
      %8562 = vmatmul.mubr.bf16.gmra.mrb[0].mxu0 %v7889
      %v8563 = vpop.f32.mrb[0].mxu0
      %v8564 = vadd.f32 0.0, %v8563
      %v8565 = vpop.f32.mrb[0].mxu0
      %v8566 = vpop.f32.mrb[0].mxu0
      %v8567 = vadd.f32 0.0, %v8566
      %v8568 = vpop.f32.mrb[0].mxu0
      %8569 = vmatprep.mubr.bf16.mxu0 0
      %8570 = vmatmul.mubr.bf16.gmra.mrb[0].mxu0 %v7891
      %v8571 = vpop.f32.mrb[0].mxu0
      %v8572 = vadd.f32 0.0, %v8571
      %v8573 = vpop.f32.mrb[0].mxu0
      %v8574 = vpop.f32.mrb[0].mxu0
      %v8575 = vadd.f32 0.0, %v8574
      %v8576 = vpop.f32.mrb[0].mxu0
      %8577 = vmatprep.mubr.bf16.mxu0 0
      %8578 = vmatmul.mubr.bf16.gmra.mrb[0].mxu0 %v7893
      %v8579 = vpop.f32.mrb[0].mxu0
      %v8580 = vadd.f32 0.0, %v8579
      %v8581 = vpop.f32.mrb[0].mxu0
      %v8582 = vpop.f32.mrb[0].mxu0
      %v8583 = vadd.f32 0.0, %v8582
      %v8584 = vpop.f32.mrb[0].mxu0
      %8585 = vdwg.mxu0
      %v8586 = vadd.f32 %v8328, %v8460
      %v8587 = vadd.f32 %v8329, %v8463
      %v8588 = vadd.f32 %v8330, %v8468
      %v8589 = vadd.f32 %v8331, %v8471
      %v8590 = vadd.f32 %v8332, %v8476
      %v8591 = vadd.f32 %v8333, %v8479
      %v8592 = vadd.f32 %v8334, %v8484
      %v8593 = vadd.f32 %v8335, %v8487
      %v8594 = vadd.f32 %v8336, %v8492
      %v8595 = vadd.f32 %v8337, %v8495
      %v8596 = vadd.f32 %v8338, %v8500
      %v8597 = vadd.f32 %v8339, %v8503
      %v8598 = vadd.f32 %v8340, %v8508
      %v8599 = vadd.f32 %v8341, %v8511
      %v8600 = vadd.f32 %v8342, %v8516
      %v8601 = vadd.f32 %v8343, %v8519
      %v8602 = vadd.f32 %v8344, %v8524
      %v8603 = vadd.f32 %v8345, %v8527
      %v8604 = vadd.f32 %v8346, %v8532
      %v8605 = vadd.f32 %v8347, %v8535
      %v8606 = vadd.f32 %v8348, %v8540
      %v8607 = vadd.f32 %v8349, %v8543
      %v8608 = vadd.f32 %v8350, %v8548
      %v8609 = vadd.f32 %v8351, %v8551
      %v8610 = vadd.f32 %v8352, %v8556
      %v8611 = vadd.f32 %v8353, %v8559
      %v8612 = vadd.f32 %v8354, %v8564
      %v8613 = vadd.f32 %v8355, %v8567
      %v8614 = vadd.f32 %v8356, %v8572
      %v8615 = vadd.f32 %v8357, %v8575
      %v8616 = vadd.f32 %v8358, %v8580
      %v8617 = vadd.f32 %v8359, %v8583
      %v8618 = vld [vmem:[%s7861 + $0x8] sm:$0xff]
      %v8619 = vld [vmem:[%s7861 + $0x10] sm:$0x1]
      %v8620 = vld [vmem:[%s7861 + $0x20] sm:$0xff]
      %v8621 = vld [vmem:[%s7861 + $0x28] sm:$0x1]
      %v8622 = vld [vmem:[%s7861 + $0x38] sm:$0xff]
      %v8623 = vld [vmem:[%s7861 + $0x40] sm:$0x1]
      %v8624 = vld [vmem:[%s7861 + $0x50] sm:$0xff]
      %v8625 = vld [vmem:[%s7861 + $0x58] sm:$0x1]
      %v8626 = vld [vmem:[%s7861 + $0x68] sm:$0xff]
      %v8627 = vld [vmem:[%s7861 + $0x70] sm:$0x1]
      %v8628 = vld [vmem:[%s7861 + $0x80] sm:$0xff]
      %v8629 = vld [vmem:[%s7861 + $0x88] sm:$0x1]
      %v8630 = vld [vmem:[%s7861 + $0x98] sm:$0xff]
      %v8631 = vld [vmem:[%s7861 + $0xa0] sm:$0x1]
      %v8632 = vld [vmem:[%s7861 + $0xb0] sm:$0xff]
      %v8633 = vld [vmem:[%s7861 + $0xb8] sm:$0x1]
      %v8634 = vld [vmem:[%s7861 + $0xc8] sm:$0xff]
      %v8635 = vld [vmem:[%s7861 + $0xd0] sm:$0x1]
      %v8636 = vld [vmem:[%s7861 + $0xe0] sm:$0xff]
      %v8637 = vld [vmem:[%s7861 + $0xe8] sm:$0x1]
      %v8638 = vld [vmem:[%s7861 + $0xf8] sm:$0xff]
      %v8639 = vld [vmem:[%s7861 + $0x100] sm:$0x1]
      %v8640 = vld [vmem:[%s7861 + $0x110] sm:$0xff]
      %v8641 = vld [vmem:[%s7861 + $0x118] sm:$0x1]
      %v8642 = vld [vmem:[%s7861 + $0x128] sm:$0xff]
      %v8643 = vld [vmem:[%s7861 + $0x130] sm:$0x1]
      %v8644 = vld [vmem:[%s7861 + $0x140] sm:$0xff]
      %v8645 = vld [vmem:[%s7861 + $0x148] sm:$0x1]
      %v8646 = vld [vmem:[%s7861 + $0x158] sm:$0xff]
      %v8647 = vld [vmem:[%s7861 + $0x160] sm:$0x1]
      %v8648 = vld [vmem:[%s7861 + $0x170] sm:$0xff]
      %v8649 = vld [vmem:[%s7861 + $0x178] sm:$0x1]
      %s8650 = scalar_lea.vmem %s4, 512
      %v8651 = vld [vmem:[%s8650] sm:$0xf]
      %v8652 = vld [vmem:[%s8650 + $0x4] sm:$0xf]
      %v8653 = vld [vmem:[%s8650 + $0x8] sm:$0xf]
      %v8654 = vld [vmem:[%s8650 + $0xc] sm:$0xf]
      %v8655 = vld [vmem:[%s8650 + $0x10] sm:$0xf]
      %v8656 = vld [vmem:[%s8650 + $0x14] sm:$0xf]
      %v8657 = vld [vmem:[%s8650 + $0x18] sm:$0xf]
      %v8658 = vld [vmem:[%s8650 + $0x1c] sm:$0xf]
      %v8659 = vld [vmem:[%s8650 + $0x20] sm:$0xf]
      %v8660 = vld [vmem:[%s8650 + $0x24] sm:$0xf]
      %v8661 = vld [vmem:[%s8650 + $0x28] sm:$0xf]
      %v8662 = vld [vmem:[%s8650 + $0x2c] sm:$0xf]
      %v8663 = vld [vmem:[%s8650 + $0x30] sm:$0xf]
      %v8664 = vld [vmem:[%s8650 + $0x34] sm:$0xf]
      %v8665 = vld [vmem:[%s8650 + $0x38] sm:$0xf]
      %v8666 = vld [vmem:[%s8650 + $0x3c] sm:$0xf]
      %v8668 = vshrl.u32 %v8618, 16
      %v8670 = vshll.u32 %v8618, 16
      %v8672 = vrot.slane %v8670, 1
      %v8673 = vor.u32 %v8668, %v8672
      %v8675 = vshll.u32 %v8619, 16
      %v8677 = vrot.slane %v8675, 1
      %v8678 = vsel %vm6157, %v8673, %v8677
      %v8680 = vshrl.u32 %v8620, 16
      %v8682 = vshll.u32 %v8620, 16
      %v8684 = vrot.slane %v8682, 1
      %v8685 = vor.u32 %v8680, %v8684
      %v8687 = vshll.u32 %v8621, 16
      %v8689 = vrot.slane %v8687, 1
      %v8690 = vsel %vm6157, %v8685, %v8689
      %v8692 = vshrl.u32 %v8622, 16
      %v8694 = vshll.u32 %v8622, 16
      %v8696 = vrot.slane %v8694, 1
      %v8697 = vor.u32 %v8692, %v8696
      %v8699 = vshll.u32 %v8623, 16
      %v8701 = vrot.slane %v8699, 1
      %v8702 = vsel %vm6157, %v8697, %v8701
      %v8704 = vshrl.u32 %v8624, 16
      %v8706 = vshll.u32 %v8624, 16
      %v8708 = vrot.slane %v8706, 1
      %v8709 = vor.u32 %v8704, %v8708
      %v8711 = vshll.u32 %v8625, 16
      %v8713 = vrot.slane %v8711, 1
      %v8714 = vsel %vm6157, %v8709, %v8713
      %v8716 = vshrl.u32 %v8626, 16
      %v8718 = vshll.u32 %v8626, 16
      %v8720 = vrot.slane %v8718, 1
      %v8721 = vor.u32 %v8716, %v8720
      %v8723 = vshll.u32 %v8627, 16
      %v8725 = vrot.slane %v8723, 1
      %v8726 = vsel %vm6157, %v8721, %v8725
      %v8728 = vshrl.u32 %v8628, 16
      %v8730 = vshll.u32 %v8628, 16
      %v8732 = vrot.slane %v8730, 1
      %v8733 = vor.u32 %v8728, %v8732
      %v8735 = vshll.u32 %v8629, 16
      %v8737 = vrot.slane %v8735, 1
      %v8738 = vsel %vm6157, %v8733, %v8737
      %v8740 = vshrl.u32 %v8630, 16
      %v8742 = vshll.u32 %v8630, 16
      %v8744 = vrot.slane %v8742, 1
      %v8745 = vor.u32 %v8740, %v8744
      %v8747 = vshll.u32 %v8631, 16
      %v8749 = vrot.slane %v8747, 1
      %v8750 = vsel %vm6157, %v8745, %v8749
      %v8752 = vshrl.u32 %v8632, 16
      %v8754 = vshll.u32 %v8632, 16
      %v8756 = vrot.slane %v8754, 1
      %v8757 = vor.u32 %v8752, %v8756
      %v8759 = vshll.u32 %v8633, 16
      %v8761 = vrot.slane %v8759, 1
      %v8762 = vsel %vm6157, %v8757, %v8761
      %v8764 = vshrl.u32 %v8634, 16
      %v8766 = vshll.u32 %v8634, 16
      %v8768 = vrot.slane %v8766, 1
      %v8769 = vor.u32 %v8764, %v8768
      %v8771 = vshll.u32 %v8635, 16
      %v8773 = vrot.slane %v8771, 1
      %v8774 = vsel %vm6157, %v8769, %v8773
      %v8776 = vshrl.u32 %v8636, 16
      %v8778 = vshll.u32 %v8636, 16
      %v8780 = vrot.slane %v8778, 1
      %v8781 = vor.u32 %v8776, %v8780
      %v8783 = vshll.u32 %v8637, 16
      %v8785 = vrot.slane %v8783, 1
      %v8786 = vsel %vm6157, %v8781, %v8785
      %v8788 = vshrl.u32 %v8638, 16
      %v8790 = vshll.u32 %v8638, 16
      %v8792 = vrot.slane %v8790, 1
      %v8793 = vor.u32 %v8788, %v8792
      %v8795 = vshll.u32 %v8639, 16
      %v8797 = vrot.slane %v8795, 1
      %v8798 = vsel %vm6157, %v8793, %v8797
      %v8800 = vshrl.u32 %v8640, 16
      %v8802 = vshll.u32 %v8640, 16
      %v8804 = vrot.slane %v8802, 1
      %v8805 = vor.u32 %v8800, %v8804
      %v8807 = vshll.u32 %v8641, 16
      %v8809 = vrot.slane %v8807, 1
      %v8810 = vsel %vm6157, %v8805, %v8809
      %v8812 = vshrl.u32 %v8642, 16
      %v8814 = vshll.u32 %v8642, 16
      %v8816 = vrot.slane %v8814, 1
      %v8817 = vor.u32 %v8812, %v8816
      %v8819 = vshll.u32 %v8643, 16
      %v8821 = vrot.slane %v8819, 1
      %v8822 = vsel %vm6157, %v8817, %v8821
      %v8824 = vshrl.u32 %v8644, 16
      %v8826 = vshll.u32 %v8644, 16
      %v8828 = vrot.slane %v8826, 1
      %v8829 = vor.u32 %v8824, %v8828
      %v8831 = vshll.u32 %v8645, 16
      %v8833 = vrot.slane %v8831, 1
      %v8834 = vsel %vm6157, %v8829, %v8833
      %v8836 = vshrl.u32 %v8646, 16
      %v8838 = vshll.u32 %v8646, 16
      %v8840 = vrot.slane %v8838, 1
      %v8841 = vor.u32 %v8836, %v8840
      %v8843 = vshll.u32 %v8647, 16
      %v8845 = vrot.slane %v8843, 1
      %v8846 = vsel %vm6157, %v8841, %v8845
      %v8848 = vshrl.u32 %v8648, 16
      %v8850 = vshll.u32 %v8648, 16
      %v8852 = vrot.slane %v8850, 1
      %v8853 = vor.u32 %v8848, %v8852
      %v8855 = vshll.u32 %v8649, 16
      %v8857 = vrot.slane %v8855, 1
      %v8858 = vsel %vm6157, %v8853, %v8857
      %v8891 = vunpack.c.l.b16 %v8651
      %v8892 = vunpack.c.l.b16 %v8652
      %v8893 = vunpack.c.l.b16 %v8653
      %v8894 = vunpack.c.l.b16 %v8654
      %v8895 = vunpack.c.l.b16 %v8655
      %v8896 = vunpack.c.l.b16 %v8656
      %v8897 = vunpack.c.l.b16 %v8657
      %v8898 = vunpack.c.l.b16 %v8658
      %v8899 = vunpack.c.l.b16 %v8659
      %v8900 = vunpack.c.l.b16 %v8660
      %v8901 = vunpack.c.l.b16 %v8661
      %v8902 = vunpack.c.l.b16 %v8662
      %v8903 = vunpack.c.l.b16 %v8663
      %v8904 = vunpack.c.l.b16 %v8664
      %v8905 = vunpack.c.l.b16 %v8665
      %v8906 = vunpack.c.l.b16 %v8666
      %v8907 = vpack.c.b16 %v8892, %v8891
      %v8908 = vpack.c.b16 %v8894, %v8893
      %v8909 = vpack.c.b16 %v8896, %v8895
      %v8910 = vpack.c.b16 %v8898, %v8897
      %v8911 = vpack.c.b16 %v8900, %v8899
      %v8912 = vpack.c.b16 %v8902, %v8901
      %v8913 = vpack.c.b16 %v8904, %v8903
      %v8914 = vpack.c.b16 %v8906, %v8905
      %8923 = vmatprep.subr.bf16.mxu0 0
      %8924 = vmatpush1.bf16.msra.mxu0 %v8907
      %8925 = vmatprep.subr.bf16.mxu0 0
      %8926 = vmatpush1.bf16.msra.mxu0 %v8908
      %8927 = vmatprep.subr.bf16.mxu0 0
      %8928 = vmatpush1.bf16.msra.mxu0 %v8909
      %8929 = vmatprep.subr.bf16.mxu0 0
      %8930 = vmatpush1.bf16.msra.mxu0 %v8910
      %8931 = vmatprep.subr.bf16.mxu0 0
      %8932 = vmatpush1.bf16.msra.mxu0 %v8911
      %8933 = vmatprep.subr.bf16.mxu0 0
      %8934 = vmatpush1.bf16.msra.mxu0 %v8912
      %8935 = vmatprep.subr.bf16.mxu0 0
      %8936 = vmatpush1.bf16.msra.mxu0 %v8913
      %8937 = vmatprep.subr.bf16.mxu0 0
      %8938 = vmatpush1.bf16.msra.mxu0 %v8914
      %8939 = vmatprep.subr.bf16.mxu0 0
      %8940 = vmatpush1.bf16.msra.mxu0 0
      %8941 = vmatprep.subr.bf16.mxu0 0
      %8942 = vmatpush1.bf16.msra.mxu0 0
      %8943 = vmatprep.subr.bf16.mxu0 0
      %8944 = vmatpush1.bf16.msra.mxu0 0
      %8945 = vmatprep.subr.bf16.mxu0 0
      %8946 = vmatpush1.bf16.msra.mxu0 0
      %8947 = vmatprep.subr.bf16.mxu0 0
      %8948 = vmatpush1.bf16.msra.mxu0 0
      %8949 = vmatprep.subr.bf16.mxu0 0
      %8950 = vmatpush1.bf16.msra.mxu0 0
      %8951 = vmatprep.subr.bf16.mxu0 0
      %8952 = vmatpush1.bf16.msra.mxu0 0
      %8953 = vmatprep.subr.bf16.mxu0 0
      %8954 = vmatpush1.bf16.msra.mxu0 0
      %8955 = vmatprep.mubr.bf16.mxu0 0
      %8956 = vmatmul.mubr.bf16.gmra.mrb[0].mxu0 %v8678
      %v8957 = vpop.f32.mrb[0].mxu0
      %v8958 = vadd.f32 0.0, %v8957
      %v8959 = vpop.f32.mrb[0].mxu0
      %v8960 = vpop.f32.mrb[0].mxu0
      %v8961 = vadd.f32 0.0, %v8960
      %v8962 = vpop.f32.mrb[0].mxu0
      %8963 = vmatprep.mubr.bf16.mxu0 0
      %8964 = vmatmul.mubr.bf16.gmra.mrb[0].mxu0 %v8690
      %v8965 = vpop.f32.mrb[0].mxu0
      %v8966 = vadd.f32 0.0, %v8965
      %v8967 = vpop.f32.mrb[0].mxu0
      %v8968 = vpop.f32.mrb[0].mxu0
      %v8969 = vadd.f32 0.0, %v8968
      %v8970 = vpop.f32.mrb[0].mxu0
      %8971 = vmatprep.mubr.bf16.mxu0 0
      %8972 = vmatmul.mubr.bf16.gmra.mrb[0].mxu0 %v8702
      %v8973 = vpop.f32.mrb[0].mxu0
      %v8974 = vadd.f32 0.0, %v8973
      %v8975 = vpop.f32.mrb[0].mxu0
      %v8976 = vpop.f32.mrb[0].mxu0
      %v8977 = vadd.f32 0.0, %v8976
      %v8978 = vpop.f32.mrb[0].mxu0
      %8979 = vmatprep.mubr.bf16.mxu0 0
      %8980 = vmatmul.mubr.bf16.gmra.mrb[0].mxu0 %v8714
      %v8981 = vpop.f32.mrb[0].mxu0
      %v8982 = vadd.f32 0.0, %v8981
      %v8983 = vpop.f32.mrb[0].mxu0
      %v8984 = vpop.f32.mrb[0].mxu0
      %v8985 = vadd.f32 0.0, %v8984
      %v8986 = vpop.f32.mrb[0].mxu0
      %8987 = vmatprep.mubr.bf16.mxu0 0
      %8988 = vmatmul.mubr.bf16.gmra.mrb[0].mxu0 %v8726
      %v8989 = vpop.f32.mrb[0].mxu0
      %v8990 = vadd.f32 0.0, %v8989
      %v8991 = vpop.f32.mrb[0].mxu0
      %v8992 = vpop.f32.mrb[0].mxu0
      %v8993 = vadd.f32 0.0, %v8992
      %v8994 = vpop.f32.mrb[0].mxu0
      %8995 = vmatprep.mubr.bf16.mxu0 0
      %8996 = vmatmul.mubr.bf16.gmra.mrb[0].mxu0 %v8738
      %v8997 = vpop.f32.mrb[0].mxu0
      %v8998 = vadd.f32 0.0, %v8997
      %v8999 = vpop.f32.mrb[0].mxu0
      %v9000 = vpop.f32.mrb[0].mxu0
      %v9001 = vadd.f32 0.0, %v9000
      %v9002 = vpop.f32.mrb[0].mxu0
      %9003 = vmatprep.mubr.bf16.mxu0 0
      %9004 = vmatmul.mubr.bf16.gmra.mrb[0].mxu0 %v8750
      %v9005 = vpop.f32.mrb[0].mxu0
      %v9006 = vadd.f32 0.0, %v9005
      %v9007 = vpop.f32.mrb[0].mxu0
      %v9008 = vpop.f32.mrb[0].mxu0
      %v9009 = vadd.f32 0.0, %v9008
      %v9010 = vpop.f32.mrb[0].mxu0
      %9011 = vmatprep.mubr.bf16.mxu0 0
      %9012 = vmatmul.mubr.bf16.gmra.mrb[0].mxu0 %v8762
      %v9013 = vpop.f32.mrb[0].mxu0
      %v9014 = vadd.f32 0.0, %v9013
      %v9015 = vpop.f32.mrb[0].mxu0
      %v9016 = vpop.f32.mrb[0].mxu0
      %v9017 = vadd.f32 0.0, %v9016
      %v9018 = vpop.f32.mrb[0].mxu0
      %9019 = vmatprep.mubr.bf16.mxu0 0
      %9020 = vmatmul.mubr.bf16.gmra.mrb[0].mxu0 %v8774
      %v9021 = vpop.f32.mrb[0].mxu0
      %v9022 = vadd.f32 0.0, %v9021
      %v9023 = vpop.f32.mrb[0].mxu0
      %v9024 = vpop.f32.mrb[0].mxu0
      %v9025 = vadd.f32 0.0, %v9024
      %v9026 = vpop.f32.mrb[0].mxu0
      %9027 = vmatprep.mubr.bf16.mxu0 0
      %9028 = vmatmul.mubr.bf16.gmra.mrb[0].mxu0 %v8786
      %v9029 = vpop.f32.mrb[0].mxu0
      %v9030 = vadd.f32 0.0, %v9029
      %v9031 = vpop.f32.mrb[0].mxu0
      %v9032 = vpop.f32.mrb[0].mxu0
      %v9033 = vadd.f32 0.0, %v9032
      %v9034 = vpop.f32.mrb[0].mxu0
      %9035 = vmatprep.mubr.bf16.mxu0 0
      %9036 = vmatmul.mubr.bf16.gmra.mrb[0].mxu0 %v8798
      %v9037 = vpop.f32.mrb[0].mxu0
      %v9038 = vadd.f32 0.0, %v9037
      %v9039 = vpop.f32.mrb[0].mxu0
      %v9040 = vpop.f32.mrb[0].mxu0
      %v9041 = vadd.f32 0.0, %v9040
      %v9042 = vpop.f32.mrb[0].mxu0
      %9043 = vmatprep.mubr.bf16.mxu0 0
      %9044 = vmatmul.mubr.bf16.gmra.mrb[0].mxu0 %v8810
      %v9045 = vpop.f32.mrb[0].mxu0
      %v9046 = vadd.f32 0.0, %v9045
      %v9047 = vpop.f32.mrb[0].mxu0
      %v9048 = vpop.f32.mrb[0].mxu0
      %v9049 = vadd.f32 0.0, %v9048
      %v9050 = vpop.f32.mrb[0].mxu0
      %9051 = vmatprep.mubr.bf16.mxu0 0
      %9052 = vmatmul.mubr.bf16.gmra.mrb[0].mxu0 %v8822
      %v9053 = vpop.f32.mrb[0].mxu0
      %v9054 = vadd.f32 0.0, %v9053
      %v9055 = vpop.f32.mrb[0].mxu0
      %v9056 = vpop.f32.mrb[0].mxu0
      %v9057 = vadd.f32 0.0, %v9056
      %v9058 = vpop.f32.mrb[0].mxu0
      %9059 = vmatprep.mubr.bf16.mxu0 0
      %9060 = vmatmul.mubr.bf16.gmra.mrb[0].mxu0 %v8834
      %v9061 = vpop.f32.mrb[0].mxu0
      %v9062 = vadd.f32 0.0, %v9061
      %v9063 = vpop.f32.mrb[0].mxu0
      %v9064 = vpop.f32.mrb[0].mxu0
      %v9065 = vadd.f32 0.0, %v9064
      %v9066 = vpop.f32.mrb[0].mxu0
      %9067 = vmatprep.mubr.bf16.mxu0 0
      %9068 = vmatmul.mubr.bf16.gmra.mrb[0].mxu0 %v8846
      %v9069 = vpop.f32.mrb[0].mxu0
      %v9070 = vadd.f32 0.0, %v9069
      %v9071 = vpop.f32.mrb[0].mxu0
      %v9072 = vpop.f32.mrb[0].mxu0
      %v9073 = vadd.f32 0.0, %v9072
      %v9074 = vpop.f32.mrb[0].mxu0
      %9075 = vmatprep.mubr.bf16.mxu0 0
      %9076 = vmatmul.mubr.bf16.gmra.mrb[0].mxu0 %v8858
      %v9077 = vpop.f32.mrb[0].mxu0
      %v9078 = vadd.f32 0.0, %v9077
      %v9079 = vpop.f32.mrb[0].mxu0
      %v9080 = vpop.f32.mrb[0].mxu0
      %v9081 = vadd.f32 0.0, %v9080
      %v9082 = vpop.f32.mrb[0].mxu0
      %9083 = vdwg.mxu0
      %v9084 = vadd.f32 %v8586, %v8958
      %v9085 = vadd.f32 %v8587, %v8961
      %v9086 = vadd.f32 %v8588, %v8966
      %v9087 = vadd.f32 %v8589, %v8969
      %v9088 = vadd.f32 %v8590, %v8974
      %v9089 = vadd.f32 %v8591, %v8977
      %v9090 = vadd.f32 %v8592, %v8982
      %v9091 = vadd.f32 %v8593, %v8985
      %v9092 = vadd.f32 %v8594, %v8990
      %v9093 = vadd.f32 %v8595, %v8993
      %v9094 = vadd.f32 %v8596, %v8998
      %v9095 = vadd.f32 %v8597, %v9001
      %v9096 = vadd.f32 %v8598, %v9006
      %v9097 = vadd.f32 %v8599, %v9009
      %v9098 = vadd.f32 %v8600, %v9014
      %v9099 = vadd.f32 %v8601, %v9017
      %v9100 = vadd.f32 %v8602, %v9022
      %v9101 = vadd.f32 %v8603, %v9025
      %v9102 = vadd.f32 %v8604, %v9030
      %v9103 = vadd.f32 %v8605, %v9033
      %v9104 = vadd.f32 %v8606, %v9038
      %v9105 = vadd.f32 %v8607, %v9041
      %v9106 = vadd.f32 %v8608, %v9046
      %v9107 = vadd.f32 %v8609, %v9049
      %v9108 = vadd.f32 %v8610, %v9054
      %v9109 = vadd.f32 %v8611, %v9057
      %v9110 = vadd.f32 %v8612, %v9062
      %v9111 = vadd.f32 %v8613, %v9065
      %v9112 = vadd.f32 %v8614, %v9070
      %v9113 = vadd.f32 %v8615, %v9073
      %v9114 = vadd.f32 %v8616, %v9078
      %v9115 = vadd.f32 %v8617, %v9081
      %v9116 = vld [vmem:[%s5] sm:$0x1]
      %v9118 = vlaneseq
      %v9119 = vshrl.u32 %v9118, 7
      %v9120 = vsub.s32 0, %v9119
      %v9121 = vrot.slane %v9116, %v9120
      %v9123 = vmul.f32 %v9084, %v9121
      %v9124 = vmul.f32 %v9085, %v9121
      %v9125 = vmul.f32 %v9086, %v9121
      %v9126 = vmul.f32 %v9087, %v9121
      %v9127 = vmul.f32 %v9088, %v9121
      %v9128 = vmul.f32 %v9089, %v9121
      %v9129 = vmul.f32 %v9090, %v9121
      %v9130 = vmul.f32 %v9091, %v9121
      %v9131 = vmul.f32 %v9092, %v9121
      %v9132 = vmul.f32 %v9093, %v9121
      %v9133 = vmul.f32 %v9094, %v9121
      %v9134 = vmul.f32 %v9095, %v9121
      %v9135 = vmul.f32 %v9096, %v9121
      %v9136 = vmul.f32 %v9097, %v9121
      %v9137 = vmul.f32 %v9098, %v9121
      %v9138 = vmul.f32 %v9099, %v9121
      %v9139 = vmul.f32 %v9100, %v9121
      %v9140 = vmul.f32 %v9101, %v9121
      %v9141 = vmul.f32 %v9102, %v9121
      %v9142 = vmul.f32 %v9103, %v9121
      %v9143 = vmul.f32 %v9104, %v9121
      %v9144 = vmul.f32 %v9105, %v9121
      %v9145 = vmul.f32 %v9106, %v9121
      %v9146 = vmul.f32 %v9107, %v9121
      %v9147 = vmul.f32 %v9108, %v9121
      %v9148 = vmul.f32 %v9109, %v9121
      %v9149 = vmul.f32 %v9110, %v9121
      %v9150 = vmul.f32 %v9111, %v9121
      %v9151 = vmul.f32 %v9112, %v9121
      %v9152 = vmul.f32 %v9113, %v9121
      %v9153 = vmul.f32 %v9114, %v9121
      %v9154 = vmul.f32 %v9115, %v9121
      %v9155 = vld [vmem:[%s6] sm:$0x1]
      %v9157 = vlaneseq
      %v9158 = vshrl.u32 %v9157, 7
      %v9159 = vsub.s32 0, %v9158
      %v9160 = vrot.slane %v9155, %v9159
      %v9162 = vadd.f32 %v9123, %v9160
      %v9163 = vadd.f32 %v9124, %v9160
      %v9164 = vadd.f32 %v9125, %v9160
      %v9165 = vadd.f32 %v9126, %v9160
      %v9166 = vadd.f32 %v9127, %v9160
      %v9167 = vadd.f32 %v9128, %v9160
      %v9168 = vadd.f32 %v9129, %v9160
      %v9169 = vadd.f32 %v9130, %v9160
      %v9170 = vadd.f32 %v9131, %v9160
      %v9171 = vadd.f32 %v9132, %v9160
      %v9172 = vadd.f32 %v9133, %v9160
      %v9173 = vadd.f32 %v9134, %v9160
      %v9174 = vadd.f32 %v9135, %v9160
      %v9175 = vadd.f32 %v9136, %v9160
      %v9176 = vadd.f32 %v9137, %v9160
      %v9177 = vadd.f32 %v9138, %v9160
      %v9178 = vadd.f32 %v9139, %v9160
      %v9179 = vadd.f32 %v9140, %v9160
      %v9180 = vadd.f32 %v9141, %v9160
      %v9181 = vadd.f32 %v9142, %v9160
      %v9182 = vadd.f32 %v9143, %v9160
      %v9183 = vadd.f32 %v9144, %v9160
      %v9184 = vadd.f32 %v9145, %v9160
      %v9185 = vadd.f32 %v9146, %v9160
      %v9186 = vadd.f32 %v9147, %v9160
      %v9187 = vadd.f32 %v9148, %v9160
      %v9188 = vadd.f32 %v9149, %v9160
      %v9189 = vadd.f32 %v9150, %v9160
      %v9190 = vadd.f32 %v9151, %v9160
      %v9191 = vadd.f32 %v9152, %v9160
      %v9192 = vadd.f32 %v9153, %v9160
      %v9193 = vadd.f32 %v9154, %v9160
      %vm9194 = vcmp.gt.f32.partialorder %v9162, 0.0
      %vm9195 = vcmp.gt.f32.partialorder %v9163, 0.0
      %vm9196 = vcmp.gt.f32.partialorder %v9164, 0.0
      %vm9197 = vcmp.gt.f32.partialorder %v9165, 0.0
      %vm9198 = vcmp.gt.f32.partialorder %v9166, 0.0
      %vm9199 = vcmp.gt.f32.partialorder %v9167, 0.0
      %vm9200 = vcmp.gt.f32.partialorder %v9168, 0.0
      %vm9201 = vcmp.gt.f32.partialorder %v9169, 0.0
      %vm9202 = vcmp.gt.f32.partialorder %v9170, 0.0
      %vm9203 = vcmp.gt.f32.partialorder %v9171, 0.0
      %vm9204 = vcmp.gt.f32.partialorder %v9172, 0.0
      %vm9205 = vcmp.gt.f32.partialorder %v9173, 0.0
      %vm9206 = vcmp.gt.f32.partialorder %v9174, 0.0
      %vm9207 = vcmp.gt.f32.partialorder %v9175, 0.0
      %vm9208 = vcmp.gt.f32.partialorder %v9176, 0.0
      %vm9209 = vcmp.gt.f32.partialorder %v9177, 0.0
      %vm9210 = vcmp.gt.f32.partialorder %v9178, 0.0
      %vm9211 = vcmp.gt.f32.partialorder %v9179, 0.0
      %vm9212 = vcmp.gt.f32.partialorder %v9180, 0.0
      %vm9213 = vcmp.gt.f32.partialorder %v9181, 0.0
      %vm9214 = vcmp.gt.f32.partialorder %v9182, 0.0
      %vm9215 = vcmp.gt.f32.partialorder %v9183, 0.0
      %vm9216 = vcmp.gt.f32.partialorder %v9184, 0.0
      %vm9217 = vcmp.gt.f32.partialorder %v9185, 0.0
      %vm9218 = vcmp.gt.f32.partialorder %v9186, 0.0
      %vm9219 = vcmp.gt.f32.partialorder %v9187, 0.0
      %vm9220 = vcmp.gt.f32.partialorder %v9188, 0.0
      %vm9221 = vcmp.gt.f32.partialorder %v9189, 0.0
      %vm9222 = vcmp.gt.f32.partialorder %v9190, 0.0
      %vm9223 = vcmp.gt.f32.partialorder %v9191, 0.0
      %vm9224 = vcmp.gt.f32.partialorder %v9192, 0.0
      %vm9225 = vcmp.gt.f32.partialorder %v9193, 0.0
      %v9226 = vmul.f32 %v9162, 0.01
      %v9227 = vmul.f32 %v9163, 0.01
      %v9228 = vmul.f32 %v9164, 0.01
      %v9229 = vmul.f32 %v9165, 0.01
      %v9230 = vmul.f32 %v9166, 0.01
      %v9231 = vmul.f32 %v9167, 0.01
      %v9232 = vmul.f32 %v9168, 0.01
      %v9233 = vmul.f32 %v9169, 0.01
      %v9234 = vmul.f32 %v9170, 0.01
      %v9235 = vmul.f32 %v9171, 0.01
      %v9236 = vmul.f32 %v9172, 0.01
      %v9237 = vmul.f32 %v9173, 0.01
      %v9238 = vmul.f32 %v9174, 0.01
      %v9239 = vmul.f32 %v9175, 0.01
      %v9240 = vmul.f32 %v9176, 0.01
      %v9241 = vmul.f32 %v9177, 0.01
      %v9242 = vmul.f32 %v9178, 0.01
      %v9243 = vmul.f32 %v9179, 0.01
      %v9244 = vmul.f32 %v9180, 0.01
      %v9245 = vmul.f32 %v9181, 0.01
      %v9246 = vmul.f32 %v9182, 0.01
      %v9247 = vmul.f32 %v9183, 0.01
      %v9248 = vmul.f32 %v9184, 0.01
      %v9249 = vmul.f32 %v9185, 0.01
      %v9250 = vmul.f32 %v9186, 0.01
      %v9251 = vmul.f32 %v9187, 0.01
      %v9252 = vmul.f32 %v9188, 0.01
      %v9253 = vmul.f32 %v9189, 0.01
      %v9254 = vmul.f32 %v9190, 0.01
      %v9255 = vmul.f32 %v9191, 0.01
      %v9256 = vmul.f32 %v9192, 0.01
      %v9257 = vmul.f32 %v9193, 0.01
      %v9258 = vsel %vm9194, %v9162, %v9226
      %v9259 = vsel %vm9195, %v9163, %v9227
      %v9260 = vsel %vm9196, %v9164, %v9228
      %v9261 = vsel %vm9197, %v9165, %v9229
      %v9262 = vsel %vm9198, %v9166, %v9230
      %v9263 = vsel %vm9199, %v9167, %v9231
      %v9264 = vsel %vm9200, %v9168, %v9232
      %v9265 = vsel %vm9201, %v9169, %v9233
      %v9266 = vsel %vm9202, %v9170, %v9234
      %v9267 = vsel %vm9203, %v9171, %v9235
      %v9268 = vsel %vm9204, %v9172, %v9236
      %v9269 = vsel %vm9205, %v9173, %v9237
      %v9270 = vsel %vm9206, %v9174, %v9238
      %v9271 = vsel %vm9207, %v9175, %v9239
      %v9272 = vsel %vm9208, %v9176, %v9240
      %v9273 = vsel %vm9209, %v9177, %v9241
      %v9274 = vsel %vm9210, %v9178, %v9242
      %v9275 = vsel %vm9211, %v9179, %v9243
      %v9276 = vsel %vm9212, %v9180, %v9244
      %v9277 = vsel %vm9213, %v9181, %v9245
      %v9278 = vsel %vm9214, %v9182, %v9246
      %v9279 = vsel %vm9215, %v9183, %v9247
      %v9280 = vsel %vm9216, %v9184, %v9248
      %v9281 = vsel %vm9217, %v9185, %v9249
      %v9282 = vsel %vm9218, %v9186, %v9250
      %v9283 = vsel %vm9219, %v9187, %v9251
      %v9284 = vsel %vm9220, %v9188, %v9252
      %v9285 = vsel %vm9221, %v9189, %v9253
      %v9286 = vsel %vm9222, %v9190, %v9254
      %v9287 = vsel %vm9223, %v9191, %v9255
      %v9288 = vsel %vm9224, %v9192, %v9256
      %v9289 = vsel %vm9225, %v9193, %v9257
      %9290 = vst [vmem:[%s278] sm:$0xff] %v9258
      %9291 = vst [vmem:[%s278 + $0x8] sm:$0xff] %v9259
      %9292 = vst [vmem:[%s278 + $0x10] sm:$0xff] %v9260
      %9293 = vst [vmem:[%s278 + $0x18] sm:$0xff] %v9261
      %9294 = vst [vmem:[%s278 + $0x20] sm:$0xff] %v9262
      %9295 = vst [vmem:[%s278 + $0x28] sm:$0xff] %v9263
      %9296 = vst [vmem:[%s278 + $0x30] sm:$0xff] %v9264
      %9297 = vst [vmem:[%s278 + $0x38] sm:$0xff] %v9265
      %9298 = vst [vmem:[%s278 + $0x40] sm:$0xff] %v9266
      %9299 = vst [vmem:[%s278 + $0x48] sm:$0xff] %v9267
      %9300 = vst [vmem:[%s278 + $0x50] sm:$0xff] %v9268
      %9301 = vst [vmem:[%s278 + $0x58] sm:$0xff] %v9269
      %9302 = vst [vmem:[%s278 + $0x60] sm:$0xff] %v9270
      %9303 = vst [vmem:[%s278 + $0x68] sm:$0xff] %v9271
      %9304 = vst [vmem:[%s278 + $0x70] sm:$0xff] %v9272
      %9305 = vst [vmem:[%s278 + $0x78] sm:$0xff] %v9273
      %9306 = vst [vmem:[%s278 + $0x80] sm:$0xff] %v9274
      %9307 = vst [vmem:[%s278 + $0x88] sm:$0xff] %v9275
      %9308 = vst [vmem:[%s278 + $0x90] sm:$0xff] %v9276
      %9309 = vst [vmem:[%s278 + $0x98] sm:$0xff] %v9277
      %9310 = vst [vmem:[%s278 + $0xa0] sm:$0xff] %v9278
      %9311 = vst [vmem:[%s278 + $0xa8] sm:$0xff] %v9279
      %9312 = vst [vmem:[%s278 + $0xb0] sm:$0xff] %v9280
      %9313 = vst [vmem:[%s278 + $0xb8] sm:$0xff] %v9281
      %9314 = vst [vmem:[%s278 + $0xc0] sm:$0xff] %v9282
      %9315 = vst [vmem:[%s278 + $0xc8] sm:$0xff] %v9283
      %9316 = vst [vmem:[%s278 + $0xd0] sm:$0xff] %v9284
      %9317 = vst [vmem:[%s278 + $0xd8] sm:$0xff] %v9285
      %9318 = vst [vmem:[%s278 + $0xe0] sm:$0xff] %v9286
      %9319 = vst [vmem:[%s278 + $0xe8] sm:$0xff] %v9287
      %9320 = vst [vmem:[%s278 + $0xf0] sm:$0xff] %v9288
      %9321 = vst [vmem:[%s278 + $0xf8] sm:$0xff] %v9289
      %p9322 = scmp.lt.s32.totalorder %s18, 1
      %s9323 = scalar_select %p9322, %s18, 1
      %s9324 = smul.addr %s9323, 32
      %s9325 = smul.addr %s9324, 8
      %s9326 = scalar_lea.vmem %s7, %s9325
      // Predicated region
      $region49: #{double_conv.1} parent=47 // pred_check
        %p9327 = pneg %p188
      $region50: #{double_conv.1} parent=47 // pred_check_branch
        %9329 = sbr.rel (%p9327) target = $region52
      $region51: #{double_conv.1} parent=47 // pred_region
        _
      $region52: #{double_conv.1} parent=47 // pred_fallthru
        _
    $region48: #{double_conv.1} parent=5 // pred_fallthru
      _
    %p9330 = scmp.le.s32.totalorder 2, %s13
    // Predicated region
    $region53: #{double_conv.1} parent=5 // pred_check
      %p9331 = pneg %p9330
    $region54: #{double_conv.1} parent=5 // pred_check_branch
      %9333 = sbr.rel (%p9331) target = $region56
    $region55: #{double_conv.1} parent=5 // pred_region
      %s9334 = ssub.s32 %s13, 2
      // Predicated region
      $region57: #{double_conv.1} parent=55 // pred_check
        %p9335 = pneg %p194
      $region58: #{double_conv.1} parent=55 // pred_check_branch
        %9337 = sbr.rel (%p9335) target = $region60
      $region59: #{double_conv.1} parent=55 // pred_region
        %p9338 = scmp.lt.s32.totalorder %s19, 1
        %s9339 = scalar_select %p9338, %s19, 1
        %s9340 = smul.addr %s9339, 32
        %s9341 = smul.addr %s9340, 8
        %s9342 = scalar_lea.vmem %s7, %s9341
      $region60: #{double_conv.1} parent=55 // pred_fallthru
        _
    $region56: #{double_conv.1} parent=5 // pred_fallthru
      _
  $region6: #{double_conv.1} parent=0 // loop_footer
    %s17 = sadd.s32 1, %s13
  $region7: #{double_conv.1} parent=0 // loop_footer_branch
    %12 = sbr.rel target = $region3
  $region8: #{double_conv.1} parent=0 // loop_exit
    _

</llo_original>
